<compile_context>
chip_gen: v7x
topology: tpu7x:2x2x1
jax: 0.10.0
libtpu: 0.0.40
codegen_flags: <defaults>
</compile_context>

<pallas_src>
import functools

import jax
import jax.numpy as jnp
from jax.experimental import pallas as pl
from jax.experimental.pallas import tpu as pltpu

NHEAD = 4  # fixed by the module (nhead=4)


# ----------------------------- fused transformer encoder layer -----------------------------

@functools.lru_cache(maxsize=None)
def _make_encoder_kernel(S, B, D, H):
    """One TransformerEncoderLayer, fully fused. Sequence data is time-major flattened:
    row r of the (S*B, D) input corresponds to (time=r//B, sequence=r%B)."""
    hd = D // NHEAD
    scale = float(hd) ** -0.5
    H3 = 3 * H

    def ln(x, g, b):  # LayerNorm, eps=1e-5 (torch default)
        mu = jnp.mean(x, axis=-1, keepdims=True)
        d = x - mu
        var = jnp.mean(d * d, axis=-1, keepdims=True)
        return d * jax.lax.rsqrt(var + 1e-5) * g + b

    def bdot(a, w):  # bf16 MXU matmul, f32 accumulation (w is already bf16)
        return jnp.dot(a.astype(jnp.bfloat16), w, preferred_element_type=jnp.float32)

    def kernel(src_ref, bias_ref,
               g3_ref, b3_ref, wqkv_ref, bqkv_ref, wo_ref, bo_ref,
               g1_ref, b1_ref,
               wih_ref, bih_ref, whhf_ref, bhhf_ref, whhb_ref, bhhb_ref,
               wl2f_ref, wl2b_ref, bl2_ref, g2_ref, b2_ref,
               o_ref):
        x = src_ref[...]                                    # (S*B, D) f32

        # ---- norm3 + MultiheadAttention (all heads / sequences in one pass) ----
        xn = ln(x, g3_ref[...], b3_ref[...])
        qkv = bdot(xn, wqkv_ref[...]) + bqkv_ref[...]       # (S*B, 3D)
        q = qkv[:, :D] * scale
        k = qkv[:, D:2 * D]
        v = qkv[:, 2 * D:]
        bias = bias_ref[...]                                # 0 within a sequence, -1e30 across

        attn = jnp.zeros((S * B, D), jnp.float32)
        for h in range(NHEAD):                              # 4 heads, unrolled
            lo = h * hd
            qh = q[:, lo:lo + hd]
            kh = k[:, lo:lo + hd]
            vh = v[:, lo:lo + hd]
            s = jnp.dot(qh.astype(jnp.bfloat16), kh.T.astype(jnp.bfloat16),
                        preferred_element_type=jnp.float32) + bias
            s = s - jnp.max(s, axis=-1, keepdims=True)
            p = jnp.exp(s)
            p = p * pl.reciprocal(jnp.sum(p, axis=-1, keepdims=True), approx=True)
            ctx = jnp.dot(p.astype(jnp.bfloat16), vh.astype(jnp.bfloat16),
                          preferred_element_type=jnp.float32)           # (S*B, hd)
            attn = attn + bdot(ctx, wo_ref[h])              # accumulate per-head out-proj slice
        attn = attn + bo_ref[...]
        x1 = ln(x + attn, g1_ref[...], b1_ref[...])         # (S*B, D)

        # ---- bidirectional GRU (hidden H per direction), statically unrolled over time ----
        gx = bdot(x1, wih_ref[...]) + bih_ref[...]          # (S*B, 6H) -- fwd|bwd merged
        gx_f = gx[:, :H3]
        gx_b = gx[:, H3:]
        h_f = jnp.zeros((B, H), jnp.float32)
        h_b = jnp.zeros((B, H), jnp.float32)
        outs_f = [None] * S
        outs_b = [None] * S
        for t in range(S):
            tb = S - 1 - t
            gh_f = bdot(h_f, whhf_ref[...]) + bhhf_ref[...]             # (B, 3H)
            gh_b = bdot(h_b, whhb_ref[...]) + bhhb_ref[...]
            gxf = gx_f[t * B:(t + 1) * B, :]
            gxb = gx_b[tb * B:(tb + 1) * B, :]
            r_f = jax.nn.sigmoid(gxf[:, :H] + gh_f[:, :H])
            z_f = jax.nn.sigmoid(gxf[:, H:2 * H] + gh_f[:, H:2 * H])
            n_f = jnp.tanh(gxf[:, 2 * H:] + r_f * gh_f[:, 2 * H:])
            h_f = (1.0 - z_f) * n_f + z_f * h_f
            r_b = jax.nn.sigmoid(gxb[:, :H] + gh_b[:, :H])
            z_b = jax.nn.sigmoid(gxb[:, H:2 * H] + gh_b[:, H:2 * H])
            n_b = jnp.tanh(gxb[:, 2 * H:] + r_b * gh_b[:, 2 * H:])
            h_b = (1.0 - z_b) * n_b + z_b * h_b
            outs_f[t] = h_f
            outs_b[tb] = h_b
        gru_f = jnp.concatenate(outs_f, axis=0)             # (S*B, H), time-major blocks
        gru_b = jnp.concatenate(outs_b, axis=0)             # (S*B, H)

        # linear2(relu([fwd | bwd])) = relu(fwd) @ Wl2[:H] + relu(bwd) @ Wl2[H:]
        ff = (bdot(jnp.maximum(gru_f, 0.0), wl2f_ref[...])
              + bdot(jnp.maximum(gru_b, 0.0), wl2b_ref[...]) + bl2_ref[...])
        o_ref[...] = ln(x1 + ff, g2_ref[...], b2_ref[...])

    return kernel


def _attn_bias(S, B):
    """(S*B, S*B) additive mask: 0 for positions in the same sequence, -1e30 otherwise."""
    r = jnp.arange(S * B, dtype=jnp.int32) % B
    return jnp.where(r[:, None] == r[None, :], 0.0, -1e30).astype(jnp.float32)


def encoder_layer(src_flat, bias, p, S, B):
    """src_flat: (S*B, D) time-major flattened sequence batch."""
    D = src_flat.shape[1]
    H = 2 * D
    kern = _make_encoder_kernel(S, B, D, H)
    return pl.pallas_call(
        kern,
        out_shape=jax.ShapeDtypeStruct((S * B, D), jnp.float32),
    )(src_flat, bias,
      p["g3"], p["b3"], p["wqkv_t"], p["bqkv"], p["wo_h"], p["bo"],
      p["g1"], p["b1"],
      p["wih_t"], p["bih"], p["whhf_t"], p["bhhf"], p["whhb_t"], p["bhhb"],
      p["wl2f_t"], p["wl2b_t"], p["bl2"], p["g2"], p["b2"])


# ------------------- fused GroupNorm(row) + GroupNorm(col) + merge + PReLU + 1x1 conv -------------------

def _merge_kernel(scal_ref, base_ref, afa_ref, ata_ref,
                  grow_ref, brow_ref, gcol_ref, bcol_ref,
                  wout_ref, bout_ref, o_ref):
    k1 = scal_ref[0]
    k2 = scal_ref[1]
    alpha = scal_ref[2]

    def gnorm(x, g, b):   # GroupNorm(1, C), eps=1e-8, channel-last (FT, D) per sample
        n = x.shape[0] * x.shape[1]
        s = jnp.sum(x, axis=1, keepdims=True)
        mu = jnp.sum(s, axis=0, keepdims=True) / n
        d = x - mu
        var = jnp.sum(jnp.sum(d * d, axis=1, keepdims=True), axis=0, keepdims=True) / n
        return d * jax.lax.rsqrt(var + 1e-8) * g + b

    afa = gnorm(afa_ref[0], grow_ref[...], brow_ref[...])
    ata = gnorm(ata_ref[0], gcol_ref[...], bcol_ref[...])
    y = base_ref[0] + k1 * afa + k2 * ata
    y = jnp.where(y >= 0.0, y, alpha * y)                   # PReLU before the output conv
    o_ref[0] = jnp.dot(y.astype(jnp.bfloat16), wout_ref[...],
                       preferred_element_type=jnp.float32) + bout_ref[...]


def merge_groupnorm_output(base, afa, ata, scal, grow, brow, gcol, bcol, wout_t, bout):
    b, FT, D = base.shape
    Cout = wout_t.shape[1]
    x_spec = pl.BlockSpec((1, FT, D), lambda i: (i, 0, 0))
    vec_spec = pl.BlockSpec((1, D), lambda i: (0, 0))
    return pl.pallas_call(
        _merge_kernel,
        grid=(b,),
        in_specs=[pl.BlockSpec(memory_space=pltpu.MemorySpace.SMEM),
                  x_spec, x_spec, x_spec,
                  vec_spec, vec_spec, vec_spec, vec_spec,
                  pl.BlockSpec((D, Cout), lambda i: (0, 0)),
                  pl.BlockSpec((1, Cout), lambda i: (0, 0))],
        out_specs=pl.BlockSpec((1, FT, Cout), lambda i: (i, 0, 0)),
        out_shape=jax.ShapeDtypeStruct((b, FT, Cout), jnp.float32),
        compiler_params=pltpu.CompilerParams(dimension_semantics=("parallel",)),
    )(scal, base, afa, ata, grow, brow, gcol, bcol, wout_t, bout)


# ----------------------------- small fused linear kernels -----------------------------

def _linear_kernel(x_ref, w_ref, b_ref, o_ref):
    o_ref[...] = jnp.dot(x_ref[...].astype(jnp.bfloat16), w_ref[...],
                         preferred_element_type=jnp.float32) + b_ref[...]


def _linear_silu_kernel(x_ref, w_ref, b_ref, o_ref):
    x = x_ref[...]
    x = x * jax.nn.sigmoid(x)                               # SiLU fused as pre-activation
    o_ref[...] = jnp.dot(x.astype(jnp.bfloat16), w_ref[...],
                         preferred_element_type=jnp.float32) + b_ref[...]


def _linear_prelu_kernel(a_ref, x_ref, w_ref, b_ref, o_ref):
    y = jnp.dot(x_ref[...].astype(jnp.bfloat16), w_ref[...],
                preferred_element_type=jnp.float32) + b_ref[...]
    alpha = a_ref[0]
    o_ref[...] = jnp.where(y >= 0.0, y, alpha * y)


def linear(x, w_t, b, *, silu=False):
    M = x.shape[0]
    N = w_t.shape[1]
    return pl.pallas_call(
        _linear_silu_kernel if silu else _linear_kernel,
        out_shape=jax.ShapeDtypeStruct((M, N), jnp.float32),
    )(x, w_t, b)


def linear_prelu(x, w_t, b, alpha):
    M = x.shape[0]
    N = w_t.shape[1]
    vspec = pl.BlockSpec(memory_space=pltpu.MemorySpace.VMEM)
    return pl.pallas_call(
        _linear_prelu_kernel,
        in_specs=[pl.BlockSpec(memory_space=pltpu.MemorySpace.SMEM), vspec, vspec, vspec],
        out_shape=jax.ShapeDtypeStruct((M, N), jnp.float32),
    )(alpha, x, w_t, b)


# ----------------------------- model glue (channel-last internally) -----------------------------

def dual_path_block(out_i, base, lp, params):
    """AFA (time-axis) + ATA (freq-axis) transformer paths + groupnorm/merge/output head.
    out_i, base: (b, F, T, D) channel-last."""
    b, F, T, D = out_i.shape
    Cout = params["wout_t"].shape[1]

    # AFA / row: sequences along T (dim1), batch = b*F, time-major flatten
    row_in = jnp.transpose(out_i, (2, 0, 1, 3)).reshape(T * b * F, D)
    row_out = encoder_layer(row_in, _attn_bias(T, b * F), lp["row"], T, b * F)
    afa = jnp.transpose(row_out.reshape(T, b, F, D), (1, 2, 0, 3))       # (b, F, T, D)

    # ATA / col: sequences along F (dim2), batch = b*T
    col_in = jnp.transpose(out_i, (1, 0, 2, 3)).reshape(F * b * T, D)
    col_out = encoder_layer(col_in, _attn_bias(F, b * T), lp["col"], F, b * T)
    ata = jnp.transpose(col_out.reshape(F, b, T, D), (1, 0, 2, 3))       # (b, F, T, D)

    scal = jnp.stack([params["k1"], params["k2"], params["alpha_out"]]).astype(jnp.float32)
    out = merge_groupnorm_output(
        base.reshape(b, F * T, D), afa.reshape(b, F * T, D), ata.reshape(b, F * T, D),
        scal, lp["grow"], lp["brow"], lp["gcol"], lp["bcol"],
        params["wout_t"], params["b_out"])
    return out.reshape(b, F, T, Cout)


def aia_transformer_merge(params, input1, input2, temb):
    b, c, F, T = input1.shape
    D = params["win_t"].shape[1]

    # input head: cat -> 1x1 conv -> PReLU (applied to the same tensor twice in torch -> identical)
    x = jnp.concatenate([input1, input2], axis=1)                        # (b, 2c, F, T)
    x_cl = jnp.transpose(x, (0, 2, 3, 1)).reshape(b * F * T, 2 * c)
    inp = linear_prelu(x_cl, params["win_t"], params["b_in"], params["alpha_in"])
    inp = inp.reshape(b, F, T, D)
    input_mag = inp
    input_ri = inp

    out_mag_list, out_ri_list = [], []
    for lp in params["layers"]:
        # time-embedding conditioning: Dense(act(temb)); act == SiLU
        # TODO(synk): `act` is a constructor argument of the torch module; hardcoded to SiLU here.
        temb_ = linear(temb, lp["wtemb_t"], lp["btemb"], silu=True)[:, None, None, :]

        o_mag = (out_mag_list[-1] + out_ri_list[-1]) if out_mag_list else input_mag
        o_mag = o_mag + temb_
        out_mag = dual_path_block(o_mag, input_mag, lp, params)
        out_mag_list.append(out_mag)

        o_ri = (out_ri_list[-1] + out_mag_list[-2]) if out_ri_list else input_ri
        o_ri = o_ri + temb_
        out_ri = dual_path_block(o_ri, input_ri, lp, params)
        out_ri_list.append(out_ri)

    to_nchw = lambda z: jnp.transpose(z, (0, 3, 1, 2))
    mag_list = [to_nchw(z) for z in out_mag_list]
    ri_list = [to_nchw(z) for z in out_ri_list]
    return mag_list[-1], mag_list, ri_list[-1], ri_list


# ----------------------------- deterministic parameter init (kernel-ready layouts) -----------------------------

def init_params(key, input_size, output_size, temb_dim, num_layers):
    d = input_size // 2
    H = 2 * d
    hd = d // NHEAD
    keys = iter(jax.random.split(key, 32 * num_layers + 8))

    def nrm(shape, scale=0.1):
        return (scale * jax.random.normal(next(keys), shape)).astype(jnp.float32)

    def bf(v):
        return v.astype(jnp.bfloat16)

    def enc_layer():
        return dict(
            g3=jnp.ones((1, d), jnp.float32), b3=jnp.zeros((1, d), jnp.float32),
            # = in_proj_weight.T (d, 3d), bf16
            wqkv_t=bf(nrm((d, 3 * d))), bqkv=jnp.zeros((1, 3 * d), jnp.float32),
            # = out_proj.weight.T reshaped per head -> (nhead, hd, d), bf16
            wo_h=bf(nrm((NHEAD, hd, d))), bo=jnp.zeros((1, d), jnp.float32),
            g1=jnp.ones((1, d), jnp.float32), b1=jnp.zeros((1, d), jnp.float32),
            # = [W_ih_fwd.T | W_ih_bwd.T] (d, 6H); biases concatenated likewise
            wih_t=bf(nrm((d, 6 * H))), bih=jnp.zeros((1, 6 * H), jnp.float32),
            # = W_hh_fwd.T / W_hh_bwd.T (H, 3H)
            whhf_t=bf(nrm((H, 3 * H))), bhhf=jnp.zeros((1, 3 * H), jnp.float32),
            whhb_t=bf(nrm((H, 3 * H))), bhhb=jnp.zeros((1, 3 * H), jnp.float32),
            # = linear2.weight.T split into fwd/bwd halves, each (H, d)
            wl2f_t=bf(nrm((H, d))), wl2b_t=bf(nrm((H, d))),
            bl2=jnp.zeros((1, d), jnp.float32),
            g2=jnp.ones((1, d), jnp.float32), b2=jnp.zeros((1, d), jnp.float32),
        )

    layers = []
    for _ in range(num_layers):
        layers.append(dict(
            row=enc_layer(), col=enc_layer(),
            grow=jnp.ones((1, d), jnp.float32), brow=jnp.zeros((1, d), jnp.float32),
            gcol=jnp.ones((1, d), jnp.float32), bcol=jnp.zeros((1, d), jnp.float32),
            wtemb_t=bf(nrm((temb_dim, d))), btemb=jnp.zeros((1, d), jnp.float32),
        ))

    return dict(
        k1=jnp.asarray(1.0, jnp.float32), k2=jnp.asarray(1.0, jnp.float32),
        win_t=bf(nrm((input_size, d))), b_in=jnp.zeros((1, d), jnp.float32),
        alpha_in=jnp.full((1,), 0.25, jnp.float32),
        wout_t=bf(nrm((d, output_size))), b_out=jnp.zeros((1, output_size), jnp.float32),
        alpha_out=jnp.asarray(0.25, jnp.float32),
        layers=layers,
    )


# ----------------------------- main -----------------------------

if __name__ == "__main__":
    B = 2
    INPUT_SIZE = 32          # channels after cat(input1, input2) -> d_model = 16
    OUTPUT_SIZE = 16         # must equal input_size//2 for num_layers > 1 (as in the torch module)
    DIM2, DIM1 = 8, 8        # (freq, time)
    TEMB_DIM = 32
    NUM_LAYERS = 2

    key = jax.random.PRNGKey(0)
    kp, ka, kb, kc = jax.random.split(key, 4)
    params = init_params(kp, INPUT_SIZE, OUTPUT_SIZE, TEMB_DIM, NUM_LAYERS)

    c = INPUT_SIZE // 2
    input1 = jax.random.normal(ka, (B, c, DIM2, DIM1), jnp.float32)
    input2 = jax.random.normal(kb, (B, c, DIM2, DIM1), jnp.float32)
    temb = jax.random.normal(kc, (B, TEMB_DIM), jnp.float32)

    fwd = jax.jit(aia_transformer_merge)
    out_mag, mag_list, out_ri, ri_list = fwd(params, input1, input2, temb)
    jax.block_until_ready(out_mag)
    jax.block_until_ready(out_ri)

    assert out_mag.shape == (B, OUTPUT_SIZE, DIM2, DIM1)
    assert out_ri.shape == (B, OUTPUT_SIZE, DIM2, DIM1)
    assert len(mag_list) == NUM_LAYERS and len(ri_list) == NUM_LAYERS
    assert bool(jnp.all(jnp.isfinite(out_mag))) and bool(jnp.all(jnp.isfinite(out_ri)))
    print("KERNEL_OK")
</pallas_src>

<mosaic_0001>
module attributes {stable_mosaic.version = 11 : i64} {
  func.func @_linear_prelu_kernel(%arg0: memref<1xf32, #tpu.memory_space<smem>>, %arg1: memref<128x32xf32, #tpu.memory_space<vmem>>, %arg2: memref<32x16xbf16, #tpu.memory_space<vmem>>, %arg3: memref<1x16xf32, #tpu.memory_space<vmem>>, %arg4: memref<128x16xf32, #tpu.memory_space<vmem>>) attributes {dimension_semantics = [], scalar_prefetch = 0 : i64, scratch_operands = 0 : i64, tpu.core_type = #tpu.core_type<tc>} {
    %c0 = arith.constant 0 : index
    %c0_0 = arith.constant 0 : index
    %0 = vector.load %arg1[%c0, %c0_0] : memref<128x32xf32, #tpu.memory_space<vmem>>, vector<128x32xf32>
    %1 = arith.truncf %0 : vector<128x32xf32> to vector<128x32xbf16>
    %c0_1 = arith.constant 0 : index
    %c0_2 = arith.constant 0 : index
    %2 = vector.load %arg2[%c0_1, %c0_2] : memref<32x16xbf16, #tpu.memory_space<vmem>>, vector<32x16xbf16>
    %cst = arith.constant dense<0.000000e+00> : vector<128x16xf32>
    %3 = tpu.matmul %1, %2, %cst {dimension_numbers = #tpu.dot_dimension_numbers<[1], [0], [0], [1], [0, 0, 1, 1], [], []>} : vector<128x32xbf16>, vector<32x16xbf16>, vector<128x16xf32> -> vector<128x16xf32>
    %c0_3 = arith.constant 0 : index
    %c0_4 = arith.constant 0 : index
    %4 = vector.load %arg3[%c0_3, %c0_4] : memref<1x16xf32, #tpu.memory_space<vmem>>, vector<1x16xf32>
    %5 = vector.broadcast %4 : vector<1x16xf32> to vector<128x16xf32>
    %6 = arith.addf %3, %5 : vector<128x16xf32>
    %c0_5 = arith.constant 0 : index
    %7 = memref.load %arg0[%c0_5] : memref<1xf32, #tpu.memory_space<smem>>
    %cst_6 = arith.constant 0.000000e+00 : f32
    %8 = vector.broadcast %cst_6 : f32 to vector<128x16xf32>
    %9 = arith.cmpf oge, %6, %8 : vector<128x16xf32>
    %10 = vector.broadcast %7 : f32 to vector<128x16xf32>
    %11 = arith.mulf %10, %6 : vector<128x16xf32>
    %12 = arith.select %9, %6, %11 : vector<128x16xi1>, vector<128x16xf32>
    %c0_7 = arith.constant 0 : index
    %c0_8 = arith.constant 0 : index
    %13 = vector.load %arg4[%c0_7, %c0_8] : memref<128x16xf32, #tpu.memory_space<vmem>>, vector<128x16xf32>
    tpu.vector_store %arg4[%c0_7, %c0_8], %12 {strides = array<i32>} : memref<128x16xf32, #tpu.memory_space<vmem>>, vector<128x16xf32>,
    return
  }
}

module attributes {stable_mosaic.version = 11 : i64} {
  func.func @_linear_silu_kernel(%arg0: memref<2x32xf32, #tpu.memory_space<vmem>>, %arg1: memref<32x16xbf16, #tpu.memory_space<vmem>>, %arg2: memref<1x16xf32, #tpu.memory_space<vmem>>, %arg3: memref<2x16xf32, #tpu.memory_space<vmem>>) attributes {dimension_semantics = [], scalar_prefetch = 0 : i64, scratch_operands = 0 : i64, tpu.core_type = #tpu.core_type<tc>} {
    %c0 = arith.constant 0 : index
    %c0_0 = arith.constant 0 : index
    %0 = vector.load %arg0[%c0, %c0_0] : memref<2x32xf32, #tpu.memory_space<vmem>>, vector<2x32xf32>
    %1 = arith.negf %0 : vector<2x32xf32>
    %2 = math.exp %1 : vector<2x32xf32>
    %cst = arith.constant 1.000000e+00 : f32
    %3 = vector.broadcast %cst : f32 to vector<2x32xf32>
    %4 = arith.addf %3, %2 : vector<2x32xf32>
    %5 = arith.divf %3, %4 : vector<2x32xf32>
    %6 = arith.mulf %0, %5 : vector<2x32xf32>
    %7 = arith.truncf %6 : vector<2x32xf32> to vector<2x32xbf16>
    %c0_1 = arith.constant 0 : index
    %c0_2 = arith.constant 0 : index
    %8 = vector.load %arg1[%c0_1, %c0_2] : memref<32x16xbf16, #tpu.memory_space<vmem>>, vector<32x16xbf16>
    %cst_3 = arith.constant dense<0.000000e+00> : vector<2x16xf32>
    %9 = tpu.matmul %7, %8, %cst_3 {dimension_numbers = #tpu.dot_dimension_numbers<[1], [0], [0], [1], [0, 0, 1, 1], [], []>} : vector<2x32xbf16>, vector<32x16xbf16>, vector<2x16xf32> -> vector<2x16xf32>
    %c0_4 = arith.constant 0 : index
    %c0_5 = arith.constant 0 : index
    %10 = vector.load %arg2[%c0_4, %c0_5] : memref<1x16xf32, #tpu.memory_space<vmem>>, vector<1x16xf32>
    %11 = vector.broadcast %10 : vector<1x16xf32> to vector<2x16xf32>
    %12 = arith.addf %9, %11 : vector<2x16xf32>
    %c0_6 = arith.constant 0 : index
    %c0_7 = arith.constant 0 : index
    %13 = vector.load %arg3[%c0_6, %c0_7] : memref<2x16xf32, #tpu.memory_space<vmem>>, vector<2x16xf32>
    tpu.vector_store %arg3[%c0_6, %c0_7], %12 {strides = array<i32>} : memref<2x16xf32, #tpu.memory_space<vmem>>, vector<2x16xf32>,
    return
  }
}

module attributes {stable_mosaic.version = 11 : i64} {
  func.func @kernel(%arg0: memref<128x16xf32, #tpu.memory_space<vmem>>, %arg1: memref<128x128xf32, #tpu.memory_space<vmem>>, %arg2: memref<1x16xf32, #tpu.memory_space<vmem>>, %arg3: memref<1x16xf32, #tpu.memory_space<vmem>>, %arg4: memref<16x48xbf16, #tpu.memory_space<vmem>>, %arg5: memref<1x48xf32, #tpu.memory_space<vmem>>, %arg6: memref<4x4x16xbf16, #tpu.memory_space<vmem>>, %arg7: memref<1x16xf32, #tpu.memory_space<vmem>>, %arg8: memref<1x16xf32, #tpu.memory_space<vmem>>, %arg9: memref<1x16xf32, #tpu.memory_space<vmem>>, %arg10: memref<16x192xbf16, #tpu.memory_space<vmem>>, %arg11: memref<1x192xf32, #tpu.memory_space<vmem>>, %arg12: memref<32x96xbf16, #tpu.memory_space<vmem>>, %arg13: memref<1x96xf32, #tpu.memory_space<vmem>>, %arg14: memref<32x96xbf16, #tpu.memory_space<vmem>>, %arg15: memref<1x96xf32, #tpu.memory_space<vmem>>, %arg16: memref<32x16xbf16, #tpu.memory_space<vmem>>, %arg17: memref<32x16xbf16, #tpu.memory_space<vmem>>, %arg18: memref<1x16xf32, #tpu.memory_space<vmem>>, %arg19: memref<1x16xf32, #tpu.memory_space<vmem>>, %arg20: memref<1x16xf32, #tpu.memory_space<vmem>>, %arg21: memref<128x16xf32, #tpu.memory_space<vmem>>) attributes {dimension_semantics = [], scalar_prefetch = 0 : i64, scratch_operands = 0 : i64, tpu.core_type = #tpu.core_type<tc>} {
    %c0 = arith.constant 0 : index
    %c0_0 = arith.constant 0 : index
    %0 = vector.load %arg0[%c0, %c0_0] : memref<128x16xf32, #tpu.memory_space<vmem>>, vector<128x16xf32>
    %c0_1 = arith.constant 0 : index
    %c0_2 = arith.constant 0 : index
    %1 = vector.load %arg2[%c0_1, %c0_2] : memref<1x16xf32, #tpu.memory_space<vmem>>, vector<1x16xf32>
    %c0_3 = arith.constant 0 : index
    %c0_4 = arith.constant 0 : index
    %2 = vector.load %arg3[%c0_3, %c0_4] : memref<1x16xf32, #tpu.memory_space<vmem>>, vector<1x16xf32>
    %cst = arith.constant dense<0.000000e+00> : vector<128xf32>
    %3 = vector.multi_reduction <add>, %0, %cst [1] : vector<128x16xf32> to vector<128xf32>
    %4 = vector.shape_cast %3 : vector<128xf32> to vector<128x1xf32>
    %cst_5 = arith.constant 1.600000e+01 : f32
    %5 = vector.broadcast %cst_5 : f32 to vector<128x1xf32>
    %6 = arith.divf %4, %5 : vector<128x1xf32>
    %7 = vector.broadcast %6 : vector<128x1xf32> to vector<128x16xf32>
    %8 = arith.subf %0, %7 : vector<128x16xf32>
    %9 = arith.mulf %8, %8 : vector<128x16xf32>
    %cst_6 = arith.constant dense<0.000000e+00> : vector<128xf32>
    %10 = vector.multi_reduction <add>, %9, %cst_6 [1] : vector<128x16xf32> to vector<128xf32>
    %11 = vector.shape_cast %10 : vector<128xf32> to vector<128x1xf32>
    %cst_7 = arith.constant 1.600000e+01 : f32
    %12 = vector.broadcast %cst_7 : f32 to vector<128x1xf32>
    %13 = arith.divf %11, %12 : vector<128x1xf32>
    %cst_8 = arith.constant 9.99999974E-6 : f32
    %14 = vector.broadcast %cst_8 : f32 to vector<128x1xf32>
    %15 = arith.addf %13, %14 : vector<128x1xf32>
    %16 = math.rsqrt %15 : vector<128x1xf32>
    %17 = vector.broadcast %16 : vector<128x1xf32> to vector<128x16xf32>
    %18 = arith.mulf %8, %17 : vector<128x16xf32>
    %19 = vector.broadcast %1 : vector<1x16xf32> to vector<128x16xf32>
    %20 = arith.mulf %18, %19 : vector<128x16xf32>
    %21 = vector.broadcast %2 : vector<1x16xf32> to vector<128x16xf32>
    %22 = arith.addf %20, %21 : vector<128x16xf32>
    %c0_9 = arith.constant 0 : index
    %c0_10 = arith.constant 0 : index
    %23 = vector.load %arg4[%c0_9, %c0_10] : memref<16x48xbf16, #tpu.memory_space<vmem>>, vector<16x48xbf16>
    %24 = arith.truncf %22 : vector<128x16xf32> to vector<128x16xbf16>
    %cst_11 = arith.constant dense<0.000000e+00> : vector<128x48xf32>
    %25 = tpu.matmul %24, %23, %cst_11 {dimension_numbers = #tpu.dot_dimension_numbers<[1], [0], [0], [1], [0, 0, 1, 1], [], []>} : vector<128x16xbf16>, vector<16x48xbf16>, vector<128x48xf32> -> vector<128x48xf32>
    %c0_12 = arith.constant 0 : index
    %c0_13 = arith.constant 0 : index
    %26 = vector.load %arg5[%c0_12, %c0_13] : memref<1x48xf32, #tpu.memory_space<vmem>>, vector<1x48xf32>
    %27 = vector.broadcast %26 : vector<1x48xf32> to vector<128x48xf32>
    %28 = arith.addf %25, %27 : vector<128x48xf32>
    %29 = vector.extract_strided_slice %28 {offsets = [0, 0], sizes = [128, 16], strides = [1, 1]} : vector<128x48xf32> to vector<128x16xf32>
    %cst_14 = arith.constant 5.000000e-01 : f32
    %30 = vector.broadcast %cst_14 : f32 to vector<128x16xf32>
    %31 = arith.mulf %29, %30 : vector<128x16xf32>
    %32 = vector.extract_strided_slice %28 {offsets = [0, 16], sizes = [128, 16], strides = [1, 1]} : vector<128x48xf32> to vector<128x16xf32>
    %33 = vector.extract_strided_slice %28 {offsets = [0, 32], sizes = [128, 16], strides = [1, 1]} : vector<128x48xf32> to vector<128x16xf32>
    %c0_15 = arith.constant 0 : index
    %c0_16 = arith.constant 0 : index
    %34 = vector.load %arg1[%c0_15, %c0_16] : memref<128x128xf32, #tpu.memory_space<vmem>>, vector<128x128xf32>
    %cst_17 = arith.constant 0.000000e+00 : f32
    %35 = vector.broadcast %cst_17 : f32 to vector<128x16xf32>
    %36 = vector.extract_strided_slice %31 {offsets = [0, 0], sizes = [128, 4], strides = [1, 1]} : vector<128x16xf32> to vector<128x4xf32>
    %37 = vector.extract_strided_slice %32 {offsets = [0, 0], sizes = [128, 4], strides = [1, 1]} : vector<128x16xf32> to vector<128x4xf32>
    %38 = vector.extract_strided_slice %33 {offsets = [0, 0], sizes = [128, 4], strides = [1, 1]} : vector<128x16xf32> to vector<128x4xf32>
    %39 = arith.truncf %36 : vector<128x4xf32> to vector<128x4xbf16>
    %40 = tpu.transpose %37, [1, 0] : vector<128x4xf32> -> vector<4x128xf32>
    %41 = arith.truncf %40 : vector<4x128xf32> to vector<4x128xbf16>
    %cst_18 = arith.constant dense<0.000000e+00> : vector<128x128xf32>
    %42 = tpu.matmul %39, %41, %cst_18 {dimension_numbers = #tpu.dot_dimension_numbers<[1], [0], [0], [1], [0, 0, 1, 1], [], []>} : vector<128x4xbf16>, vector<4x128xbf16>, vector<128x128xf32> -> vector<128x128xf32>
    %43 = arith.addf %42, %34 : vector<128x128xf32>
    %cst_19 = arith.constant dense<0xFF800000> : vector<128xf32>
    %44 = vector.multi_reduction <maximumf>, %43, %cst_19 [1] : vector<128x128xf32> to vector<128xf32>
    %45 = vector.shape_cast %44 : vector<128xf32> to vector<128x1xf32>
    %46 = vector.broadcast %45 : vector<128x1xf32> to vector<128x128xf32>
    %47 = arith.subf %43, %46 : vector<128x128xf32>
    %48 = math.exp %47 : vector<128x128xf32>
    %cst_20 = arith.constant dense<0.000000e+00> : vector<128xf32>
    %49 = vector.multi_reduction <add>, %48, %cst_20 [1] : vector<128x128xf32> to vector<128xf32>
    %50 = vector.shape_cast %49 : vector<128xf32> to vector<128x1xf32>
    %51 = tpu.reciprocal %50 {approx = true} : vector<128x1xf32> -> vector<128x1xf32>
    %52 = vector.broadcast %51 : vector<128x1xf32> to vector<128x128xf32>
    %53 = arith.mulf %48, %52 : vector<128x128xf32>
    %54 = arith.truncf %53 : vector<128x128xf32> to vector<128x128xbf16>
    %55 = arith.truncf %38 : vector<128x4xf32> to vector<128x4xbf16>
    %cst_21 = arith.constant dense<0.000000e+00> : vector<128x4xf32>
    %56 = tpu.matmul %54, %55, %cst_21 {dimension_numbers = #tpu.dot_dimension_numbers<[1], [0], [0], [1], [0, 0, 1, 1], [], []>} : vector<128x128xbf16>, vector<128x4xbf16>, vector<128x4xf32> -> vector<128x4xf32>
    %c0_22 = arith.constant 0 : index
    %c0_23 = arith.constant 0 : index
    %c0_24 = arith.constant 0 : index
    %57 = vector.load %arg6[%c0_22, %c0_23, %c0_24] : memref<4x4x16xbf16, #tpu.memory_space<vmem>>, vector<1x4x16xbf16>
    %58 = vector.shape_cast %57 : vector<1x4x16xbf16> to vector<4x16xbf16>
    %59 = arith.truncf %56 : vector<128x4xf32> to vector<128x4xbf16>
    %cst_25 = arith.constant dense<0.000000e+00> : vector<128x16xf32>
    %60 = tpu.matmul %59, %58, %cst_25 {dimension_numbers = #tpu.dot_dimension_numbers<[1], [0], [0], [1], [0, 0, 1, 1], [], []>} : vector<128x4xbf16>, vector<4x16xbf16>, vector<128x16xf32> -> vector<128x16xf32>
    %61 = arith.addf %35, %60 : vector<128x16xf32>
    %62 = vector.extract_strided_slice %31 {offsets = [0, 4], sizes = [128, 4], strides = [1, 1]} : vector<128x16xf32> to vector<128x4xf32>
    %63 = vector.extract_strided_slice %32 {offsets = [0, 4], sizes = [128, 4], strides = [1, 1]} : vector<128x16xf32> to vector<128x4xf32>
    %64 = vector.extract_strided_slice %33 {offsets = [0, 4], sizes = [128, 4], strides = [1, 1]} : vector<128x16xf32> to vector<128x4xf32>
    %65 = arith.truncf %62 : vector<128x4xf32> to vector<128x4xbf16>
    %66 = tpu.transpose %63, [1, 0] : vector<128x4xf32> -> vector<4x128xf32>
    %67 = arith.truncf %66 : vector<4x128xf32> to vector<4x128xbf16>
    %cst_26 = arith.constant dense<0.000000e+00> : vector<128x128xf32>
    %68 = tpu.matmul %65, %67, %cst_26 {dimension_numbers = #tpu.dot_dimension_numbers<[1], [0], [0], [1], [0, 0, 1, 1], [], []>} : vector<128x4xbf16>, vector<4x128xbf16>, vector<128x128xf32> -> vector<128x128xf32>
    %69 = arith.addf %68, %34 : vector<128x128xf32>
    %cst_27 = arith.constant dense<0xFF800000> : vector<128xf32>
    %70 = vector.multi_reduction <maximumf>, %69, %cst_27 [1] : vector<128x128xf32> to vector<128xf32>
    %71 = vector.shape_cast %70 : vector<128xf32> to vector<128x1xf32>
    %72 = vector.broadcast %71 : vector<128x1xf32> to vector<128x128xf32>
    %73 = arith.subf %69, %72 : vector<128x128xf32>
    %74 = math.exp %73 : vector<128x128xf32>
    %cst_28 = arith.constant dense<0.000000e+00> : vector<128xf32>
    %75 = vector.multi_reduction <add>, %74, %cst_28 [1] : vector<128x128xf32> to vector<128xf32>
    %76 = vector.shape_cast %75 : vector<128xf32> to vector<128x1xf32>
    %77 = tpu.reciprocal %76 {approx = true} : vector<128x1xf32> -> vector<128x1xf32>
    %78 = vector.broadcast %77 : vector<128x1xf32> to vector<128x128xf32>
    %79 = arith.mulf %74, %78 : vector<128x128xf32>
    %80 = arith.truncf %79 : vector<128x128xf32> to vector<128x128xbf16>
    %81 = arith.truncf %64 : vector<128x4xf32> to vector<128x4xbf16>
    %cst_29 = arith.constant dense<0.000000e+00> : vector<128x4xf32>
    %82 = tpu.matmul %80, %81, %cst_29 {dimension_numbers = #tpu.dot_dimension_numbers<[1], [0], [0], [1], [0, 0, 1, 1], [], []>} : vector<128x128xbf16>, vector<128x4xbf16>, vector<128x4xf32> -> vector<128x4xf32>
    %c1 = arith.constant 1 : index
    %c0_30 = arith.constant 0 : index
    %c0_31 = arith.constant 0 : index
    %83 = vector.load %arg6[%c1, %c0_30, %c0_31] : memref<4x4x16xbf16, #tpu.memory_space<vmem>>, vector<1x4x16xbf16>
    %84 = vector.shape_cast %83 : vector<1x4x16xbf16> to vector<4x16xbf16>
    %85 = arith.truncf %82 : vector<128x4xf32> to vector<128x4xbf16>
    %cst_32 = arith.constant dense<0.000000e+00> : vector<128x16xf32>
    %86 = tpu.matmul %85, %84, %cst_32 {dimension_numbers = #tpu.dot_dimension_numbers<[1], [0], [0], [1], [0, 0, 1, 1], [], []>} : vector<128x4xbf16>, vector<4x16xbf16>, vector<128x16xf32> -> vector<128x16xf32>
    %87 = arith.addf %61, %86 : vector<128x16xf32>
    %88 = vector.extract_strided_slice %31 {offsets = [0, 8], sizes = [128, 4], strides = [1, 1]} : vector<128x16xf32> to vector<128x4xf32>
    %89 = vector.extract_strided_slice %32 {offsets = [0, 8], sizes = [128, 4], strides = [1, 1]} : vector<128x16xf32> to vector<128x4xf32>
    %90 = vector.extract_strided_slice %33 {offsets = [0, 8], sizes = [128, 4], strides = [1, 1]} : vector<128x16xf32> to vector<128x4xf32>
    %91 = arith.truncf %88 : vector<128x4xf32> to vector<128x4xbf16>
    %92 = tpu.transpose %89, [1, 0] : vector<128x4xf32> -> vector<4x128xf32>
    %93 = arith.truncf %92 : vector<4x128xf32> to vector<4x128xbf16>
    %cst_33 = arith.constant dense<0.000000e+00> : vector<128x128xf32>
    %94 = tpu.matmul %91, %93, %cst_33 {dimension_numbers = #tpu.dot_dimension_numbers<[1], [0], [0], [1], [0, 0, 1, 1], [], []>} : vector<128x4xbf16>, vector<4x128xbf16>, vector<128x128xf32> -> vector<128x128xf32>
    %95 = arith.addf %94, %34 : vector<128x128xf32>
    %cst_34 = arith.constant dense<0xFF800000> : vector<128xf32>
    %96 = vector.multi_reduction <maximumf>, %95, %cst_34 [1] : vector<128x128xf32> to vector<128xf32>
    %97 = vector.shape_cast %96 : vector<128xf32> to vector<128x1xf32>
    %98 = vector.broadcast %97 : vector<128x1xf32> to vector<128x128xf32>
    %99 = arith.subf %95, %98 : vector<128x128xf32>
    %100 = math.exp %99 : vector<128x128xf32>
    %cst_35 = arith.constant dense<0.000000e+00> : vector<128xf32>
    %101 = vector.multi_reduction <add>, %100, %cst_35 [1] : vector<128x128xf32> to vector<128xf32>
    %102 = vector.shape_cast %101 : vector<128xf32> to vector<128x1xf32>
    %103 = tpu.reciprocal %102 {approx = true} : vector<128x1xf32> -> vector<128x1xf32>
    %104 = vector.broadcast %103 : vector<128x1xf32> to vector<128x128xf32>
    %105 = arith.mulf %100, %104 : vector<128x128xf32>
    %106 = arith.truncf %105 : vector<128x128xf32> to vector<128x128xbf16>
    %107 = arith.truncf %90 : vector<128x4xf32> to vector<128x4xbf16>
    %cst_36 = arith.constant dense<0.000000e+00> : vector<128x4xf32>
    %108 = tpu.matmul %106, %107, %cst_36 {dimension_numbers = #tpu.dot_dimension_numbers<[1], [0], [0], [1], [0, 0, 1, 1], [], []>} : vector<128x128xbf16>, vector<128x4xbf16>, vector<128x4xf32> -> vector<128x4xf32>
    %c2 = arith.constant 2 : index
    %c0_37 = arith.constant 0 : index
    %c0_38 = arith.constant 0 : index
    %109 = vector.load %arg6[%c2, %c0_37, %c0_38] : memref<4x4x16xbf16, #tpu.memory_space<vmem>>, vector<1x4x16xbf16>
    %110 = vector.shape_cast %109 : vector<1x4x16xbf16> to vector<4x16xbf16>
    %111 = arith.truncf %108 : vector<128x4xf32> to vector<128x4xbf16>
    %cst_39 = arith.constant dense<0.000000e+00> : vector<128x16xf32>
    %112 = tpu.matmul %111, %110, %cst_39 {dimension_numbers = #tpu.dot_dimension_numbers<[1], [0], [0], [1], [0, 0, 1, 1], [], []>} : vector<128x4xbf16>, vector<4x16xbf16>, vector<128x16xf32> -> vector<128x16xf32>
    %113 = arith.addf %87, %112 : vector<128x16xf32>
    %114 = vector.extract_strided_slice %31 {offsets = [0, 12], sizes = [128, 4], strides = [1, 1]} : vector<128x16xf32> to vector<128x4xf32>
    %115 = vector.extract_strided_slice %32 {offsets = [0, 12], sizes = [128, 4], strides = [1, 1]} : vector<128x16xf32> to vector<128x4xf32>
    %116 = vector.extract_strided_slice %33 {offsets = [0, 12], sizes = [128, 4], strides = [1, 1]} : vector<128x16xf32> to vector<128x4xf32>
    %117 = arith.truncf %114 : vector<128x4xf32> to vector<128x4xbf16>
    %118 = tpu.transpose %115, [1, 0] : vector<128x4xf32> -> vector<4x128xf32>
    %119 = arith.truncf %118 : vector<4x128xf32> to vector<4x128xbf16>
    %cst_40 = arith.constant dense<0.000000e+00> : vector<128x128xf32>
    %120 = tpu.matmul %117, %119, %cst_40 {dimension_numbers = #tpu.dot_dimension_numbers<[1], [0], [0], [1], [0, 0, 1, 1], [], []>} : vector<128x4xbf16>, vector<4x128xbf16>, vector<128x128xf32> -> vector<128x128xf32>
    %121 = arith.addf %120, %34 : vector<128x128xf32>
    %cst_41 = arith.constant dense<0xFF800000> : vector<128xf32>
    %122 = vector.multi_reduction <maximumf>, %121, %cst_41 [1] : vector<128x128xf32> to vector<128xf32>
    %123 = vector.shape_cast %122 : vector<128xf32> to vector<128x1xf32>
    %124 = vector.broadcast %123 : vector<128x1xf32> to vector<128x128xf32>
    %125 = arith.subf %121, %124 : vector<128x128xf32>
    %126 = math.exp %125 : vector<128x128xf32>
    %cst_42 = arith.constant dense<0.000000e+00> : vector<128xf32>
    %127 = vector.multi_reduction <add>, %126, %cst_42 [1] : vector<128x128xf32> to vector<128xf32>
    %128 = vector.shape_cast %127 : vector<128xf32> to vector<128x1xf32>
    %129 = tpu.reciprocal %128 {approx = true} : vector<128x1xf32> -> vector<128x1xf32>
    %130 = vector.broadcast %129 : vector<128x1xf32> to vector<128x128xf32>
    %131 = arith.mulf %126, %130 : vector<128x128xf32>
    %132 = arith.truncf %131 : vector<128x128xf32> to vector<128x128xbf16>
    %133 = arith.truncf %116 : vector<128x4xf32> to vector<128x4xbf16>
    %cst_43 = arith.constant dense<0.000000e+00> : vector<128x4xf32>
    %134 = tpu.matmul %132, %133, %cst_43 {dimension_numbers = #tpu.dot_dimension_numbers<[1], [0], [0], [1], [0, 0, 1, 1], [], []>} : vector<128x128xbf16>, vector<128x4xbf16>, vector<128x4xf32> -> vector<128x4xf32>
    %c3 = arith.constant 3 : index
    %c0_44 = arith.constant 0 : index
    %c0_45 = arith.constant 0 : index
    %135 = vector.load %arg6[%c3, %c0_44, %c0_45] : memref<4x4x16xbf16, #tpu.memory_space<vmem>>, vector<1x4x16xbf16>
    %136 = vector.shape_cast %135 : vector<1x4x16xbf16> to vector<4x16xbf16>
    %137 = arith.truncf %134 : vector<128x4xf32> to vector<128x4xbf16>
    %cst_46 = arith.constant dense<0.000000e+00> : vector<128x16xf32>
    %138 = tpu.matmul %137, %136, %cst_46 {dimension_numbers = #tpu.dot_dimension_numbers<[1], [0], [0], [1], [0, 0, 1, 1], [], []>} : vector<128x4xbf16>, vector<4x16xbf16>, vector<128x16xf32> -> vector<128x16xf32>
    %139 = arith.addf %113, %138 : vector<128x16xf32>
    %c0_47 = arith.constant 0 : index
    %c0_48 = arith.constant 0 : index
    %140 = vector.load %arg7[%c0_47, %c0_48] : memref<1x16xf32, #tpu.memory_space<vmem>>, vector<1x16xf32>
    %141 = vector.broadcast %140 : vector<1x16xf32> to vector<128x16xf32>
    %142 = arith.addf %139, %141 : vector<128x16xf32>
    %143 = arith.addf %0, %142 : vector<128x16xf32>
    %c0_49 = arith.constant 0 : index
    %c0_50 = arith.constant 0 : index
    %144 = vector.load %arg8[%c0_49, %c0_50] : memref<1x16xf32, #tpu.memory_space<vmem>>, vector<1x16xf32>
    %c0_51 = arith.constant 0 : index
    %c0_52 = arith.constant 0 : index
    %145 = vector.load %arg9[%c0_51, %c0_52] : memref<1x16xf32, #tpu.memory_space<vmem>>, vector<1x16xf32>
    %cst_53 = arith.constant dense<0.000000e+00> : vector<128xf32>
    %146 = vector.multi_reduction <add>, %143, %cst_53 [1] : vector<128x16xf32> to vector<128xf32>
    %147 = vector.shape_cast %146 : vector<128xf32> to vector<128x1xf32>
    %cst_54 = arith.constant 1.600000e+01 : f32
    %148 = vector.broadcast %cst_54 : f32 to vector<128x1xf32>
    %149 = arith.divf %147, %148 : vector<128x1xf32>
    %150 = vector.broadcast %149 : vector<128x1xf32> to vector<128x16xf32>
    %151 = arith.subf %143, %150 : vector<128x16xf32>
    %152 = arith.mulf %151, %151 : vector<128x16xf32>
    %cst_55 = arith.constant dense<0.000000e+00> : vector<128xf32>
    %153 = vector.multi_reduction <add>, %152, %cst_55 [1] : vector<128x16xf32> to vector<128xf32>
    %154 = vector.shape_cast %153 : vector<128xf32> to vector<128x1xf32>
    %cst_56 = arith.constant 1.600000e+01 : f32
    %155 = vector.broadcast %cst_56 : f32 to vector<128x1xf32>
    %156 = arith.divf %154, %155 : vector<128x1xf32>
    %cst_57 = arith.constant 9.99999974E-6 : f32
    %157 = vector.broadcast %cst_57 : f32 to vector<128x1xf32>
    %158 = arith.addf %156, %157 : vector<128x1xf32>
    %159 = math.rsqrt %158 : vector<128x1xf32>
    %160 = vector.broadcast %159 : vector<128x1xf32> to vector<128x16xf32>
    %161 = arith.mulf %151, %160 : vector<128x16xf32>
    %162 = vector.broadcast %144 : vector<1x16xf32> to vector<128x16xf32>
    %163 = arith.mulf %161, %162 : vector<128x16xf32>
    %164 = vector.broadcast %145 : vector<1x16xf32> to vector<128x16xf32>
    %165 = arith.addf %163, %164 : vector<128x16xf32>
    %c0_58 = arith.constant 0 : index
    %c0_59 = arith.constant 0 : index
    %166 = vector.load %arg10[%c0_58, %c0_59] : memref<16x192xbf16, #tpu.memory_space<vmem>>, vector<16x192xbf16>
    %167 = arith.truncf %165 : vector<128x16xf32> to vector<128x16xbf16>
    %cst_60 = arith.constant dense<0.000000e+00> : vector<128x192xf32>
    %168 = tpu.matmul %167, %166, %cst_60 {dimension_numbers = #tpu.dot_dimension_numbers<[1], [0], [0], [1], [0, 0, 1, 1], [], []>} : vector<128x16xbf16>, vector<16x192xbf16>, vector<128x192xf32> -> vector<128x192xf32>
    %c0_61 = arith.constant 0 : index
    %c0_62 = arith.constant 0 : index
    %169 = vector.load %arg11[%c0_61, %c0_62] : memref<1x192xf32, #tpu.memory_space<vmem>>, vector<1x192xf32>
    %170 = vector.broadcast %169 : vector<1x192xf32> to vector<128x192xf32>
    %171 = arith.addf %168, %170 : vector<128x192xf32>
    %172 = vector.extract_strided_slice %171 {offsets = [0, 0], sizes = [128, 96], strides = [1, 1]} : vector<128x192xf32> to vector<128x96xf32>
    %173 = vector.extract_strided_slice %171 {offsets = [0, 96], sizes = [128, 96], strides = [1, 1]} : vector<128x192xf32> to vector<128x96xf32>
    %cst_63 = arith.constant 0.000000e+00 : f32
    %174 = vector.broadcast %cst_63 : f32 to vector<16x32xf32>
    %cst_64 = arith.constant 0.000000e+00 : f32
    %175 = vector.broadcast %cst_64 : f32 to vector<16x32xf32>
    %c0_65 = arith.constant 0 : index
    %c0_66 = arith.constant 0 : index
    %176 = vector.load %arg12[%c0_65, %c0_66] : memref<32x96xbf16, #tpu.memory_space<vmem>>, vector<32x96xbf16>
    %177 = arith.truncf %174 : vector<16x32xf32> to vector<16x32xbf16>
    %cst_67 = arith.constant dense<0.000000e+00> : vector<16x96xf32>
    %178 = tpu.matmul %177, %176, %cst_67 {dimension_numbers = #tpu.dot_dimension_numbers<[1], [0], [0], [1], [0, 0, 1, 1], [], []>} : vector<16x32xbf16>, vector<32x96xbf16>, vector<16x96xf32> -> vector<16x96xf32>
    %c0_68 = arith.constant 0 : index
    %c0_69 = arith.constant 0 : index
    %179 = vector.load %arg13[%c0_68, %c0_69] : memref<1x96xf32, #tpu.memory_space<vmem>>, vector<1x96xf32>
    %180 = vector.broadcast %179 : vector<1x96xf32> to vector<16x96xf32>
    %181 = arith.addf %178, %180 : vector<16x96xf32>
    %c0_70 = arith.constant 0 : index
    %c0_71 = arith.constant 0 : index
    %182 = vector.load %arg14[%c0_70, %c0_71] : memref<32x96xbf16, #tpu.memory_space<vmem>>, vector<32x96xbf16>
    %183 = arith.truncf %175 : vector<16x32xf32> to vector<16x32xbf16>
    %cst_72 = arith.constant dense<0.000000e+00> : vector<16x96xf32>
    %184 = tpu.matmul %183, %182, %cst_72 {dimension_numbers = #tpu.dot_dimension_numbers<[1], [0], [0], [1], [0, 0, 1, 1], [], []>} : vector<16x32xbf16>, vector<32x96xbf16>, vector<16x96xf32> -> vector<16x96xf32>
    %c0_73 = arith.constant 0 : index
    %c0_74 = arith.constant 0 : index
    %185 = vector.load %arg15[%c0_73, %c0_74] : memref<1x96xf32, #tpu.memory_space<vmem>>, vector<1x96xf32>
    %186 = vector.broadcast %185 : vector<1x96xf32> to vector<16x96xf32>
    %187 = arith.addf %184, %186 : vector<16x96xf32>
    %188 = vector.extract_strided_slice %172 {offsets = [0, 0], sizes = [16, 96], strides = [1, 1]} : vector<128x96xf32> to vector<16x96xf32>
    %189 = vector.extract_strided_slice %173 {offsets = [112, 0], sizes = [16, 96], strides = [1, 1]} : vector<128x96xf32> to vector<16x96xf32>
    %190 = vector.extract_strided_slice %188 {offsets = [0, 0], sizes = [16, 32], strides = [1, 1]} : vector<16x96xf32> to vector<16x32xf32>
    %191 = vector.extract_strided_slice %181 {offsets = [0, 0], sizes = [16, 32], strides = [1, 1]} : vector<16x96xf32> to vector<16x32xf32>
    %192 = arith.addf %190, %191 : vector<16x32xf32>
    %193 = arith.negf %192 : vector<16x32xf32>
    %194 = math.exp %193 : vector<16x32xf32>
    %cst_75 = arith.constant 1.000000e+00 : f32
    %195 = vector.broadcast %cst_75 : f32 to vector<16x32xf32>
    %196 = arith.addf %195, %194 : vector<16x32xf32>
    %197 = arith.divf %195, %196 : vector<16x32xf32>
    %198 = vector.extract_strided_slice %188 {offsets = [0, 32], sizes = [16, 32], strides = [1, 1]} : vector<16x96xf32> to vector<16x32xf32>
    %199 = vector.extract_strided_slice %181 {offsets = [0, 32], sizes = [16, 32], strides = [1, 1]} : vector<16x96xf32> to vector<16x32xf32>
    %200 = arith.addf %198, %199 : vector<16x32xf32>
    %201 = arith.negf %200 : vector<16x32xf32>
    %202 = math.exp %201 : vector<16x32xf32>
    %cst_76 = arith.constant 1.000000e+00 : f32
    %203 = vector.broadcast %cst_76 : f32 to vector<16x32xf32>
    %204 = arith.addf %203, %202 : vector<16x32xf32>
    %205 = arith.divf %203, %204 : vector<16x32xf32>
    %206 = vector.extract_strided_slice %188 {offsets = [0, 64], sizes = [16, 32], strides = [1, 1]} : vector<16x96xf32> to vector<16x32xf32>
    %207 = vector.extract_strided_slice %181 {offsets = [0, 64], sizes = [16, 32], strides = [1, 1]} : vector<16x96xf32> to vector<16x32xf32>
    %208 = arith.mulf %197, %207 : vector<16x32xf32>
    %209 = arith.addf %206, %208 : vector<16x32xf32>
    %210 = math.tanh %209 : vector<16x32xf32>
    %cst_77 = arith.constant 1.000000e+00 : f32
    %211 = vector.broadcast %cst_77 : f32 to vector<16x32xf32>
    %212 = arith.subf %211, %205 : vector<16x32xf32>
    %213 = arith.mulf %212, %210 : vector<16x32xf32>
    %214 = arith.mulf %205, %174 : vector<16x32xf32>
    %215 = arith.addf %213, %214 : vector<16x32xf32>
    %216 = vector.extract_strided_slice %189 {offsets = [0, 0], sizes = [16, 32], strides = [1, 1]} : vector<16x96xf32> to vector<16x32xf32>
    %217 = vector.extract_strided_slice %187 {offsets = [0, 0], sizes = [16, 32], strides = [1, 1]} : vector<16x96xf32> to vector<16x32xf32>
    %218 = arith.addf %216, %217 : vector<16x32xf32>
    %219 = arith.negf %218 : vector<16x32xf32>
    %220 = math.exp %219 : vector<16x32xf32>
    %cst_78 = arith.constant 1.000000e+00 : f32
    %221 = vector.broadcast %cst_78 : f32 to vector<16x32xf32>
    %222 = arith.addf %221, %220 : vector<16x32xf32>
    %223 = arith.divf %221, %222 : vector<16x32xf32>
    %224 = vector.extract_strided_slice %189 {offsets = [0, 32], sizes = [16, 32], strides = [1, 1]} : vector<16x96xf32> to vector<16x32xf32>
    %225 = vector.extract_strided_slice %187 {offsets = [0, 32], sizes = [16, 32], strides = [1, 1]} : vector<16x96xf32> to vector<16x32xf32>
    %226 = arith.addf %224, %225 : vector<16x32xf32>
    %227 = arith.negf %226 : vector<16x32xf32>
    %228 = math.exp %227 : vector<16x32xf32>
    %cst_79 = arith.constant 1.000000e+00 : f32
    %229 = vector.broadcast %cst_79 : f32 to vector<16x32xf32>
    %230 = arith.addf %229, %228 : vector<16x32xf32>
    %231 = arith.divf %229, %230 : vector<16x32xf32>
    %232 = vector.extract_strided_slice %189 {offsets = [0, 64], sizes = [16, 32], strides = [1, 1]} : vector<16x96xf32> to vector<16x32xf32>
    %233 = vector.extract_strided_slice %187 {offsets = [0, 64], sizes = [16, 32], strides = [1, 1]} : vector<16x96xf32> to vector<16x32xf32>
    %234 = arith.mulf %223, %233 : vector<16x32xf32>
    %235 = arith.addf %232, %234 : vector<16x32xf32>
    %236 = math.tanh %235 : vector<16x32xf32>
    %cst_80 = arith.constant 1.000000e+00 : f32
    %237 = vector.broadcast %cst_80 : f32 to vector<16x32xf32>
    %238 = arith.subf %237, %231 : vector<16x32xf32>
    %239 = arith.mulf %238, %236 : vector<16x32xf32>
    %240 = arith.mulf %231, %175 : vector<16x32xf32>
    %241 = arith.addf %239, %240 : vector<16x32xf32>
    %c0_81 = arith.constant 0 : index
    %c0_82 = arith.constant 0 : index
    %242 = vector.load %arg12[%c0_81, %c0_82] : memref<32x96xbf16, #tpu.memory_space<vmem>>, vector<32x96xbf16>
    %243 = arith.truncf %215 : vector<16x32xf32> to vector<16x32xbf16>
    %cst_83 = arith.constant dense<0.000000e+00> : vector<16x96xf32>
    %244 = tpu.matmul %243, %242, %cst_83 {dimension_numbers = #tpu.dot_dimension_numbers<[1], [0], [0], [1], [0, 0, 1, 1], [], []>} : vector<16x32xbf16>, vector<32x96xbf16>, vector<16x96xf32> -> vector<16x96xf32>
    %c0_84 = arith.constant 0 : index
    %c0_85 = arith.constant 0 : index
    %245 = vector.load %arg13[%c0_84, %c0_85] : memref<1x96xf32, #tpu.memory_space<vmem>>, vector<1x96xf32>
    %246 = vector.broadcast %245 : vector<1x96xf32> to vector<16x96xf32>
    %247 = arith.addf %244, %246 : vector<16x96xf32>
    %c0_86 = arith.constant 0 : index
    %c0_87 = arith.constant 0 : index
    %248 = vector.load %arg14[%c0_86, %c0_87] : memref<32x96xbf16, #tpu.memory_space<vmem>>, vector<32x96xbf16>
    %249 = arith.truncf %241 : vector<16x32xf32> to vector<16x32xbf16>
    %cst_88 = arith.constant dense<0.000000e+00> : vector<16x96xf32>
    %250 = tpu.matmul %249, %248, %cst_88 {dimension_numbers = #tpu.dot_dimension_numbers<[1], [0], [0], [1], [0, 0, 1, 1], [], []>} : vector<16x32xbf16>, vector<32x96xbf16>, vector<16x96xf32> -> vector<16x96xf32>
    %c0_89 = arith.constant 0 : index
    %c0_90 = arith.constant 0 : index
    %251 = vector.load %arg15[%c0_89, %c0_90] : memref<1x96xf32, #tpu.memory_space<vmem>>, vector<1x96xf32>
    %252 = vector.broadcast %251 : vector<1x96xf32> to vector<16x96xf32>
    %253 = arith.addf %250, %252 : vector<16x96xf32>
    %254 = vector.extract_strided_slice %172 {offsets = [16, 0], sizes = [16, 96], strides = [1, 1]} : vector<128x96xf32> to vector<16x96xf32>
    %255 = vector.extract_strided_slice %173 {offsets = [96, 0], sizes = [16, 96], strides = [1, 1]} : vector<128x96xf32> to vector<16x96xf32>
    %256 = vector.extract_strided_slice %254 {offsets = [0, 0], sizes = [16, 32], strides = [1, 1]} : vector<16x96xf32> to vector<16x32xf32>
    %257 = vector.extract_strided_slice %247 {offsets = [0, 0], sizes = [16, 32], strides = [1, 1]} : vector<16x96xf32> to vector<16x32xf32>
    %258 = arith.addf %256, %257 : vector<16x32xf32>
    %259 = arith.negf %258 : vector<16x32xf32>
    %260 = math.exp %259 : vector<16x32xf32>
    %cst_91 = arith.constant 1.000000e+00 : f32
    %261 = vector.broadcast %cst_91 : f32 to vector<16x32xf32>
    %262 = arith.addf %261, %260 : vector<16x32xf32>
    %263 = arith.divf %261, %262 : vector<16x32xf32>
    %264 = vector.extract_strided_slice %254 {offsets = [0, 32], sizes = [16, 32], strides = [1, 1]} : vector<16x96xf32> to vector<16x32xf32>
    %265 = vector.extract_strided_slice %247 {offsets = [0, 32], sizes = [16, 32], strides = [1, 1]} : vector<16x96xf32> to vector<16x32xf32>
    %266 = arith.addf %264, %265 : vector<16x32xf32>
    %267 = arith.negf %266 : vector<16x32xf32>
    %268 = math.exp %267 : vector<16x32xf32>
    %cst_92 = arith.constant 1.000000e+00 : f32
    %269 = vector.broadcast %cst_92 : f32 to vector<16x32xf32>
    %270 = arith.addf %269, %268 : vector<16x32xf32>
    %271 = arith.divf %269, %270 : vector<16x32xf32>
    %272 = vector.extract_strided_slice %254 {offsets = [0, 64], sizes = [16, 32], strides = [1, 1]} : vector<16x96xf32> to vector<16x32xf32>
    %273 = vector.extract_strided_slice %247 {offsets = [0, 64], sizes = [16, 32], strides = [1, 1]} : vector<16x96xf32> to vector<16x32xf32>
    %274 = arith.mulf %263, %273 : vector<16x32xf32>
    %275 = arith.addf %272, %274 : vector<16x32xf32>
    %276 = math.tanh %275 : vector<16x32xf32>
    %cst_93 = arith.constant 1.000000e+00 : f32
    %277 = vector.broadcast %cst_93 : f32 to vector<16x32xf32>
    %278 = arith.subf %277, %271 : vector<16x32xf32>
    %279 = arith.mulf %278, %276 : vector<16x32xf32>
    %280 = arith.mulf %271, %215 : vector<16x32xf32>
    %281 = arith.addf %279, %280 : vector<16x32xf32>
    %282 = vector.extract_strided_slice %255 {offsets = [0, 0], sizes = [16, 32], strides = [1, 1]} : vector<16x96xf32> to vector<16x32xf32>
    %283 = vector.extract_strided_slice %253 {offsets = [0, 0], sizes = [16, 32], strides = [1, 1]} : vector<16x96xf32> to vector<16x32xf32>
    %284 = arith.addf %282, %283 : vector<16x32xf32>
    %285 = arith.negf %284 : vector<16x32xf32>
    %286 = math.exp %285 : vector<16x32xf32>
    %cst_94 = arith.constant 1.000000e+00 : f32
    %287 = vector.broadcast %cst_94 : f32 to vector<16x32xf32>
    %288 = arith.addf %287, %286 : vector<16x32xf32>
    %289 = arith.divf %287, %288 : vector<16x32xf32>
    %290 = vector.extract_strided_slice %255 {offsets = [0, 32], sizes = [16, 32], strides = [1, 1]} : vector<16x96xf32> to vector<16x32xf32>
    %291 = vector.extract_strided_slice %253 {offsets = [0, 32], sizes = [16, 32], strides = [1, 1]} : vector<16x96xf32> to vector<16x32xf32>
    %292 = arith.addf %290, %291 : vector<16x32xf32>
    %293 = arith.negf %292 : vector<16x32xf32>
    %294 = math.exp %293 : vector<16x32xf32>
    %cst_95 = arith.constant 1.000000e+00 : f32
    %295 = vector.broadcast %cst_95 : f32 to vector<16x32xf32>
    %296 = arith.addf %295, %294 : vector<16x32xf32>
    %297 = arith.divf %295, %296 : vector<16x32xf32>
    %298 = vector.extract_strided_slice %255 {offsets = [0, 64], sizes = [16, 32], strides = [1, 1]} : vector<16x96xf32> to vector<16x32xf32>
    %299 = vector.extract_strided_slice %253 {offsets = [0, 64], sizes = [16, 32], strides = [1, 1]} : vector<16x96xf32> to vector<16x32xf32>
    %300 = arith.mulf %289, %299 : vector<16x32xf32>
    %301 = arith.addf %298, %300 : vector<16x32xf32>
    %302 = math.tanh %301 : vector<16x32xf32>
    %cst_96 = arith.constant 1.000000e+00 : f32
    %303 = vector.broadcast %cst_96 : f32 to vector<16x32xf32>
    %304 = arith.subf %303, %297 : vector<16x32xf32>
    %305 = arith.mulf %304, %302 : vector<16x32xf32>
    %306 = arith.mulf %297, %241 : vector<16x32xf32>
    %307 = arith.addf %305, %306 : vector<16x32xf32>
    %c0_97 = arith.constant 0 : index
    %c0_98 = arith.constant 0 : index
    %308 = vector.load %arg12[%c0_97, %c0_98] : memref<32x96xbf16, #tpu.memory_space<vmem>>, vector<32x96xbf16>
    %309 = arith.truncf %281 : vector<16x32xf32> to vector<16x32xbf16>
    %cst_99 = arith.constant dense<0.000000e+00> : vector<16x96xf32>
    %310 = tpu.matmul %309, %308, %cst_99 {dimension_numbers = #tpu.dot_dimension_numbers<[1], [0], [0], [1], [0, 0, 1, 1], [], []>} : vector<16x32xbf16>, vector<32x96xbf16>, vector<16x96xf32> -> vector<16x96xf32>
    %c0_100 = arith.constant 0 : index
    %c0_101 = arith.constant 0 : index
    %311 = vector.load %arg13[%c0_100, %c0_101] : memref<1x96xf32, #tpu.memory_space<vmem>>, vector<1x96xf32>
    %312 = vector.broadcast %311 : vector<1x96xf32> to vector<16x96xf32>
    %313 = arith.addf %310, %312 : vector<16x96xf32>
    %c0_102 = arith.constant 0 : index
    %c0_103 = arith.constant 0 : index
    %314 = vector.load %arg14[%c0_102, %c0_103] : memref<32x96xbf16, #tpu.memory_space<vmem>>, vector<32x96xbf16>
    %315 = arith.truncf %307 : vector<16x32xf32> to vector<16x32xbf16>
    %cst_104 = arith.constant dense<0.000000e+00> : vector<16x96xf32>
    %316 = tpu.matmul %315, %314, %cst_104 {dimension_numbers = #tpu.dot_dimension_numbers<[1], [0], [0], [1], [0, 0, 1, 1], [], []>} : vector<16x32xbf16>, vector<32x96xbf16>, vector<16x96xf32> -> vector<16x96xf32>
    %c0_105 = arith.constant 0 : index
    %c0_106 = arith.constant 0 : index
    %317 = vector.load %arg15[%c0_105, %c0_106] : memref<1x96xf32, #tpu.memory_space<vmem>>, vector<1x96xf32>
    %318 = vector.broadcast %317 : vector<1x96xf32> to vector<16x96xf32>
    %319 = arith.addf %316, %318 : vector<16x96xf32>
    %320 = vector.extract_strided_slice %172 {offsets = [32, 0], sizes = [16, 96], strides = [1, 1]} : vector<128x96xf32> to vector<16x96xf32>
    %321 = vector.extract_strided_slice %173 {offsets = [80, 0], sizes = [16, 96], strides = [1, 1]} : vector<128x96xf32> to vector<16x96xf32>
    %322 = vector.extract_strided_slice %320 {offsets = [0, 0], sizes = [16, 32], strides = [1, 1]} : vector<16x96xf32> to vector<16x32xf32>
    %323 = vector.extract_strided_slice %313 {offsets = [0, 0], sizes = [16, 32], strides = [1, 1]} : vector<16x96xf32> to vector<16x32xf32>
    %324 = arith.addf %322, %323 : vector<16x32xf32>
    %325 = arith.negf %324 : vector<16x32xf32>
    %326 = math.exp %325 : vector<16x32xf32>
    %cst_107 = arith.constant 1.000000e+00 : f32
    %327 = vector.broadcast %cst_107 : f32 to vector<16x32xf32>
    %328 = arith.addf %327, %326 : vector<16x32xf32>
    %329 = arith.divf %327, %328 : vector<16x32xf32>
    %330 = vector.extract_strided_slice %320 {offsets = [0, 32], sizes = [16, 32], strides = [1, 1]} : vector<16x96xf32> to vector<16x32xf32>
    %331 = vector.extract_strided_slice %313 {offsets = [0, 32], sizes = [16, 32], strides = [1, 1]} : vector<16x96xf32> to vector<16x32xf32>
    %332 = arith.addf %330, %331 : vector<16x32xf32>
    %333 = arith.negf %332 : vector<16x32xf32>
    %334 = math.exp %333 : vector<16x32xf32>
    %cst_108 = arith.constant 1.000000e+00 : f32
    %335 = vector.broadcast %cst_108 : f32 to vector<16x32xf32>
    %336 = arith.addf %335, %334 : vector<16x32xf32>
    %337 = arith.divf %335, %336 : vector<16x32xf32>
    %338 = vector.extract_strided_slice %320 {offsets = [0, 64], sizes = [16, 32], strides = [1, 1]} : vector<16x96xf32> to vector<16x32xf32>
    %339 = vector.extract_strided_slice %313 {offsets = [0, 64], sizes = [16, 32], strides = [1, 1]} : vector<16x96xf32> to vector<16x32xf32>
    %340 = arith.mulf %329, %339 : vector<16x32xf32>
    %341 = arith.addf %338, %340 : vector<16x32xf32>
    %342 = math.tanh %341 : vector<16x32xf32>
    %cst_109 = arith.constant 1.000000e+00 : f32
    %343 = vector.broadcast %cst_109 : f32 to vector<16x32xf32>
    %344 = arith.subf %343, %337 : vector<16x32xf32>
    %345 = arith.mulf %344, %342 : vector<16x32xf32>
    %346 = arith.mulf %337, %281 : vector<16x32xf32>
    %347 = arith.addf %345, %346 : vector<16x32xf32>
    %348 = vector.extract_strided_slice %321 {offsets = [0, 0], sizes = [16, 32], strides = [1, 1]} : vector<16x96xf32> to vector<16x32xf32>
    %349 = vector.extract_strided_slice %319 {offsets = [0, 0], sizes = [16, 32], strides = [1, 1]} : vector<16x96xf32> to vector<16x32xf32>
    %350 = arith.addf %348, %349 : vector<16x32xf32>
    %351 = arith.negf %350 : vector<16x32xf32>
    %352 = math.exp %351 : vector<16x32xf32>
    %cst_110 = arith.constant 1.000000e+00 : f32
    %353 = vector.broadcast %cst_110 : f32 to vector<16x32xf32>
    %354 = arith.addf %353, %352 : vector<16x32xf32>
    %355 = arith.divf %353, %354 : vector<16x32xf32>
    %356 = vector.extract_strided_slice %321 {offsets = [0, 32], sizes = [16, 32], strides = [1, 1]} : vector<16x96xf32> to vector<16x32xf32>
    %357 = vector.extract_strided_slice %319 {offsets = [0, 32], sizes = [16, 32], strides = [1, 1]} : vector<16x96xf32> to vector<16x32xf32>
    %358 = arith.addf %356, %357 : vector<16x32xf32>
    %359 = arith.negf %358 : vector<16x32xf32>
    %360 = math.exp %359 : vector<16x32xf32>
    %cst_111 = arith.constant 1.000000e+00 : f32
    %361 = vector.broadcast %cst_111 : f32 to vector<16x32xf32>
    %362 = arith.addf %361, %360 : vector<16x32xf32>
    %363 = arith.divf %361, %362 : vector<16x32xf32>
    %364 = vector.extract_strided_slice %321 {offsets = [0, 64], sizes = [16, 32], strides = [1, 1]} : vector<16x96xf32> to vector<16x32xf32>
    %365 = vector.extract_strided_slice %319 {offsets = [0, 64], sizes = [16, 32], strides = [1, 1]} : vector<16x96xf32> to vector<16x32xf32>
    %366 = arith.mulf %355, %365 : vector<16x32xf32>
    %367 = arith.addf %364, %366 : vector<16x32xf32>
    %368 = math.tanh %367 : vector<16x32xf32>
    %cst_112 = arith.constant 1.000000e+00 : f32
    %369 = vector.broadcast %cst_112 : f32 to vector<16x32xf32>
    %370 = arith.subf %369, %363 : vector<16x32xf32>
    %371 = arith.mulf %370, %368 : vector<16x32xf32>
    %372 = arith.mulf %363, %307 : vector<16x32xf32>
    %373 = arith.addf %371, %372 : vector<16x32xf32>
    %c0_113 = arith.constant 0 : index
    %c0_114 = arith.constant 0 : index
    %374 = vector.load %arg12[%c0_113, %c0_114] : memref<32x96xbf16, #tpu.memory_space<vmem>>, vector<32x96xbf16>
    %375 = arith.truncf %347 : vector<16x32xf32> to vector<16x32xbf16>
    %cst_115 = arith.constant dense<0.000000e+00> : vector<16x96xf32>
    %376 = tpu.matmul %375, %374, %cst_115 {dimension_numbers = #tpu.dot_dimension_numbers<[1], [0], [0], [1], [0, 0, 1, 1], [], []>} : vector<16x32xbf16>, vector<32x96xbf16>, vector<16x96xf32> -> vector<16x96xf32>
    %c0_116 = arith.constant 0 : index
    %c0_117 = arith.constant 0 : index
    %377 = vector.load %arg13[%c0_116, %c0_117] : memref<1x96xf32, #tpu.memory_space<vmem>>, vector<1x96xf32>
    %378 = vector.broadcast %377 : vector<1x96xf32> to vector<16x96xf32>
    %379 = arith.addf %376, %378 : vector<16x96xf32>
    %c0_118 = arith.constant 0 : index
    %c0_119 = arith.constant 0 : index
    %380 = vector.load %arg14[%c0_118, %c0_119] : memref<32x96xbf16, #tpu.memory_space<vmem>>, vector<32x96xbf16>
    %381 = arith.truncf %373 : vector<16x32xf32> to vector<16x32xbf16>
    %cst_120 = arith.constant dense<0.000000e+00> : vector<16x96xf32>
    %382 = tpu.matmul %381, %380, %cst_120 {dimension_numbers = #tpu.dot_dimension_numbers<[1], [0], [0], [1], [0, 0, 1, 1], [], []>} : vector<16x32xbf16>, vector<32x96xbf16>, vector<16x96xf32> -> vector<16x96xf32>
    %c0_121 = arith.constant 0 : index
    %c0_122 = arith.constant 0 : index
    %383 = vector.load %arg15[%c0_121, %c0_122] : memref<1x96xf32, #tpu.memory_space<vmem>>, vector<1x96xf32>
    %384 = vector.broadcast %383 : vector<1x96xf32> to vector<16x96xf32>
    %385 = arith.addf %382, %384 : vector<16x96xf32>
    %386 = vector.extract_strided_slice %172 {offsets = [48, 0], sizes = [16, 96], strides = [1, 1]} : vector<128x96xf32> to vector<16x96xf32>
    %387 = vector.extract_strided_slice %173 {offsets = [64, 0], sizes = [16, 96], strides = [1, 1]} : vector<128x96xf32> to vector<16x96xf32>
    %388 = vector.extract_strided_slice %386 {offsets = [0, 0], sizes = [16, 32], strides = [1, 1]} : vector<16x96xf32> to vector<16x32xf32>
    %389 = vector.extract_strided_slice %379 {offsets = [0, 0], sizes = [16, 32], strides = [1, 1]} : vector<16x96xf32> to vector<16x32xf32>
    %390 = arith.addf %388, %389 : vector<16x32xf32>
    %391 = arith.negf %390 : vector<16x32xf32>
    %392 = math.exp %391 : vector<16x32xf32>
    %cst_123 = arith.constant 1.000000e+00 : f32
    %393 = vector.broadcast %cst_123 : f32 to vector<16x32xf32>
    %394 = arith.addf %393, %392 : vector<16x32xf32>
    %395 = arith.divf %393, %394 : vector<16x32xf32>
    %396 = vector.extract_strided_slice %386 {offsets = [0, 32], sizes = [16, 32], strides = [1, 1]} : vector<16x96xf32> to vector<16x32xf32>
    %397 = vector.extract_strided_slice %379 {offsets = [0, 32], sizes = [16, 32], strides = [1, 1]} : vector<16x96xf32> to vector<16x32xf32>
    %398 = arith.addf %396, %397 : vector<16x32xf32>
    %399 = arith.negf %398 : vector<16x32xf32>
    %400 = math.exp %399 : vector<16x32xf32>
    %cst_124 = arith.constant 1.000000e+00 : f32
    %401 = vector.broadcast %cst_124 : f32 to vector<16x32xf32>
    %402 = arith.addf %401, %400 : vector<16x32xf32>
    %403 = arith.divf %401, %402 : vector<16x32xf32>
    %404 = vector.extract_strided_slice %386 {offsets = [0, 64], sizes = [16, 32], strides = [1, 1]} : vector<16x96xf32> to vector<16x32xf32>
    %405 = vector.extract_strided_slice %379 {offsets = [0, 64], sizes = [16, 32], strides = [1, 1]} : vector<16x96xf32> to vector<16x32xf32>
    %406 = arith.mulf %395, %405 : vector<16x32xf32>
    %407 = arith.addf %404, %406 : vector<16x32xf32>
    %408 = math.tanh %407 : vector<16x32xf32>
    %cst_125 = arith.constant 1.000000e+00 : f32
    %409 = vector.broadcast %cst_125 : f32 to vector<16x32xf32>
    %410 = arith.subf %409, %403 : vector<16x32xf32>
    %411 = arith.mulf %410, %408 : vector<16x32xf32>
    %412 = arith.mulf %403, %347 : vector<16x32xf32>
    %413 = arith.addf %411, %412 : vector<16x32xf32>
    %414 = vector.extract_strided_slice %387 {offsets = [0, 0], sizes = [16, 32], strides = [1, 1]} : vector<16x96xf32> to vector<16x32xf32>
    %415 = vector.extract_strided_slice %385 {offsets = [0, 0], sizes = [16, 32], strides = [1, 1]} : vector<16x96xf32> to vector<16x32xf32>
    %416 = arith.addf %414, %415 : vector<16x32xf32>
    %417 = arith.negf %416 : vector<16x32xf32>
    %418 = math.exp %417 : vector<16x32xf32>
    %cst_126 = arith.constant 1.000000e+00 : f32
    %419 = vector.broadcast %cst_126 : f32 to vector<16x32xf32>
    %420 = arith.addf %419, %418 : vector<16x32xf32>
    %421 = arith.divf %419, %420 : vector<16x32xf32>
    %422 = vector.extract_strided_slice %387 {offsets = [0, 32], sizes = [16, 32], strides = [1, 1]} : vector<16x96xf32> to vector<16x32xf32>
    %423 = vector.extract_strided_slice %385 {offsets = [0, 32], sizes = [16, 32], strides = [1, 1]} : vector<16x96xf32> to vector<16x32xf32>
    %424 = arith.addf %422, %423 : vector<16x32xf32>
    %425 = arith.negf %424 : vector<16x32xf32>
    %426 = math.exp %425 : vector<16x32xf32>
    %cst_127 = arith.constant 1.000000e+00 : f32
    %427 = vector.broadcast %cst_127 : f32 to vector<16x32xf32>
    %428 = arith.addf %427, %426 : vector<16x32xf32>
    %429 = arith.divf %427, %428 : vector<16x32xf32>
    %430 = vector.extract_strided_slice %387 {offsets = [0, 64], sizes = [16, 32], strides = [1, 1]} : vector<16x96xf32> to vector<16x32xf32>
    %431 = vector.extract_strided_slice %385 {offsets = [0, 64], sizes = [16, 32], strides = [1, 1]} : vector<16x96xf32> to vector<16x32xf32>
    %432 = arith.mulf %421, %431 : vector<16x32xf32>
    %433 = arith.addf %430, %432 : vector<16x32xf32>
    %434 = math.tanh %433 : vector<16x32xf32>
    %cst_128 = arith.constant 1.000000e+00 : f32
    %435 = vector.broadcast %cst_128 : f32 to vector<16x32xf32>
    %436 = arith.subf %435, %429 : vector<16x32xf32>
    %437 = arith.mulf %436, %434 : vector<16x32xf32>
    %438 = arith.mulf %429, %373 : vector<16x32xf32>
    %439 = arith.addf %437, %438 : vector<16x32xf32>
    %c0_129 = arith.constant 0 : index
    %c0_130 = arith.constant 0 : index
    %440 = vector.load %arg12[%c0_129, %c0_130] : memref<32x96xbf16, #tpu.memory_space<vmem>>, vector<32x96xbf16>
    %441 = arith.truncf %413 : vector<16x32xf32> to vector<16x32xbf16>
    %cst_131 = arith.constant dense<0.000000e+00> : vector<16x96xf32>
    %442 = tpu.matmul %441, %440, %cst_131 {dimension_numbers = #tpu.dot_dimension_numbers<[1], [0], [0], [1], [0, 0, 1, 1], [], []>} : vector<16x32xbf16>, vector<32x96xbf16>, vector<16x96xf32> -> vector<16x96xf32>
    %c0_132 = arith.constant 0 : index
    %c0_133 = arith.constant 0 : index
    %443 = vector.load %arg13[%c0_132, %c0_133] : memref<1x96xf32, #tpu.memory_space<vmem>>, vector<1x96xf32>
    %444 = vector.broadcast %443 : vector<1x96xf32> to vector<16x96xf32>
    %445 = arith.addf %442, %444 : vector<16x96xf32>
    %c0_134 = arith.constant 0 : index
    %c0_135 = arith.constant 0 : index
    %446 = vector.load %arg14[%c0_134, %c0_135] : memref<32x96xbf16, #tpu.memory_space<vmem>>, vector<32x96xbf16>
    %447 = arith.truncf %439 : vector<16x32xf32> to vector<16x32xbf16>
    %cst_136 = arith.constant dense<0.000000e+00> : vector<16x96xf32>
    %448 = tpu.matmul %447, %446, %cst_136 {dimension_numbers = #tpu.dot_dimension_numbers<[1], [0], [0], [1], [0, 0, 1, 1], [], []>} : vector<16x32xbf16>, vector<32x96xbf16>, vector<16x96xf32> -> vector<16x96xf32>
    %c0_137 = arith.constant 0 : index
    %c0_138 = arith.constant 0 : index
    %449 = vector.load %arg15[%c0_137, %c0_138] : memref<1x96xf32, #tpu.memory_space<vmem>>, vector<1x96xf32>
    %450 = vector.broadcast %449 : vector<1x96xf32> to vector<16x96xf32>
    %451 = arith.addf %448, %450 : vector<16x96xf32>
    %452 = vector.extract_strided_slice %172 {offsets = [64, 0], sizes = [16, 96], strides = [1, 1]} : vector<128x96xf32> to vector<16x96xf32>
    %453 = vector.extract_strided_slice %173 {offsets = [48, 0], sizes = [16, 96], strides = [1, 1]} : vector<128x96xf32> to vector<16x96xf32>
    %454 = vector.extract_strided_slice %452 {offsets = [0, 0], sizes = [16, 32], strides = [1, 1]} : vector<16x96xf32> to vector<16x32xf32>
    %455 = vector.extract_strided_slice %445 {offsets = [0, 0], sizes = [16, 32], strides = [1, 1]} : vector<16x96xf32> to vector<16x32xf32>
    %456 = arith.addf %454, %455 : vector<16x32xf32>
    %457 = arith.negf %456 : vector<16x32xf32>
    %458 = math.exp %457 : vector<16x32xf32>
    %cst_139 = arith.constant 1.000000e+00 : f32
    %459 = vector.broadcast %cst_139 : f32 to vector<16x32xf32>
    %460 = arith.addf %459, %458 : vector<16x32xf32>
    %461 = arith.divf %459, %460 : vector<16x32xf32>
    %462 = vector.extract_strided_slice %452 {offsets = [0, 32], sizes = [16, 32], strides = [1, 1]} : vector<16x96xf32> to vector<16x32xf32>
    %463 = vector.extract_strided_slice %445 {offsets = [0, 32], sizes = [16, 32], strides = [1, 1]} : vector<16x96xf32> to vector<16x32xf32>
    %464 = arith.addf %462, %463 : vector<16x32xf32>
    %465 = arith.negf %464 : vector<16x32xf32>
    %466 = math.exp %465 : vector<16x32xf32>
    %cst_140 = arith.constant 1.000000e+00 : f32
    %467 = vector.broadcast %cst_140 : f32 to vector<16x32xf32>
    %468 = arith.addf %467, %466 : vector<16x32xf32>
    %469 = arith.divf %467, %468 : vector<16x32xf32>
    %470 = vector.extract_strided_slice %452 {offsets = [0, 64], sizes = [16, 32], strides = [1, 1]} : vector<16x96xf32> to vector<16x32xf32>
    %471 = vector.extract_strided_slice %445 {offsets = [0, 64], sizes = [16, 32], strides = [1, 1]} : vector<16x96xf32> to vector<16x32xf32>
    %472 = arith.mulf %461, %471 : vector<16x32xf32>
    %473 = arith.addf %470, %472 : vector<16x32xf32>
    %474 = math.tanh %473 : vector<16x32xf32>
    %cst_141 = arith.constant 1.000000e+00 : f32
    %475 = vector.broadcast %cst_141 : f32 to vector<16x32xf32>
    %476 = arith.subf %475, %469 : vector<16x32xf32>
    %477 = arith.mulf %476, %474 : vector<16x32xf32>
    %478 = arith.mulf %469, %413 : vector<16x32xf32>
    %479 = arith.addf %477, %478 : vector<16x32xf32>
    %480 = vector.extract_strided_slice %453 {offsets = [0, 0], sizes = [16, 32], strides = [1, 1]} : vector<16x96xf32> to vector<16x32xf32>
    %481 = vector.extract_strided_slice %451 {offsets = [0, 0], sizes = [16, 32], strides = [1, 1]} : vector<16x96xf32> to vector<16x32xf32>
    %482 = arith.addf %480, %481 : vector<16x32xf32>
    %483 = arith.negf %482 : vector<16x32xf32>
    %484 = math.exp %483 : vector<16x32xf32>
    %cst_142 = arith.constant 1.000000e+00 : f32
    %485 = vector.broadcast %cst_142 : f32 to vector<16x32xf32>
    %486 = arith.addf %485, %484 : vector<16x32xf32>
    %487 = arith.divf %485, %486 : vector<16x32xf32>
    %488 = vector.extract_strided_slice %453 {offsets = [0, 32], sizes = [16, 32], strides = [1, 1]} : vector<16x96xf32> to vector<16x32xf32>
    %489 = vector.extract_strided_slice %451 {offsets = [0, 32], sizes = [16, 32], strides = [1, 1]} : vector<16x96xf32> to vector<16x32xf32>
    %490 = arith.addf %488, %489 : vector<16x32xf32>
    %491 = arith.negf %490 : vector<16x32xf32>
    %492 = math.exp %491 : vector<16x32xf32>
    %cst_143 = arith.constant 1.000000e+00 : f32
    %493 = vector.broadcast %cst_143 : f32 to vector<16x32xf32>
    %494 = arith.addf %493, %492 : vector<16x32xf32>
    %495 = arith.divf %493, %494 : vector<16x32xf32>
    %496 = vector.extract_strided_slice %453 {offsets = [0, 64], sizes = [16, 32], strides = [1, 1]} : vector<16x96xf32> to vector<16x32xf32>
    %497 = vector.extract_strided_slice %451 {offsets = [0, 64], sizes = [16, 32], strides = [1, 1]} : vector<16x96xf32> to vector<16x32xf32>
    %498 = arith.mulf %487, %497 : vector<16x32xf32>
    %499 = arith.addf %496, %498 : vector<16x32xf32>
    %500 = math.tanh %499 : vector<16x32xf32>
    %cst_144 = arith.constant 1.000000e+00 : f32
    %501 = vector.broadcast %cst_144 : f32 to vector<16x32xf32>
    %502 = arith.subf %501, %495 : vector<16x32xf32>
    %503 = arith.mulf %502, %500 : vector<16x32xf32>
    %504 = arith.mulf %495, %439 : vector<16x32xf32>
    %505 = arith.addf %503, %504 : vector<16x32xf32>
    %c0_145 = arith.constant 0 : index
    %c0_146 = arith.constant 0 : index
    %506 = vector.load %arg12[%c0_145, %c0_146] : memref<32x96xbf16, #tpu.memory_space<vmem>>, vector<32x96xbf16>
    %507 = arith.truncf %479 : vector<16x32xf32> to vector<16x32xbf16>
    %cst_147 = arith.constant dense<0.000000e+00> : vector<16x96xf32>
    %508 = tpu.matmul %507, %506, %cst_147 {dimension_numbers = #tpu.dot_dimension_numbers<[1], [0], [0], [1], [0, 0, 1, 1], [], []>} : vector<16x32xbf16>, vector<32x96xbf16>, vector<16x96xf32> -> vector<16x96xf32>
    %c0_148 = arith.constant 0 : index
    %c0_149 = arith.constant 0 : index
    %509 = vector.load %arg13[%c0_148, %c0_149] : memref<1x96xf32, #tpu.memory_space<vmem>>, vector<1x96xf32>
    %510 = vector.broadcast %509 : vector<1x96xf32> to vector<16x96xf32>
    %511 = arith.addf %508, %510 : vector<16x96xf32>
    %c0_150 = arith.constant 0 : index
    %c0_151 = arith.constant 0 : index
    %512 = vector.load %arg14[%c0_150, %c0_151] : memref<32x96xbf16, #tpu.memory_space<vmem>>, vector<32x96xbf16>
    %513 = arith.truncf %505 : vector<16x32xf32> to vector<16x32xbf16>
    %cst_152 = arith.constant dense<0.000000e+00> : vector<16x96xf32>
    %514 = tpu.matmul %513, %512, %cst_152 {dimension_numbers = #tpu.dot_dimension_numbers<[1], [0], [0], [1], [0, 0, 1, 1], [], []>} : vector<16x32xbf16>, vector<32x96xbf16>, vector<16x96xf32> -> vector<16x96xf32>
    %c0_153 = arith.constant 0 : index
    %c0_154 = arith.constant 0 : index
    %515 = vector.load %arg15[%c0_153, %c0_154] : memref<1x96xf32, #tpu.memory_space<vmem>>, vector<1x96xf32>
    %516 = vector.broadcast %515 : vector<1x96xf32> to vector<16x96xf32>
    %517 = arith.addf %514, %516 : vector<16x96xf32>
    %518 = vector.extract_strided_slice %172 {offsets = [80, 0], sizes = [16, 96], strides = [1, 1]} : vector<128x96xf32> to vector<16x96xf32>
    %519 = vector.extract_strided_slice %173 {offsets = [32, 0], sizes = [16, 96], strides = [1, 1]} : vector<128x96xf32> to vector<16x96xf32>
    %520 = vector.extract_strided_slice %518 {offsets = [0, 0], sizes = [16, 32], strides = [1, 1]} : vector<16x96xf32> to vector<16x32xf32>
    %521 = vector.extract_strided_slice %511 {offsets = [0, 0], sizes = [16, 32], strides = [1, 1]} : vector<16x96xf32> to vector<16x32xf32>
    %522 = arith.addf %520, %521 : vector<16x32xf32>
    %523 = arith.negf %522 : vector<16x32xf32>
    %524 = math.exp %523 : vector<16x32xf32>
    %cst_155 = arith.constant 1.000000e+00 : f32
    %525 = vector.broadcast %cst_155 : f32 to vector<16x32xf32>
    %526 = arith.addf %525, %524 : vector<16x32xf32>
    %527 = arith.divf %525, %526 : vector<16x32xf32>
    %528 = vector.extract_strided_slice %518 {offsets = [0, 32], sizes = [16, 32], strides = [1, 1]} : vector<16x96xf32> to vector<16x32xf32>
    %529 = vector.extract_strided_slice %511 {offsets = [0, 32], sizes = [16, 32], strides = [1, 1]} : vector<16x96xf32> to vector<16x32xf32>
    %530 = arith.addf %528, %529 : vector<16x32xf32>
    %531 = arith.negf %530 : vector<16x32xf32>
    %532 = math.exp %531 : vector<16x32xf32>
    %cst_156 = arith.constant 1.000000e+00 : f32
    %533 = vector.broadcast %cst_156 : f32 to vector<16x32xf32>
    %534 = arith.addf %533, %532 : vector<16x32xf32>
    %535 = arith.divf %533, %534 : vector<16x32xf32>
    %536 = vector.extract_strided_slice %518 {offsets = [0, 64], sizes = [16, 32], strides = [1, 1]} : vector<16x96xf32> to vector<16x32xf32>
    %537 = vector.extract_strided_slice %511 {offsets = [0, 64], sizes = [16, 32], strides = [1, 1]} : vector<16x96xf32> to vector<16x32xf32>
    %538 = arith.mulf %527, %537 : vector<16x32xf32>
    %539 = arith.addf %536, %538 : vector<16x32xf32>
    %540 = math.tanh %539 : vector<16x32xf32>
    %cst_157 = arith.constant 1.000000e+00 : f32
    %541 = vector.broadcast %cst_157 : f32 to vector<16x32xf32>
    %542 = arith.subf %541, %535 : vector<16x32xf32>
    %543 = arith.mulf %542, %540 : vector<16x32xf32>
    %544 = arith.mulf %535, %479 : vector<16x32xf32>
    %545 = arith.addf %543, %544 : vector<16x32xf32>
    %546 = vector.extract_strided_slice %519 {offsets = [0, 0], sizes = [16, 32], strides = [1, 1]} : vector<16x96xf32> to vector<16x32xf32>
    %547 = vector.extract_strided_slice %517 {offsets = [0, 0], sizes = [16, 32], strides = [1, 1]} : vector<16x96xf32> to vector<16x32xf32>
    %548 = arith.addf %546, %547 : vector<16x32xf32>
    %549 = arith.negf %548 : vector<16x32xf32>
    %550 = math.exp %549 : vector<16x32xf32>
    %cst_158 = arith.constant 1.000000e+00 : f32
    %551 = vector.broadcast %cst_158 : f32 to vector<16x32xf32>
    %552 = arith.addf %551, %550 : vector<16x32xf32>
    %553 = arith.divf %551, %552 : vector<16x32xf32>
    %554 = vector.extract_strided_slice %519 {offsets = [0, 32], sizes = [16, 32], strides = [1, 1]} : vector<16x96xf32> to vector<16x32xf32>
    %555 = vector.extract_strided_slice %517 {offsets = [0, 32], sizes = [16, 32], strides = [1, 1]} : vector<16x96xf32> to vector<16x32xf32>
    %556 = arith.addf %554, %555 : vector<16x32xf32>
    %557 = arith.negf %556 : vector<16x32xf32>
    %558 = math.exp %557 : vector<16x32xf32>
    %cst_159 = arith.constant 1.000000e+00 : f32
    %559 = vector.broadcast %cst_159 : f32 to vector<16x32xf32>
    %560 = arith.addf %559, %558 : vector<16x32xf32>
    %561 = arith.divf %559, %560 : vector<16x32xf32>
    %562 = vector.extract_strided_slice %519 {offsets = [0, 64], sizes = [16, 32], strides = [1, 1]} : vector<16x96xf32> to vector<16x32xf32>
    %563 = vector.extract_strided_slice %517 {offsets = [0, 64], sizes = [16, 32], strides = [1, 1]} : vector<16x96xf32> to vector<16x32xf32>
    %564 = arith.mulf %553, %563 : vector<16x32xf32>
    %565 = arith.addf %562, %564 : vector<16x32xf32>
    %566 = math.tanh %565 : vector<16x32xf32>
    %cst_160 = arith.constant 1.000000e+00 : f32
    %567 = vector.broadcast %cst_160 : f32 to vector<16x32xf32>
    %568 = arith.subf %567, %561 : vector<16x32xf32>
    %569 = arith.mulf %568, %566 : vector<16x32xf32>
    %570 = arith.mulf %561, %505 : vector<16x32xf32>
    %571 = arith.addf %569, %570 : vector<16x32xf32>
    %c0_161 = arith.constant 0 : index
    %c0_162 = arith.constant 0 : index
    %572 = vector.load %arg12[%c0_161, %c0_162] : memref<32x96xbf16, #tpu.memory_space<vmem>>, vector<32x96xbf16>
    %573 = arith.truncf %545 : vector<16x32xf32> to vector<16x32xbf16>
    %cst_163 = arith.constant dense<0.000000e+00> : vector<16x96xf32>
    %574 = tpu.matmul %573, %572, %cst_163 {dimension_numbers = #tpu.dot_dimension_numbers<[1], [0], [0], [1], [0, 0, 1, 1], [], []>} : vector<16x32xbf16>, vector<32x96xbf16>, vector<16x96xf32> -> vector<16x96xf32>
    %c0_164 = arith.constant 0 : index
    %c0_165 = arith.constant 0 : index
    %575 = vector.load %arg13[%c0_164, %c0_165] : memref<1x96xf32, #tpu.memory_space<vmem>>, vector<1x96xf32>
    %576 = vector.broadcast %575 : vector<1x96xf32> to vector<16x96xf32>
    %577 = arith.addf %574, %576 : vector<16x96xf32>
    %c0_166 = arith.constant 0 : index
    %c0_167 = arith.constant 0 : index
    %578 = vector.load %arg14[%c0_166, %c0_167] : memref<32x96xbf16, #tpu.memory_space<vmem>>, vector<32x96xbf16>
    %579 = arith.truncf %571 : vector<16x32xf32> to vector<16x32xbf16>
    %cst_168 = arith.constant dense<0.000000e+00> : vector<16x96xf32>
    %580 = tpu.matmul %579, %578, %cst_168 {dimension_numbers = #tpu.dot_dimension_numbers<[1], [0], [0], [1], [0, 0, 1, 1], [], []>} : vector<16x32xbf16>, vector<32x96xbf16>, vector<16x96xf32> -> vector<16x96xf32>
    %c0_169 = arith.constant 0 : index
    %c0_170 = arith.constant 0 : index
    %581 = vector.load %arg15[%c0_169, %c0_170] : memref<1x96xf32, #tpu.memory_space<vmem>>, vector<1x96xf32>
    %582 = vector.broadcast %581 : vector<1x96xf32> to vector<16x96xf32>
    %583 = arith.addf %580, %582 : vector<16x96xf32>
    %584 = vector.extract_strided_slice %172 {offsets = [96, 0], sizes = [16, 96], strides = [1, 1]} : vector<128x96xf32> to vector<16x96xf32>
    %585 = vector.extract_strided_slice %173 {offsets = [16, 0], sizes = [16, 96], strides = [1, 1]} : vector<128x96xf32> to vector<16x96xf32>
    %586 = vector.extract_strided_slice %584 {offsets = [0, 0], sizes = [16, 32], strides = [1, 1]} : vector<16x96xf32> to vector<16x32xf32>
    %587 = vector.extract_strided_slice %577 {offsets = [0, 0], sizes = [16, 32], strides = [1, 1]} : vector<16x96xf32> to vector<16x32xf32>
    %588 = arith.addf %586, %587 : vector<16x32xf32>
    %589 = arith.negf %588 : vector<16x32xf32>
    %590 = math.exp %589 : vector<16x32xf32>
    %cst_171 = arith.constant 1.000000e+00 : f32
    %591 = vector.broadcast %cst_171 : f32 to vector<16x32xf32>
    %592 = arith.addf %591, %590 : vector<16x32xf32>
    %593 = arith.divf %591, %592 : vector<16x32xf32>
    %594 = vector.extract_strided_slice %584 {offsets = [0, 32], sizes = [16, 32], strides = [1, 1]} : vector<16x96xf32> to vector<16x32xf32>
    %595 = vector.extract_strided_slice %577 {offsets = [0, 32], sizes = [16, 32], strides = [1, 1]} : vector<16x96xf32> to vector<16x32xf32>
    %596 = arith.addf %594, %595 : vector<16x32xf32>
    %597 = arith.negf %596 : vector<16x32xf32>
    %598 = math.exp %597 : vector<16x32xf32>
    %cst_172 = arith.constant 1.000000e+00 : f32
    %599 = vector.broadcast %cst_172 : f32 to vector<16x32xf32>
    %600 = arith.addf %599, %598 : vector<16x32xf32>
    %601 = arith.divf %599, %600 : vector<16x32xf32>
    %602 = vector.extract_strided_slice %584 {offsets = [0, 64], sizes = [16, 32], strides = [1, 1]} : vector<16x96xf32> to vector<16x32xf32>
    %603 = vector.extract_strided_slice %577 {offsets = [0, 64], sizes = [16, 32], strides = [1, 1]} : vector<16x96xf32> to vector<16x32xf32>
    %604 = arith.mulf %593, %603 : vector<16x32xf32>
    %605 = arith.addf %602, %604 : vector<16x32xf32>
    %606 = math.tanh %605 : vector<16x32xf32>
    %cst_173 = arith.constant 1.000000e+00 : f32
    %607 = vector.broadcast %cst_173 : f32 to vector<16x32xf32>
    %608 = arith.subf %607, %601 : vector<16x32xf32>
    %609 = arith.mulf %608, %606 : vector<16x32xf32>
    %610 = arith.mulf %601, %545 : vector<16x32xf32>
    %611 = arith.addf %609, %610 : vector<16x32xf32>
    %612 = vector.extract_strided_slice %585 {offsets = [0, 0], sizes = [16, 32], strides = [1, 1]} : vector<16x96xf32> to vector<16x32xf32>
    %613 = vector.extract_strided_slice %583 {offsets = [0, 0], sizes = [16, 32], strides = [1, 1]} : vector<16x96xf32> to vector<16x32xf32>
    %614 = arith.addf %612, %613 : vector<16x32xf32>
    %615 = arith.negf %614 : vector<16x32xf32>
    %616 = math.exp %615 : vector<16x32xf32>
    %cst_174 = arith.constant 1.000000e+00 : f32
    %617 = vector.broadcast %cst_174 : f32 to vector<16x32xf32>
    %618 = arith.addf %617, %616 : vector<16x32xf32>
    %619 = arith.divf %617, %618 : vector<16x32xf32>
    %620 = vector.extract_strided_slice %585 {offsets = [0, 32], sizes = [16, 32], strides = [1, 1]} : vector<16x96xf32> to vector<16x32xf32>
    %621 = vector.extract_strided_slice %583 {offsets = [0, 32], sizes = [16, 32], strides = [1, 1]} : vector<16x96xf32> to vector<16x32xf32>
    %622 = arith.addf %620, %621 : vector<16x32xf32>
    %623 = arith.negf %622 : vector<16x32xf32>
    %624 = math.exp %623 : vector<16x32xf32>
    %cst_175 = arith.constant 1.000000e+00 : f32
    %625 = vector.broadcast %cst_175 : f32 to vector<16x32xf32>
    %626 = arith.addf %625, %624 : vector<16x32xf32>
    %627 = arith.divf %625, %626 : vector<16x32xf32>
    %628 = vector.extract_strided_slice %585 {offsets = [0, 64], sizes = [16, 32], strides = [1, 1]} : vector<16x96xf32> to vector<16x32xf32>
    %629 = vector.extract_strided_slice %583 {offsets = [0, 64], sizes = [16, 32], strides = [1, 1]} : vector<16x96xf32> to vector<16x32xf32>
    %630 = arith.mulf %619, %629 : vector<16x32xf32>
    %631 = arith.addf %628, %630 : vector<16x32xf32>
    %632 = math.tanh %631 : vector<16x32xf32>
    %cst_176 = arith.constant 1.000000e+00 : f32
    %633 = vector.broadcast %cst_176 : f32 to vector<16x32xf32>
    %634 = arith.subf %633, %627 : vector<16x32xf32>
    %635 = arith.mulf %634, %632 : vector<16x32xf32>
    %636 = arith.mulf %627, %571 : vector<16x32xf32>
    %637 = arith.addf %635, %636 : vector<16x32xf32>
    %c0_177 = arith.constant 0 : index
    %c0_178 = arith.constant 0 : index
    %638 = vector.load %arg12[%c0_177, %c0_178] : memref<32x96xbf16, #tpu.memory_space<vmem>>, vector<32x96xbf16>
    %639 = arith.truncf %611 : vector<16x32xf32> to vector<16x32xbf16>
    %cst_179 = arith.constant dense<0.000000e+00> : vector<16x96xf32>
    %640 = tpu.matmul %639, %638, %cst_179 {dimension_numbers = #tpu.dot_dimension_numbers<[1], [0], [0], [1], [0, 0, 1, 1], [], []>} : vector<16x32xbf16>, vector<32x96xbf16>, vector<16x96xf32> -> vector<16x96xf32>
    %c0_180 = arith.constant 0 : index
    %c0_181 = arith.constant 0 : index
    %641 = vector.load %arg13[%c0_180, %c0_181] : memref<1x96xf32, #tpu.memory_space<vmem>>, vector<1x96xf32>
    %642 = vector.broadcast %641 : vector<1x96xf32> to vector<16x96xf32>
    %643 = arith.addf %640, %642 : vector<16x96xf32>
    %c0_182 = arith.constant 0 : index
    %c0_183 = arith.constant 0 : index
    %644 = vector.load %arg14[%c0_182, %c0_183] : memref<32x96xbf16, #tpu.memory_space<vmem>>, vector<32x96xbf16>
    %645 = arith.truncf %637 : vector<16x32xf32> to vector<16x32xbf16>
    %cst_184 = arith.constant dense<0.000000e+00> : vector<16x96xf32>
    %646 = tpu.matmul %645, %644, %cst_184 {dimension_numbers = #tpu.dot_dimension_numbers<[1], [0], [0], [1], [0, 0, 1, 1], [], []>} : vector<16x32xbf16>, vector<32x96xbf16>, vector<16x96xf32> -> vector<16x96xf32>
    %c0_185 = arith.constant 0 : index
    %c0_186 = arith.constant 0 : index
    %647 = vector.load %arg15[%c0_185, %c0_186] : memref<1x96xf32, #tpu.memory_space<vmem>>, vector<1x96xf32>
    %648 = vector.broadcast %647 : vector<1x96xf32> to vector<16x96xf32>
    %649 = arith.addf %646, %648 : vector<16x96xf32>
    %650 = vector.extract_strided_slice %172 {offsets = [112, 0], sizes = [16, 96], strides = [1, 1]} : vector<128x96xf32> to vector<16x96xf32>
    %651 = vector.extract_strided_slice %173 {offsets = [0, 0], sizes = [16, 96], strides = [1, 1]} : vector<128x96xf32> to vector<16x96xf32>
    %652 = vector.extract_strided_slice %650 {offsets = [0, 0], sizes = [16, 32], strides = [1, 1]} : vector<16x96xf32> to vector<16x32xf32>
    %653 = vector.extract_strided_slice %643 {offsets = [0, 0], sizes = [16, 32], strides = [1, 1]} : vector<16x96xf32> to vector<16x32xf32>
    %654 = arith.addf %652, %653 : vector<16x32xf32>
    %655 = arith.negf %654 : vector<16x32xf32>
    %656 = math.exp %655 : vector<16x32xf32>
    %cst_187 = arith.constant 1.000000e+00 : f32
    %657 = vector.broadcast %cst_187 : f32 to vector<16x32xf32>
    %658 = arith.addf %657, %656 : vector<16x32xf32>
    %659 = arith.divf %657, %658 : vector<16x32xf32>
    %660 = vector.extract_strided_slice %650 {offsets = [0, 32], sizes = [16, 32], strides = [1, 1]} : vector<16x96xf32> to vector<16x32xf32>
    %661 = vector.extract_strided_slice %643 {offsets = [0, 32], sizes = [16, 32], strides = [1, 1]} : vector<16x96xf32> to vector<16x32xf32>
    %662 = arith.addf %660, %661 : vector<16x32xf32>
    %663 = arith.negf %662 : vector<16x32xf32>
    %664 = math.exp %663 : vector<16x32xf32>
    %cst_188 = arith.constant 1.000000e+00 : f32
    %665 = vector.broadcast %cst_188 : f32 to vector<16x32xf32>
    %666 = arith.addf %665, %664 : vector<16x32xf32>
    %667 = arith.divf %665, %666 : vector<16x32xf32>
    %668 = vector.extract_strided_slice %650 {offsets = [0, 64], sizes = [16, 32], strides = [1, 1]} : vector<16x96xf32> to vector<16x32xf32>
    %669 = vector.extract_strided_slice %643 {offsets = [0, 64], sizes = [16, 32], strides = [1, 1]} : vector<16x96xf32> to vector<16x32xf32>
    %670 = arith.mulf %659, %669 : vector<16x32xf32>
    %671 = arith.addf %668, %670 : vector<16x32xf32>
    %672 = math.tanh %671 : vector<16x32xf32>
    %cst_189 = arith.constant 1.000000e+00 : f32
    %673 = vector.broadcast %cst_189 : f32 to vector<16x32xf32>
    %674 = arith.subf %673, %667 : vector<16x32xf32>
    %675 = arith.mulf %674, %672 : vector<16x32xf32>
    %676 = arith.mulf %667, %611 : vector<16x32xf32>
    %677 = arith.addf %675, %676 : vector<16x32xf32>
    %678 = vector.extract_strided_slice %651 {offsets = [0, 0], sizes = [16, 32], strides = [1, 1]} : vector<16x96xf32> to vector<16x32xf32>
    %679 = vector.extract_strided_slice %649 {offsets = [0, 0], sizes = [16, 32], strides = [1, 1]} : vector<16x96xf32> to vector<16x32xf32>
    %680 = arith.addf %678, %679 : vector<16x32xf32>
    %681 = arith.negf %680 : vector<16x32xf32>
    %682 = math.exp %681 : vector<16x32xf32>
    %cst_190 = arith.constant 1.000000e+00 : f32
    %683 = vector.broadcast %cst_190 : f32 to vector<16x32xf32>
    %684 = arith.addf %683, %682 : vector<16x32xf32>
    %685 = arith.divf %683, %684 : vector<16x32xf32>
    %686 = vector.extract_strided_slice %651 {offsets = [0, 32], sizes = [16, 32], strides = [1, 1]} : vector<16x96xf32> to vector<16x32xf32>
    %687 = vector.extract_strided_slice %649 {offsets = [0, 32], sizes = [16, 32], strides = [1, 1]} : vector<16x96xf32> to vector<16x32xf32>
    %688 = arith.addf %686, %687 : vector<16x32xf32>
    %689 = arith.negf %688 : vector<16x32xf32>
    %690 = math.exp %689 : vector<16x32xf32>
    %cst_191 = arith.constant 1.000000e+00 : f32
    %691 = vector.broadcast %cst_191 : f32 to vector<16x32xf32>
    %692 = arith.addf %691, %690 : vector<16x32xf32>
    %693 = arith.divf %691, %692 : vector<16x32xf32>
    %694 = vector.extract_strided_slice %651 {offsets = [0, 64], sizes = [16, 32], strides = [1, 1]} : vector<16x96xf32> to vector<16x32xf32>
    %695 = vector.extract_strided_slice %649 {offsets = [0, 64], sizes = [16, 32], strides = [1, 1]} : vector<16x96xf32> to vector<16x32xf32>
    %696 = arith.mulf %685, %695 : vector<16x32xf32>
    %697 = arith.addf %694, %696 : vector<16x32xf32>
    %698 = math.tanh %697 : vector<16x32xf32>
    %cst_192 = arith.constant 1.000000e+00 : f32
    %699 = vector.broadcast %cst_192 : f32 to vector<16x32xf32>
    %700 = arith.subf %699, %693 : vector<16x32xf32>
    %701 = arith.mulf %700, %698 : vector<16x32xf32>
    %702 = arith.mulf %693, %637 : vector<16x32xf32>
    %703 = arith.addf %701, %702 : vector<16x32xf32>
    %704 = tpu.concatenate %215, %281, %347, %413, %479, %545, %611, %677 in 0 : vector<16x32xf32>, vector<16x32xf32>, vector<16x32xf32>, vector<16x32xf32>, vector<16x32xf32>, vector<16x32xf32>, vector<16x32xf32>, vector<16x32xf32> -> vector<128x32xf32>
    %705 = tpu.concatenate %703, %637, %571, %505, %439, %373, %307, %241 in 0 : vector<16x32xf32>, vector<16x32xf32>, vector<16x32xf32>, vector<16x32xf32>, vector<16x32xf32>, vector<16x32xf32>, vector<16x32xf32>, vector<16x32xf32> -> vector<128x32xf32>
    %cst_193 = arith.constant 0.000000e+00 : f32
    %706 = vector.broadcast %cst_193 : f32 to vector<128x32xf32>
    %707 = arith.maximumf %704, %706 : vector<128x32xf32>
    %c0_194 = arith.constant 0 : index
    %c0_195 = arith.constant 0 : index
    %708 = vector.load %arg16[%c0_194, %c0_195] : memref<32x16xbf16, #tpu.memory_space<vmem>>, vector<32x16xbf16>
    %709 = arith.truncf %707 : vector<128x32xf32> to vector<128x32xbf16>
    %cst_196 = arith.constant dense<0.000000e+00> : vector<128x16xf32>
    %710 = tpu.matmul %709, %708, %cst_196 {dimension_numbers = #tpu.dot_dimension_numbers<[1], [0], [0], [1], [0, 0, 1, 1], [], []>} : vector<128x32xbf16>, vector<32x16xbf16>, vector<128x16xf32> -> vector<128x16xf32>
    %cst_197 = arith.constant 0.000000e+00 : f32
    %711 = vector.broadcast %cst_197 : f32 to vector<128x32xf32>
    %712 = arith.maximumf %705, %711 : vector<128x32xf32>
    %c0_198 = arith.constant 0 : index
    %c0_199 = arith.constant 0 : index
    %713 = vector.load %arg17[%c0_198, %c0_199] : memref<32x16xbf16, #tpu.memory_space<vmem>>, vector<32x16xbf16>
    %714 = arith.truncf %712 : vector<128x32xf32> to vector<128x32xbf16>
    %cst_200 = arith.constant dense<0.000000e+00> : vector<128x16xf32>
    %715 = tpu.matmul %714, %713, %cst_200 {dimension_numbers = #tpu.dot_dimension_numbers<[1], [0], [0], [1], [0, 0, 1, 1], [], []>} : vector<128x32xbf16>, vector<32x16xbf16>, vector<128x16xf32> -> vector<128x16xf32>
    %716 = arith.addf %710, %715 : vector<128x16xf32>
    %c0_201 = arith.constant 0 : index
    %c0_202 = arith.constant 0 : index
    %717 = vector.load %arg18[%c0_201, %c0_202] : memref<1x16xf32, #tpu.memory_space<vmem>>, vector<1x16xf32>
    %718 = vector.broadcast %717 : vector<1x16xf32> to vector<128x16xf32>
    %719 = arith.addf %716, %718 : vector<128x16xf32>
    %720 = arith.addf %165, %719 : vector<128x16xf32>
    %c0_203 = arith.constant 0 : index
    %c0_204 = arith.constant 0 : index
    %721 = vector.load %arg19[%c0_203, %c0_204] : memref<1x16xf32, #tpu.memory_space<vmem>>, vector<1x16xf32>
    %c0_205 = arith.constant 0 : index
    %c0_206 = arith.constant 0 : index
    %722 = vector.load %arg20[%c0_205, %c0_206] : memref<1x16xf32, #tpu.memory_space<vmem>>, vector<1x16xf32>
    %cst_207 = arith.constant dense<0.000000e+00> : vector<128xf32>
    %723 = vector.multi_reduction <add>, %720, %cst_207 [1] : vector<128x16xf32> to vector<128xf32>
    %724 = vector.shape_cast %723 : vector<128xf32> to vector<128x1xf32>
    %cst_208 = arith.constant 1.600000e+01 : f32
    %725 = vector.broadcast %cst_208 : f32 to vector<128x1xf32>
    %726 = arith.divf %724, %725 : vector<128x1xf32>
    %727 = vector.broadcast %726 : vector<128x1xf32> to vector<128x16xf32>
    %728 = arith.subf %720, %727 : vector<128x16xf32>
    %729 = arith.mulf %728, %728 : vector<128x16xf32>
    %cst_209 = arith.constant dense<0.000000e+00> : vector<128xf32>
    %730 = vector.multi_reduction <add>, %729, %cst_209 [1] : vector<128x16xf32> to vector<128xf32>
    %731 = vector.shape_cast %730 : vector<128xf32> to vector<128x1xf32>
    %cst_210 = arith.constant 1.600000e+01 : f32
    %732 = vector.broadcast %cst_210 : f32 to vector<128x1xf32>
    %733 = arith.divf %731, %732 : vector<128x1xf32>
    %cst_211 = arith.constant 9.99999974E-6 : f32
    %734 = vector.broadcast %cst_211 : f32 to vector<128x1xf32>
    %735 = arith.addf %733, %734 : vector<128x1xf32>
    %736 = math.rsqrt %735 : vector<128x1xf32>
    %737 = vector.broadcast %736 : vector<128x1xf32> to vector<128x16xf32>
    %738 = arith.mulf %728, %737 : vector<128x16xf32>
    %739 = vector.broadcast %721 : vector<1x16xf32> to vector<128x16xf32>
    %740 = arith.mulf %738, %739 : vector<128x16xf32>
    %741 = vector.broadcast %722 : vector<1x16xf32> to vector<128x16xf32>
    %742 = arith.addf %740, %741 : vector<128x16xf32>
    %c0_212 = arith.constant 0 : index
    %c0_213 = arith.constant 0 : index
    %743 = vector.load %arg21[%c0_212, %c0_213] : memref<128x16xf32, #tpu.memory_space<vmem>>, vector<128x16xf32>
    tpu.vector_store %arg21[%c0_212, %c0_213], %742 {strides = array<i32>} : memref<128x16xf32, #tpu.memory_space<vmem>>, vector<128x16xf32>,
    return
  }
}

module attributes {stable_mosaic.version = 11 : i64} {
  func.func @_merge_kernel(%arg0: i32, %arg1: memref<3xf32, #tpu.memory_space<smem>>, %arg2: memref<1x64x16xf32, #tpu.memory_space<vmem>>, %arg3: memref<1x64x16xf32, #tpu.memory_space<vmem>>, %arg4: memref<1x64x16xf32, #tpu.memory_space<vmem>>, %arg5: memref<1x16xf32, #tpu.memory_space<vmem>>, %arg6: memref<1x16xf32, #tpu.memory_space<vmem>>, %arg7: memref<1x16xf32, #tpu.memory_space<vmem>>, %arg8: memref<1x16xf32, #tpu.memory_space<vmem>>, %arg9: memref<16x16xbf16, #tpu.memory_space<vmem>>, %arg10: memref<1x16xf32, #tpu.memory_space<vmem>>, %arg11: memref<1x64x16xf32, #tpu.memory_space<vmem>>) attributes {dimension_semantics = [#tpu.dimension_semantics<parallel>], iteration_bounds = array<i64: 2>, scalar_prefetch = 0 : i64, scratch_operands = 0 : i64, tpu.core_type = #tpu.core_type<tc>, window_params = [{transform_indices = @transform_0, window_bounds = array<i64: 3>}, {transform_indices = @transform_1, window_bounds = array<i64: 1, 64, 16>}, {transform_indices = @transform_2, window_bounds = array<i64: 1, 64, 16>}, {transform_indices = @transform_3, window_bounds = array<i64: 1, 64, 16>}, {pipeline_mode = #tpu.pipeline_mode<synchronous>, transform_indices = @transform_4, window_bounds = array<i64: 1, 16>}, {pipeline_mode = #tpu.pipeline_mode<synchronous>, transform_indices = @transform_5, window_bounds = array<i64: 1, 16>}, {pipeline_mode = #tpu.pipeline_mode<synchronous>, transform_indices = @transform_6, window_bounds = array<i64: 1, 16>}, {pipeline_mode = #tpu.pipeline_mode<synchronous>, transform_indices = @transform_7, window_bounds = array<i64: 1, 16>}, {pipeline_mode = #tpu.pipeline_mode<synchronous>, transform_indices = @transform_8, window_bounds = array<i64: 16, 16>}, {pipeline_mode = #tpu.pipeline_mode<synchronous>, transform_indices = @transform_9, window_bounds = array<i64: 1, 16>}, {transform_indices = @transform_10, window_bounds = array<i64: 1, 64, 16>}]} {
    %c0 = arith.constant 0 : index
    %0 = memref.load %arg1[%c0] : memref<3xf32, #tpu.memory_space<smem>>
    %c1 = arith.constant 1 : index
    %1 = memref.load %arg1[%c1] : memref<3xf32, #tpu.memory_space<smem>>
    %c2 = arith.constant 2 : index
    %2 = memref.load %arg1[%c2] : memref<3xf32, #tpu.memory_space<smem>>
    %c0_0 = arith.constant 0 : index
    %c0_1 = arith.constant 0 : index
    %c0_2 = arith.constant 0 : index
    %3 = vector.load %arg3[%c0_0, %c0_1, %c0_2] : memref<1x64x16xf32, #tpu.memory_space<vmem>>, vector<1x64x16xf32>
    %4 = vector.shape_cast %3 : vector<1x64x16xf32> to vector<64x16xf32>
    %c0_3 = arith.constant 0 : index
    %c0_4 = arith.constant 0 : index
    %5 = vector.load %arg5[%c0_3, %c0_4] : memref<1x16xf32, #tpu.memory_space<vmem>>, vector<1x16xf32>
    %c0_5 = arith.constant 0 : index
    %c0_6 = arith.constant 0 : index
    %6 = vector.load %arg6[%c0_5, %c0_6] : memref<1x16xf32, #tpu.memory_space<vmem>>, vector<1x16xf32>
    %cst = arith.constant dense<0.000000e+00> : vector<64xf32>
    %7 = vector.multi_reduction <add>, %4, %cst [1] : vector<64x16xf32> to vector<64xf32>
    %8 = vector.shape_cast %7 : vector<64xf32> to vector<64x1xf32>
    %cst_7 = arith.constant dense<0.000000e+00> : vector<1xf32>
    %9 = vector.multi_reduction <add>, %8, %cst_7 [0] : vector<64x1xf32> to vector<1xf32>
    %10 = vector.shape_cast %9 : vector<1xf32> to vector<1x1xf32>
    %cst_8 = arith.constant 1.024000e+03 : f32
    %11 = vector.broadcast %cst_8 : f32 to vector<1x1xf32>
    %12 = arith.divf %10, %11 : vector<1x1xf32>
    %13 = vector.broadcast %12 : vector<1x1xf32> to vector<64x16xf32>
    %14 = arith.subf %4, %13 : vector<64x16xf32>
    %15 = arith.mulf %14, %14 : vector<64x16xf32>
    %cst_9 = arith.constant dense<0.000000e+00> : vector<64xf32>
    %16 = vector.multi_reduction <add>, %15, %cst_9 [1] : vector<64x16xf32> to vector<64xf32>
    %17 = vector.shape_cast %16 : vector<64xf32> to vector<64x1xf32>
    %cst_10 = arith.constant dense<0.000000e+00> : vector<1xf32>
    %18 = vector.multi_reduction <add>, %17, %cst_10 [0] : vector<64x1xf32> to vector<1xf32>
    %19 = vector.shape_cast %18 : vector<1xf32> to vector<1x1xf32>
    %cst_11 = arith.constant 1.024000e+03 : f32
    %20 = vector.broadcast %cst_11 : f32 to vector<1x1xf32>
    %21 = arith.divf %19, %20 : vector<1x1xf32>
    %cst_12 = arith.constant 9.99999993E-9 : f32
    %22 = vector.broadcast %cst_12 : f32 to vector<1x1xf32>
    %23 = arith.addf %21, %22 : vector<1x1xf32>
    %24 = math.rsqrt %23 : vector<1x1xf32>
    %25 = vector.broadcast %24 : vector<1x1xf32> to vector<64x16xf32>
    %26 = arith.mulf %14, %25 : vector<64x16xf32>
    %27 = vector.broadcast %5 : vector<1x16xf32> to vector<64x16xf32>
    %28 = arith.mulf %26, %27 : vector<64x16xf32>
    %29 = vector.broadcast %6 : vector<1x16xf32> to vector<64x16xf32>
    %30 = arith.addf %28, %29 : vector<64x16xf32>
    %c0_13 = arith.constant 0 : index
    %c0_14 = arith.constant 0 : index
    %c0_15 = arith.constant 0 : index
    %31 = vector.load %arg4[%c0_13, %c0_14, %c0_15] : memref<1x64x16xf32, #tpu.memory_space<vmem>>, vector<1x64x16xf32>
    %32 = vector.shape_cast %31 : vector<1x64x16xf32> to vector<64x16xf32>
    %c0_16 = arith.constant 0 : index
    %c0_17 = arith.constant 0 : index
    %33 = vector.load %arg7[%c0_16, %c0_17] : memref<1x16xf32, #tpu.memory_space<vmem>>, vector<1x16xf32>
    %c0_18 = arith.constant 0 : index
    %c0_19 = arith.constant 0 : index
    %34 = vector.load %arg8[%c0_18, %c0_19] : memref<1x16xf32, #tpu.memory_space<vmem>>, vector<1x16xf32>
    %cst_20 = arith.constant dense<0.000000e+00> : vector<64xf32>
    %35 = vector.multi_reduction <add>, %32, %cst_20 [1] : vector<64x16xf32> to vector<64xf32>
    %36 = vector.shape_cast %35 : vector<64xf32> to vector<64x1xf32>
    %cst_21 = arith.constant dense<0.000000e+00> : vector<1xf32>
    %37 = vector.multi_reduction <add>, %36, %cst_21 [0] : vector<64x1xf32> to vector<1xf32>
    %38 = vector.shape_cast %37 : vector<1xf32> to vector<1x1xf32>
    %cst_22 = arith.constant 1.024000e+03 : f32
    %39 = vector.broadcast %cst_22 : f32 to vector<1x1xf32>
    %40 = arith.divf %38, %39 : vector<1x1xf32>
    %41 = vector.broadcast %40 : vector<1x1xf32> to vector<64x16xf32>
    %42 = arith.subf %32, %41 : vector<64x16xf32>
    %43 = arith.mulf %42, %42 : vector<64x16xf32>
    %cst_23 = arith.constant dense<0.000000e+00> : vector<64xf32>
    %44 = vector.multi_reduction <add>, %43, %cst_23 [1] : vector<64x16xf32> to vector<64xf32>
    %45 = vector.shape_cast %44 : vector<64xf32> to vector<64x1xf32>
    %cst_24 = arith.constant dense<0.000000e+00> : vector<1xf32>
    %46 = vector.multi_reduction <add>, %45, %cst_24 [0] : vector<64x1xf32> to vector<1xf32>
    %47 = vector.shape_cast %46 : vector<1xf32> to vector<1x1xf32>
    %cst_25 = arith.constant 1.024000e+03 : f32
    %48 = vector.broadcast %cst_25 : f32 to vector<1x1xf32>
    %49 = arith.divf %47, %48 : vector<1x1xf32>
    %cst_26 = arith.constant 9.99999993E-9 : f32
    %50 = vector.broadcast %cst_26 : f32 to vector<1x1xf32>
    %51 = arith.addf %49, %50 : vector<1x1xf32>
    %52 = math.rsqrt %51 : vector<1x1xf32>
    %53 = vector.broadcast %52 : vector<1x1xf32> to vector<64x16xf32>
    %54 = arith.mulf %42, %53 : vector<64x16xf32>
    %55 = vector.broadcast %33 : vector<1x16xf32> to vector<64x16xf32>
    %56 = arith.mulf %54, %55 : vector<64x16xf32>
    %57 = vector.broadcast %34 : vector<1x16xf32> to vector<64x16xf32>
    %58 = arith.addf %56, %57 : vector<64x16xf32>
    %c0_27 = arith.constant 0 : index
    %c0_28 = arith.constant 0 : index
    %c0_29 = arith.constant 0 : index
    %59 = vector.load %arg2[%c0_27, %c0_28, %c0_29] : memref<1x64x16xf32, #tpu.memory_space<vmem>>, vector<1x64x16xf32>
    %60 = vector.shape_cast %59 : vector<1x64x16xf32> to vector<64x16xf32>
    %61 = vector.broadcast %0 : f32 to vector<64x16xf32>
    %62 = arith.mulf %61, %30 : vector<64x16xf32>
    %63 = arith.addf %60, %62 : vector<64x16xf32>
    %64 = vector.broadcast %1 : f32 to vector<64x16xf32>
    %65 = arith.mulf %64, %58 : vector<64x16xf32>
    %66 = arith.addf %63, %65 : vector<64x16xf32>
    %cst_30 = arith.constant 0.000000e+00 : f32
    %67 = vector.broadcast %cst_30 : f32 to vector<64x16xf32>
    %68 = arith.cmpf oge, %66, %67 : vector<64x16xf32>
    %69 = vector.broadcast %2 : f32 to vector<64x16xf32>
    %70 = arith.mulf %69, %66 : vector<64x16xf32>
    %71 = arith.select %68, %66, %70 : vector<64x16xi1>, vector<64x16xf32>
    %72 = arith.truncf %71 : vector<64x16xf32> to vector<64x16xbf16>
    %c0_31 = arith.constant 0 : index
    %c0_32 = arith.constant 0 : index
    %73 = vector.load %arg9[%c0_31, %c0_32] : memref<16x16xbf16, #tpu.memory_space<vmem>>, vector<16x16xbf16>
    %cst_33 = arith.constant dense<0.000000e+00> : vector<64x16xf32>
    %74 = tpu.matmul %72, %73, %cst_33 {dimension_numbers = #tpu.dot_dimension_numbers<[1], [0], [0], [1], [0, 0, 1, 1], [], []>} : vector<64x16xbf16>, vector<16x16xbf16>, vector<64x16xf32> -> vector<64x16xf32>
    %c0_34 = arith.constant 0 : index
    %c0_35 = arith.constant 0 : index
    %75 = vector.load %arg10[%c0_34, %c0_35] : memref<1x16xf32, #tpu.memory_space<vmem>>, vector<1x16xf32>
    %76 = vector.broadcast %75 : vector<1x16xf32> to vector<64x16xf32>
    %77 = arith.addf %74, %76 : vector<64x16xf32>
    %c0_36 = arith.constant 0 : index
    %c0_37 = arith.constant 0 : index
    %c0_38 = arith.constant 0 : index
    %78 = vector.load %arg11[%c0_36, %c0_37, %c0_38] : memref<1x64x16xf32, #tpu.memory_space<vmem>>, vector<1x64x16xf32>
    %79 = vector.shape_cast %78 : vector<1x64x16xf32> to vector<64x16xf32>
    %80 = vector.shape_cast %77 : vector<64x16xf32> to vector<1x64x16xf32>
    tpu.vector_store %arg11[%c0_36, %c0_37, %c0_38], %80 {strides = array<i32>} : memref<1x64x16xf32, #tpu.memory_space<vmem>>, vector<1x64x16xf32>,
    return
  }
  func.func @transform_0(%arg0: i32) -> i32 {
    %c0_i32 = arith.constant 0 : i32
    %c0_i32_0 = arith.constant 0 : i32
    return %c0_i32 : i32
  }
  func.func @transform_1(%arg0: i32) -> (i32, i32, i32) {
    %c0_i32 = arith.constant 0 : i32
    %c0_i32_0 = arith.constant 0 : i32
    %c0_i32_1 = arith.constant 0 : i32
    return %arg0, %c0_i32, %c0_i32_0 : i32, i32, i32
  }
  func.func @transform_2(%arg0: i32) -> (i32, i32, i32) {
    %c0_i32 = arith.constant 0 : i32
    %c0_i32_0 = arith.constant 0 : i32
    %c0_i32_1 = arith.constant 0 : i32
    return %arg0, %c0_i32, %c0_i32_0 : i32, i32, i32
  }
  func.func @transform_3(%arg0: i32) -> (i32, i32, i32) {
    %c0_i32 = arith.constant 0 : i32
    %c0_i32_0 = arith.constant 0 : i32
    %c0_i32_1 = arith.constant 0 : i32
    return %arg0, %c0_i32, %c0_i32_0 : i32, i32, i32
  }
  func.func @transform_4(%arg0: i32) -> (i32, i32) {
    %c0_i32 = arith.constant 0 : i32
    %c0_i32_0 = arith.constant 0 : i32
    %c0_i32_1 = arith.constant 0 : i32
    return %c0_i32, %c0_i32_0 : i32, i32
  }
  func.func @transform_5(%arg0: i32) -> (i32, i32) {
    %c0_i32 = arith.constant 0 : i32
    %c0_i32_0 = arith.constant 0 : i32
    %c0_i32_1 = arith.constant 0 : i32
    return %c0_i32, %c0_i32_0 : i32, i32
  }
  func.func @transform_6(%arg0: i32) -> (i32, i32) {
    %c0_i32 = arith.constant 0 : i32
    %c0_i32_0 = arith.constant 0 : i32
    %c0_i32_1 = arith.constant 0 : i32
    return %c0_i32, %c0_i32_0 : i32, i32
  }
  func.func @transform_7(%arg0: i32) -> (i32, i32) {
    %c0_i32 = arith.constant 0 : i32
    %c0_i32_0 = arith.constant 0 : i32
    %c0_i32_1 = arith.constant 0 : i32
    return %c0_i32, %c0_i32_0 : i32, i32
  }
  func.func @transform_8(%arg0: i32) -> (i32, i32) {
    %c0_i32 = arith.constant 0 : i32
    %c0_i32_0 = arith.constant 0 : i32
    %c0_i32_1 = arith.constant 0 : i32
    return %c0_i32, %c0_i32_0 : i32, i32
  }
  func.func @transform_9(%arg0: i32) -> (i32, i32) {
    %c0_i32 = arith.constant 0 : i32
    %c0_i32_0 = arith.constant 0 : i32
    %c0_i32_1 = arith.constant 0 : i32
    return %c0_i32, %c0_i32_0 : i32, i32
  }
  func.func @transform_10(%arg0: i32) -> (i32, i32, i32) {
    %c0_i32 = arith.constant 0 : i32
    %c0_i32_0 = arith.constant 0 : i32
    %c0_i32_1 = arith.constant 0 : i32
    return %arg0, %c0_i32, %c0_i32_0 : i32, i32, i32
  }
}

</mosaic_0001>

<llo_original>
// kernel: aia_transformer_merge.16
$region0: #{aia_transformer_merge.16}
  #allocation0 [shape = 'u32[]', space=smem, size = 0x4, offset = 0x4, fixed_abs, tag = 'smem constant byte address 0x4 - core index']
  #allocation1 [shape = 'u32[144,128]{1,0:T(1,128)}', space=vmem, size = 0x12000, scoped, tag = 'internal scratch']
  %s0 = inlined_call_operand.vmem [shape: f32[2,32], index: 0, kind: input, shape index: {}]
  %s1 = inlined_call_operand.vmem [shape: bf16[32,16], index: 1, kind: input, shape index: {}]
  %s2 = inlined_call_operand.vmem [shape: f32[1,16], index: 2, kind: input, shape index: {}]
  %s3 = inlined_call_operand.vmem [shape: f32[2,16], index: 3, kind: output, shape index: {}]
  %s4 = sld [smem:[#allocation0]]
  $region22: #{aia_transformer_merge.16} parent=0
    _
  %s6 = ssub.s32 1, %s4
  %s7 = scalar_select 0, %s6, %s4
  // Predicated region
  $region2: #{aia_transformer_merge.16} parent=0 // pred_check
    _
  $region3: #{aia_transformer_merge.16} parent=0 // pred_check_branch
    %9 = sbr.rel (0) target = $region5
  $region4: #{aia_transformer_merge.16} parent=0 // pred_region
    _
  $region5: #{aia_transformer_merge.16} parent=0 // pred_fallthru
    _
  // Predicated region
  $region6: #{aia_transformer_merge.16} parent=0 // pred_check
    _
  $region7: #{aia_transformer_merge.16} parent=0 // pred_check_branch
    %11 = sbr.rel (0) target = $region9
  $region8: #{aia_transformer_merge.16} parent=0 // pred_region
    _
  $region9: #{aia_transformer_merge.16} parent=0 // pred_fallthru
    _
  // Predicated region
  $region10: #{aia_transformer_merge.16} parent=0 // pred_check
    _
  $region11: #{aia_transformer_merge.16} parent=0 // pred_check_branch
    %13 = sbr.rel (0) target = $region13
  $region12: #{aia_transformer_merge.16} parent=0 // pred_region
    _
  $region13: #{aia_transformer_merge.16} parent=0 // pred_fallthru
    _
  %v15 = vld [vmem:[%s0] sm:$0x3]
  %v16 = vxor.u32 %v15, 2147483648
  %v17 = vmul.f32 %v16, 1.442695
  %v18 = vpow.pop %v17
  %v19 = vadd.f32 %v18, 1.0
  %v20 = vrcp.pop %v19
  %v21 = vmul.f32 1.0, %v20
  %v22 = vmul.f32 %v15, %v21
  %v23 = vpack.c.bf16 %v22, %v22
  %v24 = vld [vmem:[%s1] sm:$0xf]
  %v25 = vld [vmem:[%s1 + $0x4] sm:$0xf]
  %v26 = vld [vmem:[%s1 + $0x8] sm:$0xf]
  %v27 = vld [vmem:[%s1 + $0xc] sm:$0xf]
  %v28 = vld [vmem:[%s2] sm:$0x1]
  %v30 = vlaneseq
  %v31 = vshrl.u32 %v30, 7
  %v32 = vsub.s32 0, %v31
  %v33 = vrot.slane %v28, %v32
  %v39 = vunpack.c.l.b16 %v24
  %v40 = vunpack.c.l.b16 %v25
  %v41 = vunpack.c.l.b16 %v26
  %v42 = vunpack.c.l.b16 %v27
  %v43 = vpack.c.b16 %v40, %v39
  %v44 = vpack.c.b16 %v42, %v41
  %vm47 = vcmask 261120
  %v49 = vsel %vm47, %v23, 0
  %51 = vmatprep.subr.bf16.mxu0 0
  %52 = vmatpush1.bf16.msra.mxu0 %v43
  %53 = vmatprep.subr.bf16.mxu0 0
  %54 = vmatpush1.bf16.msra.mxu0 %v44
  %55 = vmatprep.subr.bf16.mxu0 0
  %56 = vmatpush1.bf16.msra.mxu0 0
  %57 = vmatprep.subr.bf16.mxu0 0
  %58 = vmatpush1.bf16.msra.mxu0 0
  %59 = vmatprep.subr.bf16.mxu0 0
  %60 = vmatpush1.bf16.msra.mxu0 0
  %61 = vmatprep.subr.bf16.mxu0 0
  %62 = vmatpush1.bf16.msra.mxu0 0
  %63 = vmatprep.subr.bf16.mxu0 0
  %64 = vmatpush1.bf16.msra.mxu0 0
  %65 = vmatprep.subr.bf16.mxu0 0
  %66 = vmatpush1.bf16.msra.mxu0 0
  %67 = vmatprep.subr.bf16.mxu0 0
  %68 = vmatpush1.bf16.msra.mxu0 0
  %69 = vmatprep.subr.bf16.mxu0 0
  %70 = vmatpush1.bf16.msra.mxu0 0
  %71 = vmatprep.subr.bf16.mxu0 0
  %72 = vmatpush1.bf16.msra.mxu0 0
  %73 = vmatprep.subr.bf16.mxu0 0
  %74 = vmatpush1.bf16.msra.mxu0 0
  %75 = vmatprep.subr.bf16.mxu0 0
  %76 = vmatpush1.bf16.msra.mxu0 0
  %77 = vmatprep.subr.bf16.mxu0 0
  %78 = vmatpush1.bf16.msra.mxu0 0
  %79 = vmatprep.subr.bf16.mxu0 0
  %80 = vmatpush1.bf16.msra.mxu0 0
  %81 = vmatprep.subr.bf16.mxu0 0
  %82 = vmatpush1.bf16.msra.mxu0 0
  %83 = vmatprep.mubr.bf16.mxu0 0
  %84 = vmatmul.mubr.bf16.gmra.mrb[0].mxu0 %v49
  %v85 = vpop.f32.mrb[0].mxu0
  %v86 = vadd.f32 %v33, %v85
  %v87 = vpop.f32.mrb[0].mxu0
  %v88 = vpop.f32.mrb[0].mxu0
  %v89 = vpop.f32.mrb[0].mxu0
  %90 = vdwg.mxu0
  %vm91 = vcmask 123904
  %92 = vst.msk [vmem:[%s3] sm:$0x3] %vm91, %v86
  // Predicated region
  $region14: #{aia_transformer_merge.16} parent=0 // pred_check
    _
  $region15: #{aia_transformer_merge.16} parent=0 // pred_check_branch
    %94 = sbr.rel (0) target = $region17
  $region16: #{aia_transformer_merge.16} parent=0 // pred_region
    _
  $region17: #{aia_transformer_merge.16} parent=0 // pred_fallthru
    _
  // Predicated region
  $region18: #{aia_transformer_merge.16} parent=0 // pred_check
    _
  $region19: #{aia_transformer_merge.16} parent=0 // pred_check_branch
    %96 = sbr.rel (0) target = $region21
  $region20: #{aia_transformer_merge.16} parent=0 // pred_region
    _
  $region21: #{aia_transformer_merge.16} parent=0 // pred_fallthru
    _

// kernel: aia_transformer_merge.15
$region0: #{aia_transformer_merge.15}
  #allocation0 [shape = 'u32[]', space=smem, size = 0x4, offset = 0x4, fixed_abs, tag = 'smem constant byte address 0x4 - core index']
  #allocation1 [shape = 'u32[144,128]{1,0:T(1,128)}', space=vmem, size = 0x12000, scoped, tag = 'internal scratch']
  #allocation2 [shape = 'f32[1]{0:T(128)S(6)}', space=smem, size = 0x200, scoped, tag = 'scoped memory for aia_transformer_merge.15']
  %s0 = inlined_call_operand.<no memory space> [shape: f32[1], index: 0, kind: input, shape index: {}]
  %s1 = inlined_call_operand.vmem [shape: f32[128,32], index: 1, kind: input, shape index: {}]
  %s2 = inlined_call_operand.vmem [shape: bf16[32,16], index: 2, kind: input, shape index: {}]
  %s3 = inlined_call_operand.vmem [shape: f32[1,16], index: 3, kind: input, shape index: {}]
  %s4 = inlined_call_operand.vmem [shape: f32[128,16], index: 4, kind: output, shape index: {}]
  %s5 = sld [smem:[#allocation0]]
  $region26: #{aia_transformer_merge.15} parent=0
    _
  %s7 = ssub.s32 1, %s5
  %s8 = scalar_select 0, %s7, %s5
  %9 = sst [smem:[#allocation2]] %s0
  // Predicated region
  $region2: #{aia_transformer_merge.15} parent=0 // pred_check
    _
  $region3: #{aia_transformer_merge.15} parent=0 // pred_check_branch
    %11 = sbr.rel (0) target = $region5
  $region4: #{aia_transformer_merge.15} parent=0 // pred_region
    _
  $region5: #{aia_transformer_merge.15} parent=0 // pred_fallthru
    _
  // Predicated region
  $region6: #{aia_transformer_merge.15} parent=0 // pred_check
    _
  $region7: #{aia_transformer_merge.15} parent=0 // pred_check_branch
    %13 = sbr.rel (0) target = $region9
  $region8: #{aia_transformer_merge.15} parent=0 // pred_region
    _
  $region9: #{aia_transformer_merge.15} parent=0 // pred_fallthru
    _
  // Predicated region
  $region10: #{aia_transformer_merge.15} parent=0 // pred_check
    _
  $region11: #{aia_transformer_merge.15} parent=0 // pred_check_branch
    %15 = sbr.rel (0) target = $region13
  $region12: #{aia_transformer_merge.15} parent=0 // pred_region
    _
  $region13: #{aia_transformer_merge.15} parent=0 // pred_fallthru
    _
  // Predicated region
  $region14: #{aia_transformer_merge.15} parent=0 // pred_check
    _
  $region15: #{aia_transformer_merge.15} parent=0 // pred_check_branch
    %17 = sbr.rel (0) target = $region17
  $region16: #{aia_transformer_merge.15} parent=0 // pred_region
    _
  $region17: #{aia_transformer_merge.15} parent=0 // pred_fallthru
    _
  %v19 = vld [vmem:[%s1] sm:$0xff]
  %v20 = vld [vmem:[%s1 + $0x8] sm:$0xff]
  %v21 = vld [vmem:[%s1 + $0x10] sm:$0xff]
  %v22 = vld [vmem:[%s1 + $0x18] sm:$0xff]
  %v23 = vld [vmem:[%s1 + $0x20] sm:$0xff]
  %v24 = vld [vmem:[%s1 + $0x28] sm:$0xff]
  %v25 = vld [vmem:[%s1 + $0x30] sm:$0xff]
  %v26 = vld [vmem:[%s1 + $0x38] sm:$0xff]
  %v27 = vld [vmem:[%s1 + $0x40] sm:$0xff]
  %v28 = vld [vmem:[%s1 + $0x48] sm:$0xff]
  %v29 = vld [vmem:[%s1 + $0x50] sm:$0xff]
  %v30 = vld [vmem:[%s1 + $0x58] sm:$0xff]
  %v31 = vld [vmem:[%s1 + $0x60] sm:$0xff]
  %v32 = vld [vmem:[%s1 + $0x68] sm:$0xff]
  %v33 = vld [vmem:[%s1 + $0x70] sm:$0xff]
  %v34 = vld [vmem:[%s1 + $0x78] sm:$0xff]
  %v35 = vpack.c.bf16 %v20, %v19
  %v36 = vpack.c.bf16 %v22, %v21
  %v37 = vpack.c.bf16 %v24, %v23
  %v38 = vpack.c.bf16 %v26, %v25
  %v39 = vpack.c.bf16 %v28, %v27
  %v40 = vpack.c.bf16 %v30, %v29
  %v41 = vpack.c.bf16 %v32, %v31
  %v42 = vpack.c.bf16 %v34, %v33
  %v43 = vld [vmem:[%s2] sm:$0xf]
  %v44 = vld [vmem:[%s2 + $0x4] sm:$0xf]
  %v45 = vld [vmem:[%s2 + $0x8] sm:$0xf]
  %v46 = vld [vmem:[%s2 + $0xc] sm:$0xf]
  %v47 = vld [vmem:[%s3] sm:$0x1]
  %v49 = vlaneseq
  %v50 = vshrl.u32 %v49, 7
  %v51 = vsub.s32 0, %v50
  %v52 = vrot.slane %v47, %v51
  %v58 = vunpack.c.l.b16 %v43
  %v59 = vunpack.c.l.b16 %v44
  %v60 = vunpack.c.l.b16 %v45
  %v61 = vunpack.c.l.b16 %v46
  %v62 = vpack.c.b16 %v59, %v58
  %v63 = vpack.c.b16 %v61, %v60
  %vm66 = vcmask 261120
  %v68 = vsel %vm66, %v35, 0
  %v71 = vsel %vm66, %v36, 0
  %v74 = vsel %vm66, %v37, 0
  %v77 = vsel %vm66, %v38, 0
  %v80 = vsel %vm66, %v39, 0
  %v83 = vsel %vm66, %v40, 0
  %v86 = vsel %vm66, %v41, 0
  %v89 = vsel %vm66, %v42, 0
  %91 = vmatprep.subr.bf16.mxu0 0
  %92 = vmatpush1.bf16.msra.mxu0 %v62
  %93 = vmatprep.subr.bf16.mxu0 0
  %94 = vmatpush1.bf16.msra.mxu0 %v63
  %95 = vmatprep.subr.bf16.mxu0 0
  %96 = vmatpush1.bf16.msra.mxu0 0
  %97 = vmatprep.subr.bf16.mxu0 0
  %98 = vmatpush1.bf16.msra.mxu0 0
  %99 = vmatprep.subr.bf16.mxu0 0
  %100 = vmatpush1.bf16.msra.mxu0 0
  %101 = vmatprep.subr.bf16.mxu0 0
  %102 = vmatpush1.bf16.msra.mxu0 0
  %103 = vmatprep.subr.bf16.mxu0 0
  %104 = vmatpush1.bf16.msra.mxu0 0
  %105 = vmatprep.subr.bf16.mxu0 0
  %106 = vmatpush1.bf16.msra.mxu0 0
  %107 = vmatprep.subr.bf16.mxu0 0
  %108 = vmatpush1.bf16.msra.mxu0 0
  %109 = vmatprep.subr.bf16.mxu0 0
  %110 = vmatpush1.bf16.msra.mxu0 0
  %111 = vmatprep.subr.bf16.mxu0 0
  %112 = vmatpush1.bf16.msra.mxu0 0
  %113 = vmatprep.subr.bf16.mxu0 0
  %114 = vmatpush1.bf16.msra.mxu0 0
  %115 = vmatprep.subr.bf16.mxu0 0
  %116 = vmatpush1.bf16.msra.mxu0 0
  %117 = vmatprep.subr.bf16.mxu0 0
  %118 = vmatpush1.bf16.msra.mxu0 0
  %119 = vmatprep.subr.bf16.mxu0 0
  %120 = vmatpush1.bf16.msra.mxu0 0
  %121 = vmatprep.subr.bf16.mxu0 0
  %122 = vmatpush1.bf16.msra.mxu0 0
  %123 = vmatprep.mubr.bf16.mxu0 0
  %124 = vmatmul.mubr.bf16.gmra.mrb[0].mxu0 %v68
  %v125 = vpop.f32.mrb[0].mxu0
  %v126 = vadd.f32 %v52, %v125
  %v127 = vpop.f32.mrb[0].mxu0
  %v128 = vpop.f32.mrb[0].mxu0
  %v129 = vadd.f32 %v52, %v128
  %v130 = vpop.f32.mrb[0].mxu0
  %131 = vmatprep.mubr.bf16.mxu0 0
  %132 = vmatmul.mubr.bf16.gmra.mrb[0].mxu0 %v71
  %v133 = vpop.f32.mrb[0].mxu0
  %v134 = vadd.f32 %v52, %v133
  %v135 = vpop.f32.mrb[0].mxu0
  %v136 = vpop.f32.mrb[0].mxu0
  %v137 = vadd.f32 %v52, %v136
  %v138 = vpop.f32.mrb[0].mxu0
  %139 = vmatprep.mubr.bf16.mxu0 0
  %140 = vmatmul.mubr.bf16.gmra.mrb[0].mxu0 %v74
  %v141 = vpop.f32.mrb[0].mxu0
  %v142 = vadd.f32 %v52, %v141
  %v143 = vpop.f32.mrb[0].mxu0
  %v144 = vpop.f32.mrb[0].mxu0
  %v145 = vadd.f32 %v52, %v144
  %v146 = vpop.f32.mrb[0].mxu0
  %147 = vmatprep.mubr.bf16.mxu0 0
  %148 = vmatmul.mubr.bf16.gmra.mrb[0].mxu0 %v77
  %v149 = vpop.f32.mrb[0].mxu0
  %v150 = vadd.f32 %v52, %v149
  %v151 = vpop.f32.mrb[0].mxu0
  %v152 = vpop.f32.mrb[0].mxu0
  %v153 = vadd.f32 %v52, %v152
  %v154 = vpop.f32.mrb[0].mxu0
  %155 = vmatprep.mubr.bf16.mxu0 0
  %156 = vmatmul.mubr.bf16.gmra.mrb[0].mxu0 %v80
  %v157 = vpop.f32.mrb[0].mxu0
  %v158 = vadd.f32 %v52, %v157
  %v159 = vpop.f32.mrb[0].mxu0
  %v160 = vpop.f32.mrb[0].mxu0
  %v161 = vadd.f32 %v52, %v160
  %v162 = vpop.f32.mrb[0].mxu0
  %163 = vmatprep.mubr.bf16.mxu0 0
  %164 = vmatmul.mubr.bf16.gmra.mrb[0].mxu0 %v83
  %v165 = vpop.f32.mrb[0].mxu0
  %v166 = vadd.f32 %v52, %v165
  %v167 = vpop.f32.mrb[0].mxu0
  %v168 = vpop.f32.mrb[0].mxu0
  %v169 = vadd.f32 %v52, %v168
  %v170 = vpop.f32.mrb[0].mxu0
  %171 = vmatprep.mubr.bf16.mxu0 0
  %172 = vmatmul.mubr.bf16.gmra.mrb[0].mxu0 %v86
  %v173 = vpop.f32.mrb[0].mxu0
  %v174 = vadd.f32 %v52, %v173
  %v175 = vpop.f32.mrb[0].mxu0
  %v176 = vpop.f32.mrb[0].mxu0
  %v177 = vadd.f32 %v52, %v176
  %v178 = vpop.f32.mrb[0].mxu0
  %179 = vmatprep.mubr.bf16.mxu0 0
  %180 = vmatmul.mubr.bf16.gmra.mrb[0].mxu0 %v89
  %v181 = vpop.f32.mrb[0].mxu0
  %v182 = vadd.f32 %v52, %v181
  %v183 = vpop.f32.mrb[0].mxu0
  %v184 = vpop.f32.mrb[0].mxu0
  %v185 = vadd.f32 %v52, %v184
  %v186 = vpop.f32.mrb[0].mxu0
  %187 = vdwg.mxu0
  %s188 = sld [smem:[#allocation2]]
  %vm189 = vcmp.ge.f32.partialorder %v126, 0.0
  %vm190 = vcmp.ge.f32.partialorder %v129, 0.0
  %vm191 = vcmp.ge.f32.partialorder %v134, 0.0
  %vm192 = vcmp.ge.f32.partialorder %v137, 0.0
  %vm193 = vcmp.ge.f32.partialorder %v142, 0.0
  %vm194 = vcmp.ge.f32.partialorder %v145, 0.0
  %vm195 = vcmp.ge.f32.partialorder %v150, 0.0
  %vm196 = vcmp.ge.f32.partialorder %v153, 0.0
  %vm197 = vcmp.ge.f32.partialorder %v158, 0.0
  %vm198 = vcmp.ge.f32.partialorder %v161, 0.0
  %vm199 = vcmp.ge.f32.partialorder %v166, 0.0
  %vm200 = vcmp.ge.f32.partialorder %v169, 0.0
  %vm201 = vcmp.ge.f32.partialorder %v174, 0.0
  %vm202 = vcmp.ge.f32.partialorder %v177, 0.0
  %vm203 = vcmp.ge.f32.partialorder %v182, 0.0
  %vm204 = vcmp.ge.f32.partialorder %v185, 0.0
  %v205 = vstv %s188
  %v206 = vmul.f32 %v205, %v126
  %v207 = vmul.f32 %v205, %v129
  %v208 = vmul.f32 %v205, %v134
  %v209 = vmul.f32 %v205, %v137
  %v210 = vmul.f32 %v205, %v142
  %v211 = vmul.f32 %v205, %v145
  %v212 = vmul.f32 %v205, %v150
  %v213 = vmul.f32 %v205, %v153
  %v214 = vmul.f32 %v205, %v158
  %v215 = vmul.f32 %v205, %v161
  %v216 = vmul.f32 %v205, %v166
  %v217 = vmul.f32 %v205, %v169
  %v218 = vmul.f32 %v205, %v174
  %v219 = vmul.f32 %v205, %v177
  %v220 = vmul.f32 %v205, %v182
  %v221 = vmul.f32 %v205, %v185
  %v222 = vsel %vm189, %v126, %v206
  %v223 = vsel %vm190, %v129, %v207
  %v224 = vsel %vm191, %v134, %v208
  %v225 = vsel %vm192, %v137, %v209
  %v226 = vsel %vm193, %v142, %v210
  %v227 = vsel %vm194, %v145, %v211
  %v228 = vsel %vm195, %v150, %v212
  %v229 = vsel %vm196, %v153, %v213
  %v230 = vsel %vm197, %v158, %v214
  %v231 = vsel %vm198, %v161, %v215
  %v232 = vsel %vm199, %v166, %v216
  %v233 = vsel %vm200, %v169, %v217
  %v234 = vsel %vm201, %v174, %v218
  %v235 = vsel %vm202, %v177, %v219
  %v236 = vsel %vm203, %v182, %v220
  %v237 = vsel %vm204, %v185, %v221
  %vm238 = vcmask 130048
  %239 = vst.msk [vmem:[%s4] sm:$0xff] %vm238, %v222
  %240 = vst.msk [vmem:[%s4 + $0x8] sm:$0xff] %vm238, %v223
  %241 = vst.msk [vmem:[%s4 + $0x10] sm:$0xff] %vm238, %v224
  %242 = vst.msk [vmem:[%s4 + $0x18] sm:$0xff] %vm238, %v225
  %243 = vst.msk [vmem:[%s4 + $0x20] sm:$0xff] %vm238, %v226
  %244 = vst.msk [vmem:[%s4 + $0x28] sm:$0xff] %vm238, %v227
  %245 = vst.msk [vmem:[%s4 + $0x30] sm:$0xff] %vm238, %v228
  %246 = vst.msk [vmem:[%s4 + $0x38] sm:$0xff] %vm238, %v229
  %247 = vst.msk [vmem:[%s4 + $0x40] sm:$0xff] %vm238, %v230
  %248 = vst.msk [vmem:[%s4 + $0x48] sm:$0xff] %vm238, %v231
  %249 = vst.msk [vmem:[%s4 + $0x50] sm:$0xff] %vm238, %v232
  %250 = vst.msk [vmem:[%s4 + $0x58] sm:$0xff] %vm238, %v233
  %251 = vst.msk [vmem:[%s4 + $0x60] sm:$0xff] %vm238, %v234
  %252 = vst.msk [vmem:[%s4 + $0x68] sm:$0xff] %vm238, %v235
  %253 = vst.msk [vmem:[%s4 + $0x70] sm:$0xff] %vm238, %v236
  %254 = vst.msk [vmem:[%s4 + $0x78] sm:$0xff] %vm238, %v237
  // Predicated region
  $region18: #{aia_transformer_merge.15} parent=0 // pred_check
    _
  $region19: #{aia_transformer_merge.15} parent=0 // pred_check_branch
    %256 = sbr.rel (0) target = $region21
  $region20: #{aia_transformer_merge.15} parent=0 // pred_region
    _
  $region21: #{aia_transformer_merge.15} parent=0 // pred_fallthru
    _
  // Predicated region
  $region22: #{aia_transformer_merge.15} parent=0 // pred_check
    _
  $region23: #{aia_transformer_merge.15} parent=0 // pred_check_branch
    %258 = sbr.rel (0) target = $region25
  $region24: #{aia_transformer_merge.15} parent=0 // pred_region
    _
  $region25: #{aia_transformer_merge.15} parent=0 // pred_fallthru
    _

// kernel: aia_transformer_merge.19
$region0: #{aia_transformer_merge.19}
  #allocation0 [shape = 'u32[]', space=smem, size = 0x4, offset = 0x4, fixed_abs, tag = 'smem constant byte address 0x4 - core index']
  #allocation1 [shape = 'u32[144,128]{1,0:T(1,128)}', space=vmem, size = 0x12000, scoped, tag = 'internal scratch']
  %s0 = inlined_call_operand.vmem [shape: f32[3], index: 0, kind: input, shape index: {}]
  %s1 = inlined_call_operand.vmem [shape: f32[2,64,16], index: 1, kind: input, shape index: {}]
  %s2 = inlined_call_operand.vmem [shape: f32[2,64,16], index: 2, kind: input, shape index: {}]
  %s3 = inlined_call_operand.vmem [shape: f32[2,64,16], index: 3, kind: input, shape index: {}]
  %s4 = inlined_call_operand.vmem [shape: f32[1,16], index: 4, kind: input, shape index: {}]
  %s5 = inlined_call_operand.vmem [shape: f32[1,16], index: 5, kind: input, shape index: {}]
  %s6 = inlined_call_operand.vmem [shape: f32[1,16], index: 6, kind: input, shape index: {}]
  %s7 = inlined_call_operand.vmem [shape: f32[1,16], index: 7, kind: input, shape index: {}]
  %s8 = inlined_call_operand.vmem [shape: bf16[16,16], index: 8, kind: input, shape index: {}]
  %s9 = inlined_call_operand.vmem [shape: f32[1,16], index: 9, kind: input, shape index: {}]
  %s10 = inlined_call_operand.vmem [shape: f32[2,64,16], index: 10, kind: output, shape index: {}]
  %s11 = sld [smem:[#allocation0]]
  $region77: #{aia_transformer_merge.19} parent=0
    _
  %s13 = ssub.s32 1, %s11
  %s14 = scalar_select 0, %s13, %s11
  $region1: #{aia_transformer_merge.19} parent=0
    #allocation2 [shape = 'u8[512]{0}', space=smem, size = 0x200, scoped, tag = 'input window, operand 0, single buffered']
    #allocation3 [shape = 's32[2]{0}', space=sflag, size = 0x8, scoped, tag = 'scoped memory for aia_transformer_merge.19']
    %15 = vsyncpa [#allocation3], 0
    loop: start=0, step=1, limit=4
    $region2: #{aia_transformer_merge.19} parent=1 // loop_pre_header
      _
    $region3: #{aia_transformer_merge.19} parent=1 // loop_header
      %s17 = sphi 0, %s21
      %p18 = scmp.ge.s32.totalorder %s17, 4
      %s25 = sphi 0, %s25
      %s27 = sphi 0, %s25
      %s28 = sphi 0, %s27
      %s42 = sphi 0, %s28
      %s48 = sphi 0, %s50
      %s51 = sphi 0, %s48
      %s52 = sphi 0, %s51
      %s68 = sphi 0, %s52
      %s74 = sphi 0, %s76
      %s77 = sphi 0, %s74
      %s78 = sphi 0, %s77
      %s94 = sphi 0, %s78
      %s100 = sphi 0, %s102
      %s103 = sphi 0, %s100
      %s104 = sphi 0, %s103
      %s120 = sphi 0, %s104
      %s124 = sphi 0, %s124
      %s126 = sphi 0, %s124
      %s127 = sphi 0, %s126
      %s141 = sphi 0, %s127
      %s145 = sphi 0, %s145
      %s147 = sphi 0, %s145
      %s148 = sphi 0, %s147
      %s162 = sphi 0, %s148
      %s166 = sphi 0, %s166
      %s168 = sphi 0, %s166
      %s169 = sphi 0, %s168
      %s183 = sphi 0, %s169
      %s187 = sphi 0, %s187
      %s189 = sphi 0, %s187
      %s190 = sphi 0, %s189
      %s204 = sphi 0, %s190
      %s208 = sphi 0, %s208
      %s210 = sphi 0, %s208
      %s211 = sphi 0, %s210
      %s225 = sphi 0, %s211
      %s229 = sphi 0, %s229
      %s231 = sphi 0, %s229
      %s232 = sphi 0, %s231
      %s246 = sphi 0, %s232
      %s252 = sphi 0, %s254
      %s255 = sphi 0, %s252
      %s256 = sphi 0, %s255
      %s272 = sphi 0, %s256
    $region4: #{aia_transformer_merge.19} parent=1 // loop_header_branch
      %20 = sbr.rel (%p18) target = $region8
    $region5: #{aia_transformer_merge.19} parent=1 // loop_body
      %s22 = ssub.s32 %s17, 1
      %s23 = ssub.s32 %s17, 2
      %s24 = sadd.s32 %s17, 1
      %s26 = sadd.s32 %s25, 1
      %p29 = scmp.eq.s32.totalorder %s17, 1
      %p30 = scmp.ne.s32.totalorder %s25, %s27
      %p31 = scmp.eq.s32.totalorder %s17, 0
      %p32 = por %p30, %p31
      %p33 = scmp.ne.s32.totalorder %s25, %s27
      %p34 = scmp.eq.s32.totalorder %s22, 1
      %p35 = por %p33, %p34
      %p36 = scmp.ne.s32.totalorder %s27, %s28
      %p37 = scmp.eq.s32.totalorder %s22, 0
      %p38 = por %p36, %p37
      %p39 = scmp.ne.s32.totalorder %s27, %s28
      %p40 = scmp.eq.s32.totalorder %s23, 1
      %p41 = por %p39, %p40
      %p43 = scmp.ne.s32.totalorder %s28, %s42
      %p44 = scmp.eq.s32.totalorder %s23, 0
      %p45 = por %p43, %p44
      %s46 = ssub.s32 %s17, %s24
      %p47 = scmp.eq.s32.totalorder %s46, 0
      %s49 = sadd.s32 %s48, 1
      %s50 = scalar_select %p47, %s48, %s49
      %p53 = pneg %p47
      %p54 = scmp.eq.s32.totalorder %s17, 1
      %p55 = por %p53, %p54
      %p56 = scmp.ne.s32.totalorder %s48, %s51
      %p57 = scmp.eq.s32.totalorder %s17, 0
      %p58 = por %p56, %p57
      %p59 = scmp.ne.s32.totalorder %s48, %s51
      %p60 = scmp.eq.s32.totalorder %s22, 1
      %p61 = por %p59, %p60
      %p62 = scmp.ne.s32.totalorder %s51, %s52
      %p63 = scmp.eq.s32.totalorder %s22, 0
      %p64 = por %p62, %p63
      %p65 = scmp.ne.s32.totalorder %s51, %s52
      %p66 = scmp.eq.s32.totalorder %s23, 1
      %p67 = por %p65, %p66
      %p69 = scmp.ne.s32.totalorder %s52, %s68
      %p70 = scmp.eq.s32.totalorder %s23, 0
      %p71 = por %p69, %p70
      %s72 = ssub.s32 %s17, %s24
      %p73 = scmp.eq.s32.totalorder %s72, 0
      %s75 = sadd.s32 %s74, 1
      %s76 = scalar_select %p73, %s74, %s75
      %p79 = pneg %p73
      %p80 = scmp.eq.s32.totalorder %s17, 1
      %p81 = por %p79, %p80
      %p82 = scmp.ne.s32.totalorder %s74, %s77
      %p83 = scmp.eq.s32.totalorder %s17, 0
      %p84 = por %p82, %p83
      %p85 = scmp.ne.s32.totalorder %s74, %s77
      %p86 = scmp.eq.s32.totalorder %s22, 1
      %p87 = por %p85, %p86
      %p88 = scmp.ne.s32.totalorder %s77, %s78
      %p89 = scmp.eq.s32.totalorder %s22, 0
      %p90 = por %p88, %p89
      %p91 = scmp.ne.s32.totalorder %s77, %s78
      %p92 = scmp.eq.s32.totalorder %s23, 1
      %p93 = por %p91, %p92
      %p95 = scmp.ne.s32.totalorder %s78, %s94
      %p96 = scmp.eq.s32.totalorder %s23, 0
      %p97 = por %p95, %p96
      %s98 = ssub.s32 %s17, %s24
      %p99 = scmp.eq.s32.totalorder %s98, 0
      %s101 = sadd.s32 %s100, 1
      %s102 = scalar_select %p99, %s100, %s101
      %p105 = pneg %p99
      %p106 = scmp.eq.s32.totalorder %s17, 1
      %p107 = por %p105, %p106
      %p108 = scmp.ne.s32.totalorder %s100, %s103
      %p109 = scmp.eq.s32.totalorder %s17, 0
      %p110 = por %p108, %p109
      %p111 = scmp.ne.s32.totalorder %s100, %s103
      %p112 = scmp.eq.s32.totalorder %s22, 1
      %p113 = por %p111, %p112
      %p114 = scmp.ne.s32.totalorder %s103, %s104
      %p115 = scmp.eq.s32.totalorder %s22, 0
      %p116 = por %p114, %p115
      %p117 = scmp.ne.s32.totalorder %s103, %s104
      %p118 = scmp.eq.s32.totalorder %s23, 1
      %p119 = por %p117, %p118
      %p121 = scmp.ne.s32.totalorder %s104, %s120
      %p122 = scmp.eq.s32.totalorder %s23, 0
      %p123 = por %p121, %p122
      %s125 = sadd.s32 %s124, 1
      %p128 = scmp.eq.s32.totalorder %s17, 1
      %p129 = scmp.ne.s32.totalorder %s124, %s126
      %p130 = scmp.eq.s32.totalorder %s17, 0
      %p131 = por %p129, %p130
      %p132 = scmp.ne.s32.totalorder %s124, %s126
      %p133 = scmp.eq.s32.totalorder %s22, 1
      %p134 = por %p132, %p133
      %p135 = scmp.ne.s32.totalorder %s126, %s127
      %p136 = scmp.eq.s32.totalorder %s22, 0
      %p137 = por %p135, %p136
      %p138 = scmp.ne.s32.totalorder %s126, %s127
      %p139 = scmp.eq.s32.totalorder %s23, 1
      %p140 = por %p138, %p139
      %p142 = scmp.ne.s32.totalorder %s127, %s141
      %p143 = scmp.eq.s32.totalorder %s23, 0
      %p144 = por %p142, %p143
      %s146 = sadd.s32 %s145, 1
      %p149 = scmp.eq.s32.totalorder %s17, 1
      %p150 = scmp.ne.s32.totalorder %s145, %s147
      %p151 = scmp.eq.s32.totalorder %s17, 0
      %p152 = por %p150, %p151
      %p153 = scmp.ne.s32.totalorder %s145, %s147
      %p154 = scmp.eq.s32.totalorder %s22, 1
      %p155 = por %p153, %p154
      %p156 = scmp.ne.s32.totalorder %s147, %s148
      %p157 = scmp.eq.s32.totalorder %s22, 0
      %p158 = por %p156, %p157
      %p159 = scmp.ne.s32.totalorder %s147, %s148
      %p160 = scmp.eq.s32.totalorder %s23, 1
      %p161 = por %p159, %p160
      %p163 = scmp.ne.s32.totalorder %s148, %s162
      %p164 = scmp.eq.s32.totalorder %s23, 0
      %p165 = por %p163, %p164
      %s167 = sadd.s32 %s166, 1
      %p170 = scmp.eq.s32.totalorder %s17, 1
      %p171 = scmp.ne.s32.totalorder %s166, %s168
      %p172 = scmp.eq.s32.totalorder %s17, 0
      %p173 = por %p171, %p172
      %p174 = scmp.ne.s32.totalorder %s166, %s168
      %p175 = scmp.eq.s32.totalorder %s22, 1
      %p176 = por %p174, %p175
      %p177 = scmp.ne.s32.totalorder %s168, %s169
      %p178 = scmp.eq.s32.totalorder %s22, 0
      %p179 = por %p177, %p178
      %p180 = scmp.ne.s32.totalorder %s168, %s169
      %p181 = scmp.eq.s32.totalorder %s23, 1
      %p182 = por %p180, %p181
      %p184 = scmp.ne.s32.totalorder %s169, %s183
      %p185 = scmp.eq.s32.totalorder %s23, 0
      %p186 = por %p184, %p185
      %s188 = sadd.s32 %s187, 1
      %p191 = scmp.eq.s32.totalorder %s17, 1
      %p192 = scmp.ne.s32.totalorder %s187, %s189
      %p193 = scmp.eq.s32.totalorder %s17, 0
      %p194 = por %p192, %p193
      %p195 = scmp.ne.s32.totalorder %s187, %s189
      %p196 = scmp.eq.s32.totalorder %s22, 1
      %p197 = por %p195, %p196
      %p198 = scmp.ne.s32.totalorder %s189, %s190
      %p199 = scmp.eq.s32.totalorder %s22, 0
      %p200 = por %p198, %p199
      %p201 = scmp.ne.s32.totalorder %s189, %s190
      %p202 = scmp.eq.s32.totalorder %s23, 1
      %p203 = por %p201, %p202
      %p205 = scmp.ne.s32.totalorder %s190, %s204
      %p206 = scmp.eq.s32.totalorder %s23, 0
      %p207 = por %p205, %p206
      %s209 = sadd.s32 %s208, 1
      %p212 = scmp.eq.s32.totalorder %s17, 1
      %p213 = scmp.ne.s32.totalorder %s208, %s210
      %p214 = scmp.eq.s32.totalorder %s17, 0
      %p215 = por %p213, %p214
      %p216 = scmp.ne.s32.totalorder %s208, %s210
      %p217 = scmp.eq.s32.totalorder %s22, 1
      %p218 = por %p216, %p217
      %p219 = scmp.ne.s32.totalorder %s210, %s211
      %p220 = scmp.eq.s32.totalorder %s22, 0
      %p221 = por %p219, %p220
      %p222 = scmp.ne.s32.totalorder %s210, %s211
      %p223 = scmp.eq.s32.totalorder %s23, 1
      %p224 = por %p222, %p223
      %p226 = scmp.ne.s32.totalorder %s211, %s225
      %p227 = scmp.eq.s32.totalorder %s23, 0
      %p228 = por %p226, %p227
      %s230 = sadd.s32 %s229, 1
      %p233 = scmp.eq.s32.totalorder %s17, 1
      %p234 = scmp.ne.s32.totalorder %s229, %s231
      %p235 = scmp.eq.s32.totalorder %s17, 0
      %p236 = por %p234, %p235
      %p237 = scmp.ne.s32.totalorder %s229, %s231
      %p238 = scmp.eq.s32.totalorder %s22, 1
      %p239 = por %p237, %p238
      %p240 = scmp.ne.s32.totalorder %s231, %s232
      %p241 = scmp.eq.s32.totalorder %s22, 0
      %p242 = por %p240, %p241
      %p243 = scmp.ne.s32.totalorder %s231, %s232
      %p244 = scmp.eq.s32.totalorder %s23, 1
      %p245 = por %p243, %p244
      %p247 = scmp.ne.s32.totalorder %s232, %s246
      %p248 = scmp.eq.s32.totalorder %s23, 0
      %p249 = por %p247, %p248
      %s250 = ssub.s32 %s17, %s24
      %p251 = scmp.eq.s32.totalorder %s250, 0
      %s253 = sadd.s32 %s252, 1
      %s254 = scalar_select %p251, %s252, %s253
      %p257 = pneg %p251
      %p258 = scmp.eq.s32.totalorder %s17, 1
      %p259 = por %p257, %p258
      %p260 = scmp.ne.s32.totalorder %s252, %s255
      %p261 = scmp.eq.s32.totalorder %s17, 0
      %p262 = por %p260, %p261
      %p263 = scmp.ne.s32.totalorder %s252, %s255
      %p264 = scmp.eq.s32.totalorder %s22, 1
      %p265 = por %p263, %p264
      %p266 = scmp.ne.s32.totalorder %s255, %s256
      %p267 = scmp.eq.s32.totalorder %s22, 0
      %p268 = por %p266, %p267
      %p269 = scmp.ne.s32.totalorder %s255, %s256
      %p270 = scmp.eq.s32.totalorder %s23, 1
      %p271 = por %p269, %p270
      %p273 = scmp.ne.s32.totalorder %s256, %s272
      %p274 = scmp.eq.s32.totalorder %s23, 0
      %p275 = por %p273, %p274
      %p276 = scmp.le.s32.totalorder 1, %s17
      %p277 = scmp.lt.s32.totalorder %s17, 3
      %p278 = pnand %p276, %p277
      %p279 = pneg %p278
      // Predicated region
      $region9: #{aia_transformer_merge.19} parent=5 // pred_check
        _
      $region10: #{aia_transformer_merge.19} parent=5 // pred_check_branch
        %281 = sbr.rel (%p278) target = $region12
      $region11: #{aia_transformer_merge.19} parent=5 // pred_region
        %s282 = ssub.s32 %s17, 1
        // Predicated region
        $region13: #{aia_transformer_merge.19} parent=11 // pred_check
          %p283 = pneg %p38
        $region14: #{aia_transformer_merge.19} parent=11 // pred_check_branch
          %285 = sbr.rel (%p283) target = $region16
        $region15: #{aia_transformer_merge.19} parent=11 // pred_region
          %s287 = ssub.s32 16, 16
          %288 = vsyncadd [#allocation3], %s287
          %s290 = sshll.u32 %s0, 4
          %s291 = int_to_ptr.vmem [resolvable:$true] %s290
          %293 = dma.vmem_to_smem %s291, 16, [#allocation2], [#allocation3]
        $region16: #{aia_transformer_merge.19} parent=11 // pred_fallthru
          _
        // Predicated region
        $region17: #{aia_transformer_merge.19} parent=11 // pred_check
          %p294 = pneg %p137
        $region18: #{aia_transformer_merge.19} parent=11 // pred_check_branch
          %296 = sbr.rel (%p294) target = $region20
        $region19: #{aia_transformer_merge.19} parent=11 // pred_region
          _
        $region20: #{aia_transformer_merge.19} parent=11 // pred_fallthru
          _
        // Predicated region
        $region21: #{aia_transformer_merge.19} parent=11 // pred_check
          %p297 = pneg %p158
        $region22: #{aia_transformer_merge.19} parent=11 // pred_check_branch
          %299 = sbr.rel (%p297) target = $region24
        $region23: #{aia_transformer_merge.19} parent=11 // pred_region
          _
        $region24: #{aia_transformer_merge.19} parent=11 // pred_fallthru
          _
        // Predicated region
        $region25: #{aia_transformer_merge.19} parent=11 // pred_check
          %p300 = pneg %p179
        $region26: #{aia_transformer_merge.19} parent=11 // pred_check_branch
          %302 = sbr.rel (%p300) target = $region28
        $region27: #{aia_transformer_merge.19} parent=11 // pred_region
          _
        $region28: #{aia_transformer_merge.19} parent=11 // pred_fallthru
          _
        // Predicated region
        $region29: #{aia_transformer_merge.19} parent=11 // pred_check
          %p303 = pneg %p200
        $region30: #{aia_transformer_merge.19} parent=11 // pred_check_branch
          %305 = sbr.rel (%p303) target = $region32
        $region31: #{aia_transformer_merge.19} parent=11 // pred_region
          _
        $region32: #{aia_transformer_merge.19} parent=11 // pred_fallthru
          _
        // Predicated region
        $region33: #{aia_transformer_merge.19} parent=11 // pred_check
          %p306 = pneg %p221
        $region34: #{aia_transformer_merge.19} parent=11 // pred_check_branch
          %308 = sbr.rel (%p306) target = $region36
        $region35: #{aia_transformer_merge.19} parent=11 // pred_region
          _
        $region36: #{aia_transformer_merge.19} parent=11 // pred_fallthru
          _
        // Predicated region
        $region37: #{aia_transformer_merge.19} parent=11 // pred_check
          %p309 = pneg %p242
        $region38: #{aia_transformer_merge.19} parent=11 // pred_check_branch
          %311 = sbr.rel (%p309) target = $region40
        $region39: #{aia_transformer_merge.19} parent=11 // pred_region
          _
        $region40: #{aia_transformer_merge.19} parent=11 // pred_fallthru
          _
      $region12: #{aia_transformer_merge.19} parent=5 // pred_fallthru
        _
      %p312 = scmp.lt.s32.totalorder %s17, 2
      // Predicated region
      $region41: #{aia_transformer_merge.19} parent=5 // pred_check
        %p313 = pneg %p312
      $region42: #{aia_transformer_merge.19} parent=5 // pred_check_branch
        %315 = sbr.rel (%p313) target = $region44
      $region43: #{aia_transformer_merge.19} parent=5 // pred_region
        // Predicated region
        $region45: #{aia_transformer_merge.19} parent=43 // pred_check
          %p316 = pneg %p58
        $region46: #{aia_transformer_merge.19} parent=43 // pred_check_branch
          %318 = sbr.rel (%p316) target = $region48
        $region47: #{aia_transformer_merge.19} parent=43 // pred_region
          %p319 = scmp.lt.s32.totalorder %s17, 1
          %s320 = scalar_select %p319, %s17, 1
          %s321 = smul.addr %s320, 8
          %s322 = smul.addr %s321, 8
          %s323 = scalar_lea.vmem %s1, %s322
        $region48: #{aia_transformer_merge.19} parent=43 // pred_fallthru
          _
        // Predicated region
        $region49: #{aia_transformer_merge.19} parent=43 // pred_check
          %p324 = pneg %p84
        $region50: #{aia_transformer_merge.19} parent=43 // pred_check_branch
          %326 = sbr.rel (%p324) target = $region52
        $region51: #{aia_transformer_merge.19} parent=43 // pred_region
          %p327 = scmp.lt.s32.totalorder %s17, 1
          %s328 = scalar_select %p327, %s17, 1
          %s329 = smul.addr %s328, 8
          %s330 = smul.addr %s329, 8
          %s331 = scalar_lea.vmem %s2, %s330
        $region52: #{aia_transformer_merge.19} parent=43 // pred_fallthru
          _
        // Predicated region
        $region53: #{aia_transformer_merge.19} parent=43 // pred_check
          %p332 = pneg %p110
        $region54: #{aia_transformer_merge.19} parent=43 // pred_check_branch
          %334 = sbr.rel (%p332) target = $region56
        $region55: #{aia_transformer_merge.19} parent=43 // pred_region
          %p335 = scmp.lt.s32.totalorder %s17, 1
          %s336 = scalar_select %p335, %s17, 1
          %s337 = smul.addr %s336, 8
          %s338 = smul.addr %s337, 8
          %s339 = scalar_lea.vmem %s3, %s338
        $region56: #{aia_transformer_merge.19} parent=43 // pred_fallthru
          _
      $region44: #{aia_transformer_merge.19} parent=5 // pred_fallthru
        _
      %p340 = scmp.le.s32.totalorder 1, %s17
      %p341 = scmp.lt.s32.totalorder %s17, 3
      %p342 = pnand %p340, %p341
      %p343 = pneg %p342
      // Predicated region
      $region57: #{aia_transformer_merge.19} parent=5 // pred_check
        _
      $region58: #{aia_transformer_merge.19} parent=5 // pred_check_branch
        %345 = sbr.rel (%p342) target = $region60
      $region59: #{aia_transformer_merge.19} parent=5 // pred_region
        %s346 = ssub.s32 %s17, 1
        // Predicated region
        $region61: #{aia_transformer_merge.19} parent=59 // pred_check
          %p347 = pneg %p38
        $region62: #{aia_transformer_merge.19} parent=59 // pred_check_branch
          %349 = sbr.rel (%p347) target = $region64
        $region63: #{aia_transformer_merge.19} parent=59 // pred_region
          %350 = dma.done [#allocation3], 16
        $region64: #{aia_transformer_merge.19} parent=59 // pred_fallthru
          _
        %351 = sfence
        %p352 = pneg %p38
        %p353 = pneg %p35
        %p354 = scmp.lt.s32.totalorder %s22, 1
        %s355 = scalar_select %p354, %s22, 1
        %s356 = smul.addr %s355, 8
        %s357 = smul.addr %s356, 8
        %s358 = scalar_lea.vmem %s1, %s357
        %p359 = pneg %p64
        %p360 = pneg %p61
        %p361 = scmp.lt.s32.totalorder %s22, 1
        %s362 = scalar_select %p361, %s22, 1
        %s363 = smul.addr %s362, 8
        %s364 = smul.addr %s363, 8
        %s365 = scalar_lea.vmem %s2, %s364
        %p366 = pneg %p90
        %p367 = pneg %p87
        %p368 = scmp.lt.s32.totalorder %s22, 1
        %s369 = scalar_select %p368, %s22, 1
        %s370 = smul.addr %s369, 8
        %s371 = smul.addr %s370, 8
        %s372 = scalar_lea.vmem %s3, %s371
        %p373 = pneg %p116
        %p374 = pneg %p113
        %p375 = pneg %p137
        %p376 = pneg %p134
        %p377 = pneg %p158
        %p378 = pneg %p155
        %p379 = pneg %p179
        %p380 = pneg %p176
        %p381 = pneg %p200
        %p382 = pneg %p197
        %p383 = pneg %p221
        %p384 = pneg %p218
        %p385 = pneg %p242
        %p386 = pneg %p239
        %p387 = pneg %p268
        %p388 = pneg %p265
        %p389 = scmp.lt.s32.totalorder %s22, 1
        %s390 = scalar_select %p389, %s22, 1
        %s391 = smul.addr %s390, 8
        %s392 = smul.addr %s391, 8
        %s393 = scalar_lea.vmem %s10, %s392
        %p394 = scmp.lt.s32.totalorder %s22, 1
        %s395 = scalar_select %p394, %s22, 1
        %s396 = smul.addr %s395, 8
        %s397 = smul.addr %s396, 8
        %s398 = scalar_lea.vmem %s1, %s397
        %p399 = scmp.lt.s32.totalorder %s22, 1
        %s400 = scalar_select %p399, %s22, 1
        %s401 = smul.addr %s400, 8
        %s402 = smul.addr %s401, 8
        %s403 = scalar_lea.vmem %s2, %s402
        %p404 = scmp.lt.s32.totalorder %s22, 1
        %s405 = scalar_select %p404, %s22, 1
        %s406 = smul.addr %s405, 8
        %s407 = smul.addr %s406, 8
        %s408 = scalar_lea.vmem %s3, %s407
        %p409 = scmp.lt.s32.totalorder %s22, 1
        %s410 = scalar_select %p409, %s22, 1
        %s411 = smul.addr %s410, 8
        %s412 = smul.addr %s411, 8
        %s413 = scalar_lea.vmem %s10, %s412
        %s415 = sld [smem:[#allocation2]]
        %s416 = sld [smem:[#allocation2 + $0x1]]
        %s417 = sld [smem:[#allocation2 + $0x2]]
        %v418 = vld [vmem:[%s403] sm:$0xff]
        %v419 = vld [vmem:[%s403 + $0x8] sm:$0xff]
        %v420 = vld [vmem:[%s403 + $0x10] sm:$0xff]
        %v421 = vld [vmem:[%s403 + $0x18] sm:$0xff]
        %v422 = vld [vmem:[%s403 + $0x20] sm:$0xff]
        %v423 = vld [vmem:[%s403 + $0x28] sm:$0xff]
        %v424 = vld [vmem:[%s403 + $0x30] sm:$0xff]
        %v425 = vld [vmem:[%s403 + $0x38] sm:$0xff]
        %v426 = vld [vmem:[%s4] sm:$0x1]
        %v427 = vld [vmem:[%s5] sm:$0x1]
        %vm428 = vcmask 130048
        %v429 = vsel %vm428, %v418, 0.0
        %430 = vadd.xlane.f32.xlu0 %v429
        %v431 = vpop.xlane.xlu0 %430
        %v432 = vsel %vm428, %v419, 0.0
        %433 = vadd.xlane.f32.xlu0 %v432
        %v434 = vpop.xlane.xlu0 %433
        %v435 = vsel %vm428, %v420, 0.0
        %436 = vadd.xlane.f32.xlu0 %v435
        %v437 = vpop.xlane.xlu0 %436
        %v438 = vsel %vm428, %v421, 0.0
        %439 = vadd.xlane.f32.xlu0 %v438
        %v440 = vpop.xlane.xlu0 %439
        %v441 = vsel %vm428, %v422, 0.0
        %442 = vadd.xlane.f32.xlu0 %v441
        %v443 = vpop.xlane.xlu0 %442
        %v444 = vsel %vm428, %v423, 0.0
        %445 = vadd.xlane.f32.xlu0 %v444
        %v446 = vpop.xlane.xlu0 %445
        %v447 = vsel %vm428, %v424, 0.0
        %448 = vadd.xlane.f32.xlu0 %v447
        %v449 = vpop.xlane.xlu0 %448
        %v450 = vsel %vm428, %v425, 0.0
        %451 = vadd.xlane.f32.xlu0 %v450
        %v452 = vpop.xlane.xlu0 %451
        %v453 = vadd.f32 %v431, %v434
        %v454 = vadd.f32 %v453, %v437
        %v455 = vadd.f32 %v454, %v440
        %v456 = vadd.f32 %v455, %v443
        %v457 = vadd.f32 %v456, %v446
        %v458 = vadd.f32 %v457, %v449
        %v459 = vadd.f32 %v458, %v452
        %v460 = vrot.slane %v459, 4
        %v461 = vadd.f32 %v459, %v460
        %v462 = vrot.slane %v461, 2
        %v463 = vadd.f32 %v461, %v462
        %v464 = vrot.slane %v463, 1
        %v465 = vadd.f32 %v463, %v464
        %v466 = vrcp.pop 1024.0
        %v467 = vmul.f32 %v465, %v466
        %v468 = vsub.f32 %v418, %v467
        %v469 = vsub.f32 %v419, %v467
        %v470 = vsub.f32 %v420, %v467
        %v471 = vsub.f32 %v421, %v467
        %v472 = vsub.f32 %v422, %v467
        %v473 = vsub.f32 %v423, %v467
        %v474 = vsub.f32 %v424, %v467
        %v475 = vsub.f32 %v425, %v467
        %v476 = vmul.f32 %v468, %v468
        %v477 = vmul.f32 %v469, %v469
        %v478 = vmul.f32 %v470, %v470
        %v479 = vmul.f32 %v471, %v471
        %v480 = vmul.f32 %v472, %v472
        %v481 = vmul.f32 %v473, %v473
        %v482 = vmul.f32 %v474, %v474
        %v483 = vmul.f32 %v475, %v475
        %v484 = vsel %vm428, %v476, 0.0
        %485 = vadd.xlane.f32.xlu0 %v484
        %v486 = vpop.xlane.xlu0 %485
        %v487 = vsel %vm428, %v477, 0.0
        %488 = vadd.xlane.f32.xlu0 %v487
        %v489 = vpop.xlane.xlu0 %488
        %v490 = vsel %vm428, %v478, 0.0
        %491 = vadd.xlane.f32.xlu0 %v490
        %v492 = vpop.xlane.xlu0 %491
        %v493 = vsel %vm428, %v479, 0.0
        %494 = vadd.xlane.f32.xlu0 %v493
        %v495 = vpop.xlane.xlu0 %494
        %v496 = vsel %vm428, %v480, 0.0
        %497 = vadd.xlane.f32.xlu0 %v496
        %v498 = vpop.xlane.xlu0 %497
        %v499 = vsel %vm428, %v481, 0.0
        %500 = vadd.xlane.f32.xlu0 %v499
        %v501 = vpop.xlane.xlu0 %500
        %v502 = vsel %vm428, %v482, 0.0
        %503 = vadd.xlane.f32.xlu0 %v502
        %v504 = vpop.xlane.xlu0 %503
        %v505 = vsel %vm428, %v483, 0.0
        %506 = vadd.xlane.f32.xlu0 %v505
        %v507 = vpop.xlane.xlu0 %506
        %v508 = vadd.f32 %v486, %v489
        %v509 = vadd.f32 %v508, %v492
        %v510 = vadd.f32 %v509, %v495
        %v511 = vadd.f32 %v510, %v498
        %v512 = vadd.f32 %v511, %v501
        %v513 = vadd.f32 %v512, %v504
        %v514 = vadd.f32 %v513, %v507
        %v515 = vrot.slane %v514, 4
        %v516 = vadd.f32 %v514, %v515
        %v517 = vrot.slane %v516, 2
        %v518 = vadd.f32 %v516, %v517
        %v519 = vrot.slane %v518, 1
        %v520 = vadd.f32 %v518, %v519
        %v521 = vmul.f32 %v520, %v466
        %v522 = vadd.f32 %v521, 1e-08
        %v523 = vrsqrt.pop %v522
        %v524 = vmul.f32 %v468, %v523
        %v525 = vmul.f32 %v469, %v523
        %v526 = vmul.f32 %v470, %v523
        %v527 = vmul.f32 %v471, %v523
        %v528 = vmul.f32 %v472, %v523
        %v529 = vmul.f32 %v473, %v523
        %v530 = vmul.f32 %v474, %v523
        %v531 = vmul.f32 %v475, %v523
        %v533 = vlaneseq
        %v534 = vshrl.u32 %v533, 7
        %v535 = vsub.s32 0, %v534
        %v536 = vrot.slane %v426, %v535
        %v538 = vmul.f32 %v524, %v536
        %v539 = vmul.f32 %v525, %v536
        %v540 = vmul.f32 %v526, %v536
        %v541 = vmul.f32 %v527, %v536
        %v542 = vmul.f32 %v528, %v536
        %v543 = vmul.f32 %v529, %v536
        %v544 = vmul.f32 %v530, %v536
        %v545 = vmul.f32 %v531, %v536
        %v547 = vlaneseq
        %v548 = vshrl.u32 %v547, 7
        %v549 = vsub.s32 0, %v548
        %v550 = vrot.slane %v427, %v549
        %v552 = vadd.f32 %v538, %v550
        %v553 = vadd.f32 %v539, %v550
        %v554 = vadd.f32 %v540, %v550
        %v555 = vadd.f32 %v541, %v550
        %v556 = vadd.f32 %v542, %v550
        %v557 = vadd.f32 %v543, %v550
        %v558 = vadd.f32 %v544, %v550
        %v559 = vadd.f32 %v545, %v550
        %v560 = vld [vmem:[%s408] sm:$0xff]
        %v561 = vld [vmem:[%s408 + $0x8] sm:$0xff]
        %v562 = vld [vmem:[%s408 + $0x10] sm:$0xff]
        %v563 = vld [vmem:[%s408 + $0x18] sm:$0xff]
        %v564 = vld [vmem:[%s408 + $0x20] sm:$0xff]
        %v565 = vld [vmem:[%s408 + $0x28] sm:$0xff]
        %v566 = vld [vmem:[%s408 + $0x30] sm:$0xff]
        %v567 = vld [vmem:[%s408 + $0x38] sm:$0xff]
        %v568 = vld [vmem:[%s6] sm:$0x1]
        %v569 = vld [vmem:[%s7] sm:$0x1]
        %v570 = vsel %vm428, %v560, 0.0
        %571 = vadd.xlane.f32.xlu0 %v570
        %v572 = vpop.xlane.xlu0 %571
        %v573 = vsel %vm428, %v561, 0.0
        %574 = vadd.xlane.f32.xlu0 %v573
        %v575 = vpop.xlane.xlu0 %574
        %v576 = vsel %vm428, %v562, 0.0
        %577 = vadd.xlane.f32.xlu0 %v576
        %v578 = vpop.xlane.xlu0 %577
        %v579 = vsel %vm428, %v563, 0.0
        %580 = vadd.xlane.f32.xlu0 %v579
        %v581 = vpop.xlane.xlu0 %580
        %v582 = vsel %vm428, %v564, 0.0
        %583 = vadd.xlane.f32.xlu0 %v582
        %v584 = vpop.xlane.xlu0 %583
        %v585 = vsel %vm428, %v565, 0.0
        %586 = vadd.xlane.f32.xlu0 %v585
        %v587 = vpop.xlane.xlu0 %586
        %v588 = vsel %vm428, %v566, 0.0
        %589 = vadd.xlane.f32.xlu0 %v588
        %v590 = vpop.xlane.xlu0 %589
        %v591 = vsel %vm428, %v567, 0.0
        %592 = vadd.xlane.f32.xlu0 %v591
        %v593 = vpop.xlane.xlu0 %592
        %v594 = vadd.f32 %v572, %v575
        %v595 = vadd.f32 %v594, %v578
        %v596 = vadd.f32 %v595, %v581
        %v597 = vadd.f32 %v596, %v584
        %v598 = vadd.f32 %v597, %v587
        %v599 = vadd.f32 %v598, %v590
        %v600 = vadd.f32 %v599, %v593
        %v601 = vrot.slane %v600, 4
        %v602 = vadd.f32 %v600, %v601
        %v603 = vrot.slane %v602, 2
        %v604 = vadd.f32 %v602, %v603
        %v605 = vrot.slane %v604, 1
        %v606 = vadd.f32 %v604, %v605
        %v607 = vmul.f32 %v606, %v466
        %v608 = vsub.f32 %v560, %v607
        %v609 = vsub.f32 %v561, %v607
        %v610 = vsub.f32 %v562, %v607
        %v611 = vsub.f32 %v563, %v607
        %v612 = vsub.f32 %v564, %v607
        %v613 = vsub.f32 %v565, %v607
        %v614 = vsub.f32 %v566, %v607
        %v615 = vsub.f32 %v567, %v607
        %v616 = vmul.f32 %v608, %v608
        %v617 = vmul.f32 %v609, %v609
        %v618 = vmul.f32 %v610, %v610
        %v619 = vmul.f32 %v611, %v611
        %v620 = vmul.f32 %v612, %v612
        %v621 = vmul.f32 %v613, %v613
        %v622 = vmul.f32 %v614, %v614
        %v623 = vmul.f32 %v615, %v615
        %v624 = vsel %vm428, %v616, 0.0
        %625 = vadd.xlane.f32.xlu0 %v624
        %v626 = vpop.xlane.xlu0 %625
        %v627 = vsel %vm428, %v617, 0.0
        %628 = vadd.xlane.f32.xlu0 %v627
        %v629 = vpop.xlane.xlu0 %628
        %v630 = vsel %vm428, %v618, 0.0
        %631 = vadd.xlane.f32.xlu0 %v630
        %v632 = vpop.xlane.xlu0 %631
        %v633 = vsel %vm428, %v619, 0.0
        %634 = vadd.xlane.f32.xlu0 %v633
        %v635 = vpop.xlane.xlu0 %634
        %v636 = vsel %vm428, %v620, 0.0
        %637 = vadd.xlane.f32.xlu0 %v636
        %v638 = vpop.xlane.xlu0 %637
        %v639 = vsel %vm428, %v621, 0.0
        %640 = vadd.xlane.f32.xlu0 %v639
        %v641 = vpop.xlane.xlu0 %640
        %v642 = vsel %vm428, %v622, 0.0
        %643 = vadd.xlane.f32.xlu0 %v642
        %v644 = vpop.xlane.xlu0 %643
        %v645 = vsel %vm428, %v623, 0.0
        %646 = vadd.xlane.f32.xlu0 %v645
        %v647 = vpop.xlane.xlu0 %646
        %v648 = vadd.f32 %v626, %v629
        %v649 = vadd.f32 %v648, %v632
        %v650 = vadd.f32 %v649, %v635
        %v651 = vadd.f32 %v650, %v638
        %v652 = vadd.f32 %v651, %v641
        %v653 = vadd.f32 %v652, %v644
        %v654 = vadd.f32 %v653, %v647
        %v655 = vrot.slane %v654, 4
        %v656 = vadd.f32 %v654, %v655
        %v657 = vrot.slane %v656, 2
        %v658 = vadd.f32 %v656, %v657
        %v659 = vrot.slane %v658, 1
        %v660 = vadd.f32 %v658, %v659
        %v661 = vmul.f32 %v660, %v466
        %v662 = vadd.f32 %v661, 1e-08
        %v663 = vrsqrt.pop %v662
        %v664 = vmul.f32 %v608, %v663
        %v665 = vmul.f32 %v609, %v663
        %v666 = vmul.f32 %v610, %v663
        %v667 = vmul.f32 %v611, %v663
        %v668 = vmul.f32 %v612, %v663
        %v669 = vmul.f32 %v613, %v663
        %v670 = vmul.f32 %v614, %v663
        %v671 = vmul.f32 %v615, %v663
        %v673 = vlaneseq
        %v674 = vshrl.u32 %v673, 7
        %v675 = vsub.s32 0, %v674
        %v676 = vrot.slane %v568, %v675
        %v678 = vmul.f32 %v664, %v676
        %v679 = vmul.f32 %v665, %v676
        %v680 = vmul.f32 %v666, %v676
        %v681 = vmul.f32 %v667, %v676
        %v682 = vmul.f32 %v668, %v676
        %v683 = vmul.f32 %v669, %v676
        %v684 = vmul.f32 %v670, %v676
        %v685 = vmul.f32 %v671, %v676
        %v687 = vlaneseq
        %v688 = vshrl.u32 %v687, 7
        %v689 = vsub.s32 0, %v688
        %v690 = vrot.slane %v569, %v689
        %v692 = vadd.f32 %v678, %v690
        %v693 = vadd.f32 %v679, %v690
        %v694 = vadd.f32 %v680, %v690
        %v695 = vadd.f32 %v681, %v690
        %v696 = vadd.f32 %v682, %v690
        %v697 = vadd.f32 %v683, %v690
        %v698 = vadd.f32 %v684, %v690
        %v699 = vadd.f32 %v685, %v690
        %v700 = vld [vmem:[%s398] sm:$0xff]
        %v701 = vld [vmem:[%s398 + $0x8] sm:$0xff]
        %v702 = vld [vmem:[%s398 + $0x10] sm:$0xff]
        %v703 = vld [vmem:[%s398 + $0x18] sm:$0xff]
        %v704 = vld [vmem:[%s398 + $0x20] sm:$0xff]
        %v705 = vld [vmem:[%s398 + $0x28] sm:$0xff]
        %v706 = vld [vmem:[%s398 + $0x30] sm:$0xff]
        %v707 = vld [vmem:[%s398 + $0x38] sm:$0xff]
        %v708 = vstv %s415
        %v709 = vmul.f32 %v708, %v552
        %v710 = vmul.f32 %v708, %v553
        %v711 = vmul.f32 %v708, %v554
        %v712 = vmul.f32 %v708, %v555
        %v713 = vmul.f32 %v708, %v556
        %v714 = vmul.f32 %v708, %v557
        %v715 = vmul.f32 %v708, %v558
        %v716 = vmul.f32 %v708, %v559
        %v717 = vadd.f32 %v700, %v709
        %v718 = vadd.f32 %v701, %v710
        %v719 = vadd.f32 %v702, %v711
        %v720 = vadd.f32 %v703, %v712
        %v721 = vadd.f32 %v704, %v713
        %v722 = vadd.f32 %v705, %v714
        %v723 = vadd.f32 %v706, %v715
        %v724 = vadd.f32 %v707, %v716
        %v725 = vstv %s416
        %v726 = vmul.f32 %v725, %v692
        %v727 = vmul.f32 %v725, %v693
        %v728 = vmul.f32 %v725, %v694
        %v729 = vmul.f32 %v725, %v695
        %v730 = vmul.f32 %v725, %v696
        %v731 = vmul.f32 %v725, %v697
        %v732 = vmul.f32 %v725, %v698
        %v733 = vmul.f32 %v725, %v699
        %v734 = vadd.f32 %v717, %v726
        %v735 = vadd.f32 %v718, %v727
        %v736 = vadd.f32 %v719, %v728
        %v737 = vadd.f32 %v720, %v729
        %v738 = vadd.f32 %v721, %v730
        %v739 = vadd.f32 %v722, %v731
        %v740 = vadd.f32 %v723, %v732
        %v741 = vadd.f32 %v724, %v733
        %vm742 = vcmp.ge.f32.partialorder %v734, 0.0
        %vm743 = vcmp.ge.f32.partialorder %v735, 0.0
        %vm744 = vcmp.ge.f32.partialorder %v736, 0.0
        %vm745 = vcmp.ge.f32.partialorder %v737, 0.0
        %vm746 = vcmp.ge.f32.partialorder %v738, 0.0
        %vm747 = vcmp.ge.f32.partialorder %v739, 0.0
        %vm748 = vcmp.ge.f32.partialorder %v740, 0.0
        %vm749 = vcmp.ge.f32.partialorder %v741, 0.0
        %v750 = vstv %s417
        %v751 = vmul.f32 %v750, %v734
        %v752 = vmul.f32 %v750, %v735
        %v753 = vmul.f32 %v750, %v736
        %v754 = vmul.f32 %v750, %v737
        %v755 = vmul.f32 %v750, %v738
        %v756 = vmul.f32 %v750, %v739
        %v757 = vmul.f32 %v750, %v740
        %v758 = vmul.f32 %v750, %v741
        %v759 = vsel %vm742, %v734, %v751
        %v760 = vsel %vm743, %v735, %v752
        %v761 = vsel %vm744, %v736, %v753
        %v762 = vsel %vm745, %v737, %v754
        %v763 = vsel %vm746, %v738, %v755
        %v764 = vsel %vm747, %v739, %v756
        %v765 = vsel %vm748, %v740, %v757
        %v766 = vsel %vm749, %v741, %v758
        %v767 = vpack.c.bf16 %v760, %v759
        %v768 = vpack.c.bf16 %v762, %v761
        %v769 = vpack.c.bf16 %v764, %v763
        %v770 = vpack.c.bf16 %v766, %v765
        %v771 = vld [vmem:[%s8] sm:$0xf]
        %v772 = vld [vmem:[%s8 + $0x4] sm:$0xf]
        %v773 = vld [vmem:[%s9] sm:$0x1]
        %v775 = vlaneseq
        %v776 = vshrl.u32 %v775, 7
        %v777 = vsub.s32 0, %v776
        %v778 = vrot.slane %v773, %v777
        %v782 = vunpack.c.l.b16 %v771
        %v783 = vunpack.c.l.b16 %v772
        %v784 = vpack.c.b16 %v783, %v782
        %v787 = vsel %vm428, %v767, 0
        %v790 = vsel %vm428, %v768, 0
        %v793 = vsel %vm428, %v769, 0
        %v796 = vsel %vm428, %v770, 0
        %798 = vmatprep.subr.bf16.mxu0 0
        %799 = vmatpush1.bf16.msra.mxu0 %v784
        %800 = vmatprep.subr.bf16.mxu0 0
        %801 = vmatpush1.bf16.msra.mxu0 0
        %802 = vmatprep.subr.bf16.mxu0 0
        %803 = vmatpush1.bf16.msra.mxu0 0
        %804 = vmatprep.subr.bf16.mxu0 0
        %805 = vmatpush1.bf16.msra.mxu0 0
        %806 = vmatprep.subr.bf16.mxu0 0
        %807 = vmatpush1.bf16.msra.mxu0 0
        %808 = vmatprep.subr.bf16.mxu0 0
        %809 = vmatpush1.bf16.msra.mxu0 0
        %810 = vmatprep.subr.bf16.mxu0 0
        %811 = vmatpush1.bf16.msra.mxu0 0
        %812 = vmatprep.subr.bf16.mxu0 0
        %813 = vmatpush1.bf16.msra.mxu0 0
        %814 = vmatprep.subr.bf16.mxu0 0
        %815 = vmatpush1.bf16.msra.mxu0 0
        %816 = vmatprep.subr.bf16.mxu0 0
        %817 = vmatpush1.bf16.msra.mxu0 0
        %818 = vmatprep.subr.bf16.mxu0 0
        %819 = vmatpush1.bf16.msra.mxu0 0
        %820 = vmatprep.subr.bf16.mxu0 0
        %821 = vmatpush1.bf16.msra.mxu0 0
        %822 = vmatprep.subr.bf16.mxu0 0
        %823 = vmatpush1.bf16.msra.mxu0 0
        %824 = vmatprep.subr.bf16.mxu0 0
        %825 = vmatpush1.bf16.msra.mxu0 0
        %826 = vmatprep.subr.bf16.mxu0 0
        %827 = vmatpush1.bf16.msra.mxu0 0
        %828 = vmatprep.subr.bf16.mxu0 0
        %829 = vmatpush1.bf16.msra.mxu0 0
        %830 = vmatprep.mubr.bf16.mxu0 0
        %831 = vmatmul.mubr.bf16.gmra.mrb[0].mxu0 %v787
        %v832 = vpop.f32.mrb[0].mxu0
        %v833 = vadd.f32 %v778, %v832
        %v834 = vpop.f32.mrb[0].mxu0
        %v835 = vpop.f32.mrb[0].mxu0
        %v836 = vadd.f32 %v778, %v835
        %v837 = vpop.f32.mrb[0].mxu0
        %838 = vmatprep.mubr.bf16.mxu0 0
        %839 = vmatmul.mubr.bf16.gmra.mrb[0].mxu0 %v790
        %v840 = vpop.f32.mrb[0].mxu0
        %v841 = vadd.f32 %v778, %v840
        %v842 = vpop.f32.mrb[0].mxu0
        %v843 = vpop.f32.mrb[0].mxu0
        %v844 = vadd.f32 %v778, %v843
        %v845 = vpop.f32.mrb[0].mxu0
        %846 = vmatprep.mubr.bf16.mxu0 0
        %847 = vmatmul.mubr.bf16.gmra.mrb[0].mxu0 %v793
        %v848 = vpop.f32.mrb[0].mxu0
        %v849 = vadd.f32 %v778, %v848
        %v850 = vpop.f32.mrb[0].mxu0
        %v851 = vpop.f32.mrb[0].mxu0
        %v852 = vadd.f32 %v778, %v851
        %v853 = vpop.f32.mrb[0].mxu0
        %854 = vmatprep.mubr.bf16.mxu0 0
        %855 = vmatmul.mubr.bf16.gmra.mrb[0].mxu0 %v796
        %v856 = vpop.f32.mrb[0].mxu0
        %v857 = vadd.f32 %v778, %v856
        %v858 = vpop.f32.mrb[0].mxu0
        %v859 = vpop.f32.mrb[0].mxu0
        %v860 = vadd.f32 %v778, %v859
        %v861 = vpop.f32.mrb[0].mxu0
        %862 = vdwg.mxu0
        %863 = vst.msk [vmem:[%s413] sm:$0xff] %vm428, %v833
        %864 = vst.msk [vmem:[%s413 + $0x8] sm:$0xff] %vm428, %v836
        %865 = vst.msk [vmem:[%s413 + $0x10] sm:$0xff] %vm428, %v841
        %866 = vst.msk [vmem:[%s413 + $0x18] sm:$0xff] %vm428, %v844
        %867 = vst.msk [vmem:[%s413 + $0x20] sm:$0xff] %vm428, %v849
        %868 = vst.msk [vmem:[%s413 + $0x28] sm:$0xff] %vm428, %v852
        %869 = vst.msk [vmem:[%s413 + $0x30] sm:$0xff] %vm428, %v857
        %870 = vst.msk [vmem:[%s413 + $0x38] sm:$0xff] %vm428, %v860
        %p871 = scmp.lt.s32.totalorder %s22, 1
        %s872 = scalar_select %p871, %s22, 1
        %s873 = smul.addr %s872, 8
        %s874 = smul.addr %s873, 8
        %s875 = scalar_lea.vmem %s10, %s874
        // Predicated region
        $region65: #{aia_transformer_merge.19} parent=59 // pred_check
          %p876 = pneg %p265
        $region66: #{aia_transformer_merge.19} parent=59 // pred_check_branch
          %878 = sbr.rel (%p876) target = $region68
        $region67: #{aia_transformer_merge.19} parent=59 // pred_region
          _
        $region68: #{aia_transformer_merge.19} parent=59 // pred_fallthru
          _
      $region60: #{aia_transformer_merge.19} parent=5 // pred_fallthru
        _
      %p879 = scmp.le.s32.totalorder 2, %s17
      // Predicated region
      $region69: #{aia_transformer_merge.19} parent=5 // pred_check
        %p880 = pneg %p879
      $region70: #{aia_transformer_merge.19} parent=5 // pred_check_branch
        %882 = sbr.rel (%p880) target = $region72
      $region71: #{aia_transformer_merge.19} parent=5 // pred_region
        %s883 = ssub.s32 %s17, 2
        // Predicated region
        $region73: #{aia_transformer_merge.19} parent=71 // pred_check
          %p884 = pneg %p271
        $region74: #{aia_transformer_merge.19} parent=71 // pred_check_branch
          %886 = sbr.rel (%p884) target = $region76
        $region75: #{aia_transformer_merge.19} parent=71 // pred_region
          %p887 = scmp.lt.s32.totalorder %s23, 1
          %s888 = scalar_select %p887, %s23, 1
          %s889 = smul.addr %s888, 8
          %s890 = smul.addr %s889, 8
          %s891 = scalar_lea.vmem %s10, %s890
        $region76: #{aia_transformer_merge.19} parent=71 // pred_fallthru
          _
      $region72: #{aia_transformer_merge.19} parent=5 // pred_fallthru
        _
    $region6: #{aia_transformer_merge.19} parent=1 // loop_footer
      %s21 = sadd.s32 1, %s17
    $region7: #{aia_transformer_merge.19} parent=1 // loop_footer_branch
      %16 = sbr.rel target = $region3
    $region8: #{aia_transformer_merge.19} parent=1 // loop_exit
      _
    %892 = vsyncpa [#allocation3], 1
    %s893 = scalar_lea.sflag [#allocation3], 1
    %894 = vsyncpa %s893, 1

// kernel: aia_transformer_merge.17
$region0: #{aia_transformer_merge.17}
  #allocation0 [shape = 'u32[]', space=smem, size = 0x4, offset = 0x4, fixed_abs, tag = 'smem constant byte address 0x4 - core index']
  #allocation1 [shape = 'u32[144,128]{1,0:T(1,128)}', space=vmem, size = 0x12000, scoped, tag = 'internal scratch']
  %s0 = inlined_call_operand.vmem [shape: f32[128,16], index: 0, kind: input, shape index: {}]
  %s1 = inlined_call_operand.vmem [shape: f32[128,128], index: 1, kind: input, shape index: {}]
  %s2 = inlined_call_operand.vmem [shape: f32[1,16], index: 2, kind: input, shape index: {}]
  %s3 = inlined_call_operand.vmem [shape: f32[1,16], index: 3, kind: input, shape index: {}]
  %s4 = inlined_call_operand.vmem [shape: bf16[16,48], index: 4, kind: input, shape index: {}]
  %s5 = inlined_call_operand.vmem [shape: f32[1,48], index: 5, kind: input, shape index: {}]
  %s6 = inlined_call_operand.vmem [shape: bf16[4,4,16], index: 6, kind: input, shape index: {}]
  %s7 = inlined_call_operand.vmem [shape: f32[1,16], index: 7, kind: input, shape index: {}]
  %s8 = inlined_call_operand.vmem [shape: f32[1,16], index: 8, kind: input, shape index: {}]
  %s9 = inlined_call_operand.vmem [shape: f32[1,16], index: 9, kind: input, shape index: {}]
  %s10 = inlined_call_operand.vmem [shape: bf16[16,192], index: 10, kind: input, shape index: {}]
  %s11 = inlined_call_operand.vmem [shape: f32[1,192], index: 11, kind: input, shape index: {}]
  %s12 = inlined_call_operand.vmem [shape: bf16[32,96], index: 12, kind: input, shape index: {}]
  %s13 = inlined_call_operand.vmem [shape: f32[1,96], index: 13, kind: input, shape index: {}]
  %s14 = inlined_call_operand.vmem [shape: bf16[32,96], index: 14, kind: input, shape index: {}]
  %s15 = inlined_call_operand.vmem [shape: f32[1,96], index: 15, kind: input, shape index: {}]
  %s16 = inlined_call_operand.vmem [shape: bf16[32,16], index: 16, kind: input, shape index: {}]
  %s17 = inlined_call_operand.vmem [shape: bf16[32,16], index: 17, kind: input, shape index: {}]
  %s18 = inlined_call_operand.vmem [shape: f32[1,16], index: 18, kind: input, shape index: {}]
  %s19 = inlined_call_operand.vmem [shape: f32[1,16], index: 19, kind: input, shape index: {}]
  %s20 = inlined_call_operand.vmem [shape: f32[1,16], index: 20, kind: input, shape index: {}]
  %s21 = inlined_call_operand.vmem [shape: f32[128,16], index: 21, kind: output, shape index: {}]
  %s22 = sld [smem:[#allocation0]]
  $region94: #{aia_transformer_merge.17} parent=0
    _
  %s24 = ssub.s32 1, %s22
  %s25 = scalar_select 0, %s24, %s22
  // Predicated region
  $region2: #{aia_transformer_merge.17} parent=0 // pred_check
    _
  $region3: #{aia_transformer_merge.17} parent=0 // pred_check_branch
    %27 = sbr.rel (0) target = $region5
  $region4: #{aia_transformer_merge.17} parent=0 // pred_region
    _
  $region5: #{aia_transformer_merge.17} parent=0 // pred_fallthru
    _
  // Predicated region
  $region6: #{aia_transformer_merge.17} parent=0 // pred_check
    _
  $region7: #{aia_transformer_merge.17} parent=0 // pred_check_branch
    %29 = sbr.rel (0) target = $region9
  $region8: #{aia_transformer_merge.17} parent=0 // pred_region
    _
  $region9: #{aia_transformer_merge.17} parent=0 // pred_fallthru
    _
  // Predicated region
  $region10: #{aia_transformer_merge.17} parent=0 // pred_check
    _
  $region11: #{aia_transformer_merge.17} parent=0 // pred_check_branch
    %31 = sbr.rel (0) target = $region13
  $region12: #{aia_transformer_merge.17} parent=0 // pred_region
    _
  $region13: #{aia_transformer_merge.17} parent=0 // pred_fallthru
    _
  // Predicated region
  $region14: #{aia_transformer_merge.17} parent=0 // pred_check
    _
  $region15: #{aia_transformer_merge.17} parent=0 // pred_check_branch
    %33 = sbr.rel (0) target = $region17
  $region16: #{aia_transformer_merge.17} parent=0 // pred_region
    _
  $region17: #{aia_transformer_merge.17} parent=0 // pred_fallthru
    _
  // Predicated region
  $region18: #{aia_transformer_merge.17} parent=0 // pred_check
    _
  $region19: #{aia_transformer_merge.17} parent=0 // pred_check_branch
    %35 = sbr.rel (0) target = $region21
  $region20: #{aia_transformer_merge.17} parent=0 // pred_region
    _
  $region21: #{aia_transformer_merge.17} parent=0 // pred_fallthru
    _
  // Predicated region
  $region22: #{aia_transformer_merge.17} parent=0 // pred_check
    _
  $region23: #{aia_transformer_merge.17} parent=0 // pred_check_branch
    %37 = sbr.rel (0) target = $region25
  $region24: #{aia_transformer_merge.17} parent=0 // pred_region
    _
  $region25: #{aia_transformer_merge.17} parent=0 // pred_fallthru
    _
  // Predicated region
  $region26: #{aia_transformer_merge.17} parent=0 // pred_check
    _
  $region27: #{aia_transformer_merge.17} parent=0 // pred_check_branch
    %39 = sbr.rel (0) target = $region29
  $region28: #{aia_transformer_merge.17} parent=0 // pred_region
    _
  $region29: #{aia_transformer_merge.17} parent=0 // pred_fallthru
    _
  // Predicated region
  $region30: #{aia_transformer_merge.17} parent=0 // pred_check
    _
  $region31: #{aia_transformer_merge.17} parent=0 // pred_check_branch
    %41 = sbr.rel (0) target = $region33
  $region32: #{aia_transformer_merge.17} parent=0 // pred_region
    _
  $region33: #{aia_transformer_merge.17} parent=0 // pred_fallthru
    _
  // Predicated region
  $region34: #{aia_transformer_merge.17} parent=0 // pred_check
    _
  $region35: #{aia_transformer_merge.17} parent=0 // pred_check_branch
    %43 = sbr.rel (0) target = $region37
  $region36: #{aia_transformer_merge.17} parent=0 // pred_region
    _
  $region37: #{aia_transformer_merge.17} parent=0 // pred_fallthru
    _
  // Predicated region
  $region38: #{aia_transformer_merge.17} parent=0 // pred_check
    _
  $region39: #{aia_transformer_merge.17} parent=0 // pred_check_branch
    %45 = sbr.rel (0) target = $region41
  $region40: #{aia_transformer_merge.17} parent=0 // pred_region
    _
  $region41: #{aia_transformer_merge.17} parent=0 // pred_fallthru
    _
  // Predicated region
  $region42: #{aia_transformer_merge.17} parent=0 // pred_check
    _
  $region43: #{aia_transformer_merge.17} parent=0 // pred_check_branch
    %47 = sbr.rel (0) target = $region45
  $region44: #{aia_transformer_merge.17} parent=0 // pred_region
    _
  $region45: #{aia_transformer_merge.17} parent=0 // pred_fallthru
    _
  // Predicated region
  $region46: #{aia_transformer_merge.17} parent=0 // pred_check
    _
  $region47: #{aia_transformer_merge.17} parent=0 // pred_check_branch
    %49 = sbr.rel (0) target = $region49
  $region48: #{aia_transformer_merge.17} parent=0 // pred_region
    _
  $region49: #{aia_transformer_merge.17} parent=0 // pred_fallthru
    _
  // Predicated region
  $region50: #{aia_transformer_merge.17} parent=0 // pred_check
    _
  $region51: #{aia_transformer_merge.17} parent=0 // pred_check_branch
    %51 = sbr.rel (0) target = $region53
  $region52: #{aia_transformer_merge.17} parent=0 // pred_region
    _
  $region53: #{aia_transformer_merge.17} parent=0 // pred_fallthru
    _
  // Predicated region
  $region54: #{aia_transformer_merge.17} parent=0 // pred_check
    _
  $region55: #{aia_transformer_merge.17} parent=0 // pred_check_branch
    %53 = sbr.rel (0) target = $region57
  $region56: #{aia_transformer_merge.17} parent=0 // pred_region
    _
  $region57: #{aia_transformer_merge.17} parent=0 // pred_fallthru
    _
  // Predicated region
  $region58: #{aia_transformer_merge.17} parent=0 // pred_check
    _
  $region59: #{aia_transformer_merge.17} parent=0 // pred_check_branch
    %55 = sbr.rel (0) target = $region61
  $region60: #{aia_transformer_merge.17} parent=0 // pred_region
    _
  $region61: #{aia_transformer_merge.17} parent=0 // pred_fallthru
    _
  // Predicated region
  $region62: #{aia_transformer_merge.17} parent=0 // pred_check
    _
  $region63: #{aia_transformer_merge.17} parent=0 // pred_check_branch
    %57 = sbr.rel (0) target = $region65
  $region64: #{aia_transformer_merge.17} parent=0 // pred_region
    _
  $region65: #{aia_transformer_merge.17} parent=0 // pred_fallthru
    _
  // Predicated region
  $region66: #{aia_transformer_merge.17} parent=0 // pred_check
    _
  $region67: #{aia_transformer_merge.17} parent=0 // pred_check_branch
    %59 = sbr.rel (0) target = $region69
  $region68: #{aia_transformer_merge.17} parent=0 // pred_region
    _
  $region69: #{aia_transformer_merge.17} parent=0 // pred_fallthru
    _
  // Predicated region
  $region70: #{aia_transformer_merge.17} parent=0 // pred_check
    _
  $region71: #{aia_transformer_merge.17} parent=0 // pred_check_branch
    %61 = sbr.rel (0) target = $region73
  $region72: #{aia_transformer_merge.17} parent=0 // pred_region
    _
  $region73: #{aia_transformer_merge.17} parent=0 // pred_fallthru
    _
  // Predicated region
  $region74: #{aia_transformer_merge.17} parent=0 // pred_check
    _
  $region75: #{aia_transformer_merge.17} parent=0 // pred_check_branch
    %63 = sbr.rel (0) target = $region77
  $region76: #{aia_transformer_merge.17} parent=0 // pred_region
    _
  $region77: #{aia_transformer_merge.17} parent=0 // pred_fallthru
    _
  // Predicated region
  $region78: #{aia_transformer_merge.17} parent=0 // pred_check
    _
  $region79: #{aia_transformer_merge.17} parent=0 // pred_check_branch
    %65 = sbr.rel (0) target = $region81
  $region80: #{aia_transformer_merge.17} parent=0 // pred_region
    _
  $region81: #{aia_transformer_merge.17} parent=0 // pred_fallthru
    _
  // Predicated region
  $region82: #{aia_transformer_merge.17} parent=0 // pred_check
    _
  $region83: #{aia_transformer_merge.17} parent=0 // pred_check_branch
    %67 = sbr.rel (0) target = $region85
  $region84: #{aia_transformer_merge.17} parent=0 // pred_region
    _
  $region85: #{aia_transformer_merge.17} parent=0 // pred_fallthru
    _
  %v69 = vld [vmem:[%s0] sm:$0xff]
  %v70 = vld [vmem:[%s0 + $0x8] sm:$0xff]
  %v71 = vld [vmem:[%s0 + $0x10] sm:$0xff]
  %v72 = vld [vmem:[%s0 + $0x18] sm:$0xff]
  %v73 = vld [vmem:[%s0 + $0x20] sm:$0xff]
  %v74 = vld [vmem:[%s0 + $0x28] sm:$0xff]
  %v75 = vld [vmem:[%s0 + $0x30] sm:$0xff]
  %v76 = vld [vmem:[%s0 + $0x38] sm:$0xff]
  %v77 = vld [vmem:[%s0 + $0x40] sm:$0xff]
  %v78 = vld [vmem:[%s0 + $0x48] sm:$0xff]
  %v79 = vld [vmem:[%s0 + $0x50] sm:$0xff]
  %v80 = vld [vmem:[%s0 + $0x58] sm:$0xff]
  %v81 = vld [vmem:[%s0 + $0x60] sm:$0xff]
  %v82 = vld [vmem:[%s0 + $0x68] sm:$0xff]
  %v83 = vld [vmem:[%s0 + $0x70] sm:$0xff]
  %v84 = vld [vmem:[%s0 + $0x78] sm:$0xff]
  %v85 = vld [vmem:[%s2] sm:$0x1]
  %v86 = vld [vmem:[%s3] sm:$0x1]
  %vm87 = vcmask 130048
  %v88 = vsel %vm87, %v69, 0.0
  %89 = vadd.xlane.f32.xlu0 %v88
  %v90 = vpop.xlane.xlu0 %89
  %v91 = vsel %vm87, %v70, 0.0
  %92 = vadd.xlane.f32.xlu0 %v91
  %v93 = vpop.xlane.xlu0 %92
  %v94 = vsel %vm87, %v71, 0.0
  %95 = vadd.xlane.f32.xlu0 %v94
  %v96 = vpop.xlane.xlu0 %95
  %v97 = vsel %vm87, %v72, 0.0
  %98 = vadd.xlane.f32.xlu0 %v97
  %v99 = vpop.xlane.xlu0 %98
  %v100 = vsel %vm87, %v73, 0.0
  %101 = vadd.xlane.f32.xlu0 %v100
  %v102 = vpop.xlane.xlu0 %101
  %v103 = vsel %vm87, %v74, 0.0
  %104 = vadd.xlane.f32.xlu0 %v103
  %v105 = vpop.xlane.xlu0 %104
  %v106 = vsel %vm87, %v75, 0.0
  %107 = vadd.xlane.f32.xlu0 %v106
  %v108 = vpop.xlane.xlu0 %107
  %v109 = vsel %vm87, %v76, 0.0
  %110 = vadd.xlane.f32.xlu0 %v109
  %v111 = vpop.xlane.xlu0 %110
  %v112 = vsel %vm87, %v77, 0.0
  %113 = vadd.xlane.f32.xlu0 %v112
  %v114 = vpop.xlane.xlu0 %113
  %v115 = vsel %vm87, %v78, 0.0
  %116 = vadd.xlane.f32.xlu0 %v115
  %v117 = vpop.xlane.xlu0 %116
  %v118 = vsel %vm87, %v79, 0.0
  %119 = vadd.xlane.f32.xlu0 %v118
  %v120 = vpop.xlane.xlu0 %119
  %v121 = vsel %vm87, %v80, 0.0
  %122 = vadd.xlane.f32.xlu0 %v121
  %v123 = vpop.xlane.xlu0 %122
  %v124 = vsel %vm87, %v81, 0.0
  %125 = vadd.xlane.f32.xlu0 %v124
  %v126 = vpop.xlane.xlu0 %125
  %v127 = vsel %vm87, %v82, 0.0
  %128 = vadd.xlane.f32.xlu0 %v127
  %v129 = vpop.xlane.xlu0 %128
  %v130 = vsel %vm87, %v83, 0.0
  %131 = vadd.xlane.f32.xlu0 %v130
  %v132 = vpop.xlane.xlu0 %131
  %v133 = vsel %vm87, %v84, 0.0
  %134 = vadd.xlane.f32.xlu0 %v133
  %v135 = vpop.xlane.xlu0 %134
  %v136 = vrcp.pop 16.0
  %v137 = vmul.f32 %v90, %v136
  %v138 = vmul.f32 %v93, %v136
  %v139 = vmul.f32 %v96, %v136
  %v140 = vmul.f32 %v99, %v136
  %v141 = vmul.f32 %v102, %v136
  %v142 = vmul.f32 %v105, %v136
  %v143 = vmul.f32 %v108, %v136
  %v144 = vmul.f32 %v111, %v136
  %v145 = vmul.f32 %v114, %v136
  %v146 = vmul.f32 %v117, %v136
  %v147 = vmul.f32 %v120, %v136
  %v148 = vmul.f32 %v123, %v136
  %v149 = vmul.f32 %v126, %v136
  %v150 = vmul.f32 %v129, %v136
  %v151 = vmul.f32 %v132, %v136
  %v152 = vmul.f32 %v135, %v136
  %v153 = vsub.f32 %v69, %v137
  %v154 = vsub.f32 %v70, %v138
  %v155 = vsub.f32 %v71, %v139
  %v156 = vsub.f32 %v72, %v140
  %v157 = vsub.f32 %v73, %v141
  %v158 = vsub.f32 %v74, %v142
  %v159 = vsub.f32 %v75, %v143
  %v160 = vsub.f32 %v76, %v144
  %v161 = vsub.f32 %v77, %v145
  %v162 = vsub.f32 %v78, %v146
  %v163 = vsub.f32 %v79, %v147
  %v164 = vsub.f32 %v80, %v148
  %v165 = vsub.f32 %v81, %v149
  %v166 = vsub.f32 %v82, %v150
  %v167 = vsub.f32 %v83, %v151
  %v168 = vsub.f32 %v84, %v152
  %v169 = vmul.f32 %v153, %v153
  %v170 = vmul.f32 %v154, %v154
  %v171 = vmul.f32 %v155, %v155
  %v172 = vmul.f32 %v156, %v156
  %v173 = vmul.f32 %v157, %v157
  %v174 = vmul.f32 %v158, %v158
  %v175 = vmul.f32 %v159, %v159
  %v176 = vmul.f32 %v160, %v160
  %v177 = vmul.f32 %v161, %v161
  %v178 = vmul.f32 %v162, %v162
  %v179 = vmul.f32 %v163, %v163
  %v180 = vmul.f32 %v164, %v164
  %v181 = vmul.f32 %v165, %v165
  %v182 = vmul.f32 %v166, %v166
  %v183 = vmul.f32 %v167, %v167
  %v184 = vmul.f32 %v168, %v168
  %v185 = vsel %vm87, %v169, 0.0
  %186 = vadd.xlane.f32.xlu0 %v185
  %v187 = vpop.xlane.xlu0 %186
  %v188 = vsel %vm87, %v170, 0.0
  %189 = vadd.xlane.f32.xlu0 %v188
  %v190 = vpop.xlane.xlu0 %189
  %v191 = vsel %vm87, %v171, 0.0
  %192 = vadd.xlane.f32.xlu0 %v191
  %v193 = vpop.xlane.xlu0 %192
  %v194 = vsel %vm87, %v172, 0.0
  %195 = vadd.xlane.f32.xlu0 %v194
  %v196 = vpop.xlane.xlu0 %195
  %v197 = vsel %vm87, %v173, 0.0
  %198 = vadd.xlane.f32.xlu0 %v197
  %v199 = vpop.xlane.xlu0 %198
  %v200 = vsel %vm87, %v174, 0.0
  %201 = vadd.xlane.f32.xlu0 %v200
  %v202 = vpop.xlane.xlu0 %201
  %v203 = vsel %vm87, %v175, 0.0
  %204 = vadd.xlane.f32.xlu0 %v203
  %v205 = vpop.xlane.xlu0 %204
  %v206 = vsel %vm87, %v176, 0.0
  %207 = vadd.xlane.f32.xlu0 %v206
  %v208 = vpop.xlane.xlu0 %207
  %v209 = vsel %vm87, %v177, 0.0
  %210 = vadd.xlane.f32.xlu0 %v209
  %v211 = vpop.xlane.xlu0 %210
  %v212 = vsel %vm87, %v178, 0.0
  %213 = vadd.xlane.f32.xlu0 %v212
  %v214 = vpop.xlane.xlu0 %213
  %v215 = vsel %vm87, %v179, 0.0
  %216 = vadd.xlane.f32.xlu0 %v215
  %v217 = vpop.xlane.xlu0 %216
  %v218 = vsel %vm87, %v180, 0.0
  %219 = vadd.xlane.f32.xlu0 %v218
  %v220 = vpop.xlane.xlu0 %219
  %v221 = vsel %vm87, %v181, 0.0
  %222 = vadd.xlane.f32.xlu0 %v221
  %v223 = vpop.xlane.xlu0 %222
  %v224 = vsel %vm87, %v182, 0.0
  %225 = vadd.xlane.f32.xlu0 %v224
  %v226 = vpop.xlane.xlu0 %225
  %v227 = vsel %vm87, %v183, 0.0
  %228 = vadd.xlane.f32.xlu0 %v227
  %v229 = vpop.xlane.xlu0 %228
  %v230 = vsel %vm87, %v184, 0.0
  %231 = vadd.xlane.f32.xlu0 %v230
  %v232 = vpop.xlane.xlu0 %231
  %v233 = vmul.f32 %v187, %v136
  %v234 = vmul.f32 %v190, %v136
  %v235 = vmul.f32 %v193, %v136
  %v236 = vmul.f32 %v196, %v136
  %v237 = vmul.f32 %v199, %v136
  %v238 = vmul.f32 %v202, %v136
  %v239 = vmul.f32 %v205, %v136
  %v240 = vmul.f32 %v208, %v136
  %v241 = vmul.f32 %v211, %v136
  %v242 = vmul.f32 %v214, %v136
  %v243 = vmul.f32 %v217, %v136
  %v244 = vmul.f32 %v220, %v136
  %v245 = vmul.f32 %v223, %v136
  %v246 = vmul.f32 %v226, %v136
  %v247 = vmul.f32 %v229, %v136
  %v248 = vmul.f32 %v232, %v136
  %v249 = vadd.f32 %v233, 1e-05
  %v250 = vadd.f32 %v234, 1e-05
  %v251 = vadd.f32 %v235, 1e-05
  %v252 = vadd.f32 %v236, 1e-05
  %v253 = vadd.f32 %v237, 1e-05
  %v254 = vadd.f32 %v238, 1e-05
  %v255 = vadd.f32 %v239, 1e-05
  %v256 = vadd.f32 %v240, 1e-05
  %v257 = vadd.f32 %v241, 1e-05
  %v258 = vadd.f32 %v242, 1e-05
  %v259 = vadd.f32 %v243, 1e-05
  %v260 = vadd.f32 %v244, 1e-05
  %v261 = vadd.f32 %v245, 1e-05
  %v262 = vadd.f32 %v246, 1e-05
  %v263 = vadd.f32 %v247, 1e-05
  %v264 = vadd.f32 %v248, 1e-05
  %v265 = vrsqrt.pop %v249
  %v266 = vrsqrt.pop %v250
  %v267 = vrsqrt.pop %v251
  %v268 = vrsqrt.pop %v252
  %v269 = vrsqrt.pop %v253
  %v270 = vrsqrt.pop %v254
  %v271 = vrsqrt.pop %v255
  %v272 = vrsqrt.pop %v256
  %v273 = vrsqrt.pop %v257
  %v274 = vrsqrt.pop %v258
  %v275 = vrsqrt.pop %v259
  %v276 = vrsqrt.pop %v260
  %v277 = vrsqrt.pop %v261
  %v278 = vrsqrt.pop %v262
  %v279 = vrsqrt.pop %v263
  %v280 = vrsqrt.pop %v264
  %v281 = vmul.f32 %v153, %v265
  %v282 = vmul.f32 %v154, %v266
  %v283 = vmul.f32 %v155, %v267
  %v284 = vmul.f32 %v156, %v268
  %v285 = vmul.f32 %v157, %v269
  %v286 = vmul.f32 %v158, %v270
  %v287 = vmul.f32 %v159, %v271
  %v288 = vmul.f32 %v160, %v272
  %v289 = vmul.f32 %v161, %v273
  %v290 = vmul.f32 %v162, %v274
  %v291 = vmul.f32 %v163, %v275
  %v292 = vmul.f32 %v164, %v276
  %v293 = vmul.f32 %v165, %v277
  %v294 = vmul.f32 %v166, %v278
  %v295 = vmul.f32 %v167, %v279
  %v296 = vmul.f32 %v168, %v280
  %v298 = vlaneseq
  %v299 = vshrl.u32 %v298, 7
  %v300 = vsub.s32 0, %v299
  %v301 = vrot.slane %v85, %v300
  %v303 = vmul.f32 %v281, %v301
  %v304 = vmul.f32 %v282, %v301
  %v305 = vmul.f32 %v283, %v301
  %v306 = vmul.f32 %v284, %v301
  %v307 = vmul.f32 %v285, %v301
  %v308 = vmul.f32 %v286, %v301
  %v309 = vmul.f32 %v287, %v301
  %v310 = vmul.f32 %v288, %v301
  %v311 = vmul.f32 %v289, %v301
  %v312 = vmul.f32 %v290, %v301
  %v313 = vmul.f32 %v291, %v301
  %v314 = vmul.f32 %v292, %v301
  %v315 = vmul.f32 %v293, %v301
  %v316 = vmul.f32 %v294, %v301
  %v317 = vmul.f32 %v295, %v301
  %v318 = vmul.f32 %v296, %v301
  %v320 = vlaneseq
  %v321 = vshrl.u32 %v320, 7
  %v322 = vsub.s32 0, %v321
  %v323 = vrot.slane %v86, %v322
  %v325 = vadd.f32 %v303, %v323
  %v326 = vadd.f32 %v304, %v323
  %v327 = vadd.f32 %v305, %v323
  %v328 = vadd.f32 %v306, %v323
  %v329 = vadd.f32 %v307, %v323
  %v330 = vadd.f32 %v308, %v323
  %v331 = vadd.f32 %v309, %v323
  %v332 = vadd.f32 %v310, %v323
  %v333 = vadd.f32 %v311, %v323
  %v334 = vadd.f32 %v312, %v323
  %v335 = vadd.f32 %v313, %v323
  %v336 = vadd.f32 %v314, %v323
  %v337 = vadd.f32 %v315, %v323
  %v338 = vadd.f32 %v316, %v323
  %v339 = vadd.f32 %v317, %v323
  %v340 = vadd.f32 %v318, %v323
  %v341 = vld [vmem:[%s4] sm:$0xf]
  %v342 = vld [vmem:[%s4 + $0x4] sm:$0xf]
  %v343 = vpack.c.bf16 %v326, %v325
  %v344 = vpack.c.bf16 %v328, %v327
  %v345 = vpack.c.bf16 %v330, %v329
  %v346 = vpack.c.bf16 %v332, %v331
  %v347 = vpack.c.bf16 %v334, %v333
  %v348 = vpack.c.bf16 %v336, %v335
  %v349 = vpack.c.bf16 %v338, %v337
  %v350 = vpack.c.bf16 %v340, %v339
  %v351 = vld [vmem:[%s5] sm:$0x1]
  %v353 = vlaneseq
  %v354 = vshrl.u32 %v353, 7
  %v355 = vsub.s32 0, %v354
  %v356 = vrot.slane %v351, %v355
  %v360 = vunpack.c.l.b16 %v341
  %v361 = vunpack.c.l.b16 %v342
  %v362 = vpack.c.b16 %v361, %v360
  %v365 = vsel %vm87, %v343, 0
  %v368 = vsel %vm87, %v344, 0
  %v371 = vsel %vm87, %v345, 0
  %v374 = vsel %vm87, %v346, 0
  %v377 = vsel %vm87, %v347, 0
  %v380 = vsel %vm87, %v348, 0
  %v383 = vsel %vm87, %v349, 0
  %v386 = vsel %vm87, %v350, 0
  %388 = vmatprep.subr.bf16.mxu0 0
  %389 = vmatpush1.bf16.msra.mxu0 %v362
  %390 = vmatprep.subr.bf16.mxu0 0
  %391 = vmatpush1.bf16.msra.mxu0 0
  %392 = vmatprep.subr.bf16.mxu0 0
  %393 = vmatpush1.bf16.msra.mxu0 0
  %394 = vmatprep.subr.bf16.mxu0 0
  %395 = vmatpush1.bf16.msra.mxu0 0
  %396 = vmatprep.subr.bf16.mxu0 0
  %397 = vmatpush1.bf16.msra.mxu0 0
  %398 = vmatprep.subr.bf16.mxu0 0
  %399 = vmatpush1.bf16.msra.mxu0 0
  %400 = vmatprep.subr.bf16.mxu0 0
  %401 = vmatpush1.bf16.msra.mxu0 0
  %402 = vmatprep.subr.bf16.mxu0 0
  %403 = vmatpush1.bf16.msra.mxu0 0
  %404 = vmatprep.subr.bf16.mxu0 0
  %405 = vmatpush1.bf16.msra.mxu0 0
  %406 = vmatprep.subr.bf16.mxu0 0
  %407 = vmatpush1.bf16.msra.mxu0 0
  %408 = vmatprep.subr.bf16.mxu0 0
  %409 = vmatpush1.bf16.msra.mxu0 0
  %410 = vmatprep.subr.bf16.mxu0 0
  %411 = vmatpush1.bf16.msra.mxu0 0
  %412 = vmatprep.subr.bf16.mxu0 0
  %413 = vmatpush1.bf16.msra.mxu0 0
  %414 = vmatprep.subr.bf16.mxu0 0
  %415 = vmatpush1.bf16.msra.mxu0 0
  %416 = vmatprep.subr.bf16.mxu0 0
  %417 = vmatpush1.bf16.msra.mxu0 0
  %418 = vmatprep.subr.bf16.mxu0 0
  %419 = vmatpush1.bf16.msra.mxu0 0
  %420 = vmatprep.mubr.bf16.mxu0 0
  %421 = vmatmul.mubr.bf16.gmra.mrb[0].mxu0 %v365
  %v422 = vpop.f32.mrb[0].mxu0
  %v423 = vadd.f32 %v356, %v422
  %v424 = vpop.f32.mrb[0].mxu0
  %v425 = vpop.f32.mrb[0].mxu0
  %v426 = vadd.f32 %v356, %v425
  %v427 = vpop.f32.mrb[0].mxu0
  %428 = vmatprep.mubr.bf16.mxu0 0
  %429 = vmatmul.mubr.bf16.gmra.mrb[0].mxu0 %v368
  %v430 = vpop.f32.mrb[0].mxu0
  %v431 = vadd.f32 %v356, %v430
  %v432 = vpop.f32.mrb[0].mxu0
  %v433 = vpop.f32.mrb[0].mxu0
  %v434 = vadd.f32 %v356, %v433
  %v435 = vpop.f32.mrb[0].mxu0
  %436 = vmatprep.mubr.bf16.mxu0 0
  %437 = vmatmul.mubr.bf16.gmra.mrb[0].mxu0 %v371
  %v438 = vpop.f32.mrb[0].mxu0
  %v439 = vadd.f32 %v356, %v438
  %v440 = vpop.f32.mrb[0].mxu0
  %v441 = vpop.f32.mrb[0].mxu0
  %v442 = vadd.f32 %v356, %v441
  %v443 = vpop.f32.mrb[0].mxu0
  %444 = vmatprep.mubr.bf16.mxu0 0
  %445 = vmatmul.mubr.bf16.gmra.mrb[0].mxu0 %v374
  %v446 = vpop.f32.mrb[0].mxu0
  %v447 = vadd.f32 %v356, %v446
  %v448 = vpop.f32.mrb[0].mxu0
  %v449 = vpop.f32.mrb[0].mxu0
  %v450 = vadd.f32 %v356, %v449
  %v451 = vpop.f32.mrb[0].mxu0
  %452 = vmatprep.mubr.bf16.mxu0 0
  %453 = vmatmul.mubr.bf16.gmra.mrb[0].mxu0 %v377
  %v454 = vpop.f32.mrb[0].mxu0
  %v455 = vadd.f32 %v356, %v454
  %v456 = vpop.f32.mrb[0].mxu0
  %v457 = vpop.f32.mrb[0].mxu0
  %v458 = vadd.f32 %v356, %v457
  %v459 = vpop.f32.mrb[0].mxu0
  %460 = vmatprep.mubr.bf16.mxu0 0
  %461 = vmatmul.mubr.bf16.gmra.mrb[0].mxu0 %v380
  %v462 = vpop.f32.mrb[0].mxu0
  %v463 = vadd.f32 %v356, %v462
  %v464 = vpop.f32.mrb[0].mxu0
  %v465 = vpop.f32.mrb[0].mxu0
  %v466 = vadd.f32 %v356, %v465
  %v467 = vpop.f32.mrb[0].mxu0
  %468 = vmatprep.mubr.bf16.mxu0 0
  %469 = vmatmul.mubr.bf16.gmra.mrb[0].mxu0 %v383
  %v470 = vpop.f32.mrb[0].mxu0
  %v471 = vadd.f32 %v356, %v470
  %v472 = vpop.f32.mrb[0].mxu0
  %v473 = vpop.f32.mrb[0].mxu0
  %v474 = vadd.f32 %v356, %v473
  %v475 = vpop.f32.mrb[0].mxu0
  %476 = vmatprep.mubr.bf16.mxu0 0
  %477 = vmatmul.mubr.bf16.gmra.mrb[0].mxu0 %v386
  %v478 = vpop.f32.mrb[0].mxu0
  %v479 = vadd.f32 %v356, %v478
  %v480 = vpop.f32.mrb[0].mxu0
  %v481 = vpop.f32.mrb[0].mxu0
  %v482 = vadd.f32 %v356, %v481
  %v483 = vpop.f32.mrb[0].mxu0
  %484 = vdwg.mxu0
  %v485 = vmul.f32 %v423, 0.5
  %v486 = vmul.f32 %v426, 0.5
  %v487 = vmul.f32 %v431, 0.5
  %v488 = vmul.f32 %v434, 0.5
  %v489 = vmul.f32 %v439, 0.5
  %v490 = vmul.f32 %v442, 0.5
  %v491 = vmul.f32 %v447, 0.5
  %v492 = vmul.f32 %v450, 0.5
  %v493 = vmul.f32 %v455, 0.5
  %v494 = vmul.f32 %v458, 0.5
  %v495 = vmul.f32 %v463, 0.5
  %v496 = vmul.f32 %v466, 0.5
  %v497 = vmul.f32 %v471, 0.5
  %v498 = vmul.f32 %v474, 0.5
  %v499 = vmul.f32 %v479, 0.5
  %v500 = vmul.f32 %v482, 0.5
  %v501 = vld [vmem:[%s1] sm:$0xff]
  %v502 = vld [vmem:[%s1 + $0x8] sm:$0xff]
  %v503 = vld [vmem:[%s1 + $0x10] sm:$0xff]
  %v504 = vld [vmem:[%s1 + $0x18] sm:$0xff]
  %v505 = vld [vmem:[%s1 + $0x20] sm:$0xff]
  %v506 = vld [vmem:[%s1 + $0x28] sm:$0xff]
  %v507 = vld [vmem:[%s1 + $0x30] sm:$0xff]
  %v508 = vld [vmem:[%s1 + $0x38] sm:$0xff]
  %v509 = vld [vmem:[%s1 + $0x40] sm:$0xff]
  %v510 = vld [vmem:[%s1 + $0x48] sm:$0xff]
  %v511 = vld [vmem:[%s1 + $0x50] sm:$0xff]
  %v512 = vld [vmem:[%s1 + $0x58] sm:$0xff]
  %v513 = vld [vmem:[%s1 + $0x60] sm:$0xff]
  %v514 = vld [vmem:[%s1 + $0x68] sm:$0xff]
  %v515 = vld [vmem:[%s1 + $0x70] sm:$0xff]
  %v516 = vld [vmem:[%s1 + $0x78] sm:$0xff]
  %v517 = vpack.c.bf16 %v486, %v485
  %v518 = vpack.c.bf16 %v488, %v487
  %v519 = vpack.c.bf16 %v490, %v489
  %v520 = vpack.c.bf16 %v492, %v491
  %v521 = vpack.c.bf16 %v494, %v493
  %v522 = vpack.c.bf16 %v496, %v495
  %v523 = vpack.c.bf16 %v498, %v497
  %v524 = vpack.c.bf16 %v500, %v499
  %541 = vrot.lane.b32.xlu0 %v423, 112
  %v542 = vpop.permute.xlu0 %541
  %543 = vrot.lane.b32.xlu0 %v426, 112
  %v544 = vpop.permute.xlu0 %543
  %545 = vrot.lane.b32.xlu0 %v431, 112
  %v546 = vpop.permute.xlu0 %545
  %547 = vrot.lane.b32.xlu0 %v434, 112
  %v548 = vpop.permute.xlu0 %547
  %549 = vrot.lane.b32.xlu0 %v439, 112
  %v550 = vpop.permute.xlu0 %549
  %551 = vrot.lane.b32.xlu0 %v442, 112
  %v552 = vpop.permute.xlu0 %551
  %553 = vrot.lane.b32.xlu0 %v447, 112
  %v554 = vpop.permute.xlu0 %553
  %555 = vrot.lane.b32.xlu0 %v450, 112
  %v556 = vpop.permute.xlu0 %555
  %557 = vrot.lane.b32.xlu0 %v455, 112
  %v558 = vpop.permute.xlu0 %557
  %559 = vrot.lane.b32.xlu0 %v458, 112
  %v560 = vpop.permute.xlu0 %559
  %561 = vrot.lane.b32.xlu0 %v463, 112
  %v562 = vpop.permute.xlu0 %561
  %563 = vrot.lane.b32.xlu0 %v466, 112
  %v564 = vpop.permute.xlu0 %563
  %565 = vrot.lane.b32.xlu0 %v471, 112
  %v566 = vpop.permute.xlu0 %565
  %567 = vrot.lane.b32.xlu0 %v474, 112
  %v568 = vpop.permute.xlu0 %567
  %569 = vrot.lane.b32.xlu0 %v479, 112
  %v570 = vpop.permute.xlu0 %569
  %571 = vrot.lane.b32.xlu0 %v482, 112
  %v572 = vpop.permute.xlu0 %571
  %589 = vxpose.xlu0.b32.start [1/16] %v542, 128
  %590 = vxpose.xlu0.b32.cont [2/16] %v544, 128
  %591 = vxpose.xlu0.b32.cont [3/16] %v546, 128
  %592 = vxpose.xlu0.b32.cont [4/16] %v548, 128
  %593 = vxpose.xlu0.b32.cont [5/16] %v550, 128
  %594 = vxpose.xlu0.b32.cont [6/16] %v552, 128
  %595 = vxpose.xlu0.b32.cont [7/16] %v554, 128
  %596 = vxpose.xlu0.b32.cont [8/16] %v556, 128
  %597 = vxpose.xlu0.b32.cont [9/16] %v558, 128
  %598 = vxpose.xlu0.b32.cont [10/16] %v560, 128
  %599 = vxpose.xlu0.b32.cont [11/16] %v562, 128
  %600 = vxpose.xlu0.b32.cont [12/16] %v564, 128
  %601 = vxpose.xlu0.b32.cont [13/16] %v566, 128
  %602 = vxpose.xlu0.b32.cont [14/16] %v568, 128
  %603 = vxpose.xlu0.b32.cont [15/16] %v570, 128
  %604 = vxpose.xlu0.b32.end [16/16] %v572, 128
  %v605 = vpop.trf.xlu0
  %v606 = vpop.trf.xlu0
  %v607 = vpop.trf.xlu0
  %v608 = vpop.trf.xlu0
  %v609 = vpop.trf.xlu0
  %v610 = vpop.trf.xlu0
  %v611 = vpop.trf.xlu0
  %v612 = vpop.trf.xlu0
  %v613 = vpop.trf.xlu0
  %v614 = vpop.trf.xlu0
  %v615 = vpop.trf.xlu0
  %v616 = vpop.trf.xlu0
  %v617 = vpop.trf.xlu0
  %v618 = vpop.trf.xlu0
  %v619 = vpop.trf.xlu0
  %v620 = vpop.trf.xlu0
  %v621 = vpack.c.bf16 %v605, %v605
  %vm622 = vcmask 31744
  %v624 = vsel %vm622, %v517, 0
  %v627 = vsel %vm622, %v518, 0
  %v630 = vsel %vm622, %v519, 0
  %v633 = vsel %vm622, %v520, 0
  %v636 = vsel %vm622, %v521, 0
  %v639 = vsel %vm622, %v522, 0
  %v642 = vsel %vm622, %v523, 0
  %v645 = vsel %vm622, %v524, 0
  %vm647 = vcmask 1041408
  %v649 = vsel %vm647, %v621, 0
  %651 = vmatprep.subr.bf16.mxu0 0
  %652 = vmatpush1.bf16.msra.mxu0 %v649
  %653 = vmatprep.subr.bf16.mxu0 0
  %654 = vmatpush1.bf16.msra.mxu0 0
  %655 = vmatprep.subr.bf16.mxu0 0
  %656 = vmatpush1.bf16.msra.mxu0 0
  %657 = vmatprep.subr.bf16.mxu0 0
  %658 = vmatpush1.bf16.msra.mxu0 0
  %659 = vmatprep.subr.bf16.mxu0 0
  %660 = vmatpush1.bf16.msra.mxu0 0
  %661 = vmatprep.subr.bf16.mxu0 0
  %662 = vmatpush1.bf16.msra.mxu0 0
  %663 = vmatprep.subr.bf16.mxu0 0
  %664 = vmatpush1.bf16.msra.mxu0 0
  %665 = vmatprep.subr.bf16.mxu0 0
  %666 = vmatpush1.bf16.msra.mxu0 0
  %667 = vmatprep.subr.bf16.mxu0 0
  %668 = vmatpush1.bf16.msra.mxu0 0
  %669 = vmatprep.subr.bf16.mxu0 0
  %670 = vmatpush1.bf16.msra.mxu0 0
  %671 = vmatprep.subr.bf16.mxu0 0
  %672 = vmatpush1.bf16.msra.mxu0 0
  %673 = vmatprep.subr.bf16.mxu0 0
  %674 = vmatpush1.bf16.msra.mxu0 0
  %675 = vmatprep.subr.bf16.mxu0 0
  %676 = vmatpush1.bf16.msra.mxu0 0
  %677 = vmatprep.subr.bf16.mxu0 0
  %678 = vmatpush1.bf16.msra.mxu0 0
  %679 = vmatprep.subr.bf16.mxu0 0
  %680 = vmatpush1.bf16.msra.mxu0 0
  %681 = vmatprep.subr.bf16.mxu0 0
  %682 = vmatpush1.bf16.msra.mxu0 0
  %683 = vmatprep.mubr.bf16.mxu0 0
  %684 = vmatmul.mubr.bf16.gmra.mrb[0].mxu0 %v624
  %v685 = vpop.f32.mrb[0].mxu0
  %v686 = vadd.f32 %v501, %v685
  %v687 = vpop.f32.mrb[0].mxu0
  %v688 = vpop.f32.mrb[0].mxu0
  %v689 = vadd.f32 %v502, %v688
  %v690 = vpop.f32.mrb[0].mxu0
  %691 = vmatprep.mubr.bf16.mxu0 0
  %692 = vmatmul.mubr.bf16.gmra.mrb[0].mxu0 %v627
  %v693 = vpop.f32.mrb[0].mxu0
  %v694 = vadd.f32 %v503, %v693
  %v695 = vpop.f32.mrb[0].mxu0
  %v696 = vpop.f32.mrb[0].mxu0
  %v697 = vadd.f32 %v504, %v696
  %v698 = vpop.f32.mrb[0].mxu0
  %699 = vmatprep.mubr.bf16.mxu0 0
  %700 = vmatmul.mubr.bf16.gmra.mrb[0].mxu0 %v630
  %v701 = vpop.f32.mrb[0].mxu0
  %v702 = vadd.f32 %v505, %v701
  %v703 = vpop.f32.mrb[0].mxu0
  %v704 = vpop.f32.mrb[0].mxu0
  %v705 = vadd.f32 %v506, %v704
  %v706 = vpop.f32.mrb[0].mxu0
  %707 = vmatprep.mubr.bf16.mxu0 0
  %708 = vmatmul.mubr.bf16.gmra.mrb[0].mxu0 %v633
  %v709 = vpop.f32.mrb[0].mxu0
  %v710 = vadd.f32 %v507, %v709
  %v711 = vpop.f32.mrb[0].mxu0
  %v712 = vpop.f32.mrb[0].mxu0
  %v713 = vadd.f32 %v508, %v712
  %v714 = vpop.f32.mrb[0].mxu0
  %715 = vmatprep.mubr.bf16.mxu0 0
  %716 = vmatmul.mubr.bf16.gmra.mrb[0].mxu0 %v636
  %v717 = vpop.f32.mrb[0].mxu0
  %v718 = vadd.f32 %v509, %v717
  %v719 = vpop.f32.mrb[0].mxu0
  %v720 = vpop.f32.mrb[0].mxu0
  %v721 = vadd.f32 %v510, %v720
  %v722 = vpop.f32.mrb[0].mxu0
  %723 = vmatprep.mubr.bf16.mxu0 0
  %724 = vmatmul.mubr.bf16.gmra.mrb[0].mxu0 %v639
  %v725 = vpop.f32.mrb[0].mxu0
  %v726 = vadd.f32 %v511, %v725
  %v727 = vpop.f32.mrb[0].mxu0
  %v728 = vpop.f32.mrb[0].mxu0
  %v729 = vadd.f32 %v512, %v728
  %v730 = vpop.f32.mrb[0].mxu0
  %731 = vmatprep.mubr.bf16.mxu0 0
  %732 = vmatmul.mubr.bf16.gmra.mrb[0].mxu0 %v642
  %v733 = vpop.f32.mrb[0].mxu0
  %v734 = vadd.f32 %v513, %v733
  %v735 = vpop.f32.mrb[0].mxu0
  %v736 = vpop.f32.mrb[0].mxu0
  %v737 = vadd.f32 %v514, %v736
  %v738 = vpop.f32.mrb[0].mxu0
  %739 = vmatprep.mubr.bf16.mxu0 0
  %740 = vmatmul.mubr.bf16.gmra.mrb[0].mxu0 %v645
  %v741 = vpop.f32.mrb[0].mxu0
  %v742 = vadd.f32 %v515, %v741
  %v743 = vpop.f32.mrb[0].mxu0
  %v744 = vpop.f32.mrb[0].mxu0
  %v745 = vadd.f32 %v516, %v744
  %v746 = vpop.f32.mrb[0].mxu0
  %747 = vdwg.mxu0
  %748 = vmax.xlane.f32.xlu0 %v686
  %v749 = vpop.xlane.xlu0 %748
  %750 = vmax.xlane.f32.xlu0 %v689
  %v751 = vpop.xlane.xlu0 %750
  %752 = vmax.xlane.f32.xlu0 %v694
  %v753 = vpop.xlane.xlu0 %752
  %754 = vmax.xlane.f32.xlu0 %v697
  %v755 = vpop.xlane.xlu0 %754
  %756 = vmax.xlane.f32.xlu0 %v702
  %v757 = vpop.xlane.xlu0 %756
  %758 = vmax.xlane.f32.xlu0 %v705
  %v759 = vpop.xlane.xlu0 %758
  %760 = vmax.xlane.f32.xlu0 %v710
  %v761 = vpop.xlane.xlu0 %760
  %762 = vmax.xlane.f32.xlu0 %v713
  %v763 = vpop.xlane.xlu0 %762
  %764 = vmax.xlane.f32.xlu0 %v718
  %v765 = vpop.xlane.xlu0 %764
  %766 = vmax.xlane.f32.xlu0 %v721
  %v767 = vpop.xlane.xlu0 %766
  %768 = vmax.xlane.f32.xlu0 %v726
  %v769 = vpop.xlane.xlu0 %768
  %770 = vmax.xlane.f32.xlu0 %v729
  %v771 = vpop.xlane.xlu0 %770
  %772 = vmax.xlane.f32.xlu0 %v734
  %v773 = vpop.xlane.xlu0 %772
  %774 = vmax.xlane.f32.xlu0 %v737
  %v775 = vpop.xlane.xlu0 %774
  %776 = vmax.xlane.f32.xlu0 %v742
  %v777 = vpop.xlane.xlu0 %776
  %778 = vmax.xlane.f32.xlu0 %v745
  %v779 = vpop.xlane.xlu0 %778
  %v780 = vsub.f32 %v686, %v749
  %v781 = vsub.f32 %v689, %v751
  %v782 = vsub.f32 %v694, %v753
  %v783 = vsub.f32 %v697, %v755
  %v784 = vsub.f32 %v702, %v757
  %v785 = vsub.f32 %v705, %v759
  %v786 = vsub.f32 %v710, %v761
  %v787 = vsub.f32 %v713, %v763
  %v788 = vsub.f32 %v718, %v765
  %v789 = vsub.f32 %v721, %v767
  %v790 = vsub.f32 %v726, %v769
  %v791 = vsub.f32 %v729, %v771
  %v792 = vsub.f32 %v734, %v773
  %v793 = vsub.f32 %v737, %v775
  %v794 = vsub.f32 %v742, %v777
  %v795 = vsub.f32 %v745, %v779
  %v796 = vmul.f32 %v780, 1.442695
  %v797 = vpow.pop %v796
  %v798 = vmul.f32 %v781, 1.442695
  %v799 = vpow.pop %v798
  %v800 = vmul.f32 %v782, 1.442695
  %v801 = vpow.pop %v800
  %v802 = vmul.f32 %v783, 1.442695
  %v803 = vpow.pop %v802
  %v804 = vmul.f32 %v784, 1.442695
  %v805 = vpow.pop %v804
  %v806 = vmul.f32 %v785, 1.442695
  %v807 = vpow.pop %v806
  %v808 = vmul.f32 %v786, 1.442695
  %v809 = vpow.pop %v808
  %v810 = vmul.f32 %v787, 1.442695
  %v811 = vpow.pop %v810
  %v812 = vmul.f32 %v788, 1.442695
  %v813 = vpow.pop %v812
  %v814 = vmul.f32 %v789, 1.442695
  %v815 = vpow.pop %v814
  %v816 = vmul.f32 %v790, 1.442695
  %v817 = vpow.pop %v816
  %v818 = vmul.f32 %v791, 1.442695
  %v819 = vpow.pop %v818
  %v820 = vmul.f32 %v792, 1.442695
  %v821 = vpow.pop %v820
  %v822 = vmul.f32 %v793, 1.442695
  %v823 = vpow.pop %v822
  %v824 = vmul.f32 %v794, 1.442695
  %v825 = vpow.pop %v824
  %v826 = vmul.f32 %v795, 1.442695
  %v827 = vpow.pop %v826
  %828 = vadd.xlane.f32.xlu0 %v797
  %v829 = vpop.xlane.xlu0 %828
  %830 = vadd.xlane.f32.xlu0 %v799
  %v831 = vpop.xlane.xlu0 %830
  %832 = vadd.xlane.f32.xlu0 %v801
  %v833 = vpop.xlane.xlu0 %832
  %834 = vadd.xlane.f32.xlu0 %v803
  %v835 = vpop.xlane.xlu0 %834
  %836 = vadd.xlane.f32.xlu0 %v805
  %v837 = vpop.xlane.xlu0 %836
  %838 = vadd.xlane.f32.xlu0 %v807
  %v839 = vpop.xlane.xlu0 %838
  %840 = vadd.xlane.f32.xlu0 %v809
  %v841 = vpop.xlane.xlu0 %840
  %842 = vadd.xlane.f32.xlu0 %v811
  %v843 = vpop.xlane.xlu0 %842
  %844 = vadd.xlane.f32.xlu0 %v813
  %v845 = vpop.xlane.xlu0 %844
  %846 = vadd.xlane.f32.xlu0 %v815
  %v847 = vpop.xlane.xlu0 %846
  %848 = vadd.xlane.f32.xlu0 %v817
  %v849 = vpop.xlane.xlu0 %848
  %850 = vadd.xlane.f32.xlu0 %v819
  %v851 = vpop.xlane.xlu0 %850
  %852 = vadd.xlane.f32.xlu0 %v821
  %v853 = vpop.xlane.xlu0 %852
  %854 = vadd.xlane.f32.xlu0 %v823
  %v855 = vpop.xlane.xlu0 %854
  %856 = vadd.xlane.f32.xlu0 %v825
  %v857 = vpop.xlane.xlu0 %856
  %858 = vadd.xlane.f32.xlu0 %v827
  %v859 = vpop.xlane.xlu0 %858
  %v860 = vrcp.pop %v829
  %v861 = vrcp.pop %v831
  %v862 = vrcp.pop %v833
  %v863 = vrcp.pop %v835
  %v864 = vrcp.pop %v837
  %v865 = vrcp.pop %v839
  %v866 = vrcp.pop %v841
  %v867 = vrcp.pop %v843
  %v868 = vrcp.pop %v845
  %v869 = vrcp.pop %v847
  %v870 = vrcp.pop %v849
  %v871 = vrcp.pop %v851
  %v872 = vrcp.pop %v853
  %v873 = vrcp.pop %v855
  %v874 = vrcp.pop %v857
  %v875 = vrcp.pop %v859
  %v876 = vmul.f32 %v797, %v860
  %v877 = vmul.f32 %v799, %v861
  %v878 = vmul.f32 %v801, %v862
  %v879 = vmul.f32 %v803, %v863
  %v880 = vmul.f32 %v805, %v864
  %v881 = vmul.f32 %v807, %v865
  %v882 = vmul.f32 %v809, %v866
  %v883 = vmul.f32 %v811, %v867
  %v884 = vmul.f32 %v813, %v868
  %v885 = vmul.f32 %v815, %v869
  %v886 = vmul.f32 %v817, %v870
  %v887 = vmul.f32 %v819, %v871
  %v888 = vmul.f32 %v821, %v872
  %v889 = vmul.f32 %v823, %v873
  %v890 = vmul.f32 %v825, %v874
  %v891 = vmul.f32 %v827, %v875
  %v892 = vpack.c.bf16 %v877, %v876
  %v893 = vpack.c.bf16 %v879, %v878
  %v894 = vpack.c.bf16 %v881, %v880
  %v895 = vpack.c.bf16 %v883, %v882
  %v896 = vpack.c.bf16 %v885, %v884
  %v897 = vpack.c.bf16 %v887, %v886
  %v898 = vpack.c.bf16 %v889, %v888
  %v899 = vpack.c.bf16 %v891, %v890
  %v900 = vpack.c.bf16 %v426, %v423
  %v901 = vpack.c.bf16 %v434, %v431
  %v902 = vpack.c.bf16 %v442, %v439
  %v903 = vpack.c.bf16 %v450, %v447
  %v904 = vpack.c.bf16 %v458, %v455
  %v905 = vpack.c.bf16 %v466, %v463
  %v906 = vpack.c.bf16 %v474, %v471
  %v907 = vpack.c.bf16 %v482, %v479
  %916 = vrot.lane.b32.xlu0 %v900, 96
  %v917 = vpop.permute.xlu0 %916
  %918 = vrot.lane.b32.xlu0 %v901, 96
  %v919 = vpop.permute.xlu0 %918
  %920 = vrot.lane.b32.xlu0 %v902, 96
  %v921 = vpop.permute.xlu0 %920
  %922 = vrot.lane.b32.xlu0 %v903, 96
  %v923 = vpop.permute.xlu0 %922
  %924 = vrot.lane.b32.xlu0 %v904, 96
  %v925 = vpop.permute.xlu0 %924
  %926 = vrot.lane.b32.xlu0 %v905, 96
  %v927 = vpop.permute.xlu0 %926
  %928 = vrot.lane.b32.xlu0 %v906, 96
  %v929 = vpop.permute.xlu0 %928
  %930 = vrot.lane.b32.xlu0 %v907, 96
  %v931 = vpop.permute.xlu0 %930
  %940 = vmatprep.subr.bf16.mxu0 0
  %941 = vmatpush1.bf16.msra.mxu0 %v917
  %942 = vmatprep.subr.bf16.mxu0 0
  %943 = vmatpush1.bf16.msra.mxu0 %v919
  %944 = vmatprep.subr.bf16.mxu0 0
  %945 = vmatpush1.bf16.msra.mxu0 %v921
  %946 = vmatprep.subr.bf16.mxu0 0
  %947 = vmatpush1.bf16.msra.mxu0 %v923
  %948 = vmatprep.subr.bf16.mxu0 0
  %949 = vmatpush1.bf16.msra.mxu0 %v925
  %950 = vmatprep.subr.bf16.mxu0 0
  %951 = vmatpush1.bf16.msra.mxu0 %v927
  %952 = vmatprep.subr.bf16.mxu0 0
  %953 = vmatpush1.bf16.msra.mxu0 %v929
  %954 = vmatprep.subr.bf16.mxu0 0
  %955 = vmatpush1.bf16.msra.mxu0 %v931
  %956 = vmatprep.subr.bf16.mxu0 0
  %957 = vmatpush1.bf16.msra.mxu0 0
  %958 = vmatprep.subr.bf16.mxu0 0
  %959 = vmatpush1.bf16.msra.mxu0 0
  %960 = vmatprep.subr.bf16.mxu0 0
  %961 = vmatpush1.bf16.msra.mxu0 0
  %962 = vmatprep.subr.bf16.mxu0 0
  %963 = vmatpush1.bf16.msra.mxu0 0
  %964 = vmatprep.subr.bf16.mxu0 0
  %965 = vmatpush1.bf16.msra.mxu0 0
  %966 = vmatprep.subr.bf16.mxu0 0
  %967 = vmatpush1.bf16.msra.mxu0 0
  %968 = vmatprep.subr.bf16.mxu0 0
  %969 = vmatpush1.bf16.msra.mxu0 0
  %970 = vmatprep.subr.bf16.mxu0 0
  %971 = vmatpush1.bf16.msra.mxu0 0
  %972 = vmatprep.mubr.bf16.mxu0 0
  %973 = vmatmul.mubr.bf16.gmra.mrb[0].mxu0 %v892
  %v974 = vpop.f32.mrb[0].mxu0
  %v975 = vadd.f32 0.0, %v974
  %v976 = vpop.f32.mrb[0].mxu0
  %v977 = vpop.f32.mrb[0].mxu0
  %v978 = vadd.f32 0.0, %v977
  %v979 = vpop.f32.mrb[0].mxu0
  %980 = vmatprep.mubr.bf16.mxu0 0
  %981 = vmatmul.mubr.bf16.gmra.mrb[0].mxu0 %v893
  %v982 = vpop.f32.mrb[0].mxu0
  %v983 = vadd.f32 0.0, %v982
  %v984 = vpop.f32.mrb[0].mxu0
  %v985 = vpop.f32.mrb[0].mxu0
  %v986 = vadd.f32 0.0, %v985
  %v987 = vpop.f32.mrb[0].mxu0
  %988 = vmatprep.mubr.bf16.mxu0 0
  %989 = vmatmul.mubr.bf16.gmra.mrb[0].mxu0 %v894
  %v990 = vpop.f32.mrb[0].mxu0
  %v991 = vadd.f32 0.0, %v990
  %v992 = vpop.f32.mrb[0].mxu0
  %v993 = vpop.f32.mrb[0].mxu0
  %v994 = vadd.f32 0.0, %v993
  %v995 = vpop.f32.mrb[0].mxu0
  %996 = vmatprep.mubr.bf16.mxu0 0
  %997 = vmatmul.mubr.bf16.gmra.mrb[0].mxu0 %v895
  %v998 = vpop.f32.mrb[0].mxu0
  %v999 = vadd.f32 0.0, %v998
  %v1000 = vpop.f32.mrb[0].mxu0
  %v1001 = vpop.f32.mrb[0].mxu0
  %v1002 = vadd.f32 0.0, %v1001
  %v1003 = vpop.f32.mrb[0].mxu0
  %1004 = vmatprep.mubr.bf16.mxu0 0
  %1005 = vmatmul.mubr.bf16.gmra.mrb[0].mxu0 %v896
  %v1006 = vpop.f32.mrb[0].mxu0
  %v1007 = vadd.f32 0.0, %v1006
  %v1008 = vpop.f32.mrb[0].mxu0
  %v1009 = vpop.f32.mrb[0].mxu0
  %v1010 = vadd.f32 0.0, %v1009
  %v1011 = vpop.f32.mrb[0].mxu0
  %1012 = vmatprep.mubr.bf16.mxu0 0
  %1013 = vmatmul.mubr.bf16.gmra.mrb[0].mxu0 %v897
  %v1014 = vpop.f32.mrb[0].mxu0
  %v1015 = vadd.f32 0.0, %v1014
  %v1016 = vpop.f32.mrb[0].mxu0
  %v1017 = vpop.f32.mrb[0].mxu0
  %v1018 = vadd.f32 0.0, %v1017
  %v1019 = vpop.f32.mrb[0].mxu0
  %1020 = vmatprep.mubr.bf16.mxu0 0
  %1021 = vmatmul.mubr.bf16.gmra.mrb[0].mxu0 %v898
  %v1022 = vpop.f32.mrb[0].mxu0
  %v1023 = vadd.f32 0.0, %v1022
  %v1024 = vpop.f32.mrb[0].mxu0
  %v1025 = vpop.f32.mrb[0].mxu0
  %v1026 = vadd.f32 0.0, %v1025
  %v1027 = vpop.f32.mrb[0].mxu0
  %1028 = vmatprep.mubr.bf16.mxu0 0
  %1029 = vmatmul.mubr.bf16.gmra.mrb[0].mxu0 %v899
  %v1030 = vpop.f32.mrb[0].mxu0
  %v1031 = vadd.f32 0.0, %v1030
  %v1032 = vpop.f32.mrb[0].mxu0
  %v1033 = vpop.f32.mrb[0].mxu0
  %v1034 = vadd.f32 0.0, %v1033
  %v1035 = vpop.f32.mrb[0].mxu0
  %1036 = vdwg.mxu0
  %v1037 = vld [vmem:[%s6] sm:$0x3]
  %v1038 = vpack.c.bf16 %v978, %v975
  %v1039 = vpack.c.bf16 %v986, %v983
  %v1040 = vpack.c.bf16 %v994, %v991
  %v1041 = vpack.c.bf16 %v1002, %v999
  %v1042 = vpack.c.bf16 %v1010, %v1007
  %v1043 = vpack.c.bf16 %v1018, %v1015
  %v1044 = vpack.c.bf16 %v1026, %v1023
  %v1045 = vpack.c.bf16 %v1034, %v1031
  %1046 = vrot.lane.b32.xlu0 %v423, 108
  %v1047 = vpop.permute.xlu0 %1046
  %1048 = vrot.lane.b32.xlu0 %v426, 108
  %v1049 = vpop.permute.xlu0 %1048
  %1050 = vrot.lane.b32.xlu0 %v431, 108
  %v1051 = vpop.permute.xlu0 %1050
  %1052 = vrot.lane.b32.xlu0 %v434, 108
  %v1053 = vpop.permute.xlu0 %1052
  %1054 = vrot.lane.b32.xlu0 %v439, 108
  %v1055 = vpop.permute.xlu0 %1054
  %1056 = vrot.lane.b32.xlu0 %v442, 108
  %v1057 = vpop.permute.xlu0 %1056
  %1058 = vrot.lane.b32.xlu0 %v447, 108
  %v1059 = vpop.permute.xlu0 %1058
  %1060 = vrot.lane.b32.xlu0 %v450, 108
  %v1061 = vpop.permute.xlu0 %1060
  %1062 = vrot.lane.b32.xlu0 %v455, 108
  %v1063 = vpop.permute.xlu0 %1062
  %1064 = vrot.lane.b32.xlu0 %v458, 108
  %v1065 = vpop.permute.xlu0 %1064
  %1066 = vrot.lane.b32.xlu0 %v463, 108
  %v1067 = vpop.permute.xlu0 %1066
  %1068 = vrot.lane.b32.xlu0 %v466, 108
  %v1069 = vpop.permute.xlu0 %1068
  %1070 = vrot.lane.b32.xlu0 %v471, 108
  %v1071 = vpop.permute.xlu0 %1070
  %1072 = vrot.lane.b32.xlu0 %v474, 108
  %v1073 = vpop.permute.xlu0 %1072
  %1074 = vrot.lane.b32.xlu0 %v479, 108
  %v1075 = vpop.permute.xlu0 %1074
  %1076 = vrot.lane.b32.xlu0 %v482, 108
  %v1077 = vpop.permute.xlu0 %1076
  %1094 = vxpose.xlu0.b32.start [1/16] %v1047, 128
  %1095 = vxpose.xlu0.b32.cont [2/16] %v1049, 128
  %1096 = vxpose.xlu0.b32.cont [3/16] %v1051, 128
  %1097 = vxpose.xlu0.b32.cont [4/16] %v1053, 128
  %1098 = vxpose.xlu0.b32.cont [5/16] %v1055, 128
  %1099 = vxpose.xlu0.b32.cont [6/16] %v1057, 128
  %1100 = vxpose.xlu0.b32.cont [7/16] %v1059, 128
  %1101 = vxpose.xlu0.b32.cont [8/16] %v1061, 128
  %1102 = vxpose.xlu0.b32.cont [9/16] %v1063, 128
  %1103 = vxpose.xlu0.b32.cont [10/16] %v1065, 128
  %1104 = vxpose.xlu0.b32.cont [11/16] %v1067, 128
  %1105 = vxpose.xlu0.b32.cont [12/16] %v1069, 128
  %1106 = vxpose.xlu0.b32.cont [13/16] %v1071, 128
  %1107 = vxpose.xlu0.b32.cont [14/16] %v1073, 128
  %1108 = vxpose.xlu0.b32.cont [15/16] %v1075, 128
  %1109 = vxpose.xlu0.b32.end [16/16] %v1077, 128
  %v1110 = vpop.trf.xlu0
  %v1111 = vpop.trf.xlu0
  %v1112 = vpop.trf.xlu0
  %v1113 = vpop.trf.xlu0
  %v1114 = vpop.trf.xlu0
  %v1115 = vpop.trf.xlu0
  %v1116 = vpop.trf.xlu0
  %v1117 = vpop.trf.xlu0
  %v1118 = vpop.trf.xlu0
  %v1119 = vpop.trf.xlu0
  %v1120 = vpop.trf.xlu0
  %v1121 = vpop.trf.xlu0
  %v1122 = vpop.trf.xlu0
  %v1123 = vpop.trf.xlu0
  %v1124 = vpop.trf.xlu0
  %v1125 = vpop.trf.xlu0
  %v1126 = vpack.c.bf16 %v1110, %v1110
  %1135 = vrot.lane.b32.xlu0 %v517, 124
  %v1136 = vpop.permute.xlu0 %1135
  %1137 = vrot.lane.b32.xlu0 %v518, 124
  %v1138 = vpop.permute.xlu0 %1137
  %1139 = vrot.lane.b32.xlu0 %v519, 124
  %v1140 = vpop.permute.xlu0 %1139
  %1141 = vrot.lane.b32.xlu0 %v520, 124
  %v1142 = vpop.permute.xlu0 %1141
  %1143 = vrot.lane.b32.xlu0 %v521, 124
  %v1144 = vpop.permute.xlu0 %1143
  %1145 = vrot.lane.b32.xlu0 %v522, 124
  %v1146 = vpop.permute.xlu0 %1145
  %1147 = vrot.lane.b32.xlu0 %v523, 124
  %v1148 = vpop.permute.xlu0 %1147
  %1149 = vrot.lane.b32.xlu0 %v524, 124
  %v1150 = vpop.permute.xlu0 %1149
  %v1152 = vsel %vm622, %v1136, 0
  %v1155 = vsel %vm622, %v1138, 0
  %v1158 = vsel %vm622, %v1140, 0
  %v1161 = vsel %vm622, %v1142, 0
  %v1164 = vsel %vm622, %v1144, 0
  %v1167 = vsel %vm622, %v1146, 0
  %v1170 = vsel %vm622, %v1148, 0
  %v1173 = vsel %vm622, %v1150, 0
  %v1176 = vsel %vm647, %v1126, 0
  %1178 = vmatprep.subr.bf16.mxu0 0
  %1179 = vmatpush1.bf16.msra.mxu0 %v1176
  %1180 = vmatprep.subr.bf16.mxu0 0
  %1181 = vmatpush1.bf16.msra.mxu0 0
  %1182 = vmatprep.subr.bf16.mxu0 0
  %1183 = vmatpush1.bf16.msra.mxu0 0
  %1184 = vmatprep.subr.bf16.mxu0 0
  %1185 = vmatpush1.bf16.msra.mxu0 0
  %1186 = vmatprep.subr.bf16.mxu0 0
  %1187 = vmatpush1.bf16.msra.mxu0 0
  %1188 = vmatprep.subr.bf16.mxu0 0
  %1189 = vmatpush1.bf16.msra.mxu0 0
  %1190 = vmatprep.subr.bf16.mxu0 0
  %1191 = vmatpush1.bf16.msra.mxu0 0
  %1192 = vmatprep.subr.bf16.mxu0 0
  %1193 = vmatpush1.bf16.msra.mxu0 0
  %1194 = vmatprep.subr.bf16.mxu0 0
  %1195 = vmatpush1.bf16.msra.mxu0 0
  %1196 = vmatprep.subr.bf16.mxu0 0
  %1197 = vmatpush1.bf16.msra.mxu0 0
  %1198 = vmatprep.subr.bf16.mxu0 0
  %1199 = vmatpush1.bf16.msra.mxu0 0
  %1200 = vmatprep.subr.bf16.mxu0 0
  %1201 = vmatpush1.bf16.msra.mxu0 0
  %1202 = vmatprep.subr.bf16.mxu0 0
  %1203 = vmatpush1.bf16.msra.mxu0 0
  %1204 = vmatprep.subr.bf16.mxu0 0
  %1205 = vmatpush1.bf16.msra.mxu0 0
  %1206 = vmatprep.subr.bf16.mxu0 0
  %1207 = vmatpush1.bf16.msra.mxu0 0
  %1208 = vmatprep.subr.bf16.mxu0 0
  %1209 = vmatpush1.bf16.msra.mxu0 0
  %1210 = vmatprep.mubr.bf16.mxu0 0
  %1211 = vmatmul.mubr.bf16.gmra.mrb[0].mxu0 %v1152
  %v1212 = vpop.f32.mrb[0].mxu0
  %v1213 = vadd.f32 %v501, %v1212
  %v1214 = vpop.f32.mrb[0].mxu0
  %v1215 = vpop.f32.mrb[0].mxu0
  %v1216 = vadd.f32 %v502, %v1215
  %v1217 = vpop.f32.mrb[0].mxu0
  %1218 = vmatprep.mubr.bf16.mxu0 0
  %1219 = vmatmul.mubr.bf16.gmra.mrb[0].mxu0 %v1155
  %v1220 = vpop.f32.mrb[0].mxu0
  %v1221 = vadd.f32 %v503, %v1220
  %v1222 = vpop.f32.mrb[0].mxu0
  %v1223 = vpop.f32.mrb[0].mxu0
  %v1224 = vadd.f32 %v504, %v1223
  %v1225 = vpop.f32.mrb[0].mxu0
  %1226 = vmatprep.mubr.bf16.mxu0 0
  %1227 = vmatmul.mubr.bf16.gmra.mrb[0].mxu0 %v1158
  %v1228 = vpop.f32.mrb[0].mxu0
  %v1229 = vadd.f32 %v505, %v1228
  %v1230 = vpop.f32.mrb[0].mxu0
  %v1231 = vpop.f32.mrb[0].mxu0
  %v1232 = vadd.f32 %v506, %v1231
  %v1233 = vpop.f32.mrb[0].mxu0
  %1234 = vmatprep.mubr.bf16.mxu0 0
  %1235 = vmatmul.mubr.bf16.gmra.mrb[0].mxu0 %v1161
  %v1236 = vpop.f32.mrb[0].mxu0
  %v1237 = vadd.f32 %v507, %v1236
  %v1238 = vpop.f32.mrb[0].mxu0
  %v1239 = vpop.f32.mrb[0].mxu0
  %v1240 = vadd.f32 %v508, %v1239
  %v1241 = vpop.f32.mrb[0].mxu0
  %1242 = vmatprep.mubr.bf16.mxu0 0
  %1243 = vmatmul.mubr.bf16.gmra.mrb[0].mxu0 %v1164
  %v1244 = vpop.f32.mrb[0].mxu0
  %v1245 = vadd.f32 %v509, %v1244
  %v1246 = vpop.f32.mrb[0].mxu0
  %v1247 = vpop.f32.mrb[0].mxu0
  %v1248 = vadd.f32 %v510, %v1247
  %v1249 = vpop.f32.mrb[0].mxu0
  %1250 = vmatprep.mubr.bf16.mxu0 0
  %1251 = vmatmul.mubr.bf16.gmra.mrb[0].mxu0 %v1167
  %v1252 = vpop.f32.mrb[0].mxu0
  %v1253 = vadd.f32 %v511, %v1252
  %v1254 = vpop.f32.mrb[0].mxu0
  %v1255 = vpop.f32.mrb[0].mxu0
  %v1256 = vadd.f32 %v512, %v1255
  %v1257 = vpop.f32.mrb[0].mxu0
  %1258 = vmatprep.mubr.bf16.mxu0 0
  %1259 = vmatmul.mubr.bf16.gmra.mrb[0].mxu0 %v1170
  %v1260 = vpop.f32.mrb[0].mxu0
  %v1261 = vadd.f32 %v513, %v1260
  %v1262 = vpop.f32.mrb[0].mxu0
  %v1263 = vpop.f32.mrb[0].mxu0
  %v1264 = vadd.f32 %v514, %v1263
  %v1265 = vpop.f32.mrb[0].mxu0
  %1266 = vmatprep.mubr.bf16.mxu0 0
  %1267 = vmatmul.mubr.bf16.gmra.mrb[0].mxu0 %v1173
  %v1268 = vpop.f32.mrb[0].mxu0
  %v1269 = vadd.f32 %v515, %v1268
  %v1270 = vpop.f32.mrb[0].mxu0
  %v1271 = vpop.f32.mrb[0].mxu0
  %v1272 = vadd.f32 %v516, %v1271
  %v1273 = vpop.f32.mrb[0].mxu0
  %1274 = vdwg.mxu0
  %1275 = vmax.xlane.f32.xlu0 %v1213
  %v1276 = vpop.xlane.xlu0 %1275
  %1277 = vmax.xlane.f32.xlu0 %v1216
  %v1278 = vpop.xlane.xlu0 %1277
  %1279 = vmax.xlane.f32.xlu0 %v1221
  %v1280 = vpop.xlane.xlu0 %1279
  %1281 = vmax.xlane.f32.xlu0 %v1224
  %v1282 = vpop.xlane.xlu0 %1281
  %1283 = vmax.xlane.f32.xlu0 %v1229
  %v1284 = vpop.xlane.xlu0 %1283
  %1285 = vmax.xlane.f32.xlu0 %v1232
  %v1286 = vpop.xlane.xlu0 %1285
  %1287 = vmax.xlane.f32.xlu0 %v1237
  %v1288 = vpop.xlane.xlu0 %1287
  %1289 = vmax.xlane.f32.xlu0 %v1240
  %v1290 = vpop.xlane.xlu0 %1289
  %1291 = vmax.xlane.f32.xlu0 %v1245
  %v1292 = vpop.xlane.xlu0 %1291
  %1293 = vmax.xlane.f32.xlu0 %v1248
  %v1294 = vpop.xlane.xlu0 %1293
  %1295 = vmax.xlane.f32.xlu0 %v1253
  %v1296 = vpop.xlane.xlu0 %1295
  %1297 = vmax.xlane.f32.xlu0 %v1256
  %v1298 = vpop.xlane.xlu0 %1297
  %1299 = vmax.xlane.f32.xlu0 %v1261
  %v1300 = vpop.xlane.xlu0 %1299
  %1301 = vmax.xlane.f32.xlu0 %v1264
  %v1302 = vpop.xlane.xlu0 %1301
  %1303 = vmax.xlane.f32.xlu0 %v1269
  %v1304 = vpop.xlane.xlu0 %1303
  %1305 = vmax.xlane.f32.xlu0 %v1272
  %v1306 = vpop.xlane.xlu0 %1305
  %v1307 = vsub.f32 %v1213, %v1276
  %v1308 = vsub.f32 %v1216, %v1278
  %v1309 = vsub.f32 %v1221, %v1280
  %v1310 = vsub.f32 %v1224, %v1282
  %v1311 = vsub.f32 %v1229, %v1284
  %v1312 = vsub.f32 %v1232, %v1286
  %v1313 = vsub.f32 %v1237, %v1288
  %v1314 = vsub.f32 %v1240, %v1290
  %v1315 = vsub.f32 %v1245, %v1292
  %v1316 = vsub.f32 %v1248, %v1294
  %v1317 = vsub.f32 %v1253, %v1296
  %v1318 = vsub.f32 %v1256, %v1298
  %v1319 = vsub.f32 %v1261, %v1300
  %v1320 = vsub.f32 %v1264, %v1302
  %v1321 = vsub.f32 %v1269, %v1304
  %v1322 = vsub.f32 %v1272, %v1306
  %v1323 = vmul.f32 %v1307, 1.442695
  %v1324 = vpow.pop %v1323
  %v1325 = vmul.f32 %v1308, 1.442695
  %v1326 = vpow.pop %v1325
  %v1327 = vmul.f32 %v1309, 1.442695
  %v1328 = vpow.pop %v1327
  %v1329 = vmul.f32 %v1310, 1.442695
  %v1330 = vpow.pop %v1329
  %v1331 = vmul.f32 %v1311, 1.442695
  %v1332 = vpow.pop %v1331
  %v1333 = vmul.f32 %v1312, 1.442695
  %v1334 = vpow.pop %v1333
  %v1335 = vmul.f32 %v1313, 1.442695
  %v1336 = vpow.pop %v1335
  %v1337 = vmul.f32 %v1314, 1.442695
  %v1338 = vpow.pop %v1337
  %v1339 = vmul.f32 %v1315, 1.442695
  %v1340 = vpow.pop %v1339
  %v1341 = vmul.f32 %v1316, 1.442695
  %v1342 = vpow.pop %v1341
  %v1343 = vmul.f32 %v1317, 1.442695
  %v1344 = vpow.pop %v1343
  %v1345 = vmul.f32 %v1318, 1.442695
  %v1346 = vpow.pop %v1345
  %v1347 = vmul.f32 %v1319, 1.442695
  %v1348 = vpow.pop %v1347
  %v1349 = vmul.f32 %v1320, 1.442695
  %v1350 = vpow.pop %v1349
  %v1351 = vmul.f32 %v1321, 1.442695
  %v1352 = vpow.pop %v1351
  %v1353 = vmul.f32 %v1322, 1.442695
  %v1354 = vpow.pop %v1353
  %1355 = vadd.xlane.f32.xlu0 %v1324
  %v1356 = vpop.xlane.xlu0 %1355
  %1357 = vadd.xlane.f32.xlu0 %v1326
  %v1358 = vpop.xlane.xlu0 %1357
  %1359 = vadd.xlane.f32.xlu0 %v1328
  %v1360 = vpop.xlane.xlu0 %1359
  %1361 = vadd.xlane.f32.xlu0 %v1330
  %v1362 = vpop.xlane.xlu0 %1361
  %1363 = vadd.xlane.f32.xlu0 %v1332
  %v1364 = vpop.xlane.xlu0 %1363
  %1365 = vadd.xlane.f32.xlu0 %v1334
  %v1366 = vpop.xlane.xlu0 %1365
  %1367 = vadd.xlane.f32.xlu0 %v1336
  %v1368 = vpop.xlane.xlu0 %1367
  %1369 = vadd.xlane.f32.xlu0 %v1338
  %v1370 = vpop.xlane.xlu0 %1369
  %1371 = vadd.xlane.f32.xlu0 %v1340
  %v1372 = vpop.xlane.xlu0 %1371
  %1373 = vadd.xlane.f32.xlu0 %v1342
  %v1374 = vpop.xlane.xlu0 %1373
  %1375 = vadd.xlane.f32.xlu0 %v1344
  %v1376 = vpop.xlane.xlu0 %1375
  %1377 = vadd.xlane.f32.xlu0 %v1346
  %v1378 = vpop.xlane.xlu0 %1377
  %1379 = vadd.xlane.f32.xlu0 %v1348
  %v1380 = vpop.xlane.xlu0 %1379
  %1381 = vadd.xlane.f32.xlu0 %v1350
  %v1382 = vpop.xlane.xlu0 %1381
  %1383 = vadd.xlane.f32.xlu0 %v1352
  %v1384 = vpop.xlane.xlu0 %1383
  %1385 = vadd.xlane.f32.xlu0 %v1354
  %v1386 = vpop.xlane.xlu0 %1385
  %v1387 = vrcp.pop %v1356
  %v1388 = vrcp.pop %v1358
  %v1389 = vrcp.pop %v1360
  %v1390 = vrcp.pop %v1362
  %v1391 = vrcp.pop %v1364
  %v1392 = vrcp.pop %v1366
  %v1393 = vrcp.pop %v1368
  %v1394 = vrcp.pop %v1370
  %v1395 = vrcp.pop %v1372
  %v1396 = vrcp.pop %v1374
  %v1397 = vrcp.pop %v1376
  %v1398 = vrcp.pop %v1378
  %v1399 = vrcp.pop %v1380
  %v1400 = vrcp.pop %v1382
  %v1401 = vrcp.pop %v1384
  %v1402 = vrcp.pop %v1386
  %v1403 = vmul.f32 %v1324, %v1387
  %v1404 = vmul.f32 %v1326, %v1388
  %v1405 = vmul.f32 %v1328, %v1389
  %v1406 = vmul.f32 %v1330, %v1390
  %v1407 = vmul.f32 %v1332, %v1391
  %v1408 = vmul.f32 %v1334, %v1392
  %v1409 = vmul.f32 %v1336, %v1393
  %v1410 = vmul.f32 %v1338, %v1394
  %v1411 = vmul.f32 %v1340, %v1395
  %v1412 = vmul.f32 %v1342, %v1396
  %v1413 = vmul.f32 %v1344, %v1397
  %v1414 = vmul.f32 %v1346, %v1398
  %v1415 = vmul.f32 %v1348, %v1399
  %v1416 = vmul.f32 %v1350, %v1400
  %v1417 = vmul.f32 %v1352, %v1401
  %v1418 = vmul.f32 %v1354, %v1402
  %v1419 = vpack.c.bf16 %v1404, %v1403
  %v1420 = vpack.c.bf16 %v1406, %v1405
  %v1421 = vpack.c.bf16 %v1408, %v1407
  %v1422 = vpack.c.bf16 %v1410, %v1409
  %v1423 = vpack.c.bf16 %v1412, %v1411
  %v1424 = vpack.c.bf16 %v1414, %v1413
  %v1425 = vpack.c.bf16 %v1416, %v1415
  %v1426 = vpack.c.bf16 %v1418, %v1417
  %1427 = vrot.lane.b32.xlu0 %v900, 92
  %v1428 = vpop.permute.xlu0 %1427
  %1429 = vrot.lane.b32.xlu0 %v901, 92
  %v1430 = vpop.permute.xlu0 %1429
  %1431 = vrot.lane.b32.xlu0 %v902, 92
  %v1432 = vpop.permute.xlu0 %1431
  %1433 = vrot.lane.b32.xlu0 %v903, 92
  %v1434 = vpop.permute.xlu0 %1433
  %1435 = vrot.lane.b32.xlu0 %v904, 92
  %v1436 = vpop.permute.xlu0 %1435
  %1437 = vrot.lane.b32.xlu0 %v905, 92
  %v1438 = vpop.permute.xlu0 %1437
  %1439 = vrot.lane.b32.xlu0 %v906, 92
  %v1440 = vpop.permute.xlu0 %1439
  %1441 = vrot.lane.b32.xlu0 %v907, 92
  %v1442 = vpop.permute.xlu0 %1441
  %1451 = vmatprep.subr.bf16.mxu0 0
  %1452 = vmatpush1.bf16.msra.mxu0 %v1428
  %1453 = vmatprep.subr.bf16.mxu0 0
  %1454 = vmatpush1.bf16.msra.mxu0 %v1430
  %1455 = vmatprep.subr.bf16.mxu0 0
  %1456 = vmatpush1.bf16.msra.mxu0 %v1432
  %1457 = vmatprep.subr.bf16.mxu0 0
  %1458 = vmatpush1.bf16.msra.mxu0 %v1434
  %1459 = vmatprep.subr.bf16.mxu0 0
  %1460 = vmatpush1.bf16.msra.mxu0 %v1436
  %1461 = vmatprep.subr.bf16.mxu0 0
  %1462 = vmatpush1.bf16.msra.mxu0 %v1438
  %1463 = vmatprep.subr.bf16.mxu0 0
  %1464 = vmatpush1.bf16.msra.mxu0 %v1440
  %1465 = vmatprep.subr.bf16.mxu0 0
  %1466 = vmatpush1.bf16.msra.mxu0 %v1442
  %1467 = vmatprep.subr.bf16.mxu0 0
  %1468 = vmatpush1.bf16.msra.mxu0 0
  %1469 = vmatprep.subr.bf16.mxu0 0
  %1470 = vmatpush1.bf16.msra.mxu0 0
  %1471 = vmatprep.subr.bf16.mxu0 0
  %1472 = vmatpush1.bf16.msra.mxu0 0
  %1473 = vmatprep.subr.bf16.mxu0 0
  %1474 = vmatpush1.bf16.msra.mxu0 0
  %1475 = vmatprep.subr.bf16.mxu0 0
  %1476 = vmatpush1.bf16.msra.mxu0 0
  %1477 = vmatprep.subr.bf16.mxu0 0
  %1478 = vmatpush1.bf16.msra.mxu0 0
  %1479 = vmatprep.subr.bf16.mxu0 0
  %1480 = vmatpush1.bf16.msra.mxu0 0
  %1481 = vmatprep.subr.bf16.mxu0 0
  %1482 = vmatpush1.bf16.msra.mxu0 0
  %1483 = vmatprep.mubr.bf16.mxu0 0
  %1484 = vmatmul.mubr.bf16.gmra.mrb[0].mxu0 %v1419
  %v1485 = vpop.f32.mrb[0].mxu0
  %v1486 = vadd.f32 0.0, %v1485
  %v1487 = vpop.f32.mrb[0].mxu0
  %v1488 = vpop.f32.mrb[0].mxu0
  %v1489 = vadd.f32 0.0, %v1488
  %v1490 = vpop.f32.mrb[0].mxu0
  %1491 = vmatprep.mubr.bf16.mxu0 0
  %1492 = vmatmul.mubr.bf16.gmra.mrb[0].mxu0 %v1420
  %v1493 = vpop.f32.mrb[0].mxu0
  %v1494 = vadd.f32 0.0, %v1493
  %v1495 = vpop.f32.mrb[0].mxu0
  %v1496 = vpop.f32.mrb[0].mxu0
  %v1497 = vadd.f32 0.0, %v1496
  %v1498 = vpop.f32.mrb[0].mxu0
  %1499 = vmatprep.mubr.bf16.mxu0 0
  %1500 = vmatmul.mubr.bf16.gmra.mrb[0].mxu0 %v1421
  %v1501 = vpop.f32.mrb[0].mxu0
  %v1502 = vadd.f32 0.0, %v1501
  %v1503 = vpop.f32.mrb[0].mxu0
  %v1504 = vpop.f32.mrb[0].mxu0
  %v1505 = vadd.f32 0.0, %v1504
  %v1506 = vpop.f32.mrb[0].mxu0
  %1507 = vmatprep.mubr.bf16.mxu0 0
  %1508 = vmatmul.mubr.bf16.gmra.mrb[0].mxu0 %v1422
  %v1509 = vpop.f32.mrb[0].mxu0
  %v1510 = vadd.f32 0.0, %v1509
  %v1511 = vpop.f32.mrb[0].mxu0
  %v1512 = vpop.f32.mrb[0].mxu0
  %v1513 = vadd.f32 0.0, %v1512
  %v1514 = vpop.f32.mrb[0].mxu0
  %1515 = vmatprep.mubr.bf16.mxu0 0
  %1516 = vmatmul.mubr.bf16.gmra.mrb[0].mxu0 %v1423
  %v1517 = vpop.f32.mrb[0].mxu0
  %v1518 = vadd.f32 0.0, %v1517
  %v1519 = vpop.f32.mrb[0].mxu0
  %v1520 = vpop.f32.mrb[0].mxu0
  %v1521 = vadd.f32 0.0, %v1520
  %v1522 = vpop.f32.mrb[0].mxu0
  %1523 = vmatprep.mubr.bf16.mxu0 0
  %1524 = vmatmul.mubr.bf16.gmra.mrb[0].mxu0 %v1424
  %v1525 = vpop.f32.mrb[0].mxu0
  %v1526 = vadd.f32 0.0, %v1525
  %v1527 = vpop.f32.mrb[0].mxu0
  %v1528 = vpop.f32.mrb[0].mxu0
  %v1529 = vadd.f32 0.0, %v1528
  %v1530 = vpop.f32.mrb[0].mxu0
  %1531 = vmatprep.mubr.bf16.mxu0 0
  %1532 = vmatmul.mubr.bf16.gmra.mrb[0].mxu0 %v1425
  %v1533 = vpop.f32.mrb[0].mxu0
  %v1534 = vadd.f32 0.0, %v1533
  %v1535 = vpop.f32.mrb[0].mxu0
  %v1536 = vpop.f32.mrb[0].mxu0
  %v1537 = vadd.f32 0.0, %v1536
  %v1538 = vpop.f32.mrb[0].mxu0
  %1539 = vmatprep.mubr.bf16.mxu0 0
  %1540 = vmatmul.mubr.bf16.gmra.mrb[0].mxu0 %v1426
  %v1541 = vpop.f32.mrb[0].mxu0
  %v1542 = vadd.f32 0.0, %v1541
  %v1543 = vpop.f32.mrb[0].mxu0
  %v1544 = vpop.f32.mrb[0].mxu0
  %v1545 = vadd.f32 0.0, %v1544
  %v1546 = vpop.f32.mrb[0].mxu0
  %1547 = vdwg.mxu0
  %s1548 = scalar_lea.vmem %s6, 2
  %v1549 = vld [vmem:[%s1548] sm:$0x3]
  %v1550 = vpack.c.bf16 %v1489, %v1486
  %v1551 = vpack.c.bf16 %v1497, %v1494
  %v1552 = vpack.c.bf16 %v1505, %v1502
  %v1553 = vpack.c.bf16 %v1513, %v1510
  %v1554 = vpack.c.bf16 %v1521, %v1518
  %v1555 = vpack.c.bf16 %v1529, %v1526
  %v1556 = vpack.c.bf16 %v1537, %v1534
  %v1557 = vpack.c.bf16 %v1545, %v1542
  %v1559 = vsel %vm622, %v1550, 0
  %v1562 = vsel %vm622, %v1551, 0
  %v1565 = vsel %vm622, %v1552, 0
  %v1568 = vsel %vm622, %v1553, 0
  %v1571 = vsel %vm622, %v1554, 0
  %v1574 = vsel %vm622, %v1555, 0
  %v1577 = vsel %vm622, %v1556, 0
  %v1580 = vsel %vm622, %v1557, 0
  %v1583 = vsel %vm647, %v1549, 0
  %1585 = vmatprep.subr.bf16.mxu0 0
  %1586 = vmatpush1.bf16.msra.mxu0 %v1583
  %1587 = vmatprep.subr.bf16.mxu0 0
  %1588 = vmatpush1.bf16.msra.mxu0 0
  %1589 = vmatprep.subr.bf16.mxu0 0
  %1590 = vmatpush1.bf16.msra.mxu0 0
  %1591 = vmatprep.subr.bf16.mxu0 0
  %1592 = vmatpush1.bf16.msra.mxu0 0
  %1593 = vmatprep.subr.bf16.mxu0 0
  %1594 = vmatpush1.bf16.msra.mxu0 0
  %1595 = vmatprep.subr.bf16.mxu0 0
  %1596 = vmatpush1.bf16.msra.mxu0 0
  %1597 = vmatprep.subr.bf16.mxu0 0
  %1598 = vmatpush1.bf16.msra.mxu0 0
  %1599 = vmatprep.subr.bf16.mxu0 0
  %1600 = vmatpush1.bf16.msra.mxu0 0
  %1601 = vmatprep.subr.bf16.mxu0 0
  %1602 = vmatpush1.bf16.msra.mxu0 0
  %1603 = vmatprep.subr.bf16.mxu0 0
  %1604 = vmatpush1.bf16.msra.mxu0 0
  %1605 = vmatprep.subr.bf16.mxu0 0
  %1606 = vmatpush1.bf16.msra.mxu0 0
  %1607 = vmatprep.subr.bf16.mxu0 0
  %1608 = vmatpush1.bf16.msra.mxu0 0
  %1609 = vmatprep.subr.bf16.mxu0 0
  %1610 = vmatpush1.bf16.msra.mxu0 0
  %1611 = vmatprep.subr.bf16.mxu0 0
  %1612 = vmatpush1.bf16.msra.mxu0 0
  %1613 = vmatprep.subr.bf16.mxu0 0
  %1614 = vmatpush1.bf16.msra.mxu0 0
  %1615 = vmatprep.subr.bf16.mxu0 0
  %1616 = vmatpush1.bf16.msra.mxu0 0
  %1617 = vmatprep.mubr.bf16.mxu0 0
  %1618 = vmatmul.mubr.bf16.gmra.mrb[0].mxu0 %v1559
  %v1619 = vpop.f32.mrb[0].mxu0
  %v1620 = vadd.f32 0.0, %v1619
  %v1621 = vpop.f32.mrb[0].mxu0
  %v1622 = vpop.f32.mrb[0].mxu0
  %v1623 = vadd.f32 0.0, %v1622
  %v1624 = vpop.f32.mrb[0].mxu0
  %1625 = vmatprep.mubr.bf16.mxu0 0
  %1626 = vmatmul.mubr.bf16.gmra.mrb[0].mxu0 %v1562
  %v1627 = vpop.f32.mrb[0].mxu0
  %v1628 = vadd.f32 0.0, %v1627
  %v1629 = vpop.f32.mrb[0].mxu0
  %v1630 = vpop.f32.mrb[0].mxu0
  %v1631 = vadd.f32 0.0, %v1630
  %v1632 = vpop.f32.mrb[0].mxu0
  %1633 = vmatprep.mubr.bf16.mxu0 0
  %1634 = vmatmul.mubr.bf16.gmra.mrb[0].mxu0 %v1565
  %v1635 = vpop.f32.mrb[0].mxu0
  %v1636 = vadd.f32 0.0, %v1635
  %v1637 = vpop.f32.mrb[0].mxu0
  %v1638 = vpop.f32.mrb[0].mxu0
  %v1639 = vadd.f32 0.0, %v1638
  %v1640 = vpop.f32.mrb[0].mxu0
  %1641 = vmatprep.mubr.bf16.mxu0 0
  %1642 = vmatmul.mubr.bf16.gmra.mrb[0].mxu0 %v1568
  %v1643 = vpop.f32.mrb[0].mxu0
  %v1644 = vadd.f32 0.0, %v1643
  %v1645 = vpop.f32.mrb[0].mxu0
  %v1646 = vpop.f32.mrb[0].mxu0
  %v1647 = vadd.f32 0.0, %v1646
  %v1648 = vpop.f32.mrb[0].mxu0
  %1649 = vmatprep.mubr.bf16.mxu0 0
  %1650 = vmatmul.mubr.bf16.gmra.mrb[0].mxu0 %v1571
  %v1651 = vpop.f32.mrb[0].mxu0
  %v1652 = vadd.f32 0.0, %v1651
  %v1653 = vpop.f32.mrb[0].mxu0
  %v1654 = vpop.f32.mrb[0].mxu0
  %v1655 = vadd.f32 0.0, %v1654
  %v1656 = vpop.f32.mrb[0].mxu0
  %1657 = vmatprep.mubr.bf16.mxu0 0
  %1658 = vmatmul.mubr.bf16.gmra.mrb[0].mxu0 %v1574
  %v1659 = vpop.f32.mrb[0].mxu0
  %v1660 = vadd.f32 0.0, %v1659
  %v1661 = vpop.f32.mrb[0].mxu0
  %v1662 = vpop.f32.mrb[0].mxu0
  %v1663 = vadd.f32 0.0, %v1662
  %v1664 = vpop.f32.mrb[0].mxu0
  %1665 = vmatprep.mubr.bf16.mxu0 0
  %1666 = vmatmul.mubr.bf16.gmra.mrb[0].mxu0 %v1577
  %v1667 = vpop.f32.mrb[0].mxu0
  %v1668 = vadd.f32 0.0, %v1667
  %v1669 = vpop.f32.mrb[0].mxu0
  %v1670 = vpop.f32.mrb[0].mxu0
  %v1671 = vadd.f32 0.0, %v1670
  %v1672 = vpop.f32.mrb[0].mxu0
  %1673 = vmatprep.mubr.bf16.mxu0 0
  %1674 = vmatmul.mubr.bf16.gmra.mrb[0].mxu0 %v1580
  %v1675 = vpop.f32.mrb[0].mxu0
  %v1676 = vadd.f32 0.0, %v1675
  %v1677 = vpop.f32.mrb[0].mxu0
  %v1678 = vpop.f32.mrb[0].mxu0
  %v1679 = vadd.f32 0.0, %v1678
  %v1680 = vpop.f32.mrb[0].mxu0
  %1681 = vdwg.mxu0
  %v1683 = vsel %vm622, %v1038, 0
  %v1686 = vsel %vm622, %v1039, 0
  %v1689 = vsel %vm622, %v1040, 0
  %v1692 = vsel %vm622, %v1041, 0
  %v1695 = vsel %vm622, %v1042, 0
  %v1698 = vsel %vm622, %v1043, 0
  %v1701 = vsel %vm622, %v1044, 0
  %v1704 = vsel %vm622, %v1045, 0
  %v1707 = vsel %vm647, %v1037, 0
  %1709 = vmatprep.subr.bf16.mxu0 0
  %1710 = vmatpush1.bf16.msra.mxu0 %v1707
  %1711 = vmatprep.subr.bf16.mxu0 0
  %1712 = vmatpush1.bf16.msra.mxu0 0
  %1713 = vmatprep.subr.bf16.mxu0 0
  %1714 = vmatpush1.bf16.msra.mxu0 0
  %1715 = vmatprep.subr.bf16.mxu0 0
  %1716 = vmatpush1.bf16.msra.mxu0 0
  %1717 = vmatprep.subr.bf16.mxu0 0
  %1718 = vmatpush1.bf16.msra.mxu0 0
  %1719 = vmatprep.subr.bf16.mxu0 0
  %1720 = vmatpush1.bf16.msra.mxu0 0
  %1721 = vmatprep.subr.bf16.mxu0 0
  %1722 = vmatpush1.bf16.msra.mxu0 0
  %1723 = vmatprep.subr.bf16.mxu0 0
  %1724 = vmatpush1.bf16.msra.mxu0 0
  %1725 = vmatprep.subr.bf16.mxu0 0
  %1726 = vmatpush1.bf16.msra.mxu0 0
  %1727 = vmatprep.subr.bf16.mxu0 0
  %1728 = vmatpush1.bf16.msra.mxu0 0
  %1729 = vmatprep.subr.bf16.mxu0 0
  %1730 = vmatpush1.bf16.msra.mxu0 0
  %1731 = vmatprep.subr.bf16.mxu0 0
  %1732 = vmatpush1.bf16.msra.mxu0 0
  %1733 = vmatprep.subr.bf16.mxu0 0
  %1734 = vmatpush1.bf16.msra.mxu0 0
  %1735 = vmatprep.subr.bf16.mxu0 0
  %1736 = vmatpush1.bf16.msra.mxu0 0
  %1737 = vmatprep.subr.bf16.mxu0 0
  %1738 = vmatpush1.bf16.msra.mxu0 0
  %1739 = vmatprep.subr.bf16.mxu0 0
  %1740 = vmatpush1.bf16.msra.mxu0 0
  %1741 = vmatprep.mubr.bf16.mxu0 0
  %1742 = vmatmul.mubr.bf16.gmra.mrb[0].mxu0 %v1683
  %v1743 = vpop.f32.mrb[0].mxu0
  %v1744 = vadd.f32 %v1620, %v1743
  %v1745 = vpop.f32.mrb[0].mxu0
  %v1746 = vpop.f32.mrb[0].mxu0
  %v1747 = vadd.f32 %v1623, %v1746
  %v1748 = vpop.f32.mrb[0].mxu0
  %1749 = vmatprep.mubr.bf16.mxu0 0
  %1750 = vmatmul.mubr.bf16.gmra.mrb[0].mxu0 %v1686
  %v1751 = vpop.f32.mrb[0].mxu0
  %v1752 = vadd.f32 %v1628, %v1751
  %v1753 = vpop.f32.mrb[0].mxu0
  %v1754 = vpop.f32.mrb[0].mxu0
  %v1755 = vadd.f32 %v1631, %v1754
  %v1756 = vpop.f32.mrb[0].mxu0
  %1757 = vmatprep.mubr.bf16.mxu0 0
  %1758 = vmatmul.mubr.bf16.gmra.mrb[0].mxu0 %v1689
  %v1759 = vpop.f32.mrb[0].mxu0
  %v1760 = vadd.f32 %v1636, %v1759
  %v1761 = vpop.f32.mrb[0].mxu0
  %v1762 = vpop.f32.mrb[0].mxu0
  %v1763 = vadd.f32 %v1639, %v1762
  %v1764 = vpop.f32.mrb[0].mxu0
  %1765 = vmatprep.mubr.bf16.mxu0 0
  %1766 = vmatmul.mubr.bf16.gmra.mrb[0].mxu0 %v1692
  %v1767 = vpop.f32.mrb[0].mxu0
  %v1768 = vadd.f32 %v1644, %v1767
  %v1769 = vpop.f32.mrb[0].mxu0
  %v1770 = vpop.f32.mrb[0].mxu0
  %v1771 = vadd.f32 %v1647, %v1770
  %v1772 = vpop.f32.mrb[0].mxu0
  %1773 = vmatprep.mubr.bf16.mxu0 0
  %1774 = vmatmul.mubr.bf16.gmra.mrb[0].mxu0 %v1695
  %v1775 = vpop.f32.mrb[0].mxu0
  %v1776 = vadd.f32 %v1652, %v1775
  %v1777 = vpop.f32.mrb[0].mxu0
  %v1778 = vpop.f32.mrb[0].mxu0
  %v1779 = vadd.f32 %v1655, %v1778
  %v1780 = vpop.f32.mrb[0].mxu0
  %1781 = vmatprep.mubr.bf16.mxu0 0
  %1782 = vmatmul.mubr.bf16.gmra.mrb[0].mxu0 %v1698
  %v1783 = vpop.f32.mrb[0].mxu0
  %v1784 = vadd.f32 %v1660, %v1783
  %v1785 = vpop.f32.mrb[0].mxu0
  %v1786 = vpop.f32.mrb[0].mxu0
  %v1787 = vadd.f32 %v1663, %v1786
  %v1788 = vpop.f32.mrb[0].mxu0
  %1789 = vmatprep.mubr.bf16.mxu0 0
  %1790 = vmatmul.mubr.bf16.gmra.mrb[0].mxu0 %v1701
  %v1791 = vpop.f32.mrb[0].mxu0
  %v1792 = vadd.f32 %v1668, %v1791
  %v1793 = vpop.f32.mrb[0].mxu0
  %v1794 = vpop.f32.mrb[0].mxu0
  %v1795 = vadd.f32 %v1671, %v1794
  %v1796 = vpop.f32.mrb[0].mxu0
  %1797 = vmatprep.mubr.bf16.mxu0 0
  %1798 = vmatmul.mubr.bf16.gmra.mrb[0].mxu0 %v1704
  %v1799 = vpop.f32.mrb[0].mxu0
  %v1800 = vadd.f32 %v1676, %v1799
  %v1801 = vpop.f32.mrb[0].mxu0
  %v1802 = vpop.f32.mrb[0].mxu0
  %v1803 = vadd.f32 %v1679, %v1802
  %v1804 = vpop.f32.mrb[0].mxu0
  %1805 = vdwg.mxu0
  %1806 = vrot.lane.b32.xlu0 %v423, 104
  %v1807 = vpop.permute.xlu0 %1806
  %1808 = vrot.lane.b32.xlu0 %v426, 104
  %v1809 = vpop.permute.xlu0 %1808
  %1810 = vrot.lane.b32.xlu0 %v431, 104
  %v1811 = vpop.permute.xlu0 %1810
  %1812 = vrot.lane.b32.xlu0 %v434, 104
  %v1813 = vpop.permute.xlu0 %1812
  %1814 = vrot.lane.b32.xlu0 %v439, 104
  %v1815 = vpop.permute.xlu0 %1814
  %1816 = vrot.lane.b32.xlu0 %v442, 104
  %v1817 = vpop.permute.xlu0 %1816
  %1818 = vrot.lane.b32.xlu0 %v447, 104
  %v1819 = vpop.permute.xlu0 %1818
  %1820 = vrot.lane.b32.xlu0 %v450, 104
  %v1821 = vpop.permute.xlu0 %1820
  %1822 = vrot.lane.b32.xlu0 %v455, 104
  %v1823 = vpop.permute.xlu0 %1822
  %1824 = vrot.lane.b32.xlu0 %v458, 104
  %v1825 = vpop.permute.xlu0 %1824
  %1826 = vrot.lane.b32.xlu0 %v463, 104
  %v1827 = vpop.permute.xlu0 %1826
  %1828 = vrot.lane.b32.xlu0 %v466, 104
  %v1829 = vpop.permute.xlu0 %1828
  %1830 = vrot.lane.b32.xlu0 %v471, 104
  %v1831 = vpop.permute.xlu0 %1830
  %1832 = vrot.lane.b32.xlu0 %v474, 104
  %v1833 = vpop.permute.xlu0 %1832
  %1834 = vrot.lane.b32.xlu0 %v479, 104
  %v1835 = vpop.permute.xlu0 %1834
  %1836 = vrot.lane.b32.xlu0 %v482, 104
  %v1837 = vpop.permute.xlu0 %1836
  %1854 = vxpose.xlu0.b32.start [1/16] %v1807, 128
  %1855 = vxpose.xlu0.b32.cont [2/16] %v1809, 128
  %1856 = vxpose.xlu0.b32.cont [3/16] %v1811, 128
  %1857 = vxpose.xlu0.b32.cont [4/16] %v1813, 128
  %1858 = vxpose.xlu0.b32.cont [5/16] %v1815, 128
  %1859 = vxpose.xlu0.b32.cont [6/16] %v1817, 128
  %1860 = vxpose.xlu0.b32.cont [7/16] %v1819, 128
  %1861 = vxpose.xlu0.b32.cont [8/16] %v1821, 128
  %1862 = vxpose.xlu0.b32.cont [9/16] %v1823, 128
  %1863 = vxpose.xlu0.b32.cont [10/16] %v1825, 128
  %1864 = vxpose.xlu0.b32.cont [11/16] %v1827, 128
  %1865 = vxpose.xlu0.b32.cont [12/16] %v1829, 128
  %1866 = vxpose.xlu0.b32.cont [13/16] %v1831, 128
  %1867 = vxpose.xlu0.b32.cont [14/16] %v1833, 128
  %1868 = vxpose.xlu0.b32.cont [15/16] %v1835, 128
  %1869 = vxpose.xlu0.b32.end [16/16] %v1837, 128
  %v1870 = vpop.trf.xlu0
  %v1871 = vpop.trf.xlu0
  %v1872 = vpop.trf.xlu0
  %v1873 = vpop.trf.xlu0
  %v1874 = vpop.trf.xlu0
  %v1875 = vpop.trf.xlu0
  %v1876 = vpop.trf.xlu0
  %v1877 = vpop.trf.xlu0
  %v1878 = vpop.trf.xlu0
  %v1879 = vpop.trf.xlu0
  %v1880 = vpop.trf.xlu0
  %v1881 = vpop.trf.xlu0
  %v1882 = vpop.trf.xlu0
  %v1883 = vpop.trf.xlu0
  %v1884 = vpop.trf.xlu0
  %v1885 = vpop.trf.xlu0
  %v1886 = vpack.c.bf16 %v1870, %v1870
  %1887 = vrot.lane.b32.xlu0 %v517, 120
  %v1888 = vpop.permute.xlu0 %1887
  %1889 = vrot.lane.b32.xlu0 %v518, 120
  %v1890 = vpop.permute.xlu0 %1889
  %1891 = vrot.lane.b32.xlu0 %v519, 120
  %v1892 = vpop.permute.xlu0 %1891
  %1893 = vrot.lane.b32.xlu0 %v520, 120
  %v1894 = vpop.permute.xlu0 %1893
  %1895 = vrot.lane.b32.xlu0 %v521, 120
  %v1896 = vpop.permute.xlu0 %1895
  %1897 = vrot.lane.b32.xlu0 %v522, 120
  %v1898 = vpop.permute.xlu0 %1897
  %1899 = vrot.lane.b32.xlu0 %v523, 120
  %v1900 = vpop.permute.xlu0 %1899
  %1901 = vrot.lane.b32.xlu0 %v524, 120
  %v1902 = vpop.permute.xlu0 %1901
  %v1904 = vsel %vm622, %v1888, 0
  %v1907 = vsel %vm622, %v1890, 0
  %v1910 = vsel %vm622, %v1892, 0
  %v1913 = vsel %vm622, %v1894, 0
  %v1916 = vsel %vm622, %v1896, 0
  %v1919 = vsel %vm622, %v1898, 0
  %v1922 = vsel %vm622, %v1900, 0
  %v1925 = vsel %vm622, %v1902, 0
  %v1928 = vsel %vm647, %v1886, 0
  %1930 = vmatprep.subr.bf16.mxu0 0
  %1931 = vmatpush1.bf16.msra.mxu0 %v1928
  %1932 = vmatprep.subr.bf16.mxu0 0
  %1933 = vmatpush1.bf16.msra.mxu0 0
  %1934 = vmatprep.subr.bf16.mxu0 0
  %1935 = vmatpush1.bf16.msra.mxu0 0
  %1936 = vmatprep.subr.bf16.mxu0 0
  %1937 = vmatpush1.bf16.msra.mxu0 0
  %1938 = vmatprep.subr.bf16.mxu0 0
  %1939 = vmatpush1.bf16.msra.mxu0 0
  %1940 = vmatprep.subr.bf16.mxu0 0
  %1941 = vmatpush1.bf16.msra.mxu0 0
  %1942 = vmatprep.subr.bf16.mxu0 0
  %1943 = vmatpush1.bf16.msra.mxu0 0
  %1944 = vmatprep.subr.bf16.mxu0 0
  %1945 = vmatpush1.bf16.msra.mxu0 0
  %1946 = vmatprep.subr.bf16.mxu0 0
  %1947 = vmatpush1.bf16.msra.mxu0 0
  %1948 = vmatprep.subr.bf16.mxu0 0
  %1949 = vmatpush1.bf16.msra.mxu0 0
  %1950 = vmatprep.subr.bf16.mxu0 0
  %1951 = vmatpush1.bf16.msra.mxu0 0
  %1952 = vmatprep.subr.bf16.mxu0 0
  %1953 = vmatpush1.bf16.msra.mxu0 0
  %1954 = vmatprep.subr.bf16.mxu0 0
  %1955 = vmatpush1.bf16.msra.mxu0 0
  %1956 = vmatprep.subr.bf16.mxu0 0
  %1957 = vmatpush1.bf16.msra.mxu0 0
  %1958 = vmatprep.subr.bf16.mxu0 0
  %1959 = vmatpush1.bf16.msra.mxu0 0
  %1960 = vmatprep.subr.bf16.mxu0 0
  %1961 = vmatpush1.bf16.msra.mxu0 0
  %1962 = vmatprep.mubr.bf16.mxu0 0
  %1963 = vmatmul.mubr.bf16.gmra.mrb[0].mxu0 %v1904
  %v1964 = vpop.f32.mrb[0].mxu0
  %v1965 = vadd.f32 %v501, %v1964
  %v1966 = vpop.f32.mrb[0].mxu0
  %v1967 = vpop.f32.mrb[0].mxu0
  %v1968 = vadd.f32 %v502, %v1967
  %v1969 = vpop.f32.mrb[0].mxu0
  %1970 = vmatprep.mubr.bf16.mxu0 0
  %1971 = vmatmul.mubr.bf16.gmra.mrb[0].mxu0 %v1907
  %v1972 = vpop.f32.mrb[0].mxu0
  %v1973 = vadd.f32 %v503, %v1972
  %v1974 = vpop.f32.mrb[0].mxu0
  %v1975 = vpop.f32.mrb[0].mxu0
  %v1976 = vadd.f32 %v504, %v1975
  %v1977 = vpop.f32.mrb[0].mxu0
  %1978 = vmatprep.mubr.bf16.mxu0 0
  %1979 = vmatmul.mubr.bf16.gmra.mrb[0].mxu0 %v1910
  %v1980 = vpop.f32.mrb[0].mxu0
  %v1981 = vadd.f32 %v505, %v1980
  %v1982 = vpop.f32.mrb[0].mxu0
  %v1983 = vpop.f32.mrb[0].mxu0
  %v1984 = vadd.f32 %v506, %v1983
  %v1985 = vpop.f32.mrb[0].mxu0
  %1986 = vmatprep.mubr.bf16.mxu0 0
  %1987 = vmatmul.mubr.bf16.gmra.mrb[0].mxu0 %v1913
  %v1988 = vpop.f32.mrb[0].mxu0
  %v1989 = vadd.f32 %v507, %v1988
  %v1990 = vpop.f32.mrb[0].mxu0
  %v1991 = vpop.f32.mrb[0].mxu0
  %v1992 = vadd.f32 %v508, %v1991
  %v1993 = vpop.f32.mrb[0].mxu0
  %1994 = vmatprep.mubr.bf16.mxu0 0
  %1995 = vmatmul.mubr.bf16.gmra.mrb[0].mxu0 %v1916
  %v1996 = vpop.f32.mrb[0].mxu0
  %v1997 = vadd.f32 %v509, %v1996
  %v1998 = vpop.f32.mrb[0].mxu0
  %v1999 = vpop.f32.mrb[0].mxu0
  %v2000 = vadd.f32 %v510, %v1999
  %v2001 = vpop.f32.mrb[0].mxu0
  %2002 = vmatprep.mubr.bf16.mxu0 0
  %2003 = vmatmul.mubr.bf16.gmra.mrb[0].mxu0 %v1919
  %v2004 = vpop.f32.mrb[0].mxu0
  %v2005 = vadd.f32 %v511, %v2004
  %v2006 = vpop.f32.mrb[0].mxu0
  %v2007 = vpop.f32.mrb[0].mxu0
  %v2008 = vadd.f32 %v512, %v2007
  %v2009 = vpop.f32.mrb[0].mxu0
  %2010 = vmatprep.mubr.bf16.mxu0 0
  %2011 = vmatmul.mubr.bf16.gmra.mrb[0].mxu0 %v1922
  %v2012 = vpop.f32.mrb[0].mxu0
  %v2013 = vadd.f32 %v513, %v2012
  %v2014 = vpop.f32.mrb[0].mxu0
  %v2015 = vpop.f32.mrb[0].mxu0
  %v2016 = vadd.f32 %v514, %v2015
  %v2017 = vpop.f32.mrb[0].mxu0
  %2018 = vmatprep.mubr.bf16.mxu0 0
  %2019 = vmatmul.mubr.bf16.gmra.mrb[0].mxu0 %v1925
  %v2020 = vpop.f32.mrb[0].mxu0
  %v2021 = vadd.f32 %v515, %v2020
  %v2022 = vpop.f32.mrb[0].mxu0
  %v2023 = vpop.f32.mrb[0].mxu0
  %v2024 = vadd.f32 %v516, %v2023
  %v2025 = vpop.f32.mrb[0].mxu0
  %2026 = vdwg.mxu0
  %2027 = vmax.xlane.f32.xlu0 %v1965
  %v2028 = vpop.xlane.xlu0 %2027
  %2029 = vmax.xlane.f32.xlu0 %v1968
  %v2030 = vpop.xlane.xlu0 %2029
  %2031 = vmax.xlane.f32.xlu0 %v1973
  %v2032 = vpop.xlane.xlu0 %2031
  %2033 = vmax.xlane.f32.xlu0 %v1976
  %v2034 = vpop.xlane.xlu0 %2033
  %2035 = vmax.xlane.f32.xlu0 %v1981
  %v2036 = vpop.xlane.xlu0 %2035
  %2037 = vmax.xlane.f32.xlu0 %v1984
  %v2038 = vpop.xlane.xlu0 %2037
  %2039 = vmax.xlane.f32.xlu0 %v1989
  %v2040 = vpop.xlane.xlu0 %2039
  %2041 = vmax.xlane.f32.xlu0 %v1992
  %v2042 = vpop.xlane.xlu0 %2041
  %2043 = vmax.xlane.f32.xlu0 %v1997
  %v2044 = vpop.xlane.xlu0 %2043
  %2045 = vmax.xlane.f32.xlu0 %v2000
  %v2046 = vpop.xlane.xlu0 %2045
  %2047 = vmax.xlane.f32.xlu0 %v2005
  %v2048 = vpop.xlane.xlu0 %2047
  %2049 = vmax.xlane.f32.xlu0 %v2008
  %v2050 = vpop.xlane.xlu0 %2049
  %2051 = vmax.xlane.f32.xlu0 %v2013
  %v2052 = vpop.xlane.xlu0 %2051
  %2053 = vmax.xlane.f32.xlu0 %v2016
  %v2054 = vpop.xlane.xlu0 %2053
  %2055 = vmax.xlane.f32.xlu0 %v2021
  %v2056 = vpop.xlane.xlu0 %2055
  %2057 = vmax.xlane.f32.xlu0 %v2024
  %v2058 = vpop.xlane.xlu0 %2057
  %v2059 = vsub.f32 %v1965, %v2028
  %v2060 = vsub.f32 %v1968, %v2030
  %v2061 = vsub.f32 %v1973, %v2032
  %v2062 = vsub.f32 %v1976, %v2034
  %v2063 = vsub.f32 %v1981, %v2036
  %v2064 = vsub.f32 %v1984, %v2038
  %v2065 = vsub.f32 %v1989, %v2040
  %v2066 = vsub.f32 %v1992, %v2042
  %v2067 = vsub.f32 %v1997, %v2044
  %v2068 = vsub.f32 %v2000, %v2046
  %v2069 = vsub.f32 %v2005, %v2048
  %v2070 = vsub.f32 %v2008, %v2050
  %v2071 = vsub.f32 %v2013, %v2052
  %v2072 = vsub.f32 %v2016, %v2054
  %v2073 = vsub.f32 %v2021, %v2056
  %v2074 = vsub.f32 %v2024, %v2058
  %v2075 = vmul.f32 %v2059, 1.442695
  %v2076 = vpow.pop %v2075
  %v2077 = vmul.f32 %v2060, 1.442695
  %v2078 = vpow.pop %v2077
  %v2079 = vmul.f32 %v2061, 1.442695
  %v2080 = vpow.pop %v2079
  %v2081 = vmul.f32 %v2062, 1.442695
  %v2082 = vpow.pop %v2081
  %v2083 = vmul.f32 %v2063, 1.442695
  %v2084 = vpow.pop %v2083
  %v2085 = vmul.f32 %v2064, 1.442695
  %v2086 = vpow.pop %v2085
  %v2087 = vmul.f32 %v2065, 1.442695
  %v2088 = vpow.pop %v2087
  %v2089 = vmul.f32 %v2066, 1.442695
  %v2090 = vpow.pop %v2089
  %v2091 = vmul.f32 %v2067, 1.442695
  %v2092 = vpow.pop %v2091
  %v2093 = vmul.f32 %v2068, 1.442695
  %v2094 = vpow.pop %v2093
  %v2095 = vmul.f32 %v2069, 1.442695
  %v2096 = vpow.pop %v2095
  %v2097 = vmul.f32 %v2070, 1.442695
  %v2098 = vpow.pop %v2097
  %v2099 = vmul.f32 %v2071, 1.442695
  %v2100 = vpow.pop %v2099
  %v2101 = vmul.f32 %v2072, 1.442695
  %v2102 = vpow.pop %v2101
  %v2103 = vmul.f32 %v2073, 1.442695
  %v2104 = vpow.pop %v2103
  %v2105 = vmul.f32 %v2074, 1.442695
  %v2106 = vpow.pop %v2105
  %2107 = vadd.xlane.f32.xlu0 %v2076
  %v2108 = vpop.xlane.xlu0 %2107
  %2109 = vadd.xlane.f32.xlu0 %v2078
  %v2110 = vpop.xlane.xlu0 %2109
  %2111 = vadd.xlane.f32.xlu0 %v2080
  %v2112 = vpop.xlane.xlu0 %2111
  %2113 = vadd.xlane.f32.xlu0 %v2082
  %v2114 = vpop.xlane.xlu0 %2113
  %2115 = vadd.xlane.f32.xlu0 %v2084
  %v2116 = vpop.xlane.xlu0 %2115
  %2117 = vadd.xlane.f32.xlu0 %v2086
  %v2118 = vpop.xlane.xlu0 %2117
  %2119 = vadd.xlane.f32.xlu0 %v2088
  %v2120 = vpop.xlane.xlu0 %2119
  %2121 = vadd.xlane.f32.xlu0 %v2090
  %v2122 = vpop.xlane.xlu0 %2121
  %2123 = vadd.xlane.f32.xlu0 %v2092
  %v2124 = vpop.xlane.xlu0 %2123
  %2125 = vadd.xlane.f32.xlu0 %v2094
  %v2126 = vpop.xlane.xlu0 %2125
  %2127 = vadd.xlane.f32.xlu0 %v2096
  %v2128 = vpop.xlane.xlu0 %2127
  %2129 = vadd.xlane.f32.xlu0 %v2098
  %v2130 = vpop.xlane.xlu0 %2129
  %2131 = vadd.xlane.f32.xlu0 %v2100
  %v2132 = vpop.xlane.xlu0 %2131
  %2133 = vadd.xlane.f32.xlu0 %v2102
  %v2134 = vpop.xlane.xlu0 %2133
  %2135 = vadd.xlane.f32.xlu0 %v2104
  %v2136 = vpop.xlane.xlu0 %2135
  %2137 = vadd.xlane.f32.xlu0 %v2106
  %v2138 = vpop.xlane.xlu0 %2137
  %v2139 = vrcp.pop %v2108
  %v2140 = vrcp.pop %v2110
  %v2141 = vrcp.pop %v2112
  %v2142 = vrcp.pop %v2114
  %v2143 = vrcp.pop %v2116
  %v2144 = vrcp.pop %v2118
  %v2145 = vrcp.pop %v2120
  %v2146 = vrcp.pop %v2122
  %v2147 = vrcp.pop %v2124
  %v2148 = vrcp.pop %v2126
  %v2149 = vrcp.pop %v2128
  %v2150 = vrcp.pop %v2130
  %v2151 = vrcp.pop %v2132
  %v2152 = vrcp.pop %v2134
  %v2153 = vrcp.pop %v2136
  %v2154 = vrcp.pop %v2138
  %v2155 = vmul.f32 %v2076, %v2139
  %v2156 = vmul.f32 %v2078, %v2140
  %v2157 = vmul.f32 %v2080, %v2141
  %v2158 = vmul.f32 %v2082, %v2142
  %v2159 = vmul.f32 %v2084, %v2143
  %v2160 = vmul.f32 %v2086, %v2144
  %v2161 = vmul.f32 %v2088, %v2145
  %v2162 = vmul.f32 %v2090, %v2146
  %v2163 = vmul.f32 %v2092, %v2147
  %v2164 = vmul.f32 %v2094, %v2148
  %v2165 = vmul.f32 %v2096, %v2149
  %v2166 = vmul.f32 %v2098, %v2150
  %v2167 = vmul.f32 %v2100, %v2151
  %v2168 = vmul.f32 %v2102, %v2152
  %v2169 = vmul.f32 %v2104, %v2153
  %v2170 = vmul.f32 %v2106, %v2154
  %v2171 = vpack.c.bf16 %v2156, %v2155
  %v2172 = vpack.c.bf16 %v2158, %v2157
  %v2173 = vpack.c.bf16 %v2160, %v2159
  %v2174 = vpack.c.bf16 %v2162, %v2161
  %v2175 = vpack.c.bf16 %v2164, %v2163
  %v2176 = vpack.c.bf16 %v2166, %v2165
  %v2177 = vpack.c.bf16 %v2168, %v2167
  %v2178 = vpack.c.bf16 %v2170, %v2169
  %2179 = vrot.lane.b32.xlu0 %v900, 88
  %v2180 = vpop.permute.xlu0 %2179
  %2181 = vrot.lane.b32.xlu0 %v901, 88
  %v2182 = vpop.permute.xlu0 %2181
  %2183 = vrot.lane.b32.xlu0 %v902, 88
  %v2184 = vpop.permute.xlu0 %2183
  %2185 = vrot.lane.b32.xlu0 %v903, 88
  %v2186 = vpop.permute.xlu0 %2185
  %2187 = vrot.lane.b32.xlu0 %v904, 88
  %v2188 = vpop.permute.xlu0 %2187
  %2189 = vrot.lane.b32.xlu0 %v905, 88
  %v2190 = vpop.permute.xlu0 %2189
  %2191 = vrot.lane.b32.xlu0 %v906, 88
  %v2192 = vpop.permute.xlu0 %2191
  %2193 = vrot.lane.b32.xlu0 %v907, 88
  %v2194 = vpop.permute.xlu0 %2193
  %2203 = vmatprep.subr.bf16.mxu0 0
  %2204 = vmatpush1.bf16.msra.mxu0 %v2180
  %2205 = vmatprep.subr.bf16.mxu0 0
  %2206 = vmatpush1.bf16.msra.mxu0 %v2182
  %2207 = vmatprep.subr.bf16.mxu0 0
  %2208 = vmatpush1.bf16.msra.mxu0 %v2184
  %2209 = vmatprep.subr.bf16.mxu0 0
  %2210 = vmatpush1.bf16.msra.mxu0 %v2186
  %2211 = vmatprep.subr.bf16.mxu0 0
  %2212 = vmatpush1.bf16.msra.mxu0 %v2188
  %2213 = vmatprep.subr.bf16.mxu0 0
  %2214 = vmatpush1.bf16.msra.mxu0 %v2190
  %2215 = vmatprep.subr.bf16.mxu0 0
  %2216 = vmatpush1.bf16.msra.mxu0 %v2192
  %2217 = vmatprep.subr.bf16.mxu0 0
  %2218 = vmatpush1.bf16.msra.mxu0 %v2194
  %2219 = vmatprep.subr.bf16.mxu0 0
  %2220 = vmatpush1.bf16.msra.mxu0 0
  %2221 = vmatprep.subr.bf16.mxu0 0
  %2222 = vmatpush1.bf16.msra.mxu0 0
  %2223 = vmatprep.subr.bf16.mxu0 0
  %2224 = vmatpush1.bf16.msra.mxu0 0
  %2225 = vmatprep.subr.bf16.mxu0 0
  %2226 = vmatpush1.bf16.msra.mxu0 0
  %2227 = vmatprep.subr.bf16.mxu0 0
  %2228 = vmatpush1.bf16.msra.mxu0 0
  %2229 = vmatprep.subr.bf16.mxu0 0
  %2230 = vmatpush1.bf16.msra.mxu0 0
  %2231 = vmatprep.subr.bf16.mxu0 0
  %2232 = vmatpush1.bf16.msra.mxu0 0
  %2233 = vmatprep.subr.bf16.mxu0 0
  %2234 = vmatpush1.bf16.msra.mxu0 0
  %2235 = vmatprep.mubr.bf16.mxu0 0
  %2236 = vmatmul.mubr.bf16.gmra.mrb[0].mxu0 %v2171
  %v2237 = vpop.f32.mrb[0].mxu0
  %v2238 = vadd.f32 0.0, %v2237
  %v2239 = vpop.f32.mrb[0].mxu0
  %v2240 = vpop.f32.mrb[0].mxu0
  %v2241 = vadd.f32 0.0, %v2240
  %v2242 = vpop.f32.mrb[0].mxu0
  %2243 = vmatprep.mubr.bf16.mxu0 0
  %2244 = vmatmul.mubr.bf16.gmra.mrb[0].mxu0 %v2172
  %v2245 = vpop.f32.mrb[0].mxu0
  %v2246 = vadd.f32 0.0, %v2245
  %v2247 = vpop.f32.mrb[0].mxu0
  %v2248 = vpop.f32.mrb[0].mxu0
  %v2249 = vadd.f32 0.0, %v2248
  %v2250 = vpop.f32.mrb[0].mxu0
  %2251 = vmatprep.mubr.bf16.mxu0 0
  %2252 = vmatmul.mubr.bf16.gmra.mrb[0].mxu0 %v2173
  %v2253 = vpop.f32.mrb[0].mxu0
  %v2254 = vadd.f32 0.0, %v2253
  %v2255 = vpop.f32.mrb[0].mxu0
  %v2256 = vpop.f32.mrb[0].mxu0
  %v2257 = vadd.f32 0.0, %v2256
  %v2258 = vpop.f32.mrb[0].mxu0
  %2259 = vmatprep.mubr.bf16.mxu0 0
  %2260 = vmatmul.mubr.bf16.gmra.mrb[0].mxu0 %v2174
  %v2261 = vpop.f32.mrb[0].mxu0
  %v2262 = vadd.f32 0.0, %v2261
  %v2263 = vpop.f32.mrb[0].mxu0
  %v2264 = vpop.f32.mrb[0].mxu0
  %v2265 = vadd.f32 0.0, %v2264
  %v2266 = vpop.f32.mrb[0].mxu0
  %2267 = vmatprep.mubr.bf16.mxu0 0
  %2268 = vmatmul.mubr.bf16.gmra.mrb[0].mxu0 %v2175
  %v2269 = vpop.f32.mrb[0].mxu0
  %v2270 = vadd.f32 0.0, %v2269
  %v2271 = vpop.f32.mrb[0].mxu0
  %v2272 = vpop.f32.mrb[0].mxu0
  %v2273 = vadd.f32 0.0, %v2272
  %v2274 = vpop.f32.mrb[0].mxu0
  %2275 = vmatprep.mubr.bf16.mxu0 0
  %2276 = vmatmul.mubr.bf16.gmra.mrb[0].mxu0 %v2176
  %v2277 = vpop.f32.mrb[0].mxu0
  %v2278 = vadd.f32 0.0, %v2277
  %v2279 = vpop.f32.mrb[0].mxu0
  %v2280 = vpop.f32.mrb[0].mxu0
  %v2281 = vadd.f32 0.0, %v2280
  %v2282 = vpop.f32.mrb[0].mxu0
  %2283 = vmatprep.mubr.bf16.mxu0 0
  %2284 = vmatmul.mubr.bf16.gmra.mrb[0].mxu0 %v2177
  %v2285 = vpop.f32.mrb[0].mxu0
  %v2286 = vadd.f32 0.0, %v2285
  %v2287 = vpop.f32.mrb[0].mxu0
  %v2288 = vpop.f32.mrb[0].mxu0
  %v2289 = vadd.f32 0.0, %v2288
  %v2290 = vpop.f32.mrb[0].mxu0
  %2291 = vmatprep.mubr.bf16.mxu0 0
  %2292 = vmatmul.mubr.bf16.gmra.mrb[0].mxu0 %v2178
  %v2293 = vpop.f32.mrb[0].mxu0
  %v2294 = vadd.f32 0.0, %v2293
  %v2295 = vpop.f32.mrb[0].mxu0
  %v2296 = vpop.f32.mrb[0].mxu0
  %v2297 = vadd.f32 0.0, %v2296
  %v2298 = vpop.f32.mrb[0].mxu0
  %2299 = vdwg.mxu0
  %s2300 = scalar_lea.vmem %s6, 4
  %v2301 = vld [vmem:[%s2300] sm:$0x3]
  %v2302 = vpack.c.bf16 %v2241, %v2238
  %v2303 = vpack.c.bf16 %v2249, %v2246
  %v2304 = vpack.c.bf16 %v2257, %v2254
  %v2305 = vpack.c.bf16 %v2265, %v2262
  %v2306 = vpack.c.bf16 %v2273, %v2270
  %v2307 = vpack.c.bf16 %v2281, %v2278
  %v2308 = vpack.c.bf16 %v2289, %v2286
  %v2309 = vpack.c.bf16 %v2297, %v2294
  %v2311 = vsel %vm622, %v2302, 0
  %v2314 = vsel %vm622, %v2303, 0
  %v2317 = vsel %vm622, %v2304, 0
  %v2320 = vsel %vm622, %v2305, 0
  %v2323 = vsel %vm622, %v2306, 0
  %v2326 = vsel %vm622, %v2307, 0
  %v2329 = vsel %vm622, %v2308, 0
  %v2332 = vsel %vm622, %v2309, 0
  %v2335 = vsel %vm647, %v2301, 0
  %2337 = vmatprep.subr.bf16.mxu0 0
  %2338 = vmatpush1.bf16.msra.mxu0 %v2335
  %2339 = vmatprep.subr.bf16.mxu0 0
  %2340 = vmatpush1.bf16.msra.mxu0 0
  %2341 = vmatprep.subr.bf16.mxu0 0
  %2342 = vmatpush1.bf16.msra.mxu0 0
  %2343 = vmatprep.subr.bf16.mxu0 0
  %2344 = vmatpush1.bf16.msra.mxu0 0
  %2345 = vmatprep.subr.bf16.mxu0 0
  %2346 = vmatpush1.bf16.msra.mxu0 0
  %2347 = vmatprep.subr.bf16.mxu0 0
  %2348 = vmatpush1.bf16.msra.mxu0 0
  %2349 = vmatprep.subr.bf16.mxu0 0
  %2350 = vmatpush1.bf16.msra.mxu0 0
  %2351 = vmatprep.subr.bf16.mxu0 0
  %2352 = vmatpush1.bf16.msra.mxu0 0
  %2353 = vmatprep.subr.bf16.mxu0 0
  %2354 = vmatpush1.bf16.msra.mxu0 0
  %2355 = vmatprep.subr.bf16.mxu0 0
  %2356 = vmatpush1.bf16.msra.mxu0 0
  %2357 = vmatprep.subr.bf16.mxu0 0
  %2358 = vmatpush1.bf16.msra.mxu0 0
  %2359 = vmatprep.subr.bf16.mxu0 0
  %2360 = vmatpush1.bf16.msra.mxu0 0
  %2361 = vmatprep.subr.bf16.mxu0 0
  %2362 = vmatpush1.bf16.msra.mxu0 0
  %2363 = vmatprep.subr.bf16.mxu0 0
  %2364 = vmatpush1.bf16.msra.mxu0 0
  %2365 = vmatprep.subr.bf16.mxu0 0
  %2366 = vmatpush1.bf16.msra.mxu0 0
  %2367 = vmatprep.subr.bf16.mxu0 0
  %2368 = vmatpush1.bf16.msra.mxu0 0
  %2369 = vmatprep.mubr.bf16.mxu0 0
  %2370 = vmatmul.mubr.bf16.gmra.mrb[0].mxu0 %v2311
  %v2371 = vpop.f32.mrb[0].mxu0
  %v2372 = vadd.f32 0.0, %v2371
  %v2373 = vpop.f32.mrb[0].mxu0
  %v2374 = vpop.f32.mrb[0].mxu0
  %v2375 = vadd.f32 0.0, %v2374
  %v2376 = vpop.f32.mrb[0].mxu0
  %2377 = vmatprep.mubr.bf16.mxu0 0
  %2378 = vmatmul.mubr.bf16.gmra.mrb[0].mxu0 %v2314
  %v2379 = vpop.f32.mrb[0].mxu0
  %v2380 = vadd.f32 0.0, %v2379
  %v2381 = vpop.f32.mrb[0].mxu0
  %v2382 = vpop.f32.mrb[0].mxu0
  %v2383 = vadd.f32 0.0, %v2382
  %v2384 = vpop.f32.mrb[0].mxu0
  %2385 = vmatprep.mubr.bf16.mxu0 0
  %2386 = vmatmul.mubr.bf16.gmra.mrb[0].mxu0 %v2317
  %v2387 = vpop.f32.mrb[0].mxu0
  %v2388 = vadd.f32 0.0, %v2387
  %v2389 = vpop.f32.mrb[0].mxu0
  %v2390 = vpop.f32.mrb[0].mxu0
  %v2391 = vadd.f32 0.0, %v2390
  %v2392 = vpop.f32.mrb[0].mxu0
  %2393 = vmatprep.mubr.bf16.mxu0 0
  %2394 = vmatmul.mubr.bf16.gmra.mrb[0].mxu0 %v2320
  %v2395 = vpop.f32.mrb[0].mxu0
  %v2396 = vadd.f32 0.0, %v2395
  %v2397 = vpop.f32.mrb[0].mxu0
  %v2398 = vpop.f32.mrb[0].mxu0
  %v2399 = vadd.f32 0.0, %v2398
  %v2400 = vpop.f32.mrb[0].mxu0
  %2401 = vmatprep.mubr.bf16.mxu0 0
  %2402 = vmatmul.mubr.bf16.gmra.mrb[0].mxu0 %v2323
  %v2403 = vpop.f32.mrb[0].mxu0
  %v2404 = vadd.f32 0.0, %v2403
  %v2405 = vpop.f32.mrb[0].mxu0
  %v2406 = vpop.f32.mrb[0].mxu0
  %v2407 = vadd.f32 0.0, %v2406
  %v2408 = vpop.f32.mrb[0].mxu0
  %2409 = vmatprep.mubr.bf16.mxu0 0
  %2410 = vmatmul.mubr.bf16.gmra.mrb[0].mxu0 %v2326
  %v2411 = vpop.f32.mrb[0].mxu0
  %v2412 = vadd.f32 0.0, %v2411
  %v2413 = vpop.f32.mrb[0].mxu0
  %v2414 = vpop.f32.mrb[0].mxu0
  %v2415 = vadd.f32 0.0, %v2414
  %v2416 = vpop.f32.mrb[0].mxu0
  %2417 = vmatprep.mubr.bf16.mxu0 0
  %2418 = vmatmul.mubr.bf16.gmra.mrb[0].mxu0 %v2329
  %v2419 = vpop.f32.mrb[0].mxu0
  %v2420 = vadd.f32 0.0, %v2419
  %v2421 = vpop.f32.mrb[0].mxu0
  %v2422 = vpop.f32.mrb[0].mxu0
  %v2423 = vadd.f32 0.0, %v2422
  %v2424 = vpop.f32.mrb[0].mxu0
  %2425 = vmatprep.mubr.bf16.mxu0 0
  %2426 = vmatmul.mubr.bf16.gmra.mrb[0].mxu0 %v2332
  %v2427 = vpop.f32.mrb[0].mxu0
  %v2428 = vadd.f32 0.0, %v2427
  %v2429 = vpop.f32.mrb[0].mxu0
  %v2430 = vpop.f32.mrb[0].mxu0
  %v2431 = vadd.f32 0.0, %v2430
  %v2432 = vpop.f32.mrb[0].mxu0
  %2433 = vdwg.mxu0
  %v2434 = vadd.f32 %v1744, %v2372
  %v2435 = vadd.f32 %v1747, %v2375
  %v2436 = vadd.f32 %v1752, %v2380
  %v2437 = vadd.f32 %v1755, %v2383
  %v2438 = vadd.f32 %v1760, %v2388
  %v2439 = vadd.f32 %v1763, %v2391
  %v2440 = vadd.f32 %v1768, %v2396
  %v2441 = vadd.f32 %v1771, %v2399
  %v2442 = vadd.f32 %v1776, %v2404
  %v2443 = vadd.f32 %v1779, %v2407
  %v2444 = vadd.f32 %v1784, %v2412
  %v2445 = vadd.f32 %v1787, %v2415
  %v2446 = vadd.f32 %v1792, %v2420
  %v2447 = vadd.f32 %v1795, %v2423
  %v2448 = vadd.f32 %v1800, %v2428
  %v2449 = vadd.f32 %v1803, %v2431
  %2450 = vrot.lane.b32.xlu0 %v423, 100
  %v2451 = vpop.permute.xlu0 %2450
  %2452 = vrot.lane.b32.xlu0 %v426, 100
  %v2453 = vpop.permute.xlu0 %2452
  %2454 = vrot.lane.b32.xlu0 %v431, 100
  %v2455 = vpop.permute.xlu0 %2454
  %2456 = vrot.lane.b32.xlu0 %v434, 100
  %v2457 = vpop.permute.xlu0 %2456
  %2458 = vrot.lane.b32.xlu0 %v439, 100
  %v2459 = vpop.permute.xlu0 %2458
  %2460 = vrot.lane.b32.xlu0 %v442, 100
  %v2461 = vpop.permute.xlu0 %2460
  %2462 = vrot.lane.b32.xlu0 %v447, 100
  %v2463 = vpop.permute.xlu0 %2462
  %2464 = vrot.lane.b32.xlu0 %v450, 100
  %v2465 = vpop.permute.xlu0 %2464
  %2466 = vrot.lane.b32.xlu0 %v455, 100
  %v2467 = vpop.permute.xlu0 %2466
  %2468 = vrot.lane.b32.xlu0 %v458, 100
  %v2469 = vpop.permute.xlu0 %2468
  %2470 = vrot.lane.b32.xlu0 %v463, 100
  %v2471 = vpop.permute.xlu0 %2470
  %2472 = vrot.lane.b32.xlu0 %v466, 100
  %v2473 = vpop.permute.xlu0 %2472
  %2474 = vrot.lane.b32.xlu0 %v471, 100
  %v2475 = vpop.permute.xlu0 %2474
  %2476 = vrot.lane.b32.xlu0 %v474, 100
  %v2477 = vpop.permute.xlu0 %2476
  %2478 = vrot.lane.b32.xlu0 %v479, 100
  %v2479 = vpop.permute.xlu0 %2478
  %2480 = vrot.lane.b32.xlu0 %v482, 100
  %v2481 = vpop.permute.xlu0 %2480
  %2498 = vxpose.xlu0.b32.start [1/16] %v2451, 128
  %2499 = vxpose.xlu0.b32.cont [2/16] %v2453, 128
  %2500 = vxpose.xlu0.b32.cont [3/16] %v2455, 128
  %2501 = vxpose.xlu0.b32.cont [4/16] %v2457, 128
  %2502 = vxpose.xlu0.b32.cont [5/16] %v2459, 128
  %2503 = vxpose.xlu0.b32.cont [6/16] %v2461, 128
  %2504 = vxpose.xlu0.b32.cont [7/16] %v2463, 128
  %2505 = vxpose.xlu0.b32.cont [8/16] %v2465, 128
  %2506 = vxpose.xlu0.b32.cont [9/16] %v2467, 128
  %2507 = vxpose.xlu0.b32.cont [10/16] %v2469, 128
  %2508 = vxpose.xlu0.b32.cont [11/16] %v2471, 128
  %2509 = vxpose.xlu0.b32.cont [12/16] %v2473, 128
  %2510 = vxpose.xlu0.b32.cont [13/16] %v2475, 128
  %2511 = vxpose.xlu0.b32.cont [14/16] %v2477, 128
  %2512 = vxpose.xlu0.b32.cont [15/16] %v2479, 128
  %2513 = vxpose.xlu0.b32.end [16/16] %v2481, 128
  %v2514 = vpop.trf.xlu0
  %v2515 = vpop.trf.xlu0
  %v2516 = vpop.trf.xlu0
  %v2517 = vpop.trf.xlu0
  %v2518 = vpop.trf.xlu0
  %v2519 = vpop.trf.xlu0
  %v2520 = vpop.trf.xlu0
  %v2521 = vpop.trf.xlu0
  %v2522 = vpop.trf.xlu0
  %v2523 = vpop.trf.xlu0
  %v2524 = vpop.trf.xlu0
  %v2525 = vpop.trf.xlu0
  %v2526 = vpop.trf.xlu0
  %v2527 = vpop.trf.xlu0
  %v2528 = vpop.trf.xlu0
  %v2529 = vpop.trf.xlu0
  %v2530 = vpack.c.bf16 %v2514, %v2514
  %2531 = vrot.lane.b32.xlu0 %v517, 116
  %v2532 = vpop.permute.xlu0 %2531
  %2533 = vrot.lane.b32.xlu0 %v518, 116
  %v2534 = vpop.permute.xlu0 %2533
  %2535 = vrot.lane.b32.xlu0 %v519, 116
  %v2536 = vpop.permute.xlu0 %2535
  %2537 = vrot.lane.b32.xlu0 %v520, 116
  %v2538 = vpop.permute.xlu0 %2537
  %2539 = vrot.lane.b32.xlu0 %v521, 116
  %v2540 = vpop.permute.xlu0 %2539
  %2541 = vrot.lane.b32.xlu0 %v522, 116
  %v2542 = vpop.permute.xlu0 %2541
  %2543 = vrot.lane.b32.xlu0 %v523, 116
  %v2544 = vpop.permute.xlu0 %2543
  %2545 = vrot.lane.b32.xlu0 %v524, 116
  %v2546 = vpop.permute.xlu0 %2545
  %v2548 = vsel %vm622, %v2532, 0
  %v2551 = vsel %vm622, %v2534, 0
  %v2554 = vsel %vm622, %v2536, 0
  %v2557 = vsel %vm622, %v2538, 0
  %v2560 = vsel %vm622, %v2540, 0
  %v2563 = vsel %vm622, %v2542, 0
  %v2566 = vsel %vm622, %v2544, 0
  %v2569 = vsel %vm622, %v2546, 0
  %v2572 = vsel %vm647, %v2530, 0
  %2574 = vmatprep.subr.bf16.mxu0 0
  %2575 = vmatpush1.bf16.msra.mxu0 %v2572
  %2576 = vmatprep.subr.bf16.mxu0 0
  %2577 = vmatpush1.bf16.msra.mxu0 0
  %2578 = vmatprep.subr.bf16.mxu0 0
  %2579 = vmatpush1.bf16.msra.mxu0 0
  %2580 = vmatprep.subr.bf16.mxu0 0
  %2581 = vmatpush1.bf16.msra.mxu0 0
  %2582 = vmatprep.subr.bf16.mxu0 0
  %2583 = vmatpush1.bf16.msra.mxu0 0
  %2584 = vmatprep.subr.bf16.mxu0 0
  %2585 = vmatpush1.bf16.msra.mxu0 0
  %2586 = vmatprep.subr.bf16.mxu0 0
  %2587 = vmatpush1.bf16.msra.mxu0 0
  %2588 = vmatprep.subr.bf16.mxu0 0
  %2589 = vmatpush1.bf16.msra.mxu0 0
  %2590 = vmatprep.subr.bf16.mxu0 0
  %2591 = vmatpush1.bf16.msra.mxu0 0
  %2592 = vmatprep.subr.bf16.mxu0 0
  %2593 = vmatpush1.bf16.msra.mxu0 0
  %2594 = vmatprep.subr.bf16.mxu0 0
  %2595 = vmatpush1.bf16.msra.mxu0 0
  %2596 = vmatprep.subr.bf16.mxu0 0
  %2597 = vmatpush1.bf16.msra.mxu0 0
  %2598 = vmatprep.subr.bf16.mxu0 0
  %2599 = vmatpush1.bf16.msra.mxu0 0
  %2600 = vmatprep.subr.bf16.mxu0 0
  %2601 = vmatpush1.bf16.msra.mxu0 0
  %2602 = vmatprep.subr.bf16.mxu0 0
  %2603 = vmatpush1.bf16.msra.mxu0 0
  %2604 = vmatprep.subr.bf16.mxu0 0
  %2605 = vmatpush1.bf16.msra.mxu0 0
  %2606 = vmatprep.mubr.bf16.mxu0 0
  %2607 = vmatmul.mubr.bf16.gmra.mrb[0].mxu0 %v2548
  %v2608 = vpop.f32.mrb[0].mxu0
  %v2609 = vadd.f32 %v501, %v2608
  %v2610 = vpop.f32.mrb[0].mxu0
  %v2611 = vpop.f32.mrb[0].mxu0
  %v2612 = vadd.f32 %v502, %v2611
  %v2613 = vpop.f32.mrb[0].mxu0
  %2614 = vmatprep.mubr.bf16.mxu0 0
  %2615 = vmatmul.mubr.bf16.gmra.mrb[0].mxu0 %v2551
  %v2616 = vpop.f32.mrb[0].mxu0
  %v2617 = vadd.f32 %v503, %v2616
  %v2618 = vpop.f32.mrb[0].mxu0
  %v2619 = vpop.f32.mrb[0].mxu0
  %v2620 = vadd.f32 %v504, %v2619
  %v2621 = vpop.f32.mrb[0].mxu0
  %2622 = vmatprep.mubr.bf16.mxu0 0
  %2623 = vmatmul.mubr.bf16.gmra.mrb[0].mxu0 %v2554
  %v2624 = vpop.f32.mrb[0].mxu0
  %v2625 = vadd.f32 %v505, %v2624
  %v2626 = vpop.f32.mrb[0].mxu0
  %v2627 = vpop.f32.mrb[0].mxu0
  %v2628 = vadd.f32 %v506, %v2627
  %v2629 = vpop.f32.mrb[0].mxu0
  %2630 = vmatprep.mubr.bf16.mxu0 0
  %2631 = vmatmul.mubr.bf16.gmra.mrb[0].mxu0 %v2557
  %v2632 = vpop.f32.mrb[0].mxu0
  %v2633 = vadd.f32 %v507, %v2632
  %v2634 = vpop.f32.mrb[0].mxu0
  %v2635 = vpop.f32.mrb[0].mxu0
  %v2636 = vadd.f32 %v508, %v2635
  %v2637 = vpop.f32.mrb[0].mxu0
  %2638 = vmatprep.mubr.bf16.mxu0 0
  %2639 = vmatmul.mubr.bf16.gmra.mrb[0].mxu0 %v2560
  %v2640 = vpop.f32.mrb[0].mxu0
  %v2641 = vadd.f32 %v509, %v2640
  %v2642 = vpop.f32.mrb[0].mxu0
  %v2643 = vpop.f32.mrb[0].mxu0
  %v2644 = vadd.f32 %v510, %v2643
  %v2645 = vpop.f32.mrb[0].mxu0
  %2646 = vmatprep.mubr.bf16.mxu0 0
  %2647 = vmatmul.mubr.bf16.gmra.mrb[0].mxu0 %v2563
  %v2648 = vpop.f32.mrb[0].mxu0
  %v2649 = vadd.f32 %v511, %v2648
  %v2650 = vpop.f32.mrb[0].mxu0
  %v2651 = vpop.f32.mrb[0].mxu0
  %v2652 = vadd.f32 %v512, %v2651
  %v2653 = vpop.f32.mrb[0].mxu0
  %2654 = vmatprep.mubr.bf16.mxu0 0
  %2655 = vmatmul.mubr.bf16.gmra.mrb[0].mxu0 %v2566
  %v2656 = vpop.f32.mrb[0].mxu0
  %v2657 = vadd.f32 %v513, %v2656
  %v2658 = vpop.f32.mrb[0].mxu0
  %v2659 = vpop.f32.mrb[0].mxu0
  %v2660 = vadd.f32 %v514, %v2659
  %v2661 = vpop.f32.mrb[0].mxu0
  %2662 = vmatprep.mubr.bf16.mxu0 0
  %2663 = vmatmul.mubr.bf16.gmra.mrb[0].mxu0 %v2569
  %v2664 = vpop.f32.mrb[0].mxu0
  %v2665 = vadd.f32 %v515, %v2664
  %v2666 = vpop.f32.mrb[0].mxu0
  %v2667 = vpop.f32.mrb[0].mxu0
  %v2668 = vadd.f32 %v516, %v2667
  %v2669 = vpop.f32.mrb[0].mxu0
  %2670 = vdwg.mxu0
  %2671 = vmax.xlane.f32.xlu0 %v2609
  %v2672 = vpop.xlane.xlu0 %2671
  %2673 = vmax.xlane.f32.xlu0 %v2612
  %v2674 = vpop.xlane.xlu0 %2673
  %2675 = vmax.xlane.f32.xlu0 %v2617
  %v2676 = vpop.xlane.xlu0 %2675
  %2677 = vmax.xlane.f32.xlu0 %v2620
  %v2678 = vpop.xlane.xlu0 %2677
  %2679 = vmax.xlane.f32.xlu0 %v2625
  %v2680 = vpop.xlane.xlu0 %2679
  %2681 = vmax.xlane.f32.xlu0 %v2628
  %v2682 = vpop.xlane.xlu0 %2681
  %2683 = vmax.xlane.f32.xlu0 %v2633
  %v2684 = vpop.xlane.xlu0 %2683
  %2685 = vmax.xlane.f32.xlu0 %v2636
  %v2686 = vpop.xlane.xlu0 %2685
  %2687 = vmax.xlane.f32.xlu0 %v2641
  %v2688 = vpop.xlane.xlu0 %2687
  %2689 = vmax.xlane.f32.xlu0 %v2644
  %v2690 = vpop.xlane.xlu0 %2689
  %2691 = vmax.xlane.f32.xlu0 %v2649
  %v2692 = vpop.xlane.xlu0 %2691
  %2693 = vmax.xlane.f32.xlu0 %v2652
  %v2694 = vpop.xlane.xlu0 %2693
  %2695 = vmax.xlane.f32.xlu0 %v2657
  %v2696 = vpop.xlane.xlu0 %2695
  %2697 = vmax.xlane.f32.xlu0 %v2660
  %v2698 = vpop.xlane.xlu0 %2697
  %2699 = vmax.xlane.f32.xlu0 %v2665
  %v2700 = vpop.xlane.xlu0 %2699
  %2701 = vmax.xlane.f32.xlu0 %v2668
  %v2702 = vpop.xlane.xlu0 %2701
  %v2703 = vsub.f32 %v2609, %v2672
  %v2704 = vsub.f32 %v2612, %v2674
  %v2705 = vsub.f32 %v2617, %v2676
  %v2706 = vsub.f32 %v2620, %v2678
  %v2707 = vsub.f32 %v2625, %v2680
  %v2708 = vsub.f32 %v2628, %v2682
  %v2709 = vsub.f32 %v2633, %v2684
  %v2710 = vsub.f32 %v2636, %v2686
  %v2711 = vsub.f32 %v2641, %v2688
  %v2712 = vsub.f32 %v2644, %v2690
  %v2713 = vsub.f32 %v2649, %v2692
  %v2714 = vsub.f32 %v2652, %v2694
  %v2715 = vsub.f32 %v2657, %v2696
  %v2716 = vsub.f32 %v2660, %v2698
  %v2717 = vsub.f32 %v2665, %v2700
  %v2718 = vsub.f32 %v2668, %v2702
  %v2719 = vmul.f32 %v2703, 1.442695
  %v2720 = vpow.pop %v2719
  %v2721 = vmul.f32 %v2704, 1.442695
  %v2722 = vpow.pop %v2721
  %v2723 = vmul.f32 %v2705, 1.442695
  %v2724 = vpow.pop %v2723
  %v2725 = vmul.f32 %v2706, 1.442695
  %v2726 = vpow.pop %v2725
  %v2727 = vmul.f32 %v2707, 1.442695
  %v2728 = vpow.pop %v2727
  %v2729 = vmul.f32 %v2708, 1.442695
  %v2730 = vpow.pop %v2729
  %v2731 = vmul.f32 %v2709, 1.442695
  %v2732 = vpow.pop %v2731
  %v2733 = vmul.f32 %v2710, 1.442695
  %v2734 = vpow.pop %v2733
  %v2735 = vmul.f32 %v2711, 1.442695
  %v2736 = vpow.pop %v2735
  %v2737 = vmul.f32 %v2712, 1.442695
  %v2738 = vpow.pop %v2737
  %v2739 = vmul.f32 %v2713, 1.442695
  %v2740 = vpow.pop %v2739
  %v2741 = vmul.f32 %v2714, 1.442695
  %v2742 = vpow.pop %v2741
  %v2743 = vmul.f32 %v2715, 1.442695
  %v2744 = vpow.pop %v2743
  %v2745 = vmul.f32 %v2716, 1.442695
  %v2746 = vpow.pop %v2745
  %v2747 = vmul.f32 %v2717, 1.442695
  %v2748 = vpow.pop %v2747
  %v2749 = vmul.f32 %v2718, 1.442695
  %v2750 = vpow.pop %v2749
  %2751 = vadd.xlane.f32.xlu0 %v2720
  %v2752 = vpop.xlane.xlu0 %2751
  %2753 = vadd.xlane.f32.xlu0 %v2722
  %v2754 = vpop.xlane.xlu0 %2753
  %2755 = vadd.xlane.f32.xlu0 %v2724
  %v2756 = vpop.xlane.xlu0 %2755
  %2757 = vadd.xlane.f32.xlu0 %v2726
  %v2758 = vpop.xlane.xlu0 %2757
  %2759 = vadd.xlane.f32.xlu0 %v2728
  %v2760 = vpop.xlane.xlu0 %2759
  %2761 = vadd.xlane.f32.xlu0 %v2730
  %v2762 = vpop.xlane.xlu0 %2761
  %2763 = vadd.xlane.f32.xlu0 %v2732
  %v2764 = vpop.xlane.xlu0 %2763
  %2765 = vadd.xlane.f32.xlu0 %v2734
  %v2766 = vpop.xlane.xlu0 %2765
  %2767 = vadd.xlane.f32.xlu0 %v2736
  %v2768 = vpop.xlane.xlu0 %2767
  %2769 = vadd.xlane.f32.xlu0 %v2738
  %v2770 = vpop.xlane.xlu0 %2769
  %2771 = vadd.xlane.f32.xlu0 %v2740
  %v2772 = vpop.xlane.xlu0 %2771
  %2773 = vadd.xlane.f32.xlu0 %v2742
  %v2774 = vpop.xlane.xlu0 %2773
  %2775 = vadd.xlane.f32.xlu0 %v2744
  %v2776 = vpop.xlane.xlu0 %2775
  %2777 = vadd.xlane.f32.xlu0 %v2746
  %v2778 = vpop.xlane.xlu0 %2777
  %2779 = vadd.xlane.f32.xlu0 %v2748
  %v2780 = vpop.xlane.xlu0 %2779
  %2781 = vadd.xlane.f32.xlu0 %v2750
  %v2782 = vpop.xlane.xlu0 %2781
  %v2783 = vrcp.pop %v2752
  %v2784 = vrcp.pop %v2754
  %v2785 = vrcp.pop %v2756
  %v2786 = vrcp.pop %v2758
  %v2787 = vrcp.pop %v2760
  %v2788 = vrcp.pop %v2762
  %v2789 = vrcp.pop %v2764
  %v2790 = vrcp.pop %v2766
  %v2791 = vrcp.pop %v2768
  %v2792 = vrcp.pop %v2770
  %v2793 = vrcp.pop %v2772
  %v2794 = vrcp.pop %v2774
  %v2795 = vrcp.pop %v2776
  %v2796 = vrcp.pop %v2778
  %v2797 = vrcp.pop %v2780
  %v2798 = vrcp.pop %v2782
  %v2799 = vmul.f32 %v2720, %v2783
  %v2800 = vmul.f32 %v2722, %v2784
  %v2801 = vmul.f32 %v2724, %v2785
  %v2802 = vmul.f32 %v2726, %v2786
  %v2803 = vmul.f32 %v2728, %v2787
  %v2804 = vmul.f32 %v2730, %v2788
  %v2805 = vmul.f32 %v2732, %v2789
  %v2806 = vmul.f32 %v2734, %v2790
  %v2807 = vmul.f32 %v2736, %v2791
  %v2808 = vmul.f32 %v2738, %v2792
  %v2809 = vmul.f32 %v2740, %v2793
  %v2810 = vmul.f32 %v2742, %v2794
  %v2811 = vmul.f32 %v2744, %v2795
  %v2812 = vmul.f32 %v2746, %v2796
  %v2813 = vmul.f32 %v2748, %v2797
  %v2814 = vmul.f32 %v2750, %v2798
  %v2815 = vpack.c.bf16 %v2800, %v2799
  %v2816 = vpack.c.bf16 %v2802, %v2801
  %v2817 = vpack.c.bf16 %v2804, %v2803
  %v2818 = vpack.c.bf16 %v2806, %v2805
  %v2819 = vpack.c.bf16 %v2808, %v2807
  %v2820 = vpack.c.bf16 %v2810, %v2809
  %v2821 = vpack.c.bf16 %v2812, %v2811
  %v2822 = vpack.c.bf16 %v2814, %v2813
  %2823 = vrot.lane.b32.xlu0 %v900, 84
  %v2824 = vpop.permute.xlu0 %2823
  %2825 = vrot.lane.b32.xlu0 %v901, 84
  %v2826 = vpop.permute.xlu0 %2825
  %2827 = vrot.lane.b32.xlu0 %v902, 84
  %v2828 = vpop.permute.xlu0 %2827
  %2829 = vrot.lane.b32.xlu0 %v903, 84
  %v2830 = vpop.permute.xlu0 %2829
  %2831 = vrot.lane.b32.xlu0 %v904, 84
  %v2832 = vpop.permute.xlu0 %2831
  %2833 = vrot.lane.b32.xlu0 %v905, 84
  %v2834 = vpop.permute.xlu0 %2833
  %2835 = vrot.lane.b32.xlu0 %v906, 84
  %v2836 = vpop.permute.xlu0 %2835
  %2837 = vrot.lane.b32.xlu0 %v907, 84
  %v2838 = vpop.permute.xlu0 %2837
  %2847 = vmatprep.subr.bf16.mxu0 0
  %2848 = vmatpush1.bf16.msra.mxu0 %v2824
  %2849 = vmatprep.subr.bf16.mxu0 0
  %2850 = vmatpush1.bf16.msra.mxu0 %v2826
  %2851 = vmatprep.subr.bf16.mxu0 0
  %2852 = vmatpush1.bf16.msra.mxu0 %v2828
  %2853 = vmatprep.subr.bf16.mxu0 0
  %2854 = vmatpush1.bf16.msra.mxu0 %v2830
  %2855 = vmatprep.subr.bf16.mxu0 0
  %2856 = vmatpush1.bf16.msra.mxu0 %v2832
  %2857 = vmatprep.subr.bf16.mxu0 0
  %2858 = vmatpush1.bf16.msra.mxu0 %v2834
  %2859 = vmatprep.subr.bf16.mxu0 0
  %2860 = vmatpush1.bf16.msra.mxu0 %v2836
  %2861 = vmatprep.subr.bf16.mxu0 0
  %2862 = vmatpush1.bf16.msra.mxu0 %v2838
  %2863 = vmatprep.subr.bf16.mxu0 0
  %2864 = vmatpush1.bf16.msra.mxu0 0
  %2865 = vmatprep.subr.bf16.mxu0 0
  %2866 = vmatpush1.bf16.msra.mxu0 0
  %2867 = vmatprep.subr.bf16.mxu0 0
  %2868 = vmatpush1.bf16.msra.mxu0 0
  %2869 = vmatprep.subr.bf16.mxu0 0
  %2870 = vmatpush1.bf16.msra.mxu0 0
  %2871 = vmatprep.subr.bf16.mxu0 0
  %2872 = vmatpush1.bf16.msra.mxu0 0
  %2873 = vmatprep.subr.bf16.mxu0 0
  %2874 = vmatpush1.bf16.msra.mxu0 0
  %2875 = vmatprep.subr.bf16.mxu0 0
  %2876 = vmatpush1.bf16.msra.mxu0 0
  %2877 = vmatprep.subr.bf16.mxu0 0
  %2878 = vmatpush1.bf16.msra.mxu0 0
  %2879 = vmatprep.mubr.bf16.mxu0 0
  %2880 = vmatmul.mubr.bf16.gmra.mrb[0].mxu0 %v2815
  %v2881 = vpop.f32.mrb[0].mxu0
  %v2882 = vadd.f32 0.0, %v2881
  %v2883 = vpop.f32.mrb[0].mxu0
  %v2884 = vpop.f32.mrb[0].mxu0
  %v2885 = vadd.f32 0.0, %v2884
  %v2886 = vpop.f32.mrb[0].mxu0
  %2887 = vmatprep.mubr.bf16.mxu0 0
  %2888 = vmatmul.mubr.bf16.gmra.mrb[0].mxu0 %v2816
  %v2889 = vpop.f32.mrb[0].mxu0
  %v2890 = vadd.f32 0.0, %v2889
  %v2891 = vpop.f32.mrb[0].mxu0
  %v2892 = vpop.f32.mrb[0].mxu0
  %v2893 = vadd.f32 0.0, %v2892
  %v2894 = vpop.f32.mrb[0].mxu0
  %2895 = vmatprep.mubr.bf16.mxu0 0
  %2896 = vmatmul.mubr.bf16.gmra.mrb[0].mxu0 %v2817
  %v2897 = vpop.f32.mrb[0].mxu0
  %v2898 = vadd.f32 0.0, %v2897
  %v2899 = vpop.f32.mrb[0].mxu0
  %v2900 = vpop.f32.mrb[0].mxu0
  %v2901 = vadd.f32 0.0, %v2900
  %v2902 = vpop.f32.mrb[0].mxu0
  %2903 = vmatprep.mubr.bf16.mxu0 0
  %2904 = vmatmul.mubr.bf16.gmra.mrb[0].mxu0 %v2818
  %v2905 = vpop.f32.mrb[0].mxu0
  %v2906 = vadd.f32 0.0, %v2905
  %v2907 = vpop.f32.mrb[0].mxu0
  %v2908 = vpop.f32.mrb[0].mxu0
  %v2909 = vadd.f32 0.0, %v2908
  %v2910 = vpop.f32.mrb[0].mxu0
  %2911 = vmatprep.mubr.bf16.mxu0 0
  %2912 = vmatmul.mubr.bf16.gmra.mrb[0].mxu0 %v2819
  %v2913 = vpop.f32.mrb[0].mxu0
  %v2914 = vadd.f32 0.0, %v2913
  %v2915 = vpop.f32.mrb[0].mxu0
  %v2916 = vpop.f32.mrb[0].mxu0
  %v2917 = vadd.f32 0.0, %v2916
  %v2918 = vpop.f32.mrb[0].mxu0
  %2919 = vmatprep.mubr.bf16.mxu0 0
  %2920 = vmatmul.mubr.bf16.gmra.mrb[0].mxu0 %v2820
  %v2921 = vpop.f32.mrb[0].mxu0
  %v2922 = vadd.f32 0.0, %v2921
  %v2923 = vpop.f32.mrb[0].mxu0
  %v2924 = vpop.f32.mrb[0].mxu0
  %v2925 = vadd.f32 0.0, %v2924
  %v2926 = vpop.f32.mrb[0].mxu0
  %2927 = vmatprep.mubr.bf16.mxu0 0
  %2928 = vmatmul.mubr.bf16.gmra.mrb[0].mxu0 %v2821
  %v2929 = vpop.f32.mrb[0].mxu0
  %v2930 = vadd.f32 0.0, %v2929
  %v2931 = vpop.f32.mrb[0].mxu0
  %v2932 = vpop.f32.mrb[0].mxu0
  %v2933 = vadd.f32 0.0, %v2932
  %v2934 = vpop.f32.mrb[0].mxu0
  %2935 = vmatprep.mubr.bf16.mxu0 0
  %2936 = vmatmul.mubr.bf16.gmra.mrb[0].mxu0 %v2822
  %v2937 = vpop.f32.mrb[0].mxu0
  %v2938 = vadd.f32 0.0, %v2937
  %v2939 = vpop.f32.mrb[0].mxu0
  %v2940 = vpop.f32.mrb[0].mxu0
  %v2941 = vadd.f32 0.0, %v2940
  %v2942 = vpop.f32.mrb[0].mxu0
  %2943 = vdwg.mxu0
  %s2944 = scalar_lea.vmem %s6, 6
  %v2945 = vld [vmem:[%s2944] sm:$0x3]
  %v2946 = vpack.c.bf16 %v2885, %v2882
  %v2947 = vpack.c.bf16 %v2893, %v2890
  %v2948 = vpack.c.bf16 %v2901, %v2898
  %v2949 = vpack.c.bf16 %v2909, %v2906
  %v2950 = vpack.c.bf16 %v2917, %v2914
  %v2951 = vpack.c.bf16 %v2925, %v2922
  %v2952 = vpack.c.bf16 %v2933, %v2930
  %v2953 = vpack.c.bf16 %v2941, %v2938
  %v2955 = vsel %vm622, %v2946, 0
  %v2958 = vsel %vm622, %v2947, 0
  %v2961 = vsel %vm622, %v2948, 0
  %v2964 = vsel %vm622, %v2949, 0
  %v2967 = vsel %vm622, %v2950, 0
  %v2970 = vsel %vm622, %v2951, 0
  %v2973 = vsel %vm622, %v2952, 0
  %v2976 = vsel %vm622, %v2953, 0
  %v2979 = vsel %vm647, %v2945, 0
  %2981 = vmatprep.subr.bf16.mxu0 0
  %2982 = vmatpush1.bf16.msra.mxu0 %v2979
  %2983 = vmatprep.subr.bf16.mxu0 0
  %2984 = vmatpush1.bf16.msra.mxu0 0
  %2985 = vmatprep.subr.bf16.mxu0 0
  %2986 = vmatpush1.bf16.msra.mxu0 0
  %2987 = vmatprep.subr.bf16.mxu0 0
  %2988 = vmatpush1.bf16.msra.mxu0 0
  %2989 = vmatprep.subr.bf16.mxu0 0
  %2990 = vmatpush1.bf16.msra.mxu0 0
  %2991 = vmatprep.subr.bf16.mxu0 0
  %2992 = vmatpush1.bf16.msra.mxu0 0
  %2993 = vmatprep.subr.bf16.mxu0 0
  %2994 = vmatpush1.bf16.msra.mxu0 0
  %2995 = vmatprep.subr.bf16.mxu0 0
  %2996 = vmatpush1.bf16.msra.mxu0 0
  %2997 = vmatprep.subr.bf16.mxu0 0
  %2998 = vmatpush1.bf16.msra.mxu0 0
  %2999 = vmatprep.subr.bf16.mxu0 0
  %3000 = vmatpush1.bf16.msra.mxu0 0
  %3001 = vmatprep.subr.bf16.mxu0 0
  %3002 = vmatpush1.bf16.msra.mxu0 0
  %3003 = vmatprep.subr.bf16.mxu0 0
  %3004 = vmatpush1.bf16.msra.mxu0 0
  %3005 = vmatprep.subr.bf16.mxu0 0
  %3006 = vmatpush1.bf16.msra.mxu0 0
  %3007 = vmatprep.subr.bf16.mxu0 0
  %3008 = vmatpush1.bf16.msra.mxu0 0
  %3009 = vmatprep.subr.bf16.mxu0 0
  %3010 = vmatpush1.bf16.msra.mxu0 0
  %3011 = vmatprep.subr.bf16.mxu0 0
  %3012 = vmatpush1.bf16.msra.mxu0 0
  %3013 = vmatprep.mubr.bf16.mxu0 0
  %3014 = vmatmul.mubr.bf16.gmra.mrb[0].mxu0 %v2955
  %v3015 = vpop.f32.mrb[0].mxu0
  %v3016 = vadd.f32 0.0, %v3015
  %v3017 = vpop.f32.mrb[0].mxu0
  %v3018 = vpop.f32.mrb[0].mxu0
  %v3019 = vadd.f32 0.0, %v3018
  %v3020 = vpop.f32.mrb[0].mxu0
  %3021 = vmatprep.mubr.bf16.mxu0 0
  %3022 = vmatmul.mubr.bf16.gmra.mrb[0].mxu0 %v2958
  %v3023 = vpop.f32.mrb[0].mxu0
  %v3024 = vadd.f32 0.0, %v3023
  %v3025 = vpop.f32.mrb[0].mxu0
  %v3026 = vpop.f32.mrb[0].mxu0
  %v3027 = vadd.f32 0.0, %v3026
  %v3028 = vpop.f32.mrb[0].mxu0
  %3029 = vmatprep.mubr.bf16.mxu0 0
  %3030 = vmatmul.mubr.bf16.gmra.mrb[0].mxu0 %v2961
  %v3031 = vpop.f32.mrb[0].mxu0
  %v3032 = vadd.f32 0.0, %v3031
  %v3033 = vpop.f32.mrb[0].mxu0
  %v3034 = vpop.f32.mrb[0].mxu0
  %v3035 = vadd.f32 0.0, %v3034
  %v3036 = vpop.f32.mrb[0].mxu0
  %3037 = vmatprep.mubr.bf16.mxu0 0
  %3038 = vmatmul.mubr.bf16.gmra.mrb[0].mxu0 %v2964
  %v3039 = vpop.f32.mrb[0].mxu0
  %v3040 = vadd.f32 0.0, %v3039
  %v3041 = vpop.f32.mrb[0].mxu0
  %v3042 = vpop.f32.mrb[0].mxu0
  %v3043 = vadd.f32 0.0, %v3042
  %v3044 = vpop.f32.mrb[0].mxu0
  %3045 = vmatprep.mubr.bf16.mxu0 0
  %3046 = vmatmul.mubr.bf16.gmra.mrb[0].mxu0 %v2967
  %v3047 = vpop.f32.mrb[0].mxu0
  %v3048 = vadd.f32 0.0, %v3047
  %v3049 = vpop.f32.mrb[0].mxu0
  %v3050 = vpop.f32.mrb[0].mxu0
  %v3051 = vadd.f32 0.0, %v3050
  %v3052 = vpop.f32.mrb[0].mxu0
  %3053 = vmatprep.mubr.bf16.mxu0 0
  %3054 = vmatmul.mubr.bf16.gmra.mrb[0].mxu0 %v2970
  %v3055 = vpop.f32.mrb[0].mxu0
  %v3056 = vadd.f32 0.0, %v3055
  %v3057 = vpop.f32.mrb[0].mxu0
  %v3058 = vpop.f32.mrb[0].mxu0
  %v3059 = vadd.f32 0.0, %v3058
  %v3060 = vpop.f32.mrb[0].mxu0
  %3061 = vmatprep.mubr.bf16.mxu0 0
  %3062 = vmatmul.mubr.bf16.gmra.mrb[0].mxu0 %v2973
  %v3063 = vpop.f32.mrb[0].mxu0
  %v3064 = vadd.f32 0.0, %v3063
  %v3065 = vpop.f32.mrb[0].mxu0
  %v3066 = vpop.f32.mrb[0].mxu0
  %v3067 = vadd.f32 0.0, %v3066
  %v3068 = vpop.f32.mrb[0].mxu0
  %3069 = vmatprep.mubr.bf16.mxu0 0
  %3070 = vmatmul.mubr.bf16.gmra.mrb[0].mxu0 %v2976
  %v3071 = vpop.f32.mrb[0].mxu0
  %v3072 = vadd.f32 0.0, %v3071
  %v3073 = vpop.f32.mrb[0].mxu0
  %v3074 = vpop.f32.mrb[0].mxu0
  %v3075 = vadd.f32 0.0, %v3074
  %v3076 = vpop.f32.mrb[0].mxu0
  %3077 = vdwg.mxu0
  %v3078 = vadd.f32 %v2434, %v3016
  %v3079 = vadd.f32 %v2435, %v3019
  %v3080 = vadd.f32 %v2436, %v3024
  %v3081 = vadd.f32 %v2437, %v3027
  %v3082 = vadd.f32 %v2438, %v3032
  %v3083 = vadd.f32 %v2439, %v3035
  %v3084 = vadd.f32 %v2440, %v3040
  %v3085 = vadd.f32 %v2441, %v3043
  %v3086 = vadd.f32 %v2442, %v3048
  %v3087 = vadd.f32 %v2443, %v3051
  %v3088 = vadd.f32 %v2444, %v3056
  %v3089 = vadd.f32 %v2445, %v3059
  %v3090 = vadd.f32 %v2446, %v3064
  %v3091 = vadd.f32 %v2447, %v3067
  %v3092 = vadd.f32 %v2448, %v3072
  %v3093 = vadd.f32 %v2449, %v3075
  %v3094 = vld [vmem:[%s7] sm:$0x1]
  %v3096 = vlaneseq
  %v3097 = vshrl.u32 %v3096, 7
  %v3098 = vsub.s32 0, %v3097
  %v3099 = vrot.slane %v3094, %v3098
  %v3101 = vadd.f32 %v3078, %v3099
  %v3102 = vadd.f32 %v3079, %v3099
  %v3103 = vadd.f32 %v3080, %v3099
  %v3104 = vadd.f32 %v3081, %v3099
  %v3105 = vadd.f32 %v3082, %v3099
  %v3106 = vadd.f32 %v3083, %v3099
  %v3107 = vadd.f32 %v3084, %v3099
  %v3108 = vadd.f32 %v3085, %v3099
  %v3109 = vadd.f32 %v3086, %v3099
  %v3110 = vadd.f32 %v3087, %v3099
  %v3111 = vadd.f32 %v3088, %v3099
  %v3112 = vadd.f32 %v3089, %v3099
  %v3113 = vadd.f32 %v3090, %v3099
  %v3114 = vadd.f32 %v3091, %v3099
  %v3115 = vadd.f32 %v3092, %v3099
  %v3116 = vadd.f32 %v3093, %v3099
  %v3117 = vadd.f32 %v69, %v3101
  %v3118 = vadd.f32 %v70, %v3102
  %v3119 = vadd.f32 %v71, %v3103
  %v3120 = vadd.f32 %v72, %v3104
  %v3121 = vadd.f32 %v73, %v3105
  %v3122 = vadd.f32 %v74, %v3106
  %v3123 = vadd.f32 %v75, %v3107
  %v3124 = vadd.f32 %v76, %v3108
  %v3125 = vadd.f32 %v77, %v3109
  %v3126 = vadd.f32 %v78, %v3110
  %v3127 = vadd.f32 %v79, %v3111
  %v3128 = vadd.f32 %v80, %v3112
  %v3129 = vadd.f32 %v81, %v3113
  %v3130 = vadd.f32 %v82, %v3114
  %v3131 = vadd.f32 %v83, %v3115
  %v3132 = vadd.f32 %v84, %v3116
  %v3133 = vld [vmem:[%s8] sm:$0x1]
  %v3134 = vld [vmem:[%s9] sm:$0x1]
  %v3135 = vsel %vm87, %v3117, 0.0
  %3136 = vadd.xlane.f32.xlu0 %v3135
  %v3137 = vpop.xlane.xlu0 %3136
  %v3138 = vsel %vm87, %v3118, 0.0
  %3139 = vadd.xlane.f32.xlu0 %v3138
  %v3140 = vpop.xlane.xlu0 %3139
  %v3141 = vsel %vm87, %v3119, 0.0
  %3142 = vadd.xlane.f32.xlu0 %v3141
  %v3143 = vpop.xlane.xlu0 %3142
  %v3144 = vsel %vm87, %v3120, 0.0
  %3145 = vadd.xlane.f32.xlu0 %v3144
  %v3146 = vpop.xlane.xlu0 %3145
  %v3147 = vsel %vm87, %v3121, 0.0
  %3148 = vadd.xlane.f32.xlu0 %v3147
  %v3149 = vpop.xlane.xlu0 %3148
  %v3150 = vsel %vm87, %v3122, 0.0
  %3151 = vadd.xlane.f32.xlu0 %v3150
  %v3152 = vpop.xlane.xlu0 %3151
  %v3153 = vsel %vm87, %v3123, 0.0
  %3154 = vadd.xlane.f32.xlu0 %v3153
  %v3155 = vpop.xlane.xlu0 %3154
  %v3156 = vsel %vm87, %v3124, 0.0
  %3157 = vadd.xlane.f32.xlu0 %v3156
  %v3158 = vpop.xlane.xlu0 %3157
  %v3159 = vsel %vm87, %v3125, 0.0
  %3160 = vadd.xlane.f32.xlu0 %v3159
  %v3161 = vpop.xlane.xlu0 %3160
  %v3162 = vsel %vm87, %v3126, 0.0
  %3163 = vadd.xlane.f32.xlu0 %v3162
  %v3164 = vpop.xlane.xlu0 %3163
  %v3165 = vsel %vm87, %v3127, 0.0
  %3166 = vadd.xlane.f32.xlu0 %v3165
  %v3167 = vpop.xlane.xlu0 %3166
  %v3168 = vsel %vm87, %v3128, 0.0
  %3169 = vadd.xlane.f32.xlu0 %v3168
  %v3170 = vpop.xlane.xlu0 %3169
  %v3171 = vsel %vm87, %v3129, 0.0
  %3172 = vadd.xlane.f32.xlu0 %v3171
  %v3173 = vpop.xlane.xlu0 %3172
  %v3174 = vsel %vm87, %v3130, 0.0
  %3175 = vadd.xlane.f32.xlu0 %v3174
  %v3176 = vpop.xlane.xlu0 %3175
  %v3177 = vsel %vm87, %v3131, 0.0
  %3178 = vadd.xlane.f32.xlu0 %v3177
  %v3179 = vpop.xlane.xlu0 %3178
  %v3180 = vsel %vm87, %v3132, 0.0
  %3181 = vadd.xlane.f32.xlu0 %v3180
  %v3182 = vpop.xlane.xlu0 %3181
  %v3183 = vmul.f32 %v3137, %v136
  %v3184 = vmul.f32 %v3140, %v136
  %v3185 = vmul.f32 %v3143, %v136
  %v3186 = vmul.f32 %v3146, %v136
  %v3187 = vmul.f32 %v3149, %v136
  %v3188 = vmul.f32 %v3152, %v136
  %v3189 = vmul.f32 %v3155, %v136
  %v3190 = vmul.f32 %v3158, %v136
  %v3191 = vmul.f32 %v3161, %v136
  %v3192 = vmul.f32 %v3164, %v136
  %v3193 = vmul.f32 %v3167, %v136
  %v3194 = vmul.f32 %v3170, %v136
  %v3195 = vmul.f32 %v3173, %v136
  %v3196 = vmul.f32 %v3176, %v136
  %v3197 = vmul.f32 %v3179, %v136
  %v3198 = vmul.f32 %v3182, %v136
  %v3199 = vsub.f32 %v3117, %v3183
  %v3200 = vsub.f32 %v3118, %v3184
  %v3201 = vsub.f32 %v3119, %v3185
  %v3202 = vsub.f32 %v3120, %v3186
  %v3203 = vsub.f32 %v3121, %v3187
  %v3204 = vsub.f32 %v3122, %v3188
  %v3205 = vsub.f32 %v3123, %v3189
  %v3206 = vsub.f32 %v3124, %v3190
  %v3207 = vsub.f32 %v3125, %v3191
  %v3208 = vsub.f32 %v3126, %v3192
  %v3209 = vsub.f32 %v3127, %v3193
  %v3210 = vsub.f32 %v3128, %v3194
  %v3211 = vsub.f32 %v3129, %v3195
  %v3212 = vsub.f32 %v3130, %v3196
  %v3213 = vsub.f32 %v3131, %v3197
  %v3214 = vsub.f32 %v3132, %v3198
  %v3215 = vmul.f32 %v3199, %v3199
  %v3216 = vmul.f32 %v3200, %v3200
  %v3217 = vmul.f32 %v3201, %v3201
  %v3218 = vmul.f32 %v3202, %v3202
  %v3219 = vmul.f32 %v3203, %v3203
  %v3220 = vmul.f32 %v3204, %v3204
  %v3221 = vmul.f32 %v3205, %v3205
  %v3222 = vmul.f32 %v3206, %v3206
  %v3223 = vmul.f32 %v3207, %v3207
  %v3224 = vmul.f32 %v3208, %v3208
  %v3225 = vmul.f32 %v3209, %v3209
  %v3226 = vmul.f32 %v3210, %v3210
  %v3227 = vmul.f32 %v3211, %v3211
  %v3228 = vmul.f32 %v3212, %v3212
  %v3229 = vmul.f32 %v3213, %v3213
  %v3230 = vmul.f32 %v3214, %v3214
  %v3231 = vsel %vm87, %v3215, 0.0
  %3232 = vadd.xlane.f32.xlu0 %v3231
  %v3233 = vpop.xlane.xlu0 %3232
  %v3234 = vsel %vm87, %v3216, 0.0
  %3235 = vadd.xlane.f32.xlu0 %v3234
  %v3236 = vpop.xlane.xlu0 %3235
  %v3237 = vsel %vm87, %v3217, 0.0
  %3238 = vadd.xlane.f32.xlu0 %v3237
  %v3239 = vpop.xlane.xlu0 %3238
  %v3240 = vsel %vm87, %v3218, 0.0
  %3241 = vadd.xlane.f32.xlu0 %v3240
  %v3242 = vpop.xlane.xlu0 %3241
  %v3243 = vsel %vm87, %v3219, 0.0
  %3244 = vadd.xlane.f32.xlu0 %v3243
  %v3245 = vpop.xlane.xlu0 %3244
  %v3246 = vsel %vm87, %v3220, 0.0
  %3247 = vadd.xlane.f32.xlu0 %v3246
  %v3248 = vpop.xlane.xlu0 %3247
  %v3249 = vsel %vm87, %v3221, 0.0
  %3250 = vadd.xlane.f32.xlu0 %v3249
  %v3251 = vpop.xlane.xlu0 %3250
  %v3252 = vsel %vm87, %v3222, 0.0
  %3253 = vadd.xlane.f32.xlu0 %v3252
  %v3254 = vpop.xlane.xlu0 %3253
  %v3255 = vsel %vm87, %v3223, 0.0
  %3256 = vadd.xlane.f32.xlu0 %v3255
  %v3257 = vpop.xlane.xlu0 %3256
  %v3258 = vsel %vm87, %v3224, 0.0
  %3259 = vadd.xlane.f32.xlu0 %v3258
  %v3260 = vpop.xlane.xlu0 %3259
  %v3261 = vsel %vm87, %v3225, 0.0
  %3262 = vadd.xlane.f32.xlu0 %v3261
  %v3263 = vpop.xlane.xlu0 %3262
  %v3264 = vsel %vm87, %v3226, 0.0
  %3265 = vadd.xlane.f32.xlu0 %v3264
  %v3266 = vpop.xlane.xlu0 %3265
  %v3267 = vsel %vm87, %v3227, 0.0
  %3268 = vadd.xlane.f32.xlu0 %v3267
  %v3269 = vpop.xlane.xlu0 %3268
  %v3270 = vsel %vm87, %v3228, 0.0
  %3271 = vadd.xlane.f32.xlu0 %v3270
  %v3272 = vpop.xlane.xlu0 %3271
  %v3273 = vsel %vm87, %v3229, 0.0
  %3274 = vadd.xlane.f32.xlu0 %v3273
  %v3275 = vpop.xlane.xlu0 %3274
  %v3276 = vsel %vm87, %v3230, 0.0
  %3277 = vadd.xlane.f32.xlu0 %v3276
  %v3278 = vpop.xlane.xlu0 %3277
  %v3279 = vmul.f32 %v3233, %v136
  %v3280 = vmul.f32 %v3236, %v136
  %v3281 = vmul.f32 %v3239, %v136
  %v3282 = vmul.f32 %v3242, %v136
  %v3283 = vmul.f32 %v3245, %v136
  %v3284 = vmul.f32 %v3248, %v136
  %v3285 = vmul.f32 %v3251, %v136
  %v3286 = vmul.f32 %v3254, %v136
  %v3287 = vmul.f32 %v3257, %v136
  %v3288 = vmul.f32 %v3260, %v136
  %v3289 = vmul.f32 %v3263, %v136
  %v3290 = vmul.f32 %v3266, %v136
  %v3291 = vmul.f32 %v3269, %v136
  %v3292 = vmul.f32 %v3272, %v136
  %v3293 = vmul.f32 %v3275, %v136
  %v3294 = vmul.f32 %v3278, %v136
  %v3295 = vadd.f32 %v3279, 1e-05
  %v3296 = vadd.f32 %v3280, 1e-05
  %v3297 = vadd.f32 %v3281, 1e-05
  %v3298 = vadd.f32 %v3282, 1e-05
  %v3299 = vadd.f32 %v3283, 1e-05
  %v3300 = vadd.f32 %v3284, 1e-05
  %v3301 = vadd.f32 %v3285, 1e-05
  %v3302 = vadd.f32 %v3286, 1e-05
  %v3303 = vadd.f32 %v3287, 1e-05
  %v3304 = vadd.f32 %v3288, 1e-05
  %v3305 = vadd.f32 %v3289, 1e-05
  %v3306 = vadd.f32 %v3290, 1e-05
  %v3307 = vadd.f32 %v3291, 1e-05
  %v3308 = vadd.f32 %v3292, 1e-05
  %v3309 = vadd.f32 %v3293, 1e-05
  %v3310 = vadd.f32 %v3294, 1e-05
  %v3311 = vrsqrt.pop %v3295
  %v3312 = vrsqrt.pop %v3296
  %v3313 = vrsqrt.pop %v3297
  %v3314 = vrsqrt.pop %v3298
  %v3315 = vrsqrt.pop %v3299
  %v3316 = vrsqrt.pop %v3300
  %v3317 = vrsqrt.pop %v3301
  %v3318 = vrsqrt.pop %v3302
  %v3319 = vrsqrt.pop %v3303
  %v3320 = vrsqrt.pop %v3304
  %v3321 = vrsqrt.pop %v3305
  %v3322 = vrsqrt.pop %v3306
  %v3323 = vrsqrt.pop %v3307
  %v3324 = vrsqrt.pop %v3308
  %v3325 = vrsqrt.pop %v3309
  %v3326 = vrsqrt.pop %v3310
  %v3327 = vmul.f32 %v3199, %v3311
  %v3328 = vmul.f32 %v3200, %v3312
  %v3329 = vmul.f32 %v3201, %v3313
  %v3330 = vmul.f32 %v3202, %v3314
  %v3331 = vmul.f32 %v3203, %v3315
  %v3332 = vmul.f32 %v3204, %v3316
  %v3333 = vmul.f32 %v3205, %v3317
  %v3334 = vmul.f32 %v3206, %v3318
  %v3335 = vmul.f32 %v3207, %v3319
  %v3336 = vmul.f32 %v3208, %v3320
  %v3337 = vmul.f32 %v3209, %v3321
  %v3338 = vmul.f32 %v3210, %v3322
  %v3339 = vmul.f32 %v3211, %v3323
  %v3340 = vmul.f32 %v3212, %v3324
  %v3341 = vmul.f32 %v3213, %v3325
  %v3342 = vmul.f32 %v3214, %v3326
  %v3344 = vlaneseq
  %v3345 = vshrl.u32 %v3344, 7
  %v3346 = vsub.s32 0, %v3345
  %v3347 = vrot.slane %v3133, %v3346
  %v3349 = vmul.f32 %v3327, %v3347
  %v3350 = vmul.f32 %v3328, %v3347
  %v3351 = vmul.f32 %v3329, %v3347
  %v3352 = vmul.f32 %v3330, %v3347
  %v3353 = vmul.f32 %v3331, %v3347
  %v3354 = vmul.f32 %v3332, %v3347
  %v3355 = vmul.f32 %v3333, %v3347
  %v3356 = vmul.f32 %v3334, %v3347
  %v3357 = vmul.f32 %v3335, %v3347
  %v3358 = vmul.f32 %v3336, %v3347
  %v3359 = vmul.f32 %v3337, %v3347
  %v3360 = vmul.f32 %v3338, %v3347
  %v3361 = vmul.f32 %v3339, %v3347
  %v3362 = vmul.f32 %v3340, %v3347
  %v3363 = vmul.f32 %v3341, %v3347
  %v3364 = vmul.f32 %v3342, %v3347
  %v3366 = vlaneseq
  %v3367 = vshrl.u32 %v3366, 7
  %v3368 = vsub.s32 0, %v3367
  %v3369 = vrot.slane %v3134, %v3368
  %v3371 = vadd.f32 %v3349, %v3369
  %v3372 = vadd.f32 %v3350, %v3369
  %v3373 = vadd.f32 %v3351, %v3369
  %v3374 = vadd.f32 %v3352, %v3369
  %v3375 = vadd.f32 %v3353, %v3369
  %v3376 = vadd.f32 %v3354, %v3369
  %v3377 = vadd.f32 %v3355, %v3369
  %v3378 = vadd.f32 %v3356, %v3369
  %v3379 = vadd.f32 %v3357, %v3369
  %v3380 = vadd.f32 %v3358, %v3369
  %v3381 = vadd.f32 %v3359, %v3369
  %v3382 = vadd.f32 %v3360, %v3369
  %v3383 = vadd.f32 %v3361, %v3369
  %v3384 = vadd.f32 %v3362, %v3369
  %v3385 = vadd.f32 %v3363, %v3369
  %v3386 = vadd.f32 %v3364, %v3369
  %v3387 = vld [vmem:[%s10] sm:$0xff]
  %v3388 = vld [vmem:[%s10 + $0x8] sm:$0xff]
  %v3389 = vpack.c.bf16 %v3372, %v3371
  %v3390 = vpack.c.bf16 %v3374, %v3373
  %v3391 = vpack.c.bf16 %v3376, %v3375
  %v3392 = vpack.c.bf16 %v3378, %v3377
  %v3393 = vpack.c.bf16 %v3380, %v3379
  %v3394 = vpack.c.bf16 %v3382, %v3381
  %v3395 = vpack.c.bf16 %v3384, %v3383
  %v3396 = vpack.c.bf16 %v3386, %v3385
  %v3397 = vld [vmem:[%s11] sm:$0x3]
  %v3399 = vlaneseq
  %v3400 = vshrl.u32 %v3399, 7
  %v3401 = vsub.s32 0, %v3400
  %v3402 = vrot.slane %v3397, %v3401
  %v3403 = vlaneseq
  %v3404 = vshrl.u32 %v3403, 7
  %v3405 = vsub.s32 1, %v3404
  %v3406 = vrot.slane %v3397, %v3405
  %v3411 = vunpack.c.l.b16 %v3387
  %v3412 = vunpack.c.h.b16 %v3387
  %v3413 = vunpack.c.l.b16 %v3388
  %v3414 = vunpack.c.h.b16 %v3388
  %v3415 = vpack.c.b16 %v3413, %v3411
  %v3416 = vpack.c.b16 %v3414, %v3412
  %v3420 = vsel %vm87, %v3389, 0
  %v3423 = vsel %vm87, %v3390, 0
  %v3426 = vsel %vm87, %v3391, 0
  %v3429 = vsel %vm87, %v3392, 0
  %v3432 = vsel %vm87, %v3393, 0
  %v3435 = vsel %vm87, %v3394, 0
  %v3438 = vsel %vm87, %v3395, 0
  %v3441 = vsel %vm87, %v3396, 0
  %3443 = vmatprep.subr.bf16.mxu0 %v3416
  %3444 = vmatpush1.bf16.msra.mxu0 %v3415
  %3445 = vmatprep.subr.bf16.mxu0 0
  %3446 = vmatpush1.bf16.msra.mxu0 0
  %3447 = vmatprep.subr.bf16.mxu0 0
  %3448 = vmatpush1.bf16.msra.mxu0 0
  %3449 = vmatprep.subr.bf16.mxu0 0
  %3450 = vmatpush1.bf16.msra.mxu0 0
  %3451 = vmatprep.subr.bf16.mxu0 0
  %3452 = vmatpush1.bf16.msra.mxu0 0
  %3453 = vmatprep.subr.bf16.mxu0 0
  %3454 = vmatpush1.bf16.msra.mxu0 0
  %3455 = vmatprep.subr.bf16.mxu0 0
  %3456 = vmatpush1.bf16.msra.mxu0 0
  %3457 = vmatprep.subr.bf16.mxu0 0
  %3458 = vmatpush1.bf16.msra.mxu0 0
  %3459 = vmatprep.subr.bf16.mxu0 0
  %3460 = vmatpush1.bf16.msra.mxu0 0
  %3461 = vmatprep.subr.bf16.mxu0 0
  %3462 = vmatpush1.bf16.msra.mxu0 0
  %3463 = vmatprep.subr.bf16.mxu0 0
  %3464 = vmatpush1.bf16.msra.mxu0 0
  %3465 = vmatprep.subr.bf16.mxu0 0
  %3466 = vmatpush1.bf16.msra.mxu0 0
  %3467 = vmatprep.subr.bf16.mxu0 0
  %3468 = vmatpush1.bf16.msra.mxu0 0
  %3469 = vmatprep.subr.bf16.mxu0 0
  %3470 = vmatpush1.bf16.msra.mxu0 0
  %3471 = vmatprep.subr.bf16.mxu0 0
  %3472 = vmatpush1.bf16.msra.mxu0 0
  %3473 = vmatprep.subr.bf16.mxu0 0
  %3474 = vmatpush1.bf16.msra.mxu0 0
  %3475 = vmatprep.mubr.bf16.mxu0 0
  %3476 = vmatmul.mubr.bf16.gmra.mrb[0].mxu0 %v3420
  %v3477 = vpop.f32.mrb[0].mxu0
  %v3478 = vadd.f32 %v3402, %v3477
  %v3479 = vpop.f32.mrb[0].mxu0
  %v3480 = vadd.f32 %v3406, %v3479
  %v3481 = vpop.f32.mrb[0].mxu0
  %v3482 = vadd.f32 %v3402, %v3481
  %v3483 = vpop.f32.mrb[0].mxu0
  %v3484 = vadd.f32 %v3406, %v3483
  %3485 = vmatprep.mubr.bf16.mxu0 0
  %3486 = vmatmul.mubr.bf16.gmra.mrb[0].mxu0 %v3423
  %v3487 = vpop.f32.mrb[0].mxu0
  %v3488 = vadd.f32 %v3402, %v3487
  %v3489 = vpop.f32.mrb[0].mxu0
  %v3490 = vadd.f32 %v3406, %v3489
  %v3491 = vpop.f32.mrb[0].mxu0
  %v3492 = vadd.f32 %v3402, %v3491
  %v3493 = vpop.f32.mrb[0].mxu0
  %v3494 = vadd.f32 %v3406, %v3493
  %3495 = vmatprep.mubr.bf16.mxu0 0
  %3496 = vmatmul.mubr.bf16.gmra.mrb[0].mxu0 %v3426
  %v3497 = vpop.f32.mrb[0].mxu0
  %v3498 = vadd.f32 %v3402, %v3497
  %v3499 = vpop.f32.mrb[0].mxu0
  %v3500 = vadd.f32 %v3406, %v3499
  %v3501 = vpop.f32.mrb[0].mxu0
  %v3502 = vadd.f32 %v3402, %v3501
  %v3503 = vpop.f32.mrb[0].mxu0
  %v3504 = vadd.f32 %v3406, %v3503
  %3505 = vmatprep.mubr.bf16.mxu0 0
  %3506 = vmatmul.mubr.bf16.gmra.mrb[0].mxu0 %v3429
  %v3507 = vpop.f32.mrb[0].mxu0
  %v3508 = vadd.f32 %v3402, %v3507
  %v3509 = vpop.f32.mrb[0].mxu0
  %v3510 = vadd.f32 %v3406, %v3509
  %v3511 = vpop.f32.mrb[0].mxu0
  %v3512 = vadd.f32 %v3402, %v3511
  %v3513 = vpop.f32.mrb[0].mxu0
  %v3514 = vadd.f32 %v3406, %v3513
  %3515 = vmatprep.mubr.bf16.mxu0 0
  %3516 = vmatmul.mubr.bf16.gmra.mrb[0].mxu0 %v3432
  %v3517 = vpop.f32.mrb[0].mxu0
  %v3518 = vadd.f32 %v3402, %v3517
  %v3519 = vpop.f32.mrb[0].mxu0
  %v3520 = vadd.f32 %v3406, %v3519
  %v3521 = vpop.f32.mrb[0].mxu0
  %v3522 = vadd.f32 %v3402, %v3521
  %v3523 = vpop.f32.mrb[0].mxu0
  %v3524 = vadd.f32 %v3406, %v3523
  %3525 = vmatprep.mubr.bf16.mxu0 0
  %3526 = vmatmul.mubr.bf16.gmra.mrb[0].mxu0 %v3435
  %v3527 = vpop.f32.mrb[0].mxu0
  %v3528 = vadd.f32 %v3402, %v3527
  %v3529 = vpop.f32.mrb[0].mxu0
  %v3530 = vadd.f32 %v3406, %v3529
  %v3531 = vpop.f32.mrb[0].mxu0
  %v3532 = vadd.f32 %v3402, %v3531
  %v3533 = vpop.f32.mrb[0].mxu0
  %v3534 = vadd.f32 %v3406, %v3533
  %3535 = vmatprep.mubr.bf16.mxu0 0
  %3536 = vmatmul.mubr.bf16.gmra.mrb[0].mxu0 %v3438
  %v3537 = vpop.f32.mrb[0].mxu0
  %v3538 = vadd.f32 %v3402, %v3537
  %v3539 = vpop.f32.mrb[0].mxu0
  %v3540 = vadd.f32 %v3406, %v3539
  %v3541 = vpop.f32.mrb[0].mxu0
  %v3542 = vadd.f32 %v3402, %v3541
  %v3543 = vpop.f32.mrb[0].mxu0
  %v3544 = vadd.f32 %v3406, %v3543
  %3545 = vmatprep.mubr.bf16.mxu0 0
  %3546 = vmatmul.mubr.bf16.gmra.mrb[0].mxu0 %v3441
  %v3547 = vpop.f32.mrb[0].mxu0
  %v3548 = vadd.f32 %v3402, %v3547
  %v3549 = vpop.f32.mrb[0].mxu0
  %v3550 = vadd.f32 %v3406, %v3549
  %v3551 = vpop.f32.mrb[0].mxu0
  %v3552 = vadd.f32 %v3402, %v3551
  %v3553 = vpop.f32.mrb[0].mxu0
  %v3554 = vadd.f32 %v3406, %v3553
  %3555 = vdwg.mxu0
  %v3556 = vld [vmem:[%s12] sm:$0xf]
  %v3557 = vld [vmem:[%s12 + $0x4] sm:$0xf]
  %v3558 = vld [vmem:[%s12 + $0x8] sm:$0xf]
  %v3559 = vld [vmem:[%s12 + $0xc] sm:$0xf]
  %v3560 = vld [vmem:[%s13] sm:$0x1]
  %v3562 = vlaneseq
  %v3563 = vshrl.u32 %v3562, 7
  %v3564 = vsub.s32 0, %v3563
  %v3565 = vrot.slane %v3560, %v3564
  %v3571 = vunpack.c.l.b16 %v3556
  %v3572 = vunpack.c.l.b16 %v3557
  %v3573 = vunpack.c.l.b16 %v3558
  %v3574 = vunpack.c.l.b16 %v3559
  %v3575 = vpack.c.b16 %v3572, %v3571
  %v3576 = vpack.c.b16 %v3574, %v3573
  %vm3579 = vcmask 261120
  %v3581 = vsel %vm3579, 0, 0
  %3583 = vmatprep.subr.bf16.mxu0 0
  %3584 = vmatpush1.bf16.msra.mxu0 %v3575
  %3585 = vmatprep.subr.bf16.mxu0 0
  %3586 = vmatpush1.bf16.msra.mxu0 %v3576
  %3587 = vmatprep.subr.bf16.mxu0 0
  %3588 = vmatpush1.bf16.msra.mxu0 0
  %3589 = vmatprep.subr.bf16.mxu0 0
  %3590 = vmatpush1.bf16.msra.mxu0 0
  %3591 = vmatprep.subr.bf16.mxu0 0
  %3592 = vmatpush1.bf16.msra.mxu0 0
  %3593 = vmatprep.subr.bf16.mxu0 0
  %3594 = vmatpush1.bf16.msra.mxu0 0
  %3595 = vmatprep.subr.bf16.mxu0 0
  %3596 = vmatpush1.bf16.msra.mxu0 0
  %3597 = vmatprep.subr.bf16.mxu0 0
  %3598 = vmatpush1.bf16.msra.mxu0 0
  %3599 = vmatprep.subr.bf16.mxu0 0
  %3600 = vmatpush1.bf16.msra.mxu0 0
  %3601 = vmatprep.subr.bf16.mxu0 0
  %3602 = vmatpush1.bf16.msra.mxu0 0
  %3603 = vmatprep.subr.bf16.mxu0 0
  %3604 = vmatpush1.bf16.msra.mxu0 0
  %3605 = vmatprep.subr.bf16.mxu0 0
  %3606 = vmatpush1.bf16.msra.mxu0 0
  %3607 = vmatprep.subr.bf16.mxu0 0
  %3608 = vmatpush1.bf16.msra.mxu0 0
  %3609 = vmatprep.subr.bf16.mxu0 0
  %3610 = vmatpush1.bf16.msra.mxu0 0
  %3611 = vmatprep.subr.bf16.mxu0 0
  %3612 = vmatpush1.bf16.msra.mxu0 0
  %3613 = vmatprep.subr.bf16.mxu0 0
  %3614 = vmatpush1.bf16.msra.mxu0 0
  %3615 = vmatprep.mubr.bf16.mxu0 0
  %3616 = vmatmul.mubr.bf16.gmra.mrb[0].mxu0 %v3581
  %v3617 = vpop.f32.mrb[0].mxu0
  %v3618 = vadd.f32 %v3565, %v3617
  %v3619 = vpop.f32.mrb[0].mxu0
  %v3620 = vpop.f32.mrb[0].mxu0
  %v3621 = vadd.f32 %v3565, %v3620
  %v3622 = vpop.f32.mrb[0].mxu0
  %3623 = vdwg.mxu0
  %v3624 = vld [vmem:[%s14] sm:$0xf]
  %v3625 = vld [vmem:[%s14 + $0x4] sm:$0xf]
  %v3626 = vld [vmem:[%s14 + $0x8] sm:$0xf]
  %v3627 = vld [vmem:[%s14 + $0xc] sm:$0xf]
  %v3628 = vld [vmem:[%s15] sm:$0x1]
  %v3630 = vlaneseq
  %v3631 = vshrl.u32 %v3630, 7
  %v3632 = vsub.s32 0, %v3631
  %v3633 = vrot.slane %v3628, %v3632
  %v3639 = vunpack.c.l.b16 %v3624
  %v3640 = vunpack.c.l.b16 %v3625
  %v3641 = vunpack.c.l.b16 %v3626
  %v3642 = vunpack.c.l.b16 %v3627
  %v3643 = vpack.c.b16 %v3640, %v3639
  %v3644 = vpack.c.b16 %v3642, %v3641
  %3647 = vmatprep.subr.bf16.mxu0 0
  %3648 = vmatpush1.bf16.msra.mxu0 %v3643
  %3649 = vmatprep.subr.bf16.mxu0 0
  %3650 = vmatpush1.bf16.msra.mxu0 %v3644
  %3651 = vmatprep.subr.bf16.mxu0 0
  %3652 = vmatpush1.bf16.msra.mxu0 0
  %3653 = vmatprep.subr.bf16.mxu0 0
  %3654 = vmatpush1.bf16.msra.mxu0 0
  %3655 = vmatprep.subr.bf16.mxu0 0
  %3656 = vmatpush1.bf16.msra.mxu0 0
  %3657 = vmatprep.subr.bf16.mxu0 0
  %3658 = vmatpush1.bf16.msra.mxu0 0
  %3659 = vmatprep.subr.bf16.mxu0 0
  %3660 = vmatpush1.bf16.msra.mxu0 0
  %3661 = vmatprep.subr.bf16.mxu0 0
  %3662 = vmatpush1.bf16.msra.mxu0 0
  %3663 = vmatprep.subr.bf16.mxu0 0
  %3664 = vmatpush1.bf16.msra.mxu0 0
  %3665 = vmatprep.subr.bf16.mxu0 0
  %3666 = vmatpush1.bf16.msra.mxu0 0
  %3667 = vmatprep.subr.bf16.mxu0 0
  %3668 = vmatpush1.bf16.msra.mxu0 0
  %3669 = vmatprep.subr.bf16.mxu0 0
  %3670 = vmatpush1.bf16.msra.mxu0 0
  %3671 = vmatprep.subr.bf16.mxu0 0
  %3672 = vmatpush1.bf16.msra.mxu0 0
  %3673 = vmatprep.subr.bf16.mxu0 0
  %3674 = vmatpush1.bf16.msra.mxu0 0
  %3675 = vmatprep.subr.bf16.mxu0 0
  %3676 = vmatpush1.bf16.msra.mxu0 0
  %3677 = vmatprep.subr.bf16.mxu0 0
  %3678 = vmatpush1.bf16.msra.mxu0 0
  %3679 = vmatprep.mubr.bf16.mxu0 0
  %3680 = vmatmul.mubr.bf16.gmra.mrb[0].mxu0 %v3581
  %v3681 = vpop.f32.mrb[0].mxu0
  %v3682 = vadd.f32 %v3633, %v3681
  %v3683 = vpop.f32.mrb[0].mxu0
  %v3684 = vpop.f32.mrb[0].mxu0
  %v3685 = vadd.f32 %v3633, %v3684
  %v3686 = vpop.f32.mrb[0].mxu0
  %3687 = vdwg.mxu0
  %v3688 = vadd.f32 %v3478, %v3618
  %v3689 = vadd.f32 %v3482, %v3621
  %v3690 = vxor.u32 %v3688, 2147483648
  %v3691 = vxor.u32 %v3689, 2147483648
  %v3692 = vmul.f32 %v3690, 1.442695
  %v3693 = vpow.pop %v3692
  %v3694 = vmul.f32 %v3691, 1.442695
  %v3695 = vpow.pop %v3694
  %v3696 = vadd.f32 %v3693, 1.0
  %v3697 = vadd.f32 %v3695, 1.0
  %v3698 = vrcp.pop %v3696
  %v3699 = vmul.f32 1.0, %v3698
  %v3700 = vrcp.pop %v3697
  %v3701 = vmul.f32 1.0, %v3700
  %3704 = vrot.lane.b32.xlu0 %v3618, 64
  %v3705 = vpop.permute.xlu0 %3704
  %3706 = vrot.lane.b32.xlu0 %v3621, 64
  %v3707 = vpop.permute.xlu0 %3706
  %v3710 = vmul.f32 %v3699, %v3705
  %v3711 = vmul.f32 %v3701, %v3707
  %3714 = vrot.lane.b32.xlu0 %v3710, 64
  %v3715 = vpop.permute.xlu0 %3714
  %3716 = vrot.lane.b32.xlu0 %v3711, 64
  %v3717 = vpop.permute.xlu0 %3716
  %v3720 = vadd.f32 %v3478, %v3715
  %v3721 = vadd.f32 %v3482, %v3717
  %v3722 = vtanh.pop %v3720
  %v3723 = vtanh.pop %v3721
  %v3724 = vsub.f32 1.0, %v3699
  %v3725 = vsub.f32 1.0, %v3701
  %3728 = vrot.lane.b32.xlu0 %v3722, 96
  %v3729 = vpop.permute.xlu0 %3728
  %3730 = vrot.lane.b32.xlu0 %v3723, 96
  %v3731 = vpop.permute.xlu0 %3730
  %v3734 = vmul.f32 %v3724, %v3729
  %v3735 = vmul.f32 %v3725, %v3731
  %v3736 = vmul.f32 %v3699, 0.0
  %v3737 = vmul.f32 %v3701, 0.0
  %v3738 = vadd.f32 %v3734, %v3736
  %v3739 = vadd.f32 %v3735, %v3737
  %3742 = vrot.lane.b32.xlu0 %v3682, 96
  %v3743 = vpop.permute.xlu0 %3742
  %3744 = vrot.lane.b32.xlu0 %v3685, 96
  %v3745 = vpop.permute.xlu0 %3744
  %v3748 = vadd.f32 %v3548, %v3743
  %v3749 = vadd.f32 %v3552, %v3745
  %v3750 = vxor.u32 %v3748, 2147483648
  %v3751 = vxor.u32 %v3749, 2147483648
  %v3752 = vmul.f32 %v3750, 1.442695
  %v3753 = vpow.pop %v3752
  %v3754 = vmul.f32 %v3751, 1.442695
  %v3755 = vpow.pop %v3754
  %v3756 = vadd.f32 %v3753, 1.0
  %v3757 = vadd.f32 %v3755, 1.0
  %v3758 = vrcp.pop %v3756
  %v3759 = vmul.f32 1.0, %v3758
  %v3760 = vrcp.pop %v3757
  %v3761 = vmul.f32 1.0, %v3760
  %v3762 = vadd.f32 %v3550, %v3743
  %v3763 = vadd.f32 %v3554, %v3745
  %v3764 = vxor.u32 %v3762, 2147483648
  %v3765 = vxor.u32 %v3763, 2147483648
  %v3766 = vmul.f32 %v3764, 1.442695
  %v3767 = vpow.pop %v3766
  %v3768 = vmul.f32 %v3765, 1.442695
  %v3769 = vpow.pop %v3768
  %v3770 = vadd.f32 %v3767, 1.0
  %v3771 = vadd.f32 %v3769, 1.0
  %v3772 = vrcp.pop %v3770
  %v3773 = vmul.f32 1.0, %v3772
  %v3774 = vrcp.pop %v3771
  %v3775 = vmul.f32 1.0, %v3774
  %3776 = vrot.lane.b32.xlu0 %v3682, 32
  %v3777 = vpop.permute.xlu0 %3776
  %3778 = vrot.lane.b32.xlu0 %v3685, 32
  %v3779 = vpop.permute.xlu0 %3778
  %v3782 = vmul.f32 %v3759, %v3777
  %v3783 = vmul.f32 %v3761, %v3779
  %3786 = vrot.lane.b32.xlu0 %v3782, 64
  %v3787 = vpop.permute.xlu0 %3786
  %3788 = vrot.lane.b32.xlu0 %v3783, 64
  %v3789 = vpop.permute.xlu0 %3788
  %v3792 = vadd.f32 %v3550, %v3787
  %v3793 = vadd.f32 %v3554, %v3789
  %v3794 = vtanh.pop %v3792
  %v3795 = vtanh.pop %v3793
  %v3796 = vsub.f32 1.0, %v3773
  %v3797 = vsub.f32 1.0, %v3775
  %3800 = vrot.lane.b32.xlu0 %v3794, 96
  %v3801 = vpop.permute.xlu0 %3800
  %3802 = vrot.lane.b32.xlu0 %v3795, 96
  %v3803 = vpop.permute.xlu0 %3802
  %v3806 = vmul.f32 %v3796, %v3801
  %v3807 = vmul.f32 %v3797, %v3803
  %v3808 = vmul.f32 %v3773, 0.0
  %v3809 = vmul.f32 %v3775, 0.0
  %v3810 = vadd.f32 %v3806, %v3808
  %v3811 = vadd.f32 %v3807, %v3809
  %v3812 = vpack.c.bf16 %v3739, %v3738
  %3814 = vrot.lane.b32.xlu0 %v3812, 96
  %v3815 = vpop.permute.xlu0 %3814
  %v3817 = vsel %vm3579, %v3815, 0
  %3819 = vmatprep.subr.bf16.mxu0 0
  %3820 = vmatpush1.bf16.msra.mxu0 %v3575
  %3821 = vmatprep.subr.bf16.mxu0 0
  %3822 = vmatpush1.bf16.msra.mxu0 %v3576
  %3823 = vmatprep.subr.bf16.mxu0 0
  %3824 = vmatpush1.bf16.msra.mxu0 0
  %3825 = vmatprep.subr.bf16.mxu0 0
  %3826 = vmatpush1.bf16.msra.mxu0 0
  %3827 = vmatprep.subr.bf16.mxu0 0
  %3828 = vmatpush1.bf16.msra.mxu0 0
  %3829 = vmatprep.subr.bf16.mxu0 0
  %3830 = vmatpush1.bf16.msra.mxu0 0
  %3831 = vmatprep.subr.bf16.mxu0 0
  %3832 = vmatpush1.bf16.msra.mxu0 0
  %3833 = vmatprep.subr.bf16.mxu0 0
  %3834 = vmatpush1.bf16.msra.mxu0 0
  %3835 = vmatprep.subr.bf16.mxu0 0
  %3836 = vmatpush1.bf16.msra.mxu0 0
  %3837 = vmatprep.subr.bf16.mxu0 0
  %3838 = vmatpush1.bf16.msra.mxu0 0
  %3839 = vmatprep.subr.bf16.mxu0 0
  %3840 = vmatpush1.bf16.msra.mxu0 0
  %3841 = vmatprep.subr.bf16.mxu0 0
  %3842 = vmatpush1.bf16.msra.mxu0 0
  %3843 = vmatprep.subr.bf16.mxu0 0
  %3844 = vmatpush1.bf16.msra.mxu0 0
  %3845 = vmatprep.subr.bf16.mxu0 0
  %3846 = vmatpush1.bf16.msra.mxu0 0
  %3847 = vmatprep.subr.bf16.mxu0 0
  %3848 = vmatpush1.bf16.msra.mxu0 0
  %3849 = vmatprep.subr.bf16.mxu0 0
  %3850 = vmatpush1.bf16.msra.mxu0 0
  %3851 = vmatprep.mubr.bf16.mxu0 0
  %3852 = vmatmul.mubr.bf16.gmra.mrb[0].mxu0 %v3817
  %v3853 = vpop.f32.mrb[0].mxu0
  %v3854 = vadd.f32 %v3565, %v3853
  %v3855 = vpop.f32.mrb[0].mxu0
  %v3856 = vpop.f32.mrb[0].mxu0
  %v3857 = vadd.f32 %v3565, %v3856
  %v3858 = vpop.f32.mrb[0].mxu0
  %3859 = vdwg.mxu0
  %v3860 = vpack.c.bf16 %v3811, %v3810
  %v3862 = vsel %vm3579, %v3860, 0
  %3864 = vmatprep.subr.bf16.mxu0 0
  %3865 = vmatpush1.bf16.msra.mxu0 %v3643
  %3866 = vmatprep.subr.bf16.mxu0 0
  %3867 = vmatpush1.bf16.msra.mxu0 %v3644
  %3868 = vmatprep.subr.bf16.mxu0 0
  %3869 = vmatpush1.bf16.msra.mxu0 0
  %3870 = vmatprep.subr.bf16.mxu0 0
  %3871 = vmatpush1.bf16.msra.mxu0 0
  %3872 = vmatprep.subr.bf16.mxu0 0
  %3873 = vmatpush1.bf16.msra.mxu0 0
  %3874 = vmatprep.subr.bf16.mxu0 0
  %3875 = vmatpush1.bf16.msra.mxu0 0
  %3876 = vmatprep.subr.bf16.mxu0 0
  %3877 = vmatpush1.bf16.msra.mxu0 0
  %3878 = vmatprep.subr.bf16.mxu0 0
  %3879 = vmatpush1.bf16.msra.mxu0 0
  %3880 = vmatprep.subr.bf16.mxu0 0
  %3881 = vmatpush1.bf16.msra.mxu0 0
  %3882 = vmatprep.subr.bf16.mxu0 0
  %3883 = vmatpush1.bf16.msra.mxu0 0
  %3884 = vmatprep.subr.bf16.mxu0 0
  %3885 = vmatpush1.bf16.msra.mxu0 0
  %3886 = vmatprep.subr.bf16.mxu0 0
  %3887 = vmatpush1.bf16.msra.mxu0 0
  %3888 = vmatprep.subr.bf16.mxu0 0
  %3889 = vmatpush1.bf16.msra.mxu0 0
  %3890 = vmatprep.subr.bf16.mxu0 0
  %3891 = vmatpush1.bf16.msra.mxu0 0
  %3892 = vmatprep.subr.bf16.mxu0 0
  %3893 = vmatpush1.bf16.msra.mxu0 0
  %3894 = vmatprep.subr.bf16.mxu0 0
  %3895 = vmatpush1.bf16.msra.mxu0 0
  %3896 = vmatprep.mubr.bf16.mxu0 0
  %3897 = vmatmul.mubr.bf16.gmra.mrb[0].mxu0 %v3862
  %v3898 = vpop.f32.mrb[0].mxu0
  %v3899 = vadd.f32 %v3633, %v3898
  %v3900 = vpop.f32.mrb[0].mxu0
  %v3901 = vpop.f32.mrb[0].mxu0
  %v3902 = vadd.f32 %v3633, %v3901
  %v3903 = vpop.f32.mrb[0].mxu0
  %3904 = vdwg.mxu0
  %v3905 = vadd.f32 %v3488, %v3854
  %v3906 = vadd.f32 %v3492, %v3857
  %v3907 = vxor.u32 %v3905, 2147483648
  %v3908 = vxor.u32 %v3906, 2147483648
  %v3909 = vmul.f32 %v3907, 1.442695
  %v3910 = vpow.pop %v3909
  %v3911 = vmul.f32 %v3908, 1.442695
  %v3912 = vpow.pop %v3911
  %v3913 = vadd.f32 %v3910, 1.0
  %v3914 = vadd.f32 %v3912, 1.0
  %v3915 = vrcp.pop %v3913
  %v3916 = vmul.f32 1.0, %v3915
  %v3917 = vrcp.pop %v3914
  %v3918 = vmul.f32 1.0, %v3917
  %3921 = vrot.lane.b32.xlu0 %v3854, 64
  %v3922 = vpop.permute.xlu0 %3921
  %3923 = vrot.lane.b32.xlu0 %v3857, 64
  %v3924 = vpop.permute.xlu0 %3923
  %v3927 = vmul.f32 %v3916, %v3922
  %v3928 = vmul.f32 %v3918, %v3924
  %3931 = vrot.lane.b32.xlu0 %v3927, 64
  %v3932 = vpop.permute.xlu0 %3931
  %3933 = vrot.lane.b32.xlu0 %v3928, 64
  %v3934 = vpop.permute.xlu0 %3933
  %v3937 = vadd.f32 %v3488, %v3932
  %v3938 = vadd.f32 %v3492, %v3934
  %v3939 = vtanh.pop %v3937
  %v3940 = vtanh.pop %v3938
  %v3941 = vsub.f32 1.0, %v3916
  %v3942 = vsub.f32 1.0, %v3918
  %3945 = vrot.lane.b32.xlu0 %v3939, 96
  %v3946 = vpop.permute.xlu0 %3945
  %3947 = vrot.lane.b32.xlu0 %v3940, 96
  %v3948 = vpop.permute.xlu0 %3947
  %v3951 = vmul.f32 %v3941, %v3946
  %v3952 = vmul.f32 %v3942, %v3948
  %v3953 = vmul.f32 %v3916, %v3738
  %v3954 = vmul.f32 %v3918, %v3739
  %v3955 = vadd.f32 %v3951, %v3953
  %v3956 = vadd.f32 %v3952, %v3954
  %3959 = vrot.lane.b32.xlu0 %v3899, 96
  %v3960 = vpop.permute.xlu0 %3959
  %3961 = vrot.lane.b32.xlu0 %v3902, 96
  %v3962 = vpop.permute.xlu0 %3961
  %v3965 = vadd.f32 %v3538, %v3960
  %v3966 = vadd.f32 %v3542, %v3962
  %v3967 = vxor.u32 %v3965, 2147483648
  %v3968 = vxor.u32 %v3966, 2147483648
  %v3969 = vmul.f32 %v3967, 1.442695
  %v3970 = vpow.pop %v3969
  %v3971 = vmul.f32 %v3968, 1.442695
  %v3972 = vpow.pop %v3971
  %v3973 = vadd.f32 %v3970, 1.0
  %v3974 = vadd.f32 %v3972, 1.0
  %v3975 = vrcp.pop %v3973
  %v3976 = vmul.f32 1.0, %v3975
  %v3977 = vrcp.pop %v3974
  %v3978 = vmul.f32 1.0, %v3977
  %v3979 = vadd.f32 %v3540, %v3960
  %v3980 = vadd.f32 %v3544, %v3962
  %v3981 = vxor.u32 %v3979, 2147483648
  %v3982 = vxor.u32 %v3980, 2147483648
  %v3983 = vmul.f32 %v3981, 1.442695
  %v3984 = vpow.pop %v3983
  %v3985 = vmul.f32 %v3982, 1.442695
  %v3986 = vpow.pop %v3985
  %v3987 = vadd.f32 %v3984, 1.0
  %v3988 = vadd.f32 %v3986, 1.0
  %v3989 = vrcp.pop %v3987
  %v3990 = vmul.f32 1.0, %v3989
  %v3991 = vrcp.pop %v3988
  %v3992 = vmul.f32 1.0, %v3991
  %3993 = vrot.lane.b32.xlu0 %v3899, 32
  %v3994 = vpop.permute.xlu0 %3993
  %3995 = vrot.lane.b32.xlu0 %v3902, 32
  %v3996 = vpop.permute.xlu0 %3995
  %v3999 = vmul.f32 %v3976, %v3994
  %v4000 = vmul.f32 %v3978, %v3996
  %4003 = vrot.lane.b32.xlu0 %v3999, 64
  %v4004 = vpop.permute.xlu0 %4003
  %4005 = vrot.lane.b32.xlu0 %v4000, 64
  %v4006 = vpop.permute.xlu0 %4005
  %v4009 = vadd.f32 %v3540, %v4004
  %v4010 = vadd.f32 %v3544, %v4006
  %v4011 = vtanh.pop %v4009
  %v4012 = vtanh.pop %v4010
  %v4013 = vsub.f32 1.0, %v3990
  %v4014 = vsub.f32 1.0, %v3992
  %4017 = vrot.lane.b32.xlu0 %v4011, 96
  %v4018 = vpop.permute.xlu0 %4017
  %4019 = vrot.lane.b32.xlu0 %v4012, 96
  %v4020 = vpop.permute.xlu0 %4019
  %v4023 = vmul.f32 %v4013, %v4018
  %v4024 = vmul.f32 %v4014, %v4020
  %v4025 = vmul.f32 %v3990, %v3810
  %v4026 = vmul.f32 %v3992, %v3811
  %v4027 = vadd.f32 %v4023, %v4025
  %v4028 = vadd.f32 %v4024, %v4026
  %v4029 = vpack.c.bf16 %v3956, %v3955
  %4031 = vrot.lane.b32.xlu0 %v4029, 96
  %v4032 = vpop.permute.xlu0 %4031
  %v4034 = vsel %vm3579, %v4032, 0
  %4036 = vmatprep.subr.bf16.mxu0 0
  %4037 = vmatpush1.bf16.msra.mxu0 %v3575
  %4038 = vmatprep.subr.bf16.mxu0 0
  %4039 = vmatpush1.bf16.msra.mxu0 %v3576
  %4040 = vmatprep.subr.bf16.mxu0 0
  %4041 = vmatpush1.bf16.msra.mxu0 0
  %4042 = vmatprep.subr.bf16.mxu0 0
  %4043 = vmatpush1.bf16.msra.mxu0 0
  %4044 = vmatprep.subr.bf16.mxu0 0
  %4045 = vmatpush1.bf16.msra.mxu0 0
  %4046 = vmatprep.subr.bf16.mxu0 0
  %4047 = vmatpush1.bf16.msra.mxu0 0
  %4048 = vmatprep.subr.bf16.mxu0 0
  %4049 = vmatpush1.bf16.msra.mxu0 0
  %4050 = vmatprep.subr.bf16.mxu0 0
  %4051 = vmatpush1.bf16.msra.mxu0 0
  %4052 = vmatprep.subr.bf16.mxu0 0
  %4053 = vmatpush1.bf16.msra.mxu0 0
  %4054 = vmatprep.subr.bf16.mxu0 0
  %4055 = vmatpush1.bf16.msra.mxu0 0
  %4056 = vmatprep.subr.bf16.mxu0 0
  %4057 = vmatpush1.bf16.msra.mxu0 0
  %4058 = vmatprep.subr.bf16.mxu0 0
  %4059 = vmatpush1.bf16.msra.mxu0 0
  %4060 = vmatprep.subr.bf16.mxu0 0
  %4061 = vmatpush1.bf16.msra.mxu0 0
  %4062 = vmatprep.subr.bf16.mxu0 0
  %4063 = vmatpush1.bf16.msra.mxu0 0
  %4064 = vmatprep.subr.bf16.mxu0 0
  %4065 = vmatpush1.bf16.msra.mxu0 0
  %4066 = vmatprep.subr.bf16.mxu0 0
  %4067 = vmatpush1.bf16.msra.mxu0 0
  %4068 = vmatprep.mubr.bf16.mxu0 0
  %4069 = vmatmul.mubr.bf16.gmra.mrb[0].mxu0 %v4034
  %v4070 = vpop.f32.mrb[0].mxu0
  %v4071 = vadd.f32 %v3565, %v4070
  %v4072 = vpop.f32.mrb[0].mxu0
  %v4073 = vpop.f32.mrb[0].mxu0
  %v4074 = vadd.f32 %v3565, %v4073
  %v4075 = vpop.f32.mrb[0].mxu0
  %4076 = vdwg.mxu0
  %v4077 = vpack.c.bf16 %v4028, %v4027
  %v4079 = vsel %vm3579, %v4077, 0
  %4081 = vmatprep.subr.bf16.mxu0 0
  %4082 = vmatpush1.bf16.msra.mxu0 %v3643
  %4083 = vmatprep.subr.bf16.mxu0 0
  %4084 = vmatpush1.bf16.msra.mxu0 %v3644
  %4085 = vmatprep.subr.bf16.mxu0 0
  %4086 = vmatpush1.bf16.msra.mxu0 0
  %4087 = vmatprep.subr.bf16.mxu0 0
  %4088 = vmatpush1.bf16.msra.mxu0 0
  %4089 = vmatprep.subr.bf16.mxu0 0
  %4090 = vmatpush1.bf16.msra.mxu0 0
  %4091 = vmatprep.subr.bf16.mxu0 0
  %4092 = vmatpush1.bf16.msra.mxu0 0
  %4093 = vmatprep.subr.bf16.mxu0 0
  %4094 = vmatpush1.bf16.msra.mxu0 0
  %4095 = vmatprep.subr.bf16.mxu0 0
  %4096 = vmatpush1.bf16.msra.mxu0 0
  %4097 = vmatprep.subr.bf16.mxu0 0
  %4098 = vmatpush1.bf16.msra.mxu0 0
  %4099 = vmatprep.subr.bf16.mxu0 0
  %4100 = vmatpush1.bf16.msra.mxu0 0
  %4101 = vmatprep.subr.bf16.mxu0 0
  %4102 = vmatpush1.bf16.msra.mxu0 0
  %4103 = vmatprep.subr.bf16.mxu0 0
  %4104 = vmatpush1.bf16.msra.mxu0 0
  %4105 = vmatprep.subr.bf16.mxu0 0
  %4106 = vmatpush1.bf16.msra.mxu0 0
  %4107 = vmatprep.subr.bf16.mxu0 0
  %4108 = vmatpush1.bf16.msra.mxu0 0
  %4109 = vmatprep.subr.bf16.mxu0 0
  %4110 = vmatpush1.bf16.msra.mxu0 0
  %4111 = vmatprep.subr.bf16.mxu0 0
  %4112 = vmatpush1.bf16.msra.mxu0 0
  %4113 = vmatprep.mubr.bf16.mxu0 0
  %4114 = vmatmul.mubr.bf16.gmra.mrb[0].mxu0 %v4079
  %v4115 = vpop.f32.mrb[0].mxu0
  %v4116 = vadd.f32 %v3633, %v4115
  %v4117 = vpop.f32.mrb[0].mxu0
  %v4118 = vpop.f32.mrb[0].mxu0
  %v4119 = vadd.f32 %v3633, %v4118
  %v4120 = vpop.f32.mrb[0].mxu0
  %4121 = vdwg.mxu0
  %v4122 = vadd.f32 %v3498, %v4071
  %v4123 = vadd.f32 %v3502, %v4074
  %v4124 = vxor.u32 %v4122, 2147483648
  %v4125 = vxor.u32 %v4123, 2147483648
  %v4126 = vmul.f32 %v4124, 1.442695
  %v4127 = vpow.pop %v4126
  %v4128 = vmul.f32 %v4125, 1.442695
  %v4129 = vpow.pop %v4128
  %v4130 = vadd.f32 %v4127, 1.0
  %v4131 = vadd.f32 %v4129, 1.0
  %v4132 = vrcp.pop %v4130
  %v4133 = vmul.f32 1.0, %v4132
  %v4134 = vrcp.pop %v4131
  %v4135 = vmul.f32 1.0, %v4134
  %4138 = vrot.lane.b32.xlu0 %v4071, 64
  %v4139 = vpop.permute.xlu0 %4138
  %4140 = vrot.lane.b32.xlu0 %v4074, 64
  %v4141 = vpop.permute.xlu0 %4140
  %v4144 = vmul.f32 %v4133, %v4139
  %v4145 = vmul.f32 %v4135, %v4141
  %4148 = vrot.lane.b32.xlu0 %v4144, 64
  %v4149 = vpop.permute.xlu0 %4148
  %4150 = vrot.lane.b32.xlu0 %v4145, 64
  %v4151 = vpop.permute.xlu0 %4150
  %v4154 = vadd.f32 %v3498, %v4149
  %v4155 = vadd.f32 %v3502, %v4151
  %v4156 = vtanh.pop %v4154
  %v4157 = vtanh.pop %v4155
  %v4158 = vsub.f32 1.0, %v4133
  %v4159 = vsub.f32 1.0, %v4135
  %4162 = vrot.lane.b32.xlu0 %v4156, 96
  %v4163 = vpop.permute.xlu0 %4162
  %4164 = vrot.lane.b32.xlu0 %v4157, 96
  %v4165 = vpop.permute.xlu0 %4164
  %v4168 = vmul.f32 %v4158, %v4163
  %v4169 = vmul.f32 %v4159, %v4165
  %v4170 = vmul.f32 %v4133, %v3955
  %v4171 = vmul.f32 %v4135, %v3956
  %v4172 = vadd.f32 %v4168, %v4170
  %v4173 = vadd.f32 %v4169, %v4171
  %4176 = vrot.lane.b32.xlu0 %v4116, 96
  %v4177 = vpop.permute.xlu0 %4176
  %4178 = vrot.lane.b32.xlu0 %v4119, 96
  %v4179 = vpop.permute.xlu0 %4178
  %v4182 = vadd.f32 %v3528, %v4177
  %v4183 = vadd.f32 %v3532, %v4179
  %v4184 = vxor.u32 %v4182, 2147483648
  %v4185 = vxor.u32 %v4183, 2147483648
  %v4186 = vmul.f32 %v4184, 1.442695
  %v4187 = vpow.pop %v4186
  %v4188 = vmul.f32 %v4185, 1.442695
  %v4189 = vpow.pop %v4188
  %v4190 = vadd.f32 %v4187, 1.0
  %v4191 = vadd.f32 %v4189, 1.0
  %v4192 = vrcp.pop %v4190
  %v4193 = vmul.f32 1.0, %v4192
  %v4194 = vrcp.pop %v4191
  %v4195 = vmul.f32 1.0, %v4194
  %v4196 = vadd.f32 %v3530, %v4177
  %v4197 = vadd.f32 %v3534, %v4179
  %v4198 = vxor.u32 %v4196, 2147483648
  %v4199 = vxor.u32 %v4197, 2147483648
  %v4200 = vmul.f32 %v4198, 1.442695
  %v4201 = vpow.pop %v4200
  %v4202 = vmul.f32 %v4199, 1.442695
  %v4203 = vpow.pop %v4202
  %v4204 = vadd.f32 %v4201, 1.0
  %v4205 = vadd.f32 %v4203, 1.0
  %v4206 = vrcp.pop %v4204
  %v4207 = vmul.f32 1.0, %v4206
  %v4208 = vrcp.pop %v4205
  %v4209 = vmul.f32 1.0, %v4208
  %4210 = vrot.lane.b32.xlu0 %v4116, 32
  %v4211 = vpop.permute.xlu0 %4210
  %4212 = vrot.lane.b32.xlu0 %v4119, 32
  %v4213 = vpop.permute.xlu0 %4212
  %v4216 = vmul.f32 %v4193, %v4211
  %v4217 = vmul.f32 %v4195, %v4213
  %4220 = vrot.lane.b32.xlu0 %v4216, 64
  %v4221 = vpop.permute.xlu0 %4220
  %4222 = vrot.lane.b32.xlu0 %v4217, 64
  %v4223 = vpop.permute.xlu0 %4222
  %v4226 = vadd.f32 %v3530, %v4221
  %v4227 = vadd.f32 %v3534, %v4223
  %v4228 = vtanh.pop %v4226
  %v4229 = vtanh.pop %v4227
  %v4230 = vsub.f32 1.0, %v4207
  %v4231 = vsub.f32 1.0, %v4209
  %4234 = vrot.lane.b32.xlu0 %v4228, 96
  %v4235 = vpop.permute.xlu0 %4234
  %4236 = vrot.lane.b32.xlu0 %v4229, 96
  %v4237 = vpop.permute.xlu0 %4236
  %v4240 = vmul.f32 %v4230, %v4235
  %v4241 = vmul.f32 %v4231, %v4237
  %v4242 = vmul.f32 %v4207, %v4027
  %v4243 = vmul.f32 %v4209, %v4028
  %v4244 = vadd.f32 %v4240, %v4242
  %v4245 = vadd.f32 %v4241, %v4243
  %v4246 = vpack.c.bf16 %v4173, %v4172
  %4248 = vrot.lane.b32.xlu0 %v4246, 96
  %v4249 = vpop.permute.xlu0 %4248
  %v4251 = vsel %vm3579, %v4249, 0
  %4253 = vmatprep.subr.bf16.mxu0 0
  %4254 = vmatpush1.bf16.msra.mxu0 %v3575
  %4255 = vmatprep.subr.bf16.mxu0 0
  %4256 = vmatpush1.bf16.msra.mxu0 %v3576
  %4257 = vmatprep.subr.bf16.mxu0 0
  %4258 = vmatpush1.bf16.msra.mxu0 0
  %4259 = vmatprep.subr.bf16.mxu0 0
  %4260 = vmatpush1.bf16.msra.mxu0 0
  %4261 = vmatprep.subr.bf16.mxu0 0
  %4262 = vmatpush1.bf16.msra.mxu0 0
  %4263 = vmatprep.subr.bf16.mxu0 0
  %4264 = vmatpush1.bf16.msra.mxu0 0
  %4265 = vmatprep.subr.bf16.mxu0 0
  %4266 = vmatpush1.bf16.msra.mxu0 0
  %4267 = vmatprep.subr.bf16.mxu0 0
  %4268 = vmatpush1.bf16.msra.mxu0 0
  %4269 = vmatprep.subr.bf16.mxu0 0
  %4270 = vmatpush1.bf16.msra.mxu0 0
  %4271 = vmatprep.subr.bf16.mxu0 0
  %4272 = vmatpush1.bf16.msra.mxu0 0
  %4273 = vmatprep.subr.bf16.mxu0 0
  %4274 = vmatpush1.bf16.msra.mxu0 0
  %4275 = vmatprep.subr.bf16.mxu0 0
  %4276 = vmatpush1.bf16.msra.mxu0 0
  %4277 = vmatprep.subr.bf16.mxu0 0
  %4278 = vmatpush1.bf16.msra.mxu0 0
  %4279 = vmatprep.subr.bf16.mxu0 0
  %4280 = vmatpush1.bf16.msra.mxu0 0
  %4281 = vmatprep.subr.bf16.mxu0 0
  %4282 = vmatpush1.bf16.msra.mxu0 0
  %4283 = vmatprep.subr.bf16.mxu0 0
  %4284 = vmatpush1.bf16.msra.mxu0 0
  %4285 = vmatprep.mubr.bf16.mxu0 0
  %4286 = vmatmul.mubr.bf16.gmra.mrb[0].mxu0 %v4251
  %v4287 = vpop.f32.mrb[0].mxu0
  %v4288 = vadd.f32 %v3565, %v4287
  %v4289 = vpop.f32.mrb[0].mxu0
  %v4290 = vpop.f32.mrb[0].mxu0
  %v4291 = vadd.f32 %v3565, %v4290
  %v4292 = vpop.f32.mrb[0].mxu0
  %4293 = vdwg.mxu0
  %v4294 = vpack.c.bf16 %v4245, %v4244
  %v4296 = vsel %vm3579, %v4294, 0
  %4298 = vmatprep.subr.bf16.mxu0 0
  %4299 = vmatpush1.bf16.msra.mxu0 %v3643
  %4300 = vmatprep.subr.bf16.mxu0 0
  %4301 = vmatpush1.bf16.msra.mxu0 %v3644
  %4302 = vmatprep.subr.bf16.mxu0 0
  %4303 = vmatpush1.bf16.msra.mxu0 0
  %4304 = vmatprep.subr.bf16.mxu0 0
  %4305 = vmatpush1.bf16.msra.mxu0 0
  %4306 = vmatprep.subr.bf16.mxu0 0
  %4307 = vmatpush1.bf16.msra.mxu0 0
  %4308 = vmatprep.subr.bf16.mxu0 0
  %4309 = vmatpush1.bf16.msra.mxu0 0
  %4310 = vmatprep.subr.bf16.mxu0 0
  %4311 = vmatpush1.bf16.msra.mxu0 0
  %4312 = vmatprep.subr.bf16.mxu0 0
  %4313 = vmatpush1.bf16.msra.mxu0 0
  %4314 = vmatprep.subr.bf16.mxu0 0
  %4315 = vmatpush1.bf16.msra.mxu0 0
  %4316 = vmatprep.subr.bf16.mxu0 0
  %4317 = vmatpush1.bf16.msra.mxu0 0
  %4318 = vmatprep.subr.bf16.mxu0 0
  %4319 = vmatpush1.bf16.msra.mxu0 0
  %4320 = vmatprep.subr.bf16.mxu0 0
  %4321 = vmatpush1.bf16.msra.mxu0 0
  %4322 = vmatprep.subr.bf16.mxu0 0
  %4323 = vmatpush1.bf16.msra.mxu0 0
  %4324 = vmatprep.subr.bf16.mxu0 0
  %4325 = vmatpush1.bf16.msra.mxu0 0
  %4326 = vmatprep.subr.bf16.mxu0 0
  %4327 = vmatpush1.bf16.msra.mxu0 0
  %4328 = vmatprep.subr.bf16.mxu0 0
  %4329 = vmatpush1.bf16.msra.mxu0 0
  %4330 = vmatprep.mubr.bf16.mxu0 0
  %4331 = vmatmul.mubr.bf16.gmra.mrb[0].mxu0 %v4296
  %v4332 = vpop.f32.mrb[0].mxu0
  %v4333 = vadd.f32 %v3633, %v4332
  %v4334 = vpop.f32.mrb[0].mxu0
  %v4335 = vpop.f32.mrb[0].mxu0
  %v4336 = vadd.f32 %v3633, %v4335
  %v4337 = vpop.f32.mrb[0].mxu0
  %4338 = vdwg.mxu0
  %v4339 = vadd.f32 %v3508, %v4288
  %v4340 = vadd.f32 %v3512, %v4291
  %v4341 = vxor.u32 %v4339, 2147483648
  %v4342 = vxor.u32 %v4340, 2147483648
  %v4343 = vmul.f32 %v4341, 1.442695
  %v4344 = vpow.pop %v4343
  %v4345 = vmul.f32 %v4342, 1.442695
  %v4346 = vpow.pop %v4345
  %v4347 = vadd.f32 %v4344, 1.0
  %v4348 = vadd.f32 %v4346, 1.0
  %v4349 = vrcp.pop %v4347
  %v4350 = vmul.f32 1.0, %v4349
  %v4351 = vrcp.pop %v4348
  %v4352 = vmul.f32 1.0, %v4351
  %4355 = vrot.lane.b32.xlu0 %v4288, 64
  %v4356 = vpop.permute.xlu0 %4355
  %4357 = vrot.lane.b32.xlu0 %v4291, 64
  %v4358 = vpop.permute.xlu0 %4357
  %v4361 = vmul.f32 %v4350, %v4356
  %v4362 = vmul.f32 %v4352, %v4358
  %4365 = vrot.lane.b32.xlu0 %v4361, 64
  %v4366 = vpop.permute.xlu0 %4365
  %4367 = vrot.lane.b32.xlu0 %v4362, 64
  %v4368 = vpop.permute.xlu0 %4367
  %v4371 = vadd.f32 %v3508, %v4366
  %v4372 = vadd.f32 %v3512, %v4368
  %v4373 = vtanh.pop %v4371
  %v4374 = vtanh.pop %v4372
  %v4375 = vsub.f32 1.0, %v4350
  %v4376 = vsub.f32 1.0, %v4352
  %4379 = vrot.lane.b32.xlu0 %v4373, 96
  %v4380 = vpop.permute.xlu0 %4379
  %4381 = vrot.lane.b32.xlu0 %v4374, 96
  %v4382 = vpop.permute.xlu0 %4381
  %v4385 = vmul.f32 %v4375, %v4380
  %v4386 = vmul.f32 %v4376, %v4382
  %v4387 = vmul.f32 %v4350, %v4172
  %v4388 = vmul.f32 %v4352, %v4173
  %v4389 = vadd.f32 %v4385, %v4387
  %v4390 = vadd.f32 %v4386, %v4388
  %4393 = vrot.lane.b32.xlu0 %v4333, 96
  %v4394 = vpop.permute.xlu0 %4393
  %4395 = vrot.lane.b32.xlu0 %v4336, 96
  %v4396 = vpop.permute.xlu0 %4395
  %v4399 = vadd.f32 %v3518, %v4394
  %v4400 = vadd.f32 %v3522, %v4396
  %v4401 = vxor.u32 %v4399, 2147483648
  %v4402 = vxor.u32 %v4400, 2147483648
  %v4403 = vmul.f32 %v4401, 1.442695
  %v4404 = vpow.pop %v4403
  %v4405 = vmul.f32 %v4402, 1.442695
  %v4406 = vpow.pop %v4405
  %v4407 = vadd.f32 %v4404, 1.0
  %v4408 = vadd.f32 %v4406, 1.0
  %v4409 = vrcp.pop %v4407
  %v4410 = vmul.f32 1.0, %v4409
  %v4411 = vrcp.pop %v4408
  %v4412 = vmul.f32 1.0, %v4411
  %v4413 = vadd.f32 %v3520, %v4394
  %v4414 = vadd.f32 %v3524, %v4396
  %v4415 = vxor.u32 %v4413, 2147483648
  %v4416 = vxor.u32 %v4414, 2147483648
  %v4417 = vmul.f32 %v4415, 1.442695
  %v4418 = vpow.pop %v4417
  %v4419 = vmul.f32 %v4416, 1.442695
  %v4420 = vpow.pop %v4419
  %v4421 = vadd.f32 %v4418, 1.0
  %v4422 = vadd.f32 %v4420, 1.0
  %v4423 = vrcp.pop %v4421
  %v4424 = vmul.f32 1.0, %v4423
  %v4425 = vrcp.pop %v4422
  %v4426 = vmul.f32 1.0, %v4425
  %4427 = vrot.lane.b32.xlu0 %v4333, 32
  %v4428 = vpop.permute.xlu0 %4427
  %4429 = vrot.lane.b32.xlu0 %v4336, 32
  %v4430 = vpop.permute.xlu0 %4429
  %v4433 = vmul.f32 %v4410, %v4428
  %v4434 = vmul.f32 %v4412, %v4430
  %4437 = vrot.lane.b32.xlu0 %v4433, 64
  %v4438 = vpop.permute.xlu0 %4437
  %4439 = vrot.lane.b32.xlu0 %v4434, 64
  %v4440 = vpop.permute.xlu0 %4439
  %v4443 = vadd.f32 %v3520, %v4438
  %v4444 = vadd.f32 %v3524, %v4440
  %v4445 = vtanh.pop %v4443
  %v4446 = vtanh.pop %v4444
  %v4447 = vsub.f32 1.0, %v4424
  %v4448 = vsub.f32 1.0, %v4426
  %4451 = vrot.lane.b32.xlu0 %v4445, 96
  %v4452 = vpop.permute.xlu0 %4451
  %4453 = vrot.lane.b32.xlu0 %v4446, 96
  %v4454 = vpop.permute.xlu0 %4453
  %v4457 = vmul.f32 %v4447, %v4452
  %v4458 = vmul.f32 %v4448, %v4454
  %v4459 = vmul.f32 %v4424, %v4244
  %v4460 = vmul.f32 %v4426, %v4245
  %v4461 = vadd.f32 %v4457, %v4459
  %v4462 = vadd.f32 %v4458, %v4460
  %v4463 = vpack.c.bf16 %v4390, %v4389
  %4465 = vrot.lane.b32.xlu0 %v4463, 96
  %v4466 = vpop.permute.xlu0 %4465
  %v4468 = vsel %vm3579, %v4466, 0
  %4470 = vmatprep.subr.bf16.mxu0 0
  %4471 = vmatpush1.bf16.msra.mxu0 %v3575
  %4472 = vmatprep.subr.bf16.mxu0 0
  %4473 = vmatpush1.bf16.msra.mxu0 %v3576
  %4474 = vmatprep.subr.bf16.mxu0 0
  %4475 = vmatpush1.bf16.msra.mxu0 0
  %4476 = vmatprep.subr.bf16.mxu0 0
  %4477 = vmatpush1.bf16.msra.mxu0 0
  %4478 = vmatprep.subr.bf16.mxu0 0
  %4479 = vmatpush1.bf16.msra.mxu0 0
  %4480 = vmatprep.subr.bf16.mxu0 0
  %4481 = vmatpush1.bf16.msra.mxu0 0
  %4482 = vmatprep.subr.bf16.mxu0 0
  %4483 = vmatpush1.bf16.msra.mxu0 0
  %4484 = vmatprep.subr.bf16.mxu0 0
  %4485 = vmatpush1.bf16.msra.mxu0 0
  %4486 = vmatprep.subr.bf16.mxu0 0
  %4487 = vmatpush1.bf16.msra.mxu0 0
  %4488 = vmatprep.subr.bf16.mxu0 0
  %4489 = vmatpush1.bf16.msra.mxu0 0
  %4490 = vmatprep.subr.bf16.mxu0 0
  %4491 = vmatpush1.bf16.msra.mxu0 0
  %4492 = vmatprep.subr.bf16.mxu0 0
  %4493 = vmatpush1.bf16.msra.mxu0 0
  %4494 = vmatprep.subr.bf16.mxu0 0
  %4495 = vmatpush1.bf16.msra.mxu0 0
  %4496 = vmatprep.subr.bf16.mxu0 0
  %4497 = vmatpush1.bf16.msra.mxu0 0
  %4498 = vmatprep.subr.bf16.mxu0 0
  %4499 = vmatpush1.bf16.msra.mxu0 0
  %4500 = vmatprep.subr.bf16.mxu0 0
  %4501 = vmatpush1.bf16.msra.mxu0 0
  %4502 = vmatprep.mubr.bf16.mxu0 0
  %4503 = vmatmul.mubr.bf16.gmra.mrb[0].mxu0 %v4468
  %v4504 = vpop.f32.mrb[0].mxu0
  %v4505 = vadd.f32 %v3565, %v4504
  %v4506 = vpop.f32.mrb[0].mxu0
  %v4507 = vpop.f32.mrb[0].mxu0
  %v4508 = vadd.f32 %v3565, %v4507
  %v4509 = vpop.f32.mrb[0].mxu0
  %4510 = vdwg.mxu0
  %v4511 = vpack.c.bf16 %v4462, %v4461
  %v4513 = vsel %vm3579, %v4511, 0
  %4515 = vmatprep.subr.bf16.mxu0 0
  %4516 = vmatpush1.bf16.msra.mxu0 %v3643
  %4517 = vmatprep.subr.bf16.mxu0 0
  %4518 = vmatpush1.bf16.msra.mxu0 %v3644
  %4519 = vmatprep.subr.bf16.mxu0 0
  %4520 = vmatpush1.bf16.msra.mxu0 0
  %4521 = vmatprep.subr.bf16.mxu0 0
  %4522 = vmatpush1.bf16.msra.mxu0 0
  %4523 = vmatprep.subr.bf16.mxu0 0
  %4524 = vmatpush1.bf16.msra.mxu0 0
  %4525 = vmatprep.subr.bf16.mxu0 0
  %4526 = vmatpush1.bf16.msra.mxu0 0
  %4527 = vmatprep.subr.bf16.mxu0 0
  %4528 = vmatpush1.bf16.msra.mxu0 0
  %4529 = vmatprep.subr.bf16.mxu0 0
  %4530 = vmatpush1.bf16.msra.mxu0 0
  %4531 = vmatprep.subr.bf16.mxu0 0
  %4532 = vmatpush1.bf16.msra.mxu0 0
  %4533 = vmatprep.subr.bf16.mxu0 0
  %4534 = vmatpush1.bf16.msra.mxu0 0
  %4535 = vmatprep.subr.bf16.mxu0 0
  %4536 = vmatpush1.bf16.msra.mxu0 0
  %4537 = vmatprep.subr.bf16.mxu0 0
  %4538 = vmatpush1.bf16.msra.mxu0 0
  %4539 = vmatprep.subr.bf16.mxu0 0
  %4540 = vmatpush1.bf16.msra.mxu0 0
  %4541 = vmatprep.subr.bf16.mxu0 0
  %4542 = vmatpush1.bf16.msra.mxu0 0
  %4543 = vmatprep.subr.bf16.mxu0 0
  %4544 = vmatpush1.bf16.msra.mxu0 0
  %4545 = vmatprep.subr.bf16.mxu0 0
  %4546 = vmatpush1.bf16.msra.mxu0 0
  %4547 = vmatprep.mubr.bf16.mxu0 0
  %4548 = vmatmul.mubr.bf16.gmra.mrb[0].mxu0 %v4513
  %v4549 = vpop.f32.mrb[0].mxu0
  %v4550 = vadd.f32 %v3633, %v4549
  %v4551 = vpop.f32.mrb[0].mxu0
  %v4552 = vpop.f32.mrb[0].mxu0
  %v4553 = vadd.f32 %v3633, %v4552
  %v4554 = vpop.f32.mrb[0].mxu0
  %4555 = vdwg.mxu0
  %v4556 = vadd.f32 %v3518, %v4505
  %v4557 = vadd.f32 %v3522, %v4508
  %v4558 = vxor.u32 %v4556, 2147483648
  %v4559 = vxor.u32 %v4557, 2147483648
  %v4560 = vmul.f32 %v4558, 1.442695
  %v4561 = vpow.pop %v4560
  %v4562 = vmul.f32 %v4559, 1.442695
  %v4563 = vpow.pop %v4562
  %v4564 = vadd.f32 %v4561, 1.0
  %v4565 = vadd.f32 %v4563, 1.0
  %v4566 = vrcp.pop %v4564
  %v4567 = vmul.f32 1.0, %v4566
  %v4568 = vrcp.pop %v4565
  %v4569 = vmul.f32 1.0, %v4568
  %4572 = vrot.lane.b32.xlu0 %v4505, 64
  %v4573 = vpop.permute.xlu0 %4572
  %4574 = vrot.lane.b32.xlu0 %v4508, 64
  %v4575 = vpop.permute.xlu0 %4574
  %v4578 = vmul.f32 %v4567, %v4573
  %v4579 = vmul.f32 %v4569, %v4575
  %4582 = vrot.lane.b32.xlu0 %v4578, 64
  %v4583 = vpop.permute.xlu0 %4582
  %4584 = vrot.lane.b32.xlu0 %v4579, 64
  %v4585 = vpop.permute.xlu0 %4584
  %v4588 = vadd.f32 %v3518, %v4583
  %v4589 = vadd.f32 %v3522, %v4585
  %v4590 = vtanh.pop %v4588
  %v4591 = vtanh.pop %v4589
  %v4592 = vsub.f32 1.0, %v4567
  %v4593 = vsub.f32 1.0, %v4569
  %4596 = vrot.lane.b32.xlu0 %v4590, 96
  %v4597 = vpop.permute.xlu0 %4596
  %4598 = vrot.lane.b32.xlu0 %v4591, 96
  %v4599 = vpop.permute.xlu0 %4598
  %v4602 = vmul.f32 %v4592, %v4597
  %v4603 = vmul.f32 %v4593, %v4599
  %v4604 = vmul.f32 %v4567, %v4389
  %v4605 = vmul.f32 %v4569, %v4390
  %v4606 = vadd.f32 %v4602, %v4604
  %v4607 = vadd.f32 %v4603, %v4605
  %4610 = vrot.lane.b32.xlu0 %v4550, 96
  %v4611 = vpop.permute.xlu0 %4610
  %4612 = vrot.lane.b32.xlu0 %v4553, 96
  %v4613 = vpop.permute.xlu0 %4612
  %v4616 = vadd.f32 %v3508, %v4611
  %v4617 = vadd.f32 %v3512, %v4613
  %v4618 = vxor.u32 %v4616, 2147483648
  %v4619 = vxor.u32 %v4617, 2147483648
  %v4620 = vmul.f32 %v4618, 1.442695
  %v4621 = vpow.pop %v4620
  %v4622 = vmul.f32 %v4619, 1.442695
  %v4623 = vpow.pop %v4622
  %v4624 = vadd.f32 %v4621, 1.0
  %v4625 = vadd.f32 %v4623, 1.0
  %v4626 = vrcp.pop %v4624
  %v4627 = vmul.f32 1.0, %v4626
  %v4628 = vrcp.pop %v4625
  %v4629 = vmul.f32 1.0, %v4628
  %v4630 = vadd.f32 %v3510, %v4611
  %v4631 = vadd.f32 %v3514, %v4613
  %v4632 = vxor.u32 %v4630, 2147483648
  %v4633 = vxor.u32 %v4631, 2147483648
  %v4634 = vmul.f32 %v4632, 1.442695
  %v4635 = vpow.pop %v4634
  %v4636 = vmul.f32 %v4633, 1.442695
  %v4637 = vpow.pop %v4636
  %v4638 = vadd.f32 %v4635, 1.0
  %v4639 = vadd.f32 %v4637, 1.0
  %v4640 = vrcp.pop %v4638
  %v4641 = vmul.f32 1.0, %v4640
  %v4642 = vrcp.pop %v4639
  %v4643 = vmul.f32 1.0, %v4642
  %4644 = vrot.lane.b32.xlu0 %v4550, 32
  %v4645 = vpop.permute.xlu0 %4644
  %4646 = vrot.lane.b32.xlu0 %v4553, 32
  %v4647 = vpop.permute.xlu0 %4646
  %v4650 = vmul.f32 %v4627, %v4645
  %v4651 = vmul.f32 %v4629, %v4647
  %4654 = vrot.lane.b32.xlu0 %v4650, 64
  %v4655 = vpop.permute.xlu0 %4654
  %4656 = vrot.lane.b32.xlu0 %v4651, 64
  %v4657 = vpop.permute.xlu0 %4656
  %v4660 = vadd.f32 %v3510, %v4655
  %v4661 = vadd.f32 %v3514, %v4657
  %v4662 = vtanh.pop %v4660
  %v4663 = vtanh.pop %v4661
  %v4664 = vsub.f32 1.0, %v4641
  %v4665 = vsub.f32 1.0, %v4643
  %4668 = vrot.lane.b32.xlu0 %v4662, 96
  %v4669 = vpop.permute.xlu0 %4668
  %4670 = vrot.lane.b32.xlu0 %v4663, 96
  %v4671 = vpop.permute.xlu0 %4670
  %v4674 = vmul.f32 %v4664, %v4669
  %v4675 = vmul.f32 %v4665, %v4671
  %v4676 = vmul.f32 %v4641, %v4461
  %v4677 = vmul.f32 %v4643, %v4462
  %v4678 = vadd.f32 %v4674, %v4676
  %v4679 = vadd.f32 %v4675, %v4677
  %v4680 = vpack.c.bf16 %v4607, %v4606
  %4682 = vrot.lane.b32.xlu0 %v4680, 96
  %v4683 = vpop.permute.xlu0 %4682
  %v4685 = vsel %vm3579, %v4683, 0
  %4687 = vmatprep.subr.bf16.mxu0 0
  %4688 = vmatpush1.bf16.msra.mxu0 %v3575
  %4689 = vmatprep.subr.bf16.mxu0 0
  %4690 = vmatpush1.bf16.msra.mxu0 %v3576
  %4691 = vmatprep.subr.bf16.mxu0 0
  %4692 = vmatpush1.bf16.msra.mxu0 0
  %4693 = vmatprep.subr.bf16.mxu0 0
  %4694 = vmatpush1.bf16.msra.mxu0 0
  %4695 = vmatprep.subr.bf16.mxu0 0
  %4696 = vmatpush1.bf16.msra.mxu0 0
  %4697 = vmatprep.subr.bf16.mxu0 0
  %4698 = vmatpush1.bf16.msra.mxu0 0
  %4699 = vmatprep.subr.bf16.mxu0 0
  %4700 = vmatpush1.bf16.msra.mxu0 0
  %4701 = vmatprep.subr.bf16.mxu0 0
  %4702 = vmatpush1.bf16.msra.mxu0 0
  %4703 = vmatprep.subr.bf16.mxu0 0
  %4704 = vmatpush1.bf16.msra.mxu0 0
  %4705 = vmatprep.subr.bf16.mxu0 0
  %4706 = vmatpush1.bf16.msra.mxu0 0
  %4707 = vmatprep.subr.bf16.mxu0 0
  %4708 = vmatpush1.bf16.msra.mxu0 0
  %4709 = vmatprep.subr.bf16.mxu0 0
  %4710 = vmatpush1.bf16.msra.mxu0 0
  %4711 = vmatprep.subr.bf16.mxu0 0
  %4712 = vmatpush1.bf16.msra.mxu0 0
  %4713 = vmatprep.subr.bf16.mxu0 0
  %4714 = vmatpush1.bf16.msra.mxu0 0
  %4715 = vmatprep.subr.bf16.mxu0 0
  %4716 = vmatpush1.bf16.msra.mxu0 0
  %4717 = vmatprep.subr.bf16.mxu0 0
  %4718 = vmatpush1.bf16.msra.mxu0 0
  %4719 = vmatprep.mubr.bf16.mxu0 0
  %4720 = vmatmul.mubr.bf16.gmra.mrb[0].mxu0 %v4685
  %v4721 = vpop.f32.mrb[0].mxu0
  %v4722 = vadd.f32 %v3565, %v4721
  %v4723 = vpop.f32.mrb[0].mxu0
  %v4724 = vpop.f32.mrb[0].mxu0
  %v4725 = vadd.f32 %v3565, %v4724
  %v4726 = vpop.f32.mrb[0].mxu0
  %4727 = vdwg.mxu0
  %v4728 = vpack.c.bf16 %v4679, %v4678
  %v4730 = vsel %vm3579, %v4728, 0
  %4732 = vmatprep.subr.bf16.mxu0 0
  %4733 = vmatpush1.bf16.msra.mxu0 %v3643
  %4734 = vmatprep.subr.bf16.mxu0 0
  %4735 = vmatpush1.bf16.msra.mxu0 %v3644
  %4736 = vmatprep.subr.bf16.mxu0 0
  %4737 = vmatpush1.bf16.msra.mxu0 0
  %4738 = vmatprep.subr.bf16.mxu0 0
  %4739 = vmatpush1.bf16.msra.mxu0 0
  %4740 = vmatprep.subr.bf16.mxu0 0
  %4741 = vmatpush1.bf16.msra.mxu0 0
  %4742 = vmatprep.subr.bf16.mxu0 0
  %4743 = vmatpush1.bf16.msra.mxu0 0
  %4744 = vmatprep.subr.bf16.mxu0 0
  %4745 = vmatpush1.bf16.msra.mxu0 0
  %4746 = vmatprep.subr.bf16.mxu0 0
  %4747 = vmatpush1.bf16.msra.mxu0 0
  %4748 = vmatprep.subr.bf16.mxu0 0
  %4749 = vmatpush1.bf16.msra.mxu0 0
  %4750 = vmatprep.subr.bf16.mxu0 0
  %4751 = vmatpush1.bf16.msra.mxu0 0
  %4752 = vmatprep.subr.bf16.mxu0 0
  %4753 = vmatpush1.bf16.msra.mxu0 0
  %4754 = vmatprep.subr.bf16.mxu0 0
  %4755 = vmatpush1.bf16.msra.mxu0 0
  %4756 = vmatprep.subr.bf16.mxu0 0
  %4757 = vmatpush1.bf16.msra.mxu0 0
  %4758 = vmatprep.subr.bf16.mxu0 0
  %4759 = vmatpush1.bf16.msra.mxu0 0
  %4760 = vmatprep.subr.bf16.mxu0 0
  %4761 = vmatpush1.bf16.msra.mxu0 0
  %4762 = vmatprep.subr.bf16.mxu0 0
  %4763 = vmatpush1.bf16.msra.mxu0 0
  %4764 = vmatprep.mubr.bf16.mxu0 0
  %4765 = vmatmul.mubr.bf16.gmra.mrb[0].mxu0 %v4730
  %v4766 = vpop.f32.mrb[0].mxu0
  %v4767 = vadd.f32 %v3633, %v4766
  %v4768 = vpop.f32.mrb[0].mxu0
  %v4769 = vpop.f32.mrb[0].mxu0
  %v4770 = vadd.f32 %v3633, %v4769
  %v4771 = vpop.f32.mrb[0].mxu0
  %4772 = vdwg.mxu0
  %v4773 = vadd.f32 %v3528, %v4722
  %v4774 = vadd.f32 %v3532, %v4725
  %v4775 = vxor.u32 %v4773, 2147483648
  %v4776 = vxor.u32 %v4774, 2147483648
  %v4777 = vmul.f32 %v4775, 1.442695
  %v4778 = vpow.pop %v4777
  %v4779 = vmul.f32 %v4776, 1.442695
  %v4780 = vpow.pop %v4779
  %v4781 = vadd.f32 %v4778, 1.0
  %v4782 = vadd.f32 %v4780, 1.0
  %v4783 = vrcp.pop %v4781
  %v4784 = vmul.f32 1.0, %v4783
  %v4785 = vrcp.pop %v4782
  %v4786 = vmul.f32 1.0, %v4785
  %4789 = vrot.lane.b32.xlu0 %v4722, 64
  %v4790 = vpop.permute.xlu0 %4789
  %4791 = vrot.lane.b32.xlu0 %v4725, 64
  %v4792 = vpop.permute.xlu0 %4791
  %v4795 = vmul.f32 %v4784, %v4790
  %v4796 = vmul.f32 %v4786, %v4792
  %4799 = vrot.lane.b32.xlu0 %v4795, 64
  %v4800 = vpop.permute.xlu0 %4799
  %4801 = vrot.lane.b32.xlu0 %v4796, 64
  %v4802 = vpop.permute.xlu0 %4801
  %v4805 = vadd.f32 %v3528, %v4800
  %v4806 = vadd.f32 %v3532, %v4802
  %v4807 = vtanh.pop %v4805
  %v4808 = vtanh.pop %v4806
  %v4809 = vsub.f32 1.0, %v4784
  %v4810 = vsub.f32 1.0, %v4786
  %4813 = vrot.lane.b32.xlu0 %v4807, 96
  %v4814 = vpop.permute.xlu0 %4813
  %4815 = vrot.lane.b32.xlu0 %v4808, 96
  %v4816 = vpop.permute.xlu0 %4815
  %v4819 = vmul.f32 %v4809, %v4814
  %v4820 = vmul.f32 %v4810, %v4816
  %v4821 = vmul.f32 %v4784, %v4606
  %v4822 = vmul.f32 %v4786, %v4607
  %v4823 = vadd.f32 %v4819, %v4821
  %v4824 = vadd.f32 %v4820, %v4822
  %4827 = vrot.lane.b32.xlu0 %v4767, 96
  %v4828 = vpop.permute.xlu0 %4827
  %4829 = vrot.lane.b32.xlu0 %v4770, 96
  %v4830 = vpop.permute.xlu0 %4829
  %v4833 = vadd.f32 %v3498, %v4828
  %v4834 = vadd.f32 %v3502, %v4830
  %v4835 = vxor.u32 %v4833, 2147483648
  %v4836 = vxor.u32 %v4834, 2147483648
  %v4837 = vmul.f32 %v4835, 1.442695
  %v4838 = vpow.pop %v4837
  %v4839 = vmul.f32 %v4836, 1.442695
  %v4840 = vpow.pop %v4839
  %v4841 = vadd.f32 %v4838, 1.0
  %v4842 = vadd.f32 %v4840, 1.0
  %v4843 = vrcp.pop %v4841
  %v4844 = vmul.f32 1.0, %v4843
  %v4845 = vrcp.pop %v4842
  %v4846 = vmul.f32 1.0, %v4845
  %v4847 = vadd.f32 %v3500, %v4828
  %v4848 = vadd.f32 %v3504, %v4830
  %v4849 = vxor.u32 %v4847, 2147483648
  %v4850 = vxor.u32 %v4848, 2147483648
  %v4851 = vmul.f32 %v4849, 1.442695
  %v4852 = vpow.pop %v4851
  %v4853 = vmul.f32 %v4850, 1.442695
  %v4854 = vpow.pop %v4853
  %v4855 = vadd.f32 %v4852, 1.0
  %v4856 = vadd.f32 %v4854, 1.0
  %v4857 = vrcp.pop %v4855
  %v4858 = vmul.f32 1.0, %v4857
  %v4859 = vrcp.pop %v4856
  %v4860 = vmul.f32 1.0, %v4859
  %4861 = vrot.lane.b32.xlu0 %v4767, 32
  %v4862 = vpop.permute.xlu0 %4861
  %4863 = vrot.lane.b32.xlu0 %v4770, 32
  %v4864 = vpop.permute.xlu0 %4863
  %v4867 = vmul.f32 %v4844, %v4862
  %v4868 = vmul.f32 %v4846, %v4864
  %4871 = vrot.lane.b32.xlu0 %v4867, 64
  %v4872 = vpop.permute.xlu0 %4871
  %4873 = vrot.lane.b32.xlu0 %v4868, 64
  %v4874 = vpop.permute.xlu0 %4873
  %v4877 = vadd.f32 %v3500, %v4872
  %v4878 = vadd.f32 %v3504, %v4874
  %v4879 = vtanh.pop %v4877
  %v4880 = vtanh.pop %v4878
  %v4881 = vsub.f32 1.0, %v4858
  %v4882 = vsub.f32 1.0, %v4860
  %4885 = vrot.lane.b32.xlu0 %v4879, 96
  %v4886 = vpop.permute.xlu0 %4885
  %4887 = vrot.lane.b32.xlu0 %v4880, 96
  %v4888 = vpop.permute.xlu0 %4887
  %v4891 = vmul.f32 %v4881, %v4886
  %v4892 = vmul.f32 %v4882, %v4888
  %v4893 = vmul.f32 %v4858, %v4678
  %v4894 = vmul.f32 %v4860, %v4679
  %v4895 = vadd.f32 %v4891, %v4893
  %v4896 = vadd.f32 %v4892, %v4894
  %v4897 = vpack.c.bf16 %v4824, %v4823
  %4899 = vrot.lane.b32.xlu0 %v4897, 96
  %v4900 = vpop.permute.xlu0 %4899
  %v4902 = vsel %vm3579, %v4900, 0
  %4904 = vmatprep.subr.bf16.mxu0 0
  %4905 = vmatpush1.bf16.msra.mxu0 %v3575
  %4906 = vmatprep.subr.bf16.mxu0 0
  %4907 = vmatpush1.bf16.msra.mxu0 %v3576
  %4908 = vmatprep.subr.bf16.mxu0 0
  %4909 = vmatpush1.bf16.msra.mxu0 0
  %4910 = vmatprep.subr.bf16.mxu0 0
  %4911 = vmatpush1.bf16.msra.mxu0 0
  %4912 = vmatprep.subr.bf16.mxu0 0
  %4913 = vmatpush1.bf16.msra.mxu0 0
  %4914 = vmatprep.subr.bf16.mxu0 0
  %4915 = vmatpush1.bf16.msra.mxu0 0
  %4916 = vmatprep.subr.bf16.mxu0 0
  %4917 = vmatpush1.bf16.msra.mxu0 0
  %4918 = vmatprep.subr.bf16.mxu0 0
  %4919 = vmatpush1.bf16.msra.mxu0 0
  %4920 = vmatprep.subr.bf16.mxu0 0
  %4921 = vmatpush1.bf16.msra.mxu0 0
  %4922 = vmatprep.subr.bf16.mxu0 0
  %4923 = vmatpush1.bf16.msra.mxu0 0
  %4924 = vmatprep.subr.bf16.mxu0 0
  %4925 = vmatpush1.bf16.msra.mxu0 0
  %4926 = vmatprep.subr.bf16.mxu0 0
  %4927 = vmatpush1.bf16.msra.mxu0 0
  %4928 = vmatprep.subr.bf16.mxu0 0
  %4929 = vmatpush1.bf16.msra.mxu0 0
  %4930 = vmatprep.subr.bf16.mxu0 0
  %4931 = vmatpush1.bf16.msra.mxu0 0
  %4932 = vmatprep.subr.bf16.mxu0 0
  %4933 = vmatpush1.bf16.msra.mxu0 0
  %4934 = vmatprep.subr.bf16.mxu0 0
  %4935 = vmatpush1.bf16.msra.mxu0 0
  %4936 = vmatprep.mubr.bf16.mxu0 0
  %4937 = vmatmul.mubr.bf16.gmra.mrb[0].mxu0 %v4902
  %v4938 = vpop.f32.mrb[0].mxu0
  %v4939 = vadd.f32 %v3565, %v4938
  %v4940 = vpop.f32.mrb[0].mxu0
  %v4941 = vpop.f32.mrb[0].mxu0
  %v4942 = vadd.f32 %v3565, %v4941
  %v4943 = vpop.f32.mrb[0].mxu0
  %4944 = vdwg.mxu0
  %v4945 = vpack.c.bf16 %v4896, %v4895
  %v4947 = vsel %vm3579, %v4945, 0
  %4949 = vmatprep.subr.bf16.mxu0 0
  %4950 = vmatpush1.bf16.msra.mxu0 %v3643
  %4951 = vmatprep.subr.bf16.mxu0 0
  %4952 = vmatpush1.bf16.msra.mxu0 %v3644
  %4953 = vmatprep.subr.bf16.mxu0 0
  %4954 = vmatpush1.bf16.msra.mxu0 0
  %4955 = vmatprep.subr.bf16.mxu0 0
  %4956 = vmatpush1.bf16.msra.mxu0 0
  %4957 = vmatprep.subr.bf16.mxu0 0
  %4958 = vmatpush1.bf16.msra.mxu0 0
  %4959 = vmatprep.subr.bf16.mxu0 0
  %4960 = vmatpush1.bf16.msra.mxu0 0
  %4961 = vmatprep.subr.bf16.mxu0 0
  %4962 = vmatpush1.bf16.msra.mxu0 0
  %4963 = vmatprep.subr.bf16.mxu0 0
  %4964 = vmatpush1.bf16.msra.mxu0 0
  %4965 = vmatprep.subr.bf16.mxu0 0
  %4966 = vmatpush1.bf16.msra.mxu0 0
  %4967 = vmatprep.subr.bf16.mxu0 0
  %4968 = vmatpush1.bf16.msra.mxu0 0
  %4969 = vmatprep.subr.bf16.mxu0 0
  %4970 = vmatpush1.bf16.msra.mxu0 0
  %4971 = vmatprep.subr.bf16.mxu0 0
  %4972 = vmatpush1.bf16.msra.mxu0 0
  %4973 = vmatprep.subr.bf16.mxu0 0
  %4974 = vmatpush1.bf16.msra.mxu0 0
  %4975 = vmatprep.subr.bf16.mxu0 0
  %4976 = vmatpush1.bf16.msra.mxu0 0
  %4977 = vmatprep.subr.bf16.mxu0 0
  %4978 = vmatpush1.bf16.msra.mxu0 0
  %4979 = vmatprep.subr.bf16.mxu0 0
  %4980 = vmatpush1.bf16.msra.mxu0 0
  %4981 = vmatprep.mubr.bf16.mxu0 0
  %4982 = vmatmul.mubr.bf16.gmra.mrb[0].mxu0 %v4947
  %v4983 = vpop.f32.mrb[0].mxu0
  %v4984 = vadd.f32 %v3633, %v4983
  %v4985 = vpop.f32.mrb[0].mxu0
  %v4986 = vpop.f32.mrb[0].mxu0
  %v4987 = vadd.f32 %v3633, %v4986
  %v4988 = vpop.f32.mrb[0].mxu0
  %4989 = vdwg.mxu0
  %v4990 = vadd.f32 %v3538, %v4939
  %v4991 = vadd.f32 %v3542, %v4942
  %v4992 = vxor.u32 %v4990, 2147483648
  %v4993 = vxor.u32 %v4991, 2147483648
  %v4994 = vmul.f32 %v4992, 1.442695
  %v4995 = vpow.pop %v4994
  %v4996 = vmul.f32 %v4993, 1.442695
  %v4997 = vpow.pop %v4996
  %v4998 = vadd.f32 %v4995, 1.0
  %v4999 = vadd.f32 %v4997, 1.0
  %v5000 = vrcp.pop %v4998
  %v5001 = vmul.f32 1.0, %v5000
  %v5002 = vrcp.pop %v4999
  %v5003 = vmul.f32 1.0, %v5002
  %5006 = vrot.lane.b32.xlu0 %v4939, 64
  %v5007 = vpop.permute.xlu0 %5006
  %5008 = vrot.lane.b32.xlu0 %v4942, 64
  %v5009 = vpop.permute.xlu0 %5008
  %v5012 = vmul.f32 %v5001, %v5007
  %v5013 = vmul.f32 %v5003, %v5009
  %5016 = vrot.lane.b32.xlu0 %v5012, 64
  %v5017 = vpop.permute.xlu0 %5016
  %5018 = vrot.lane.b32.xlu0 %v5013, 64
  %v5019 = vpop.permute.xlu0 %5018
  %v5022 = vadd.f32 %v3538, %v5017
  %v5023 = vadd.f32 %v3542, %v5019
  %v5024 = vtanh.pop %v5022
  %v5025 = vtanh.pop %v5023
  %v5026 = vsub.f32 1.0, %v5001
  %v5027 = vsub.f32 1.0, %v5003
  %5030 = vrot.lane.b32.xlu0 %v5024, 96
  %v5031 = vpop.permute.xlu0 %5030
  %5032 = vrot.lane.b32.xlu0 %v5025, 96
  %v5033 = vpop.permute.xlu0 %5032
  %v5036 = vmul.f32 %v5026, %v5031
  %v5037 = vmul.f32 %v5027, %v5033
  %v5038 = vmul.f32 %v5001, %v4823
  %v5039 = vmul.f32 %v5003, %v4824
  %v5040 = vadd.f32 %v5036, %v5038
  %v5041 = vadd.f32 %v5037, %v5039
  %5044 = vrot.lane.b32.xlu0 %v4984, 96
  %v5045 = vpop.permute.xlu0 %5044
  %5046 = vrot.lane.b32.xlu0 %v4987, 96
  %v5047 = vpop.permute.xlu0 %5046
  %v5050 = vadd.f32 %v3488, %v5045
  %v5051 = vadd.f32 %v3492, %v5047
  %v5052 = vxor.u32 %v5050, 2147483648
  %v5053 = vxor.u32 %v5051, 2147483648
  %v5054 = vmul.f32 %v5052, 1.442695
  %v5055 = vpow.pop %v5054
  %v5056 = vmul.f32 %v5053, 1.442695
  %v5057 = vpow.pop %v5056
  %v5058 = vadd.f32 %v5055, 1.0
  %v5059 = vadd.f32 %v5057, 1.0
  %v5060 = vrcp.pop %v5058
  %v5061 = vmul.f32 1.0, %v5060
  %v5062 = vrcp.pop %v5059
  %v5063 = vmul.f32 1.0, %v5062
  %v5064 = vadd.f32 %v3490, %v5045
  %v5065 = vadd.f32 %v3494, %v5047
  %v5066 = vxor.u32 %v5064, 2147483648
  %v5067 = vxor.u32 %v5065, 2147483648
  %v5068 = vmul.f32 %v5066, 1.442695
  %v5069 = vpow.pop %v5068
  %v5070 = vmul.f32 %v5067, 1.442695
  %v5071 = vpow.pop %v5070
  %v5072 = vadd.f32 %v5069, 1.0
  %v5073 = vadd.f32 %v5071, 1.0
  %v5074 = vrcp.pop %v5072
  %v5075 = vmul.f32 1.0, %v5074
  %v5076 = vrcp.pop %v5073
  %v5077 = vmul.f32 1.0, %v5076
  %5078 = vrot.lane.b32.xlu0 %v4984, 32
  %v5079 = vpop.permute.xlu0 %5078
  %5080 = vrot.lane.b32.xlu0 %v4987, 32
  %v5081 = vpop.permute.xlu0 %5080
  %v5084 = vmul.f32 %v5061, %v5079
  %v5085 = vmul.f32 %v5063, %v5081
  %5088 = vrot.lane.b32.xlu0 %v5084, 64
  %v5089 = vpop.permute.xlu0 %5088
  %5090 = vrot.lane.b32.xlu0 %v5085, 64
  %v5091 = vpop.permute.xlu0 %5090
  %v5094 = vadd.f32 %v3490, %v5089
  %v5095 = vadd.f32 %v3494, %v5091
  %v5096 = vtanh.pop %v5094
  %v5097 = vtanh.pop %v5095
  %v5098 = vsub.f32 1.0, %v5075
  %v5099 = vsub.f32 1.0, %v5077
  %5102 = vrot.lane.b32.xlu0 %v5096, 96
  %v5103 = vpop.permute.xlu0 %5102
  %5104 = vrot.lane.b32.xlu0 %v5097, 96
  %v5105 = vpop.permute.xlu0 %5104
  %v5108 = vmul.f32 %v5098, %v5103
  %v5109 = vmul.f32 %v5099, %v5105
  %v5110 = vmul.f32 %v5075, %v4895
  %v5111 = vmul.f32 %v5077, %v4896
  %v5112 = vadd.f32 %v5108, %v5110
  %v5113 = vadd.f32 %v5109, %v5111
  %v5114 = vpack.c.bf16 %v5041, %v5040
  %5116 = vrot.lane.b32.xlu0 %v5114, 96
  %v5117 = vpop.permute.xlu0 %5116
  %v5119 = vsel %vm3579, %v5117, 0
  %5121 = vmatprep.subr.bf16.mxu0 0
  %5122 = vmatpush1.bf16.msra.mxu0 %v3575
  %5123 = vmatprep.subr.bf16.mxu0 0
  %5124 = vmatpush1.bf16.msra.mxu0 %v3576
  %5125 = vmatprep.subr.bf16.mxu0 0
  %5126 = vmatpush1.bf16.msra.mxu0 0
  %5127 = vmatprep.subr.bf16.mxu0 0
  %5128 = vmatpush1.bf16.msra.mxu0 0
  %5129 = vmatprep.subr.bf16.mxu0 0
  %5130 = vmatpush1.bf16.msra.mxu0 0
  %5131 = vmatprep.subr.bf16.mxu0 0
  %5132 = vmatpush1.bf16.msra.mxu0 0
  %5133 = vmatprep.subr.bf16.mxu0 0
  %5134 = vmatpush1.bf16.msra.mxu0 0
  %5135 = vmatprep.subr.bf16.mxu0 0
  %5136 = vmatpush1.bf16.msra.mxu0 0
  %5137 = vmatprep.subr.bf16.mxu0 0
  %5138 = vmatpush1.bf16.msra.mxu0 0
  %5139 = vmatprep.subr.bf16.mxu0 0
  %5140 = vmatpush1.bf16.msra.mxu0 0
  %5141 = vmatprep.subr.bf16.mxu0 0
  %5142 = vmatpush1.bf16.msra.mxu0 0
  %5143 = vmatprep.subr.bf16.mxu0 0
  %5144 = vmatpush1.bf16.msra.mxu0 0
  %5145 = vmatprep.subr.bf16.mxu0 0
  %5146 = vmatpush1.bf16.msra.mxu0 0
  %5147 = vmatprep.subr.bf16.mxu0 0
  %5148 = vmatpush1.bf16.msra.mxu0 0
  %5149 = vmatprep.subr.bf16.mxu0 0
  %5150 = vmatpush1.bf16.msra.mxu0 0
  %5151 = vmatprep.subr.bf16.mxu0 0
  %5152 = vmatpush1.bf16.msra.mxu0 0
  %5153 = vmatprep.mubr.bf16.mxu0 0
  %5154 = vmatmul.mubr.bf16.gmra.mrb[0].mxu0 %v5119
  %v5155 = vpop.f32.mrb[0].mxu0
  %v5156 = vadd.f32 %v3565, %v5155
  %v5157 = vpop.f32.mrb[0].mxu0
  %v5158 = vpop.f32.mrb[0].mxu0
  %v5159 = vadd.f32 %v3565, %v5158
  %v5160 = vpop.f32.mrb[0].mxu0
  %5161 = vdwg.mxu0
  %v5162 = vpack.c.bf16 %v5113, %v5112
  %v5164 = vsel %vm3579, %v5162, 0
  %5166 = vmatprep.subr.bf16.mxu0 0
  %5167 = vmatpush1.bf16.msra.mxu0 %v3643
  %5168 = vmatprep.subr.bf16.mxu0 0
  %5169 = vmatpush1.bf16.msra.mxu0 %v3644
  %5170 = vmatprep.subr.bf16.mxu0 0
  %5171 = vmatpush1.bf16.msra.mxu0 0
  %5172 = vmatprep.subr.bf16.mxu0 0
  %5173 = vmatpush1.bf16.msra.mxu0 0
  %5174 = vmatprep.subr.bf16.mxu0 0
  %5175 = vmatpush1.bf16.msra.mxu0 0
  %5176 = vmatprep.subr.bf16.mxu0 0
  %5177 = vmatpush1.bf16.msra.mxu0 0
  %5178 = vmatprep.subr.bf16.mxu0 0
  %5179 = vmatpush1.bf16.msra.mxu0 0
  %5180 = vmatprep.subr.bf16.mxu0 0
  %5181 = vmatpush1.bf16.msra.mxu0 0
  %5182 = vmatprep.subr.bf16.mxu0 0
  %5183 = vmatpush1.bf16.msra.mxu0 0
  %5184 = vmatprep.subr.bf16.mxu0 0
  %5185 = vmatpush1.bf16.msra.mxu0 0
  %5186 = vmatprep.subr.bf16.mxu0 0
  %5187 = vmatpush1.bf16.msra.mxu0 0
  %5188 = vmatprep.subr.bf16.mxu0 0
  %5189 = vmatpush1.bf16.msra.mxu0 0
  %5190 = vmatprep.subr.bf16.mxu0 0
  %5191 = vmatpush1.bf16.msra.mxu0 0
  %5192 = vmatprep.subr.bf16.mxu0 0
  %5193 = vmatpush1.bf16.msra.mxu0 0
  %5194 = vmatprep.subr.bf16.mxu0 0
  %5195 = vmatpush1.bf16.msra.mxu0 0
  %5196 = vmatprep.subr.bf16.mxu0 0
  %5197 = vmatpush1.bf16.msra.mxu0 0
  %5198 = vmatprep.mubr.bf16.mxu0 0
  %5199 = vmatmul.mubr.bf16.gmra.mrb[0].mxu0 %v5164
  %v5200 = vpop.f32.mrb[0].mxu0
  %v5201 = vadd.f32 %v3633, %v5200
  %v5202 = vpop.f32.mrb[0].mxu0
  %v5203 = vpop.f32.mrb[0].mxu0
  %v5204 = vadd.f32 %v3633, %v5203
  %v5205 = vpop.f32.mrb[0].mxu0
  %5206 = vdwg.mxu0
  %v5207 = vadd.f32 %v3548, %v5156
  %v5208 = vadd.f32 %v3552, %v5159
  %v5209 = vxor.u32 %v5207, 2147483648
  %v5210 = vxor.u32 %v5208, 2147483648
  %v5211 = vmul.f32 %v5209, 1.442695
  %v5212 = vpow.pop %v5211
  %v5213 = vmul.f32 %v5210, 1.442695
  %v5214 = vpow.pop %v5213
  %v5215 = vadd.f32 %v5212, 1.0
  %v5216 = vadd.f32 %v5214, 1.0
  %v5217 = vrcp.pop %v5215
  %v5218 = vmul.f32 1.0, %v5217
  %v5219 = vrcp.pop %v5216
  %v5220 = vmul.f32 1.0, %v5219
  %5223 = vrot.lane.b32.xlu0 %v5156, 64
  %v5224 = vpop.permute.xlu0 %5223
  %5225 = vrot.lane.b32.xlu0 %v5159, 64
  %v5226 = vpop.permute.xlu0 %5225
  %v5229 = vmul.f32 %v5218, %v5224
  %v5230 = vmul.f32 %v5220, %v5226
  %5233 = vrot.lane.b32.xlu0 %v5229, 64
  %v5234 = vpop.permute.xlu0 %5233
  %5235 = vrot.lane.b32.xlu0 %v5230, 64
  %v5236 = vpop.permute.xlu0 %5235
  %v5239 = vadd.f32 %v3548, %v5234
  %v5240 = vadd.f32 %v3552, %v5236
  %v5241 = vtanh.pop %v5239
  %v5242 = vtanh.pop %v5240
  %v5243 = vsub.f32 1.0, %v5218
  %v5244 = vsub.f32 1.0, %v5220
  %5247 = vrot.lane.b32.xlu0 %v5241, 96
  %v5248 = vpop.permute.xlu0 %5247
  %5249 = vrot.lane.b32.xlu0 %v5242, 96
  %v5250 = vpop.permute.xlu0 %5249
  %v5253 = vmul.f32 %v5243, %v5248
  %v5254 = vmul.f32 %v5244, %v5250
  %v5255 = vmul.f32 %v5218, %v5040
  %v5256 = vmul.f32 %v5220, %v5041
  %v5257 = vadd.f32 %v5253, %v5255
  %v5258 = vadd.f32 %v5254, %v5256
  %5261 = vrot.lane.b32.xlu0 %v5201, 96
  %v5262 = vpop.permute.xlu0 %5261
  %5263 = vrot.lane.b32.xlu0 %v5204, 96
  %v5264 = vpop.permute.xlu0 %5263
  %v5267 = vadd.f32 %v3478, %v5262
  %v5268 = vadd.f32 %v3482, %v5264
  %v5269 = vxor.u32 %v5267, 2147483648
  %v5270 = vxor.u32 %v5268, 2147483648
  %v5271 = vmul.f32 %v5269, 1.442695
  %v5272 = vpow.pop %v5271
  %v5273 = vmul.f32 %v5270, 1.442695
  %v5274 = vpow.pop %v5273
  %v5275 = vadd.f32 %v5272, 1.0
  %v5276 = vadd.f32 %v5274, 1.0
  %v5277 = vrcp.pop %v5275
  %v5278 = vmul.f32 1.0, %v5277
  %v5279 = vrcp.pop %v5276
  %v5280 = vmul.f32 1.0, %v5279
  %v5281 = vadd.f32 %v3480, %v5262
  %v5282 = vadd.f32 %v3484, %v5264
  %v5283 = vxor.u32 %v5281, 2147483648
  %v5284 = vxor.u32 %v5282, 2147483648
  %v5285 = vmul.f32 %v5283, 1.442695
  %v5286 = vpow.pop %v5285
  %v5287 = vmul.f32 %v5284, 1.442695
  %v5288 = vpow.pop %v5287
  %v5289 = vadd.f32 %v5286, 1.0
  %v5290 = vadd.f32 %v5288, 1.0
  %v5291 = vrcp.pop %v5289
  %v5292 = vmul.f32 1.0, %v5291
  %v5293 = vrcp.pop %v5290
  %v5294 = vmul.f32 1.0, %v5293
  %5295 = vrot.lane.b32.xlu0 %v5201, 32
  %v5296 = vpop.permute.xlu0 %5295
  %5297 = vrot.lane.b32.xlu0 %v5204, 32
  %v5298 = vpop.permute.xlu0 %5297
  %v5301 = vmul.f32 %v5278, %v5296
  %v5302 = vmul.f32 %v5280, %v5298
  %5305 = vrot.lane.b32.xlu0 %v5301, 64
  %v5306 = vpop.permute.xlu0 %5305
  %5307 = vrot.lane.b32.xlu0 %v5302, 64
  %v5308 = vpop.permute.xlu0 %5307
  %v5311 = vadd.f32 %v3480, %v5306
  %v5312 = vadd.f32 %v3484, %v5308
  %v5313 = vtanh.pop %v5311
  %v5314 = vtanh.pop %v5312
  %v5315 = vsub.f32 1.0, %v5292
  %v5316 = vsub.f32 1.0, %v5294
  %5319 = vrot.lane.b32.xlu0 %v5313, 96
  %v5320 = vpop.permute.xlu0 %5319
  %5321 = vrot.lane.b32.xlu0 %v5314, 96
  %v5322 = vpop.permute.xlu0 %5321
  %v5325 = vmul.f32 %v5315, %v5320
  %v5326 = vmul.f32 %v5316, %v5322
  %v5327 = vmul.f32 %v5292, %v5112
  %v5328 = vmul.f32 %v5294, %v5113
  %v5329 = vadd.f32 %v5325, %v5327
  %v5330 = vadd.f32 %v5326, %v5328
  %v5331 = vmax.f32 %v3738, 0.0
  %v5332 = vmax.f32 %v3739, 0.0
  %v5333 = vmax.f32 %v3955, 0.0
  %v5334 = vmax.f32 %v3956, 0.0
  %v5335 = vmax.f32 %v4172, 0.0
  %v5336 = vmax.f32 %v4173, 0.0
  %v5337 = vmax.f32 %v4389, 0.0
  %v5338 = vmax.f32 %v4390, 0.0
  %v5339 = vmax.f32 %v4606, 0.0
  %v5340 = vmax.f32 %v4607, 0.0
  %v5341 = vmax.f32 %v4823, 0.0
  %v5342 = vmax.f32 %v4824, 0.0
  %v5343 = vmax.f32 %v5040, 0.0
  %v5344 = vmax.f32 %v5041, 0.0
  %v5345 = vmax.f32 %v5257, 0.0
  %v5346 = vmax.f32 %v5258, 0.0
  %v5347 = vld [vmem:[%s16] sm:$0xf]
  %v5348 = vld [vmem:[%s16 + $0x4] sm:$0xf]
  %v5349 = vld [vmem:[%s16 + $0x8] sm:$0xf]
  %v5350 = vld [vmem:[%s16 + $0xc] sm:$0xf]
  %v5351 = vpack.c.bf16 %v5332, %v5331
  %v5352 = vpack.c.bf16 %v5334, %v5333
  %v5353 = vpack.c.bf16 %v5336, %v5335
  %v5354 = vpack.c.bf16 %v5338, %v5337
  %v5355 = vpack.c.bf16 %v5340, %v5339
  %v5356 = vpack.c.bf16 %v5342, %v5341
  %v5357 = vpack.c.bf16 %v5344, %v5343
  %v5358 = vpack.c.bf16 %v5346, %v5345
  %v5359 = vmax.f32 %v5329, 0.0
  %v5360 = vmax.f32 %v5330, 0.0
  %v5361 = vmax.f32 %v5112, 0.0
  %v5362 = vmax.f32 %v5113, 0.0
  %v5363 = vmax.f32 %v4895, 0.0
  %v5364 = vmax.f32 %v4896, 0.0
  %v5365 = vmax.f32 %v4678, 0.0
  %v5366 = vmax.f32 %v4679, 0.0
  %v5367 = vmax.f32 %v4461, 0.0
  %v5368 = vmax.f32 %v4462, 0.0
  %v5369 = vmax.f32 %v4244, 0.0
  %v5370 = vmax.f32 %v4245, 0.0
  %v5371 = vmax.f32 %v4027, 0.0
  %v5372 = vmax.f32 %v4028, 0.0
  %v5373 = vmax.f32 %v3810, 0.0
  %v5374 = vmax.f32 %v3811, 0.0
  %v5375 = vld [vmem:[%s17] sm:$0xf]
  %v5376 = vld [vmem:[%s17 + $0x4] sm:$0xf]
  %v5377 = vld [vmem:[%s17 + $0x8] sm:$0xf]
  %v5378 = vld [vmem:[%s17 + $0xc] sm:$0xf]
  %v5379 = vpack.c.bf16 %v5360, %v5359
  %v5380 = vpack.c.bf16 %v5362, %v5361
  %v5381 = vpack.c.bf16 %v5364, %v5363
  %v5382 = vpack.c.bf16 %v5366, %v5365
  %v5383 = vpack.c.bf16 %v5368, %v5367
  %v5384 = vpack.c.bf16 %v5370, %v5369
  %v5385 = vpack.c.bf16 %v5372, %v5371
  %v5386 = vpack.c.bf16 %v5374, %v5373
  %v5391 = vunpack.c.l.b16 %v5375
  %v5392 = vunpack.c.l.b16 %v5376
  %v5393 = vunpack.c.l.b16 %v5377
  %v5394 = vunpack.c.l.b16 %v5378
  %v5395 = vpack.c.b16 %v5392, %v5391
  %v5396 = vpack.c.b16 %v5394, %v5393
  %v5400 = vsel %vm3579, %v5379, 0
  %v5403 = vsel %vm3579, %v5380, 0
  %v5406 = vsel %vm3579, %v5381, 0
  %v5409 = vsel %vm3579, %v5382, 0
  %v5412 = vsel %vm3579, %v5383, 0
  %v5415 = vsel %vm3579, %v5384, 0
  %v5418 = vsel %vm3579, %v5385, 0
  %v5421 = vsel %vm3579, %v5386, 0
  %5423 = vmatprep.subr.bf16.mxu0 0
  %5424 = vmatpush1.bf16.msra.mxu0 %v5395
  %5425 = vmatprep.subr.bf16.mxu0 0
  %5426 = vmatpush1.bf16.msra.mxu0 %v5396
  %5427 = vmatprep.subr.bf16.mxu0 0
  %5428 = vmatpush1.bf16.msra.mxu0 0
  %5429 = vmatprep.subr.bf16.mxu0 0
  %5430 = vmatpush1.bf16.msra.mxu0 0
  %5431 = vmatprep.subr.bf16.mxu0 0
  %5432 = vmatpush1.bf16.msra.mxu0 0
  %5433 = vmatprep.subr.bf16.mxu0 0
  %5434 = vmatpush1.bf16.msra.mxu0 0
  %5435 = vmatprep.subr.bf16.mxu0 0
  %5436 = vmatpush1.bf16.msra.mxu0 0
  %5437 = vmatprep.subr.bf16.mxu0 0
  %5438 = vmatpush1.bf16.msra.mxu0 0
  %5439 = vmatprep.subr.bf16.mxu0 0
  %5440 = vmatpush1.bf16.msra.mxu0 0
  %5441 = vmatprep.subr.bf16.mxu0 0
  %5442 = vmatpush1.bf16.msra.mxu0 0
  %5443 = vmatprep.subr.bf16.mxu0 0
  %5444 = vmatpush1.bf16.msra.mxu0 0
  %5445 = vmatprep.subr.bf16.mxu0 0
  %5446 = vmatpush1.bf16.msra.mxu0 0
  %5447 = vmatprep.subr.bf16.mxu0 0
  %5448 = vmatpush1.bf16.msra.mxu0 0
  %5449 = vmatprep.subr.bf16.mxu0 0
  %5450 = vmatpush1.bf16.msra.mxu0 0
  %5451 = vmatprep.subr.bf16.mxu0 0
  %5452 = vmatpush1.bf16.msra.mxu0 0
  %5453 = vmatprep.subr.bf16.mxu0 0
  %5454 = vmatpush1.bf16.msra.mxu0 0
  %5455 = vmatprep.mubr.bf16.mxu0 0
  %5456 = vmatmul.mubr.bf16.gmra.mrb[0].mxu0 %v5400
  %v5457 = vpop.f32.mrb[0].mxu0
  %v5458 = vadd.f32 0.0, %v5457
  %v5459 = vpop.f32.mrb[0].mxu0
  %v5460 = vpop.f32.mrb[0].mxu0
  %v5461 = vadd.f32 0.0, %v5460
  %v5462 = vpop.f32.mrb[0].mxu0
  %5463 = vmatprep.mubr.bf16.mxu0 0
  %5464 = vmatmul.mubr.bf16.gmra.mrb[0].mxu0 %v5403
  %v5465 = vpop.f32.mrb[0].mxu0
  %v5466 = vadd.f32 0.0, %v5465
  %v5467 = vpop.f32.mrb[0].mxu0
  %v5468 = vpop.f32.mrb[0].mxu0
  %v5469 = vadd.f32 0.0, %v5468
  %v5470 = vpop.f32.mrb[0].mxu0
  %5471 = vmatprep.mubr.bf16.mxu0 0
  %5472 = vmatmul.mubr.bf16.gmra.mrb[0].mxu0 %v5406
  %v5473 = vpop.f32.mrb[0].mxu0
  %v5474 = vadd.f32 0.0, %v5473
  %v5475 = vpop.f32.mrb[0].mxu0
  %v5476 = vpop.f32.mrb[0].mxu0
  %v5477 = vadd.f32 0.0, %v5476
  %v5478 = vpop.f32.mrb[0].mxu0
  %5479 = vmatprep.mubr.bf16.mxu0 0
  %5480 = vmatmul.mubr.bf16.gmra.mrb[0].mxu0 %v5409
  %v5481 = vpop.f32.mrb[0].mxu0
  %v5482 = vadd.f32 0.0, %v5481
  %v5483 = vpop.f32.mrb[0].mxu0
  %v5484 = vpop.f32.mrb[0].mxu0
  %v5485 = vadd.f32 0.0, %v5484
  %v5486 = vpop.f32.mrb[0].mxu0
  %5487 = vmatprep.mubr.bf16.mxu0 0
  %5488 = vmatmul.mubr.bf16.gmra.mrb[0].mxu0 %v5412
  %v5489 = vpop.f32.mrb[0].mxu0
  %v5490 = vadd.f32 0.0, %v5489
  %v5491 = vpop.f32.mrb[0].mxu0
  %v5492 = vpop.f32.mrb[0].mxu0
  %v5493 = vadd.f32 0.0, %v5492
  %v5494 = vpop.f32.mrb[0].mxu0
  %5495 = vmatprep.mubr.bf16.mxu0 0
  %5496 = vmatmul.mubr.bf16.gmra.mrb[0].mxu0 %v5415
  %v5497 = vpop.f32.mrb[0].mxu0
  %v5498 = vadd.f32 0.0, %v5497
  %v5499 = vpop.f32.mrb[0].mxu0
  %v5500 = vpop.f32.mrb[0].mxu0
  %v5501 = vadd.f32 0.0, %v5500
  %v5502 = vpop.f32.mrb[0].mxu0
  %5503 = vmatprep.mubr.bf16.mxu0 0
  %5504 = vmatmul.mubr.bf16.gmra.mrb[0].mxu0 %v5418
  %v5505 = vpop.f32.mrb[0].mxu0
  %v5506 = vadd.f32 0.0, %v5505
  %v5507 = vpop.f32.mrb[0].mxu0
  %v5508 = vpop.f32.mrb[0].mxu0
  %v5509 = vadd.f32 0.0, %v5508
  %v5510 = vpop.f32.mrb[0].mxu0
  %5511 = vmatprep.mubr.bf16.mxu0 0
  %5512 = vmatmul.mubr.bf16.gmra.mrb[0].mxu0 %v5421
  %v5513 = vpop.f32.mrb[0].mxu0
  %v5514 = vadd.f32 0.0, %v5513
  %v5515 = vpop.f32.mrb[0].mxu0
  %v5516 = vpop.f32.mrb[0].mxu0
  %v5517 = vadd.f32 0.0, %v5516
  %v5518 = vpop.f32.mrb[0].mxu0
  %5519 = vdwg.mxu0
  %5528 = vrot.lane.b32.xlu0 %v5351, 96
  %v5529 = vpop.permute.xlu0 %5528
  %5530 = vrot.lane.b32.xlu0 %v5352, 96
  %v5531 = vpop.permute.xlu0 %5530
  %5532 = vrot.lane.b32.xlu0 %v5353, 96
  %v5533 = vpop.permute.xlu0 %5532
  %5534 = vrot.lane.b32.xlu0 %v5354, 96
  %v5535 = vpop.permute.xlu0 %5534
  %5536 = vrot.lane.b32.xlu0 %v5355, 96
  %v5537 = vpop.permute.xlu0 %5536
  %5538 = vrot.lane.b32.xlu0 %v5356, 96
  %v5539 = vpop.permute.xlu0 %5538
  %5540 = vrot.lane.b32.xlu0 %v5357, 96
  %v5541 = vpop.permute.xlu0 %5540
  %5542 = vrot.lane.b32.xlu0 %v5358, 96
  %v5543 = vpop.permute.xlu0 %5542
  %v5548 = vunpack.c.l.b16 %v5347
  %v5549 = vunpack.c.l.b16 %v5348
  %v5550 = vunpack.c.l.b16 %v5349
  %v5551 = vunpack.c.l.b16 %v5350
  %v5552 = vpack.c.b16 %v5549, %v5548
  %v5553 = vpack.c.b16 %v5551, %v5550
  %v5557 = vsel %vm3579, %v5529, 0
  %v5560 = vsel %vm3579, %v5531, 0
  %v5563 = vsel %vm3579, %v5533, 0
  %v5566 = vsel %vm3579, %v5535, 0
  %v5569 = vsel %vm3579, %v5537, 0
  %v5572 = vsel %vm3579, %v5539, 0
  %v5575 = vsel %vm3579, %v5541, 0
  %v5578 = vsel %vm3579, %v5543, 0
  %5580 = vmatprep.subr.bf16.mxu0 0
  %5581 = vmatpush1.bf16.msra.mxu0 %v5552
  %5582 = vmatprep.subr.bf16.mxu0 0
  %5583 = vmatpush1.bf16.msra.mxu0 %v5553
  %5584 = vmatprep.subr.bf16.mxu0 0
  %5585 = vmatpush1.bf16.msra.mxu0 0
  %5586 = vmatprep.subr.bf16.mxu0 0
  %5587 = vmatpush1.bf16.msra.mxu0 0
  %5588 = vmatprep.subr.bf16.mxu0 0
  %5589 = vmatpush1.bf16.msra.mxu0 0
  %5590 = vmatprep.subr.bf16.mxu0 0
  %5591 = vmatpush1.bf16.msra.mxu0 0
  %5592 = vmatprep.subr.bf16.mxu0 0
  %5593 = vmatpush1.bf16.msra.mxu0 0
  %5594 = vmatprep.subr.bf16.mxu0 0
  %5595 = vmatpush1.bf16.msra.mxu0 0
  %5596 = vmatprep.subr.bf16.mxu0 0
  %5597 = vmatpush1.bf16.msra.mxu0 0
  %5598 = vmatprep.subr.bf16.mxu0 0
  %5599 = vmatpush1.bf16.msra.mxu0 0
  %5600 = vmatprep.subr.bf16.mxu0 0
  %5601 = vmatpush1.bf16.msra.mxu0 0
  %5602 = vmatprep.subr.bf16.mxu0 0
  %5603 = vmatpush1.bf16.msra.mxu0 0
  %5604 = vmatprep.subr.bf16.mxu0 0
  %5605 = vmatpush1.bf16.msra.mxu0 0
  %5606 = vmatprep.subr.bf16.mxu0 0
  %5607 = vmatpush1.bf16.msra.mxu0 0
  %5608 = vmatprep.subr.bf16.mxu0 0
  %5609 = vmatpush1.bf16.msra.mxu0 0
  %5610 = vmatprep.subr.bf16.mxu0 0
  %5611 = vmatpush1.bf16.msra.mxu0 0
  %5612 = vmatprep.mubr.bf16.mxu0 0
  %5613 = vmatmul.mubr.bf16.gmra.mrb[0].mxu0 %v5557
  %v5614 = vpop.f32.mrb[0].mxu0
  %v5615 = vadd.f32 %v5458, %v5614
  %v5616 = vpop.f32.mrb[0].mxu0
  %v5617 = vpop.f32.mrb[0].mxu0
  %v5618 = vadd.f32 %v5461, %v5617
  %v5619 = vpop.f32.mrb[0].mxu0
  %5620 = vmatprep.mubr.bf16.mxu0 0
  %5621 = vmatmul.mubr.bf16.gmra.mrb[0].mxu0 %v5560
  %v5622 = vpop.f32.mrb[0].mxu0
  %v5623 = vadd.f32 %v5466, %v5622
  %v5624 = vpop.f32.mrb[0].mxu0
  %v5625 = vpop.f32.mrb[0].mxu0
  %v5626 = vadd.f32 %v5469, %v5625
  %v5627 = vpop.f32.mrb[0].mxu0
  %5628 = vmatprep.mubr.bf16.mxu0 0
  %5629 = vmatmul.mubr.bf16.gmra.mrb[0].mxu0 %v5563
  %v5630 = vpop.f32.mrb[0].mxu0
  %v5631 = vadd.f32 %v5474, %v5630
  %v5632 = vpop.f32.mrb[0].mxu0
  %v5633 = vpop.f32.mrb[0].mxu0
  %v5634 = vadd.f32 %v5477, %v5633
  %v5635 = vpop.f32.mrb[0].mxu0
  %5636 = vmatprep.mubr.bf16.mxu0 0
  %5637 = vmatmul.mubr.bf16.gmra.mrb[0].mxu0 %v5566
  %v5638 = vpop.f32.mrb[0].mxu0
  %v5639 = vadd.f32 %v5482, %v5638
  %v5640 = vpop.f32.mrb[0].mxu0
  %v5641 = vpop.f32.mrb[0].mxu0
  %v5642 = vadd.f32 %v5485, %v5641
  %v5643 = vpop.f32.mrb[0].mxu0
  %5644 = vmatprep.mubr.bf16.mxu0 0
  %5645 = vmatmul.mubr.bf16.gmra.mrb[0].mxu0 %v5569
  %v5646 = vpop.f32.mrb[0].mxu0
  %v5647 = vadd.f32 %v5490, %v5646
  %v5648 = vpop.f32.mrb[0].mxu0
  %v5649 = vpop.f32.mrb[0].mxu0
  %v5650 = vadd.f32 %v5493, %v5649
  %v5651 = vpop.f32.mrb[0].mxu0
  %5652 = vmatprep.mubr.bf16.mxu0 0
  %5653 = vmatmul.mubr.bf16.gmra.mrb[0].mxu0 %v5572
  %v5654 = vpop.f32.mrb[0].mxu0
  %v5655 = vadd.f32 %v5498, %v5654
  %v5656 = vpop.f32.mrb[0].mxu0
  %v5657 = vpop.f32.mrb[0].mxu0
  %v5658 = vadd.f32 %v5501, %v5657
  %v5659 = vpop.f32.mrb[0].mxu0
  %5660 = vmatprep.mubr.bf16.mxu0 0
  %5661 = vmatmul.mubr.bf16.gmra.mrb[0].mxu0 %v5575
  %v5662 = vpop.f32.mrb[0].mxu0
  %v5663 = vadd.f32 %v5506, %v5662
  %v5664 = vpop.f32.mrb[0].mxu0
  %v5665 = vpop.f32.mrb[0].mxu0
  %v5666 = vadd.f32 %v5509, %v5665
  %v5667 = vpop.f32.mrb[0].mxu0
  %5668 = vmatprep.mubr.bf16.mxu0 0
  %5669 = vmatmul.mubr.bf16.gmra.mrb[0].mxu0 %v5578
  %v5670 = vpop.f32.mrb[0].mxu0
  %v5671 = vadd.f32 %v5514, %v5670
  %v5672 = vpop.f32.mrb[0].mxu0
  %v5673 = vpop.f32.mrb[0].mxu0
  %v5674 = vadd.f32 %v5517, %v5673
  %v5675 = vpop.f32.mrb[0].mxu0
  %5676 = vdwg.mxu0
  %v5677 = vld [vmem:[%s18] sm:$0x1]
  %v5679 = vlaneseq
  %v5680 = vshrl.u32 %v5679, 7
  %v5681 = vsub.s32 0, %v5680
  %v5682 = vrot.slane %v5677, %v5681
  %v5684 = vadd.f32 %v5615, %v5682
  %v5685 = vadd.f32 %v5618, %v5682
  %v5686 = vadd.f32 %v5623, %v5682
  %v5687 = vadd.f32 %v5626, %v5682
  %v5688 = vadd.f32 %v5631, %v5682
  %v5689 = vadd.f32 %v5634, %v5682
  %v5690 = vadd.f32 %v5639, %v5682
  %v5691 = vadd.f32 %v5642, %v5682
  %v5692 = vadd.f32 %v5647, %v5682
  %v5693 = vadd.f32 %v5650, %v5682
  %v5694 = vadd.f32 %v5655, %v5682
  %v5695 = vadd.f32 %v5658, %v5682
  %v5696 = vadd.f32 %v5663, %v5682
  %v5697 = vadd.f32 %v5666, %v5682
  %v5698 = vadd.f32 %v5671, %v5682
  %v5699 = vadd.f32 %v5674, %v5682
  %v5700 = vadd.f32 %v3371, %v5684
  %v5701 = vadd.f32 %v3372, %v5685
  %v5702 = vadd.f32 %v3373, %v5686
  %v5703 = vadd.f32 %v3374, %v5687
  %v5704 = vadd.f32 %v3375, %v5688
  %v5705 = vadd.f32 %v3376, %v5689
  %v5706 = vadd.f32 %v3377, %v5690
  %v5707 = vadd.f32 %v3378, %v5691
  %v5708 = vadd.f32 %v3379, %v5692
  %v5709 = vadd.f32 %v3380, %v5693
  %v5710 = vadd.f32 %v3381, %v5694
  %v5711 = vadd.f32 %v3382, %v5695
  %v5712 = vadd.f32 %v3383, %v5696
  %v5713 = vadd.f32 %v3384, %v5697
  %v5714 = vadd.f32 %v3385, %v5698
  %v5715 = vadd.f32 %v3386, %v5699
  %v5716 = vld [vmem:[%s19] sm:$0x1]
  %v5717 = vld [vmem:[%s20] sm:$0x1]
  %v5718 = vsel %vm87, %v5700, 0.0
  %5719 = vadd.xlane.f32.xlu0 %v5718
  %v5720 = vpop.xlane.xlu0 %5719
  %v5721 = vsel %vm87, %v5701, 0.0
  %5722 = vadd.xlane.f32.xlu0 %v5721
  %v5723 = vpop.xlane.xlu0 %5722
  %v5724 = vsel %vm87, %v5702, 0.0
  %5725 = vadd.xlane.f32.xlu0 %v5724
  %v5726 = vpop.xlane.xlu0 %5725
  %v5727 = vsel %vm87, %v5703, 0.0
  %5728 = vadd.xlane.f32.xlu0 %v5727
  %v5729 = vpop.xlane.xlu0 %5728
  %v5730 = vsel %vm87, %v5704, 0.0
  %5731 = vadd.xlane.f32.xlu0 %v5730
  %v5732 = vpop.xlane.xlu0 %5731
  %v5733 = vsel %vm87, %v5705, 0.0
  %5734 = vadd.xlane.f32.xlu0 %v5733
  %v5735 = vpop.xlane.xlu0 %5734
  %v5736 = vsel %vm87, %v5706, 0.0
  %5737 = vadd.xlane.f32.xlu0 %v5736
  %v5738 = vpop.xlane.xlu0 %5737
  %v5739 = vsel %vm87, %v5707, 0.0
  %5740 = vadd.xlane.f32.xlu0 %v5739
  %v5741 = vpop.xlane.xlu0 %5740
  %v5742 = vsel %vm87, %v5708, 0.0
  %5743 = vadd.xlane.f32.xlu0 %v5742
  %v5744 = vpop.xlane.xlu0 %5743
  %v5745 = vsel %vm87, %v5709, 0.0
  %5746 = vadd.xlane.f32.xlu0 %v5745
  %v5747 = vpop.xlane.xlu0 %5746
  %v5748 = vsel %vm87, %v5710, 0.0
  %5749 = vadd.xlane.f32.xlu0 %v5748
  %v5750 = vpop.xlane.xlu0 %5749
  %v5751 = vsel %vm87, %v5711, 0.0
  %5752 = vadd.xlane.f32.xlu0 %v5751
  %v5753 = vpop.xlane.xlu0 %5752
  %v5754 = vsel %vm87, %v5712, 0.0
  %5755 = vadd.xlane.f32.xlu0 %v5754
  %v5756 = vpop.xlane.xlu0 %5755
  %v5757 = vsel %vm87, %v5713, 0.0
  %5758 = vadd.xlane.f32.xlu0 %v5757
  %v5759 = vpop.xlane.xlu0 %5758
  %v5760 = vsel %vm87, %v5714, 0.0
  %5761 = vadd.xlane.f32.xlu0 %v5760
  %v5762 = vpop.xlane.xlu0 %5761
  %v5763 = vsel %vm87, %v5715, 0.0
  %5764 = vadd.xlane.f32.xlu0 %v5763
  %v5765 = vpop.xlane.xlu0 %5764
  %v5766 = vmul.f32 %v5720, %v136
  %v5767 = vmul.f32 %v5723, %v136
  %v5768 = vmul.f32 %v5726, %v136
  %v5769 = vmul.f32 %v5729, %v136
  %v5770 = vmul.f32 %v5732, %v136
  %v5771 = vmul.f32 %v5735, %v136
  %v5772 = vmul.f32 %v5738, %v136
  %v5773 = vmul.f32 %v5741, %v136
  %v5774 = vmul.f32 %v5744, %v136
  %v5775 = vmul.f32 %v5747, %v136
  %v5776 = vmul.f32 %v5750, %v136
  %v5777 = vmul.f32 %v5753, %v136
  %v5778 = vmul.f32 %v5756, %v136
  %v5779 = vmul.f32 %v5759, %v136
  %v5780 = vmul.f32 %v5762, %v136
  %v5781 = vmul.f32 %v5765, %v136
  %v5782 = vsub.f32 %v5700, %v5766
  %v5783 = vsub.f32 %v5701, %v5767
  %v5784 = vsub.f32 %v5702, %v5768
  %v5785 = vsub.f32 %v5703, %v5769
  %v5786 = vsub.f32 %v5704, %v5770
  %v5787 = vsub.f32 %v5705, %v5771
  %v5788 = vsub.f32 %v5706, %v5772
  %v5789 = vsub.f32 %v5707, %v5773
  %v5790 = vsub.f32 %v5708, %v5774
  %v5791 = vsub.f32 %v5709, %v5775
  %v5792 = vsub.f32 %v5710, %v5776
  %v5793 = vsub.f32 %v5711, %v5777
  %v5794 = vsub.f32 %v5712, %v5778
  %v5795 = vsub.f32 %v5713, %v5779
  %v5796 = vsub.f32 %v5714, %v5780
  %v5797 = vsub.f32 %v5715, %v5781
  %v5798 = vmul.f32 %v5782, %v5782
  %v5799 = vmul.f32 %v5783, %v5783
  %v5800 = vmul.f32 %v5784, %v5784
  %v5801 = vmul.f32 %v5785, %v5785
  %v5802 = vmul.f32 %v5786, %v5786
  %v5803 = vmul.f32 %v5787, %v5787
  %v5804 = vmul.f32 %v5788, %v5788
  %v5805 = vmul.f32 %v5789, %v5789
  %v5806 = vmul.f32 %v5790, %v5790
  %v5807 = vmul.f32 %v5791, %v5791
  %v5808 = vmul.f32 %v5792, %v5792
  %v5809 = vmul.f32 %v5793, %v5793
  %v5810 = vmul.f32 %v5794, %v5794
  %v5811 = vmul.f32 %v5795, %v5795
  %v5812 = vmul.f32 %v5796, %v5796
  %v5813 = vmul.f32 %v5797, %v5797
  %v5814 = vsel %vm87, %v5798, 0.0
  %5815 = vadd.xlane.f32.xlu0 %v5814
  %v5816 = vpop.xlane.xlu0 %5815
  %v5817 = vsel %vm87, %v5799, 0.0
  %5818 = vadd.xlane.f32.xlu0 %v5817
  %v5819 = vpop.xlane.xlu0 %5818
  %v5820 = vsel %vm87, %v5800, 0.0
  %5821 = vadd.xlane.f32.xlu0 %v5820
  %v5822 = vpop.xlane.xlu0 %5821
  %v5823 = vsel %vm87, %v5801, 0.0
  %5824 = vadd.xlane.f32.xlu0 %v5823
  %v5825 = vpop.xlane.xlu0 %5824
  %v5826 = vsel %vm87, %v5802, 0.0
  %5827 = vadd.xlane.f32.xlu0 %v5826
  %v5828 = vpop.xlane.xlu0 %5827
  %v5829 = vsel %vm87, %v5803, 0.0
  %5830 = vadd.xlane.f32.xlu0 %v5829
  %v5831 = vpop.xlane.xlu0 %5830
  %v5832 = vsel %vm87, %v5804, 0.0
  %5833 = vadd.xlane.f32.xlu0 %v5832
  %v5834 = vpop.xlane.xlu0 %5833
  %v5835 = vsel %vm87, %v5805, 0.0
  %5836 = vadd.xlane.f32.xlu0 %v5835
  %v5837 = vpop.xlane.xlu0 %5836
  %v5838 = vsel %vm87, %v5806, 0.0
  %5839 = vadd.xlane.f32.xlu0 %v5838
  %v5840 = vpop.xlane.xlu0 %5839
  %v5841 = vsel %vm87, %v5807, 0.0
  %5842 = vadd.xlane.f32.xlu0 %v5841
  %v5843 = vpop.xlane.xlu0 %5842
  %v5844 = vsel %vm87, %v5808, 0.0
  %5845 = vadd.xlane.f32.xlu0 %v5844
  %v5846 = vpop.xlane.xlu0 %5845
  %v5847 = vsel %vm87, %v5809, 0.0
  %5848 = vadd.xlane.f32.xlu0 %v5847
  %v5849 = vpop.xlane.xlu0 %5848
  %v5850 = vsel %vm87, %v5810, 0.0
  %5851 = vadd.xlane.f32.xlu0 %v5850
  %v5852 = vpop.xlane.xlu0 %5851
  %v5853 = vsel %vm87, %v5811, 0.0
  %5854 = vadd.xlane.f32.xlu0 %v5853
  %v5855 = vpop.xlane.xlu0 %5854
  %v5856 = vsel %vm87, %v5812, 0.0
  %5857 = vadd.xlane.f32.xlu0 %v5856
  %v5858 = vpop.xlane.xlu0 %5857
  %v5859 = vsel %vm87, %v5813, 0.0
  %5860 = vadd.xlane.f32.xlu0 %v5859
  %v5861 = vpop.xlane.xlu0 %5860
  %v5862 = vmul.f32 %v5816, %v136
  %v5863 = vmul.f32 %v5819, %v136
  %v5864 = vmul.f32 %v5822, %v136
  %v5865 = vmul.f32 %v5825, %v136
  %v5866 = vmul.f32 %v5828, %v136
  %v5867 = vmul.f32 %v5831, %v136
  %v5868 = vmul.f32 %v5834, %v136
  %v5869 = vmul.f32 %v5837, %v136
  %v5870 = vmul.f32 %v5840, %v136
  %v5871 = vmul.f32 %v5843, %v136
  %v5872 = vmul.f32 %v5846, %v136
  %v5873 = vmul.f32 %v5849, %v136
  %v5874 = vmul.f32 %v5852, %v136
  %v5875 = vmul.f32 %v5855, %v136
  %v5876 = vmul.f32 %v5858, %v136
  %v5877 = vmul.f32 %v5861, %v136
  %v5878 = vadd.f32 %v5862, 1e-05
  %v5879 = vadd.f32 %v5863, 1e-05
  %v5880 = vadd.f32 %v5864, 1e-05
  %v5881 = vadd.f32 %v5865, 1e-05
  %v5882 = vadd.f32 %v5866, 1e-05
  %v5883 = vadd.f32 %v5867, 1e-05
  %v5884 = vadd.f32 %v5868, 1e-05
  %v5885 = vadd.f32 %v5869, 1e-05
  %v5886 = vadd.f32 %v5870, 1e-05
  %v5887 = vadd.f32 %v5871, 1e-05
  %v5888 = vadd.f32 %v5872, 1e-05
  %v5889 = vadd.f32 %v5873, 1e-05
  %v5890 = vadd.f32 %v5874, 1e-05
  %v5891 = vadd.f32 %v5875, 1e-05
  %v5892 = vadd.f32 %v5876, 1e-05
  %v5893 = vadd.f32 %v5877, 1e-05
  %v5894 = vrsqrt.pop %v5878
  %v5895 = vrsqrt.pop %v5879
  %v5896 = vrsqrt.pop %v5880
  %v5897 = vrsqrt.pop %v5881
  %v5898 = vrsqrt.pop %v5882
  %v5899 = vrsqrt.pop %v5883
  %v5900 = vrsqrt.pop %v5884
  %v5901 = vrsqrt.pop %v5885
  %v5902 = vrsqrt.pop %v5886
  %v5903 = vrsqrt.pop %v5887
  %v5904 = vrsqrt.pop %v5888
  %v5905 = vrsqrt.pop %v5889
  %v5906 = vrsqrt.pop %v5890
  %v5907 = vrsqrt.pop %v5891
  %v5908 = vrsqrt.pop %v5892
  %v5909 = vrsqrt.pop %v5893
  %v5910 = vmul.f32 %v5782, %v5894
  %v5911 = vmul.f32 %v5783, %v5895
  %v5912 = vmul.f32 %v5784, %v5896
  %v5913 = vmul.f32 %v5785, %v5897
  %v5914 = vmul.f32 %v5786, %v5898
  %v5915 = vmul.f32 %v5787, %v5899
  %v5916 = vmul.f32 %v5788, %v5900
  %v5917 = vmul.f32 %v5789, %v5901
  %v5918 = vmul.f32 %v5790, %v5902
  %v5919 = vmul.f32 %v5791, %v5903
  %v5920 = vmul.f32 %v5792, %v5904
  %v5921 = vmul.f32 %v5793, %v5905
  %v5922 = vmul.f32 %v5794, %v5906
  %v5923 = vmul.f32 %v5795, %v5907
  %v5924 = vmul.f32 %v5796, %v5908
  %v5925 = vmul.f32 %v5797, %v5909
  %v5927 = vlaneseq
  %v5928 = vshrl.u32 %v5927, 7
  %v5929 = vsub.s32 0, %v5928
  %v5930 = vrot.slane %v5716, %v5929
  %v5932 = vmul.f32 %v5910, %v5930
  %v5933 = vmul.f32 %v5911, %v5930
  %v5934 = vmul.f32 %v5912, %v5930
  %v5935 = vmul.f32 %v5913, %v5930
  %v5936 = vmul.f32 %v5914, %v5930
  %v5937 = vmul.f32 %v5915, %v5930
  %v5938 = vmul.f32 %v5916, %v5930
  %v5939 = vmul.f32 %v5917, %v5930
  %v5940 = vmul.f32 %v5918, %v5930
  %v5941 = vmul.f32 %v5919, %v5930
  %v5942 = vmul.f32 %v5920, %v5930
  %v5943 = vmul.f32 %v5921, %v5930
  %v5944 = vmul.f32 %v5922, %v5930
  %v5945 = vmul.f32 %v5923, %v5930
  %v5946 = vmul.f32 %v5924, %v5930
  %v5947 = vmul.f32 %v5925, %v5930
  %v5949 = vlaneseq
  %v5950 = vshrl.u32 %v5949, 7
  %v5951 = vsub.s32 0, %v5950
  %v5952 = vrot.slane %v5717, %v5951
  %v5954 = vadd.f32 %v5932, %v5952
  %v5955 = vadd.f32 %v5933, %v5952
  %v5956 = vadd.f32 %v5934, %v5952
  %v5957 = vadd.f32 %v5935, %v5952
  %v5958 = vadd.f32 %v5936, %v5952
  %v5959 = vadd.f32 %v5937, %v5952
  %v5960 = vadd.f32 %v5938, %v5952
  %v5961 = vadd.f32 %v5939, %v5952
  %v5962 = vadd.f32 %v5940, %v5952
  %v5963 = vadd.f32 %v5941, %v5952
  %v5964 = vadd.f32 %v5942, %v5952
  %v5965 = vadd.f32 %v5943, %v5952
  %v5966 = vadd.f32 %v5944, %v5952
  %v5967 = vadd.f32 %v5945, %v5952
  %v5968 = vadd.f32 %v5946, %v5952
  %v5969 = vadd.f32 %v5947, %v5952
  %5970 = vst.msk [vmem:[%s21] sm:$0xff] %vm87, %v5954
  %5971 = vst.msk [vmem:[%s21 + $0x8] sm:$0xff] %vm87, %v5955
  %5972 = vst.msk [vmem:[%s21 + $0x10] sm:$0xff] %vm87, %v5956
  %5973 = vst.msk [vmem:[%s21 + $0x18] sm:$0xff] %vm87, %v5957
  %5974 = vst.msk [vmem:[%s21 + $0x20] sm:$0xff] %vm87, %v5958
  %5975 = vst.msk [vmem:[%s21 + $0x28] sm:$0xff] %vm87, %v5959
  %5976 = vst.msk [vmem:[%s21 + $0x30] sm:$0xff] %vm87, %v5960
  %5977 = vst.msk [vmem:[%s21 + $0x38] sm:$0xff] %vm87, %v5961
  %5978 = vst.msk [vmem:[%s21 + $0x40] sm:$0xff] %vm87, %v5962
  %5979 = vst.msk [vmem:[%s21 + $0x48] sm:$0xff] %vm87, %v5963
  %5980 = vst.msk [vmem:[%s21 + $0x50] sm:$0xff] %vm87, %v5964
  %5981 = vst.msk [vmem:[%s21 + $0x58] sm:$0xff] %vm87, %v5965
  %5982 = vst.msk [vmem:[%s21 + $0x60] sm:$0xff] %vm87, %v5966
  %5983 = vst.msk [vmem:[%s21 + $0x68] sm:$0xff] %vm87, %v5967
  %5984 = vst.msk [vmem:[%s21 + $0x70] sm:$0xff] %vm87, %v5968
  %5985 = vst.msk [vmem:[%s21 + $0x78] sm:$0xff] %vm87, %v5969
  // Predicated region
  $region86: #{aia_transformer_merge.17} parent=0 // pred_check
    _
  $region87: #{aia_transformer_merge.17} parent=0 // pred_check_branch
    %5987 = sbr.rel (0) target = $region89
  $region88: #{aia_transformer_merge.17} parent=0 // pred_region
    _
  $region89: #{aia_transformer_merge.17} parent=0 // pred_fallthru
    _
  // Predicated region
  $region90: #{aia_transformer_merge.17} parent=0 // pred_check
    _
  $region91: #{aia_transformer_merge.17} parent=0 // pred_check_branch
    %5989 = sbr.rel (0) target = $region93
  $region92: #{aia_transformer_merge.17} parent=0 // pred_region
    _
  $region93: #{aia_transformer_merge.17} parent=0 // pred_fallthru
    _

</llo_original>
